<compile_context>
chip_gen: v6e
topology: v6e:2x2x1
jax: 0.10.0
libtpu: 0.0.40
codegen_flags: <defaults>
</compile_context>

<pallas_src>
import jax
import jax.numpy as jnp
from jax.experimental import pallas as pl
from jax.experimental.pallas import tpu as pltpu

_VMEM_LIMIT = 32 * 1024 * 1024  # explicit scoped-VMEM budget, safe on v5e/v6e/v7x


# ----------------------------------------------------------------------------
# Pallas kernel: conv-as-GEMM, single K block:  out = relu(x @ w + b)
# ----------------------------------------------------------------------------
def _conv_gemm_kernel(x_ref, w_ref, b_ref, o_ref):
    y = jnp.dot(x_ref[...], w_ref[...], preferred_element_type=jnp.float32)
    o_ref[...] = jnp.maximum(y + b_ref[...], 0.0).astype(o_ref.dtype)


def _pick_tm(m, max_tile=512):
    """Row tile: divides m, multiple of 8, and gives >= 2 grid steps so both
    v7x TensorCores get work (costs ~0.35us extra on 1-TC v5e/v6e)."""
    for t in (512, 256, 128, 64, 32, 16, 8):
        if t <= max_tile and m % t == 0 and m // t >= 2:
            return t
    return m


def conv_gemm(x, w, b, *, out_dtype):
    """x: (M, K) bf16, w: (K, N) bf16, b: (1, N) f32 -> relu(x@w+b) as out_dtype."""
    m, k = x.shape
    _, n = w.shape
    tm = _pick_tm(m)
    return pl.pallas_call(
        _conv_gemm_kernel,
        out_shape=jax.ShapeDtypeStruct((m, n), out_dtype),
        grid_spec=pltpu.PrefetchScalarGridSpec(
            num_scalar_prefetch=0,
            grid=(m // tm,),
            in_specs=[
                pl.BlockSpec((tm, k), lambda i: (i, 0)),
                pl.BlockSpec((k, n), lambda i: (0, 0)),
                pl.BlockSpec((1, n), lambda i: (0, 0)),
            ],
            out_specs=pl.BlockSpec((tm, n), lambda i: (i, 0)),
        ),
        compiler_params=pltpu.CompilerParams(
            dimension_semantics=("parallel",),
            vmem_limit_bytes=_VMEM_LIMIT,
        ),
    )(x, w, b)


# ----------------------------------------------------------------------------
# Pallas kernel: fc1 with int8 weight (per-output-channel scale), bf16
# activations, f32 accumulation.  Grid = (N-split [parallel], K [arbitrary]).
# Epilogue applies scale + bias + ReLU.
# ----------------------------------------------------------------------------
def _fc1_kernel(x_ref, wq_ref, s_ref, b_ref, o_ref, acc_ref):
    k = pl.program_id(1)

    @pl.when(k == 0)
    def _():
        acc_ref[...] = jnp.zeros_like(acc_ref)

    # int8 -> bf16 dequant-cast on the VPU (hides under the weight DMA),
    # bf16 x bf16 matmul on the MXU, f32 accumulate.
    acc_ref[...] += jnp.dot(
        x_ref[...], wq_ref[...].astype(jnp.bfloat16),
        preferred_element_type=jnp.float32,
    )

    @pl.when(k == pl.num_programs(1) - 1)
    def _():
        y = acc_ref[...] * s_ref[...] + b_ref[...]
        o_ref[...] = jnp.maximum(y, 0.0).astype(o_ref.dtype)


def _pick_tk(k, target=8192):
    if k <= target:
        return k
    for t in (8192, 4096, 2048, 1024, 512, 256, 128):
        if t <= target and k % t == 0:
            return t
    return k  # full-K fallback: int8 weight keeps this well under the VMEM limit


def fc1_matmul(x, wq, scale, bias, *, n_split=2, tk_target=8192):
    """x: (B, K) bf16, wq: (K, 512) int8, scale/bias: (1, 512) f32 -> relu f32."""
    b_, k_ = x.shape
    _, n = wq.shape
    if n % n_split or (n // n_split) % 128:
        n_split = 1
    tn = n // n_split
    tk = _pick_tk(k_, tk_target)
    return pl.pallas_call(
        _fc1_kernel,
        out_shape=jax.ShapeDtypeStruct((b_, n), jnp.float32),
        grid_spec=pltpu.PrefetchScalarGridSpec(
            num_scalar_prefetch=0,
            grid=(n_split, k_ // tk),
            in_specs=[
                pl.BlockSpec((b_, tk), lambda j, kk: (0, kk)),
                pl.BlockSpec((tk, tn), lambda j, kk: (kk, j)),
                pl.BlockSpec((1, tn), lambda j, kk: (0, j)),
                pl.BlockSpec((1, tn), lambda j, kk: (0, j)),
            ],
            out_specs=pl.BlockSpec((b_, tn), lambda j, kk: (0, j)),
            scratch_shapes=[pltpu.VMEM((b_, tn), jnp.float32)],
        ),
        compiler_params=pltpu.CompilerParams(
            dimension_semantics=("parallel", "arbitrary"),
            vmem_limit_bytes=_VMEM_LIMIT,
        ),
    )(x, wq, scale, bias)


# ----------------------------------------------------------------------------
# im2col glue (pure layout transform, no FLOPs, no transposes)
# ----------------------------------------------------------------------------
def im2col(x_nhwc, k, s, p):
    """(B,H,W,C) -> patches (B*OH*OW, k*k*C) with feature order (kh, kw, c)."""
    bsz, h, w, c = x_nhwc.shape
    xp = jnp.pad(x_nhwc, ((0, 0), (p, p), (p, p), (0, 0)))
    oh = (h + 2 * p - k) // s + 1
    ow = (w + 2 * p - k) // s + 1
    slabs = [
        xp[:, kh:kh + oh * s:s, kw:kw + ow * s:s, :]
        for kh in range(k)
        for kw in range(k)
    ]
    patches = jnp.stack(slabs, axis=3)                 # (B, OH, OW, k*k, C)
    return patches.reshape(bsz * oh * ow, k * k * c), oh, ow


# ----------------------------------------------------------------------------
# One-time parameter re-layout / quantization (outside jit)
# ----------------------------------------------------------------------------
def prepare_params(params):
    # conv weights -> (kh*kw*Cin, Cout) matching im2col feature order, bf16
    w1 = (jnp.transpose(params["conv1_w"], (2, 3, 1, 0))
          .reshape(1 * 4 * 4, 32).astype(jnp.bfloat16))
    w2 = (jnp.transpose(params["conv2_w"], (2, 3, 1, 0))
          .reshape(32 * 4 * 4, 64).astype(jnp.bfloat16))

    # fc1: permute columns from PyTorch NCHW-flatten (c,h,w) to our NHWC-flatten
    # (h,w,c), lay out (K, N), then quantize int8 with per-output-channel scale.
    fc1 = params["fc1_w"].reshape(512, 64, 16, 16)
    fc1 = jnp.transpose(fc1, (2, 3, 1, 0)).reshape(16 * 16 * 64, 512)  # (K, N) f32
    scale = jnp.maximum(jnp.max(jnp.abs(fc1), axis=0, keepdims=True), 1e-30) / 127.0
    wq = jnp.clip(jnp.round(fc1 / scale), -127, 127).astype(jnp.int8)  # (K, N) int8

    # mu/logvar heads stay f32 (tiny, done in XLA): (512, 2L) weight, (1, 2L) bias
    wh = jnp.transpose(
        jnp.concatenate([params["fc_mu_w"], params["fc_logvar_w"]], axis=0)
    )
    bh = jnp.concatenate([params["fc_mu_b"], params["fc_logvar_b"]], axis=0)

    return {
        "w1": w1, "b1": params["conv1_b"].reshape(1, -1),
        "w2": w2, "b2": params["conv2_b"].reshape(1, -1),
        "wq": wq, "scale": scale, "bf": params["fc1_b"].reshape(1, -1),
        "wh": wh, "bh": bh.reshape(1, -1),
    }


# ----------------------------------------------------------------------------
# Encoder forward (jitted; consumes pre-laid-out params)
# ----------------------------------------------------------------------------
@jax.jit
def encoder2d_gray_forward(x_nchw, prep):
    bsz = x_nchw.shape[0]
    x = jnp.transpose(x_nchw, (0, 2, 3, 1)).astype(jnp.bfloat16)   # NHWC bf16

    # conv1: 1 -> 32, k=4, s=2, p=1 (64x64 -> 32x32).  K=16 GEMM, <1% MXU
    # depth and dispatch-bound at small batch -> plain XLA per review.
    p1, oh1, ow1 = im2col(x, 4, 2, 1)                              # (B*1024, 16)
    h1 = jnp.dot(p1, prep["w1"], preferred_element_type=jnp.float32)
    h1 = jnp.maximum(h1 + prep["b1"], 0.0).astype(jnp.bfloat16)
    h1 = h1.reshape(bsz, oh1, ow1, 32)

    # conv2: 32 -> 64 (32x32 -> 16x16), Pallas GEMM, bf16 in/out, f32 acc.
    p2, oh2, ow2 = im2col(h1, 4, 2, 1)                             # (B*256, 512)
    h2 = conv_gemm(p2, prep["w2"], prep["b2"], out_dtype=jnp.bfloat16)

    # NHWC flatten is a pure reshape (fc1 weight columns were pre-permuted).
    flat = h2.reshape(bsz, oh2 * ow2 * 64)                         # (B, 16384) bf16

    # fc1 (int8 weight, per-channel scale, f32 acc) + ReLU as a Pallas kernel,
    # N-split across both v7x TensorCores.
    f1 = fc1_matmul(flat, prep["wq"], prep["scale"], prep["bf"])   # (B, 512) f32

    # mu / logvar heads in XLA (tiny).
    heads = jnp.dot(f1, prep["wh"], preferred_element_type=jnp.float32) + prep["bh"]
    latent = heads.shape[1] // 2
    return heads[:, :latent], heads[:, latent:]


# ----------------------------------------------------------------------------
# Pure-JAX f32 reference (PyTorch semantics) for correctness check
# ----------------------------------------------------------------------------
def encoder_ref(x_nchw, params):
    def conv(x, w, b):
        y = jax.lax.conv_general_dilated(
            x, w, window_strides=(2, 2), padding=((1, 1), (1, 1)),
            dimension_numbers=("NCHW", "OIHW", "NCHW"))
        return jax.nn.relu(y + b[None, :, None, None])

    h = conv(x_nchw, params["conv1_w"], params["conv1_b"])
    h = conv(h, params["conv2_w"], params["conv2_b"])
    flat = h.reshape(h.shape[0], -1)
    f1 = jax.nn.relu(flat @ params["fc1_w"].T + params["fc1_b"])
    mu = f1 @ params["fc_mu_w"].T + params["fc_mu_b"]
    logvar = f1 @ params["fc_logvar_w"].T + params["fc_logvar_b"]
    return mu, logvar


def init_params(key, latent_dim):
    ks = jax.random.split(key, 10)
    s = 0.02
    return {
        "conv1_w": s * jax.random.normal(ks[0], (32, 1, 4, 4), jnp.float32),
        "conv1_b": s * jax.random.normal(ks[1], (32,), jnp.float32),
        "conv2_w": s * jax.random.normal(ks[2], (64, 32, 4, 4), jnp.float32),
        "conv2_b": s * jax.random.normal(ks[3], (64,), jnp.float32),
        "fc1_w": s * jax.random.normal(ks[4], (512, 64 * 16 * 16), jnp.float32),
        "fc1_b": s * jax.random.normal(ks[5], (512,), jnp.float32),
        "fc_mu_w": s * jax.random.normal(ks[6], (latent_dim, 512), jnp.float32),
        "fc_mu_b": s * jax.random.normal(ks[7], (latent_dim,), jnp.float32),
        "fc_logvar_w": s * jax.random.normal(ks[8], (latent_dim, 512), jnp.float32),
        "fc_logvar_b": s * jax.random.normal(ks[9], (latent_dim,), jnp.float32),
    }


if __name__ == "__main__":
    latent_dim = 32
    batch = 2
    key = jax.random.PRNGKey(0)
    kx, kp = jax.random.split(key)

    # fc1 expects 64*16*16 features => input spatial must be 64x64 (NCHW).
    x = jax.random.normal(kx, (batch, 1, 64, 64), jnp.float32)
    params = init_params(kp, latent_dim)

    # One-time weight re-layout / int8 quantization, outside the jitted forward.
    prep = prepare_params(params)
    jax.block_until_ready(prep)

    mu, logvar = encoder2d_gray_forward(x, prep)
    jax.block_until_ready((mu, logvar))

    assert mu.shape == (batch, latent_dim) and logvar.shape == (batch, latent_dim)

    # Loosened tolerance vs. f32 reference: conv path + fc1 activations are
    # bf16 and the fc1 weight is int8 (per-channel scale, f32 accumulation);
    # wiring errors would be orders of magnitude larger than these bounds.
    mu_r, logvar_r = encoder_ref(x, params)
    assert jnp.allclose(mu, mu_r, atol=1e-2, rtol=5e-2), float(
        jnp.max(jnp.abs(mu - mu_r)))
    assert jnp.allclose(logvar, logvar_r, atol=1e-2, rtol=5e-2), float(
        jnp.max(jnp.abs(logvar - logvar_r)))

    print("KERNEL_OK")
</pallas_src>

<mosaic_0001>
module attributes {stable_mosaic.version = 11 : i64} {
  func.func @_conv_gemm_kernel(%arg0: i32, %arg1: memref<256x512xbf16, #tpu.memory_space<vmem>>, %arg2: memref<512x64xbf16, #tpu.memory_space<vmem>>, %arg3: memref<1x64xf32, #tpu.memory_space<vmem>>, %arg4: memref<256x64xbf16, #tpu.memory_space<vmem>>) attributes {dimension_semantics = [#tpu.dimension_semantics<parallel>], iteration_bounds = array<i64: 2>, scalar_prefetch = 0 : i64, scratch_operands = 0 : i64, tpu.core_type = #tpu.core_type<tc>, window_params = [{transform_indices = @transform_0, window_bounds = array<i64: 256, 512>}, {pipeline_mode = #tpu.pipeline_mode<synchronous>, transform_indices = @transform_1, window_bounds = array<i64: 512, 64>}, {pipeline_mode = #tpu.pipeline_mode<synchronous>, transform_indices = @transform_2, window_bounds = array<i64: 1, 64>}, {transform_indices = @transform_3, window_bounds = array<i64: 256, 64>}]} {
    %c0 = arith.constant 0 : index
    %c0_0 = arith.constant 0 : index
    %0 = vector.load %arg1[%c0, %c0_0] : memref<256x512xbf16, #tpu.memory_space<vmem>>, vector<256x512xbf16>
    %c0_1 = arith.constant 0 : index
    %c0_2 = arith.constant 0 : index
    %1 = vector.load %arg2[%c0_1, %c0_2] : memref<512x64xbf16, #tpu.memory_space<vmem>>, vector<512x64xbf16>
    %cst = arith.constant dense<0.000000e+00> : vector<256x64xf32>
    %2 = tpu.matmul %0, %1, %cst {dimension_numbers = #tpu.dot_dimension_numbers<[1], [0], [0], [1], [0, 0, 1, 1], [], []>} : vector<256x512xbf16>, vector<512x64xbf16>, vector<256x64xf32> -> vector<256x64xf32>
    %c0_3 = arith.constant 0 : index
    %c0_4 = arith.constant 0 : index
    %3 = vector.load %arg3[%c0_3, %c0_4] : memref<1x64xf32, #tpu.memory_space<vmem>>, vector<1x64xf32>
    %4 = vector.broadcast %3 : vector<1x64xf32> to vector<256x64xf32>
    %5 = arith.addf %2, %4 : vector<256x64xf32>
    %cst_5 = arith.constant 0.000000e+00 : f32
    %6 = vector.broadcast %cst_5 : f32 to vector<256x64xf32>
    %7 = arith.maximumf %5, %6 : vector<256x64xf32>
    %8 = arith.truncf %7 : vector<256x64xf32> to vector<256x64xbf16>
    %c0_6 = arith.constant 0 : index
    %c0_7 = arith.constant 0 : index
    %9 = vector.load %arg4[%c0_6, %c0_7] : memref<256x64xbf16, #tpu.memory_space<vmem>>, vector<256x64xbf16>
    tpu.vector_store %arg4[%c0_6, %c0_7], %8 {strides = array<i32>} : memref<256x64xbf16, #tpu.memory_space<vmem>>, vector<256x64xbf16>,
    return
  }
  func.func @transform_0(%arg0: i32) -> (i32, i32) {
    %c0_i32 = arith.constant 0 : i32
    %c0_i32_0 = arith.constant 0 : i32
    return %arg0, %c0_i32 : i32, i32
  }
  func.func @transform_1(%arg0: i32) -> (i32, i32) {
    %c0_i32 = arith.constant 0 : i32
    %c0_i32_0 = arith.constant 0 : i32
    %c0_i32_1 = arith.constant 0 : i32
    return %c0_i32, %c0_i32_0 : i32, i32
  }
  func.func @transform_2(%arg0: i32) -> (i32, i32) {
    %c0_i32 = arith.constant 0 : i32
    %c0_i32_0 = arith.constant 0 : i32
    %c0_i32_1 = arith.constant 0 : i32
    return %c0_i32, %c0_i32_0 : i32, i32
  }
  func.func @transform_3(%arg0: i32) -> (i32, i32) {
    %c0_i32 = arith.constant 0 : i32
    %c0_i32_0 = arith.constant 0 : i32
    return %arg0, %c0_i32 : i32, i32
  }
}

module attributes {stable_mosaic.version = 11 : i64} {
  func.func @_fc1_kernel(%arg0: i32, %arg1: i32, %arg2: memref<2x8192xbf16, #tpu.memory_space<vmem>>, %arg3: memref<8192x256xi8, #tpu.memory_space<vmem>>, %arg4: memref<1x256xf32, #tpu.memory_space<vmem>>, %arg5: memref<1x256xf32, #tpu.memory_space<vmem>>, %arg6: memref<2x256xf32, #tpu.memory_space<vmem>>, %arg7: memref<2x256xf32, #tpu.memory_space<vmem>>) attributes {dimension_semantics = [#tpu.dimension_semantics<parallel>, #tpu.dimension_semantics<arbitrary>], iteration_bounds = array<i64: 2, 2>, scalar_prefetch = 0 : i64, scratch_operands = 1 : i64, tpu.core_type = #tpu.core_type<tc>, window_params = [{transform_indices = @transform_0, window_bounds = array<i64: 2, 8192>}, {transform_indices = @transform_1, window_bounds = array<i64: 8192, 256>}, {transform_indices = @transform_2, window_bounds = array<i64: 1, 256>}, {transform_indices = @transform_3, window_bounds = array<i64: 1, 256>}, {transform_indices = @transform_4, window_bounds = array<i64: 2, 256>}]} {
    %c0_i32 = arith.constant 0 : i32
    %0 = arith.cmpi eq, %arg1, %c0_i32 : i32
    %1 = arith.extui %0 : i1 to i32
    %c0_i32_0 = arith.constant 0 : i32
    %2 = arith.cmpi ne, %1, %c0_i32_0 : i32
    scf.if %2 {
      %cst_9 = arith.constant 0.000000e+00 : f32
      %13 = vector.broadcast %cst_9 : f32 to vector<2x256xf32>
      %c0_10 = arith.constant 0 : index
      %c0_11 = arith.constant 0 : index
      %14 = vector.load %arg7[%c0_10, %c0_11] : memref<2x256xf32, #tpu.memory_space<vmem>>, vector<2x256xf32>
      tpu.vector_store %arg7[%c0_10, %c0_11], %13 {strides = array<i32>} : memref<2x256xf32, #tpu.memory_space<vmem>>, vector<2x256xf32>,
    } else {
    }
    %c0 = arith.constant 0 : index
    %c0_1 = arith.constant 0 : index
    %3 = vector.load %arg7[%c0, %c0_1] : memref<2x256xf32, #tpu.memory_space<vmem>>, vector<2x256xf32>
    %c0_2 = arith.constant 0 : index
    %c0_3 = arith.constant 0 : index
    %4 = vector.load %arg2[%c0_2, %c0_3] : memref<2x8192xbf16, #tpu.memory_space<vmem>>, vector<2x8192xbf16>
    %c0_4 = arith.constant 0 : index
    %c0_5 = arith.constant 0 : index
    %5 = vector.load %arg3[%c0_4, %c0_5] : memref<8192x256xi8, #tpu.memory_space<vmem>>, vector<8192x256xi8>
    %6 = arith.sitofp %5 : vector<8192x256xi8> to vector<8192x256xbf16>
    %cst = arith.constant dense<0.000000e+00> : vector<2x256xf32>
    %7 = tpu.matmul %4, %6, %cst {dimension_numbers = #tpu.dot_dimension_numbers<[1], [0], [0], [1], [0, 0, 1, 1], [], []>} : vector<2x8192xbf16>, vector<8192x256xbf16>, vector<2x256xf32> -> vector<2x256xf32>
    %8 = arith.addf %3, %7 : vector<2x256xf32>
    %c0_6 = arith.constant 0 : index
    %c0_7 = arith.constant 0 : index
    %9 = vector.load %arg7[%c0_6, %c0_7] : memref<2x256xf32, #tpu.memory_space<vmem>>, vector<2x256xf32>
    tpu.vector_store %arg7[%c0_6, %c0_7], %8 {strides = array<i32>} : memref<2x256xf32, #tpu.memory_space<vmem>>, vector<2x256xf32>,
    %c1_i32 = arith.constant 1 : i32
    %10 = arith.cmpi eq, %arg1, %c1_i32 : i32
    %11 = arith.extui %10 : i1 to i32
    %c0_i32_8 = arith.constant 0 : i32
    %12 = arith.cmpi ne, %11, %c0_i32_8 : i32
    scf.if %12 {
      %c0_9 = arith.constant 0 : index
      %c0_10 = arith.constant 0 : index
      %13 = vector.load %arg7[%c0_9, %c0_10] : memref<2x256xf32, #tpu.memory_space<vmem>>, vector<2x256xf32>
      %c0_11 = arith.constant 0 : index
      %c0_12 = arith.constant 0 : index
      %14 = vector.load %arg4[%c0_11, %c0_12] : memref<1x256xf32, #tpu.memory_space<vmem>>, vector<1x256xf32>
      %15 = vector.broadcast %14 : vector<1x256xf32> to vector<2x256xf32>
      %16 = arith.mulf %13, %15 : vector<2x256xf32>
      %c0_13 = arith.constant 0 : index
      %c0_14 = arith.constant 0 : index
      %17 = vector.load %arg5[%c0_13, %c0_14] : memref<1x256xf32, #tpu.memory_space<vmem>>, vector<1x256xf32>
      %18 = vector.broadcast %17 : vector<1x256xf32> to vector<2x256xf32>
      %19 = arith.addf %16, %18 : vector<2x256xf32>
      %cst_15 = arith.constant 0.000000e+00 : f32
      %20 = vector.broadcast %cst_15 : f32 to vector<2x256xf32>
      %21 = arith.maximumf %19, %20 : vector<2x256xf32>
      %c0_16 = arith.constant 0 : index
      %c0_17 = arith.constant 0 : index
      %22 = vector.load %arg6[%c0_16, %c0_17] : memref<2x256xf32, #tpu.memory_space<vmem>>, vector<2x256xf32>
      tpu.vector_store %arg6[%c0_16, %c0_17], %21 {strides = array<i32>} : memref<2x256xf32, #tpu.memory_space<vmem>>, vector<2x256xf32>,
    } else {
    }
    return
  }
  func.func @transform_0(%arg0: i32, %arg1: i32) -> (i32, i32) {
    %c0_i32 = arith.constant 0 : i32
    %c0_i32_0 = arith.constant 0 : i32
    return %c0_i32, %arg1 : i32, i32
  }
  func.func @transform_1(%arg0: i32, %arg1: i32) -> (i32, i32) {
    %c0_i32 = arith.constant 0 : i32
    return %arg1, %arg0 : i32, i32
  }
  func.func @transform_2(%arg0: i32, %arg1: i32) -> (i32, i32) {
    %c0_i32 = arith.constant 0 : i32
    %c0_i32_0 = arith.constant 0 : i32
    return %c0_i32, %arg0 : i32, i32
  }
  func.func @transform_3(%arg0: i32, %arg1: i32) -> (i32, i32) {
    %c0_i32 = arith.constant 0 : i32
    %c0_i32_0 = arith.constant 0 : i32
    return %c0_i32, %arg0 : i32, i32
  }
  func.func @transform_4(%arg0: i32, %arg1: i32) -> (i32, i32) {
    %c0_i32 = arith.constant 0 : i32
    %c0_i32_0 = arith.constant 0 : i32
    return %c0_i32, %arg0 : i32, i32
  }
}

</mosaic_0001>

<llo_original>
// kernel: encoder2d_gray_forward.2
$region0: #{encoder2d_gray_forward.2}
  #allocation0 [shape = 'u32[]', space=smem, size = 0x4, offset = 0x4, fixed_abs, tag = 'smem constant byte address 0x4 - core index']
  #allocation1 [shape = 'u32[144,128]{1,0:T(1,128)}', space=vmem, size = 0x12000, scoped, tag = 'internal scratch']
  %s0 = inlined_call_operand.vmem [shape: bf16[512,512], index: 0, kind: input, shape index: {}]
  %s1 = inlined_call_operand.vmem [shape: bf16[512,64], index: 1, kind: input, shape index: {}]
  %s2 = inlined_call_operand.vmem [shape: f32[1,64], index: 2, kind: input, shape index: {}]
  %s3 = inlined_call_operand.vmem [shape: bf16[512,64], index: 3, kind: output, shape index: {}]
  %s4 = sld [smem:[#allocation0]]
  $region45: #{encoder2d_gray_forward.2} parent=0
    _
  %s6 = ssub.s32 1, %s4
  %s7 = scalar_select 0, %s6, %s4
  loop: start=0, step=1, limit=4
  $region2: #{encoder2d_gray_forward.2} parent=0 // loop_pre_header
    _
  $region3: #{encoder2d_gray_forward.2} parent=0 // loop_header
    %s9 = sphi 0, %s13
    %p10 = scmp.ge.s32.totalorder %s9, 4
    %s19 = sphi 0, %s21
    %s22 = sphi 0, %s19
    %s23 = sphi 0, %s22
    %s39 = sphi 0, %s23
    %s43 = sphi 0, %s43
    %s45 = sphi 0, %s43
    %s46 = sphi 0, %s45
    %s60 = sphi 0, %s46
    %s64 = sphi 0, %s64
    %s66 = sphi 0, %s64
    %s67 = sphi 0, %s66
    %s81 = sphi 0, %s67
    %s87 = sphi 0, %s89
    %s90 = sphi 0, %s87
    %s91 = sphi 0, %s90
    %s107 = sphi 0, %s91
  $region4: #{encoder2d_gray_forward.2} parent=0 // loop_header_branch
    %12 = sbr.rel (%p10) target = $region8
  $region5: #{encoder2d_gray_forward.2} parent=0 // loop_body
    %s14 = ssub.s32 %s9, 1
    %s15 = ssub.s32 %s9, 2
    %s16 = sadd.s32 %s9, 1
    %s17 = ssub.s32 %s9, %s16
    %p18 = scmp.eq.s32.totalorder %s17, 0
    %s20 = sadd.s32 %s19, 1
    %s21 = scalar_select %p18, %s19, %s20
    %p24 = pneg %p18
    %p25 = scmp.eq.s32.totalorder %s9, 1
    %p26 = por %p24, %p25
    %p27 = scmp.ne.s32.totalorder %s19, %s22
    %p28 = scmp.eq.s32.totalorder %s9, 0
    %p29 = por %p27, %p28
    %p30 = scmp.ne.s32.totalorder %s19, %s22
    %p31 = scmp.eq.s32.totalorder %s14, 1
    %p32 = por %p30, %p31
    %p33 = scmp.ne.s32.totalorder %s22, %s23
    %p34 = scmp.eq.s32.totalorder %s14, 0
    %p35 = por %p33, %p34
    %p36 = scmp.ne.s32.totalorder %s22, %s23
    %p37 = scmp.eq.s32.totalorder %s15, 1
    %p38 = por %p36, %p37
    %p40 = scmp.ne.s32.totalorder %s23, %s39
    %p41 = scmp.eq.s32.totalorder %s15, 0
    %p42 = por %p40, %p41
    %s44 = sadd.s32 %s43, 1
    %p47 = scmp.eq.s32.totalorder %s9, 1
    %p48 = scmp.ne.s32.totalorder %s43, %s45
    %p49 = scmp.eq.s32.totalorder %s9, 0
    %p50 = por %p48, %p49
    %p51 = scmp.ne.s32.totalorder %s43, %s45
    %p52 = scmp.eq.s32.totalorder %s14, 1
    %p53 = por %p51, %p52
    %p54 = scmp.ne.s32.totalorder %s45, %s46
    %p55 = scmp.eq.s32.totalorder %s14, 0
    %p56 = por %p54, %p55
    %p57 = scmp.ne.s32.totalorder %s45, %s46
    %p58 = scmp.eq.s32.totalorder %s15, 1
    %p59 = por %p57, %p58
    %p61 = scmp.ne.s32.totalorder %s46, %s60
    %p62 = scmp.eq.s32.totalorder %s15, 0
    %p63 = por %p61, %p62
    %s65 = sadd.s32 %s64, 1
    %p68 = scmp.eq.s32.totalorder %s9, 1
    %p69 = scmp.ne.s32.totalorder %s64, %s66
    %p70 = scmp.eq.s32.totalorder %s9, 0
    %p71 = por %p69, %p70
    %p72 = scmp.ne.s32.totalorder %s64, %s66
    %p73 = scmp.eq.s32.totalorder %s14, 1
    %p74 = por %p72, %p73
    %p75 = scmp.ne.s32.totalorder %s66, %s67
    %p76 = scmp.eq.s32.totalorder %s14, 0
    %p77 = por %p75, %p76
    %p78 = scmp.ne.s32.totalorder %s66, %s67
    %p79 = scmp.eq.s32.totalorder %s15, 1
    %p80 = por %p78, %p79
    %p82 = scmp.ne.s32.totalorder %s67, %s81
    %p83 = scmp.eq.s32.totalorder %s15, 0
    %p84 = por %p82, %p83
    %s85 = ssub.s32 %s9, %s16
    %p86 = scmp.eq.s32.totalorder %s85, 0
    %s88 = sadd.s32 %s87, 1
    %s89 = scalar_select %p86, %s87, %s88
    %p92 = pneg %p86
    %p93 = scmp.eq.s32.totalorder %s9, 1
    %p94 = por %p92, %p93
    %p95 = scmp.ne.s32.totalorder %s87, %s90
    %p96 = scmp.eq.s32.totalorder %s9, 0
    %p97 = por %p95, %p96
    %p98 = scmp.ne.s32.totalorder %s87, %s90
    %p99 = scmp.eq.s32.totalorder %s14, 1
    %p100 = por %p98, %p99
    %p101 = scmp.ne.s32.totalorder %s90, %s91
    %p102 = scmp.eq.s32.totalorder %s14, 0
    %p103 = por %p101, %p102
    %p104 = scmp.ne.s32.totalorder %s90, %s91
    %p105 = scmp.eq.s32.totalorder %s15, 1
    %p106 = por %p104, %p105
    %p108 = scmp.ne.s32.totalorder %s91, %s107
    %p109 = scmp.eq.s32.totalorder %s15, 0
    %p110 = por %p108, %p109
    %p111 = scmp.le.s32.totalorder 1, %s9
    %p112 = scmp.lt.s32.totalorder %s9, 3
    %p113 = pnand %p111, %p112
    %p114 = pneg %p113
    // Predicated region
    $region9: #{encoder2d_gray_forward.2} parent=5 // pred_check
      _
    $region10: #{encoder2d_gray_forward.2} parent=5 // pred_check_branch
      %116 = sbr.rel (%p113) target = $region12
    $region11: #{encoder2d_gray_forward.2} parent=5 // pred_region
      %s117 = ssub.s32 %s9, 1
      // Predicated region
      $region13: #{encoder2d_gray_forward.2} parent=11 // pred_check
        %p118 = pneg %p56
      $region14: #{encoder2d_gray_forward.2} parent=11 // pred_check_branch
        %120 = sbr.rel (%p118) target = $region16
      $region15: #{encoder2d_gray_forward.2} parent=11 // pred_region
        _
      $region16: #{encoder2d_gray_forward.2} parent=11 // pred_fallthru
        _
      // Predicated region
      $region17: #{encoder2d_gray_forward.2} parent=11 // pred_check
        %p121 = pneg %p77
      $region18: #{encoder2d_gray_forward.2} parent=11 // pred_check_branch
        %123 = sbr.rel (%p121) target = $region20
      $region19: #{encoder2d_gray_forward.2} parent=11 // pred_region
        _
      $region20: #{encoder2d_gray_forward.2} parent=11 // pred_fallthru
        _
    $region12: #{encoder2d_gray_forward.2} parent=5 // pred_fallthru
      _
    %p124 = scmp.lt.s32.totalorder %s9, 2
    // Predicated region
    $region21: #{encoder2d_gray_forward.2} parent=5 // pred_check
      %p125 = pneg %p124
    $region22: #{encoder2d_gray_forward.2} parent=5 // pred_check_branch
      %127 = sbr.rel (%p125) target = $region24
    $region23: #{encoder2d_gray_forward.2} parent=5 // pred_region
      // Predicated region
      $region25: #{encoder2d_gray_forward.2} parent=23 // pred_check
        %p128 = pneg %p29
      $region26: #{encoder2d_gray_forward.2} parent=23 // pred_check_branch
        %130 = sbr.rel (%p128) target = $region28
      $region27: #{encoder2d_gray_forward.2} parent=23 // pred_region
        %s131 = smul.u32 32, %s9
        %p132 = scmp.lt.s32.totalorder %s131, 63
        %s133 = scalar_select %p132, %s131, 63
        %s134 = smul.addr %s133, 4
        %s135 = smul.addr %s134, 4
        %s136 = scalar_lea.vmem %s0, %s135
        %s137 = smul.u32 32, %s9
      $region28: #{encoder2d_gray_forward.2} parent=23 // pred_fallthru
        _
    $region24: #{encoder2d_gray_forward.2} parent=5 // pred_fallthru
      _
    %p138 = scmp.le.s32.totalorder 1, %s9
    %p139 = scmp.lt.s32.totalorder %s9, 3
    %p140 = pnand %p138, %p139
    %p141 = pneg %p140
    // Predicated region
    $region29: #{encoder2d_gray_forward.2} parent=5 // pred_check
      _
    $region30: #{encoder2d_gray_forward.2} parent=5 // pred_check_branch
      %143 = sbr.rel (%p140) target = $region32
    $region31: #{encoder2d_gray_forward.2} parent=5 // pred_region
      %s144 = ssub.s32 %s9, 1
      %s145 = smul.u32 32, %s14
      %p146 = scmp.lt.s32.totalorder %s145, 63
      %s147 = scalar_select %p146, %s145, 63
      %s148 = smul.addr %s147, 4
      %s149 = smul.addr %s148, 4
      %s150 = scalar_lea.vmem %s0, %s149
      %p151 = pneg %p35
      %p152 = pneg %p32
      %p153 = pneg %p56
      %p154 = pneg %p53
      %p155 = pneg %p77
      %p156 = pneg %p74
      %p157 = pneg %p103
      %p158 = pneg %p100
      %s159 = smul.u32 32, %s14
      %p160 = scmp.lt.s32.totalorder %s159, 63
      %s161 = scalar_select %p160, %s159, 63
      %s162 = smul.addr %s161, 4
      %s163 = scalar_lea.vmem %s3, %s162
      %s164 = smul.u32 32, %s14
      %p165 = scmp.lt.s32.totalorder %s164, 63
      %s166 = scalar_select %p165, %s164, 63
      %s167 = smul.addr %s166, 4
      %s168 = smul.addr %s167, 4
      %s169 = scalar_lea.vmem %s0, %s168
      %s170 = smul.u32 32, %s14
      %s171 = smul.u32 32, %s14
      %p172 = scmp.lt.s32.totalorder %s171, 63
      %s173 = scalar_select %p172, %s171, 63
      %s174 = smul.addr %s173, 4
      %s175 = scalar_lea.vmem %s3, %s174
      %s176 = smul.u32 32, %s14
      %v178 = vld [vmem:[%s169] sm:$0xff]
      %v179 = vld [vmem:[%s169 + $0x8] sm:$0xff]
      %v180 = vld [vmem:[%s169 + $0x10] sm:$0xff]
      %v181 = vld [vmem:[%s169 + $0x18] sm:$0xff]
      %v182 = vld [vmem:[%s169 + $0x20] sm:$0xff]
      %v183 = vld [vmem:[%s169 + $0x28] sm:$0xff]
      %v184 = vld [vmem:[%s169 + $0x30] sm:$0xff]
      %v185 = vld [vmem:[%s169 + $0x38] sm:$0xff]
      %v186 = vld [vmem:[%s169 + $0x40] sm:$0xff]
      %v187 = vld [vmem:[%s169 + $0x48] sm:$0xff]
      %v188 = vld [vmem:[%s169 + $0x50] sm:$0xff]
      %v189 = vld [vmem:[%s169 + $0x58] sm:$0xff]
      %v190 = vld [vmem:[%s169 + $0x60] sm:$0xff]
      %v191 = vld [vmem:[%s169 + $0x68] sm:$0xff]
      %v192 = vld [vmem:[%s169 + $0x70] sm:$0xff]
      %v193 = vld [vmem:[%s169 + $0x78] sm:$0xff]
      %v194 = vld [vmem:[%s169 + $0x80] sm:$0xff]
      %v195 = vld [vmem:[%s169 + $0x88] sm:$0xff]
      %v196 = vld [vmem:[%s169 + $0x90] sm:$0xff]
      %v197 = vld [vmem:[%s169 + $0x98] sm:$0xff]
      %v198 = vld [vmem:[%s169 + $0xa0] sm:$0xff]
      %v199 = vld [vmem:[%s169 + $0xa8] sm:$0xff]
      %v200 = vld [vmem:[%s169 + $0xb0] sm:$0xff]
      %v201 = vld [vmem:[%s169 + $0xb8] sm:$0xff]
      %v202 = vld [vmem:[%s169 + $0xc0] sm:$0xff]
      %v203 = vld [vmem:[%s169 + $0xc8] sm:$0xff]
      %v204 = vld [vmem:[%s169 + $0xd0] sm:$0xff]
      %v205 = vld [vmem:[%s169 + $0xd8] sm:$0xff]
      %v206 = vld [vmem:[%s169 + $0xe0] sm:$0xff]
      %v207 = vld [vmem:[%s169 + $0xe8] sm:$0xff]
      %v208 = vld [vmem:[%s169 + $0xf0] sm:$0xff]
      %v209 = vld [vmem:[%s169 + $0xf8] sm:$0xff]
      %v210 = vld [vmem:[%s169 + $0x100] sm:$0xff]
      %v211 = vld [vmem:[%s169 + $0x108] sm:$0xff]
      %v212 = vld [vmem:[%s169 + $0x110] sm:$0xff]
      %v213 = vld [vmem:[%s169 + $0x118] sm:$0xff]
      %v214 = vld [vmem:[%s169 + $0x120] sm:$0xff]
      %v215 = vld [vmem:[%s169 + $0x128] sm:$0xff]
      %v216 = vld [vmem:[%s169 + $0x130] sm:$0xff]
      %v217 = vld [vmem:[%s169 + $0x138] sm:$0xff]
      %v218 = vld [vmem:[%s169 + $0x140] sm:$0xff]
      %v219 = vld [vmem:[%s169 + $0x148] sm:$0xff]
      %v220 = vld [vmem:[%s169 + $0x150] sm:$0xff]
      %v221 = vld [vmem:[%s169 + $0x158] sm:$0xff]
      %v222 = vld [vmem:[%s169 + $0x160] sm:$0xff]
      %v223 = vld [vmem:[%s169 + $0x168] sm:$0xff]
      %v224 = vld [vmem:[%s169 + $0x170] sm:$0xff]
      %v225 = vld [vmem:[%s169 + $0x178] sm:$0xff]
      %v226 = vld [vmem:[%s169 + $0x180] sm:$0xff]
      %v227 = vld [vmem:[%s169 + $0x188] sm:$0xff]
      %v228 = vld [vmem:[%s169 + $0x190] sm:$0xff]
      %v229 = vld [vmem:[%s169 + $0x198] sm:$0xff]
      %v230 = vld [vmem:[%s169 + $0x1a0] sm:$0xff]
      %v231 = vld [vmem:[%s169 + $0x1a8] sm:$0xff]
      %v232 = vld [vmem:[%s169 + $0x1b0] sm:$0xff]
      %v233 = vld [vmem:[%s169 + $0x1b8] sm:$0xff]
      %v234 = vld [vmem:[%s169 + $0x1c0] sm:$0xff]
      %v235 = vld [vmem:[%s169 + $0x1c8] sm:$0xff]
      %v236 = vld [vmem:[%s169 + $0x1d0] sm:$0xff]
      %v237 = vld [vmem:[%s169 + $0x1d8] sm:$0xff]
      %v238 = vld [vmem:[%s169 + $0x1e0] sm:$0xff]
      %v239 = vld [vmem:[%s169 + $0x1e8] sm:$0xff]
      %v240 = vld [vmem:[%s169 + $0x1f0] sm:$0xff]
      %v241 = vld [vmem:[%s169 + $0x1f8] sm:$0xff]
      %v242 = vld [vmem:[%s1] sm:$0xf]
      %v243 = vld [vmem:[%s1 + $0x4] sm:$0xf]
      %v244 = vld [vmem:[%s1 + $0x8] sm:$0xf]
      %v245 = vld [vmem:[%s1 + $0xc] sm:$0xf]
      %v246 = vld [vmem:[%s1 + $0x10] sm:$0xf]
      %v247 = vld [vmem:[%s1 + $0x14] sm:$0xf]
      %v248 = vld [vmem:[%s1 + $0x18] sm:$0xf]
      %v249 = vld [vmem:[%s1 + $0x1c] sm:$0xf]
      %v250 = vld [vmem:[%s1 + $0x20] sm:$0xf]
      %v251 = vld [vmem:[%s1 + $0x24] sm:$0xf]
      %v252 = vld [vmem:[%s1 + $0x28] sm:$0xf]
      %v253 = vld [vmem:[%s1 + $0x2c] sm:$0xf]
      %v254 = vld [vmem:[%s1 + $0x30] sm:$0xf]
      %v255 = vld [vmem:[%s1 + $0x34] sm:$0xf]
      %v256 = vld [vmem:[%s1 + $0x38] sm:$0xf]
      %v257 = vld [vmem:[%s1 + $0x3c] sm:$0xf]
      %v258 = vld [vmem:[%s1 + $0x40] sm:$0xf]
      %v259 = vld [vmem:[%s1 + $0x44] sm:$0xf]
      %v260 = vld [vmem:[%s1 + $0x48] sm:$0xf]
      %v261 = vld [vmem:[%s1 + $0x4c] sm:$0xf]
      %v262 = vld [vmem:[%s1 + $0x50] sm:$0xf]
      %v263 = vld [vmem:[%s1 + $0x54] sm:$0xf]
      %v264 = vld [vmem:[%s1 + $0x58] sm:$0xf]
      %v265 = vld [vmem:[%s1 + $0x5c] sm:$0xf]
      %v266 = vld [vmem:[%s1 + $0x60] sm:$0xf]
      %v267 = vld [vmem:[%s1 + $0x64] sm:$0xf]
      %v268 = vld [vmem:[%s1 + $0x68] sm:$0xf]
      %v269 = vld [vmem:[%s1 + $0x6c] sm:$0xf]
      %v270 = vld [vmem:[%s1 + $0x70] sm:$0xf]
      %v271 = vld [vmem:[%s1 + $0x74] sm:$0xf]
      %v272 = vld [vmem:[%s1 + $0x78] sm:$0xf]
      %v273 = vld [vmem:[%s1 + $0x7c] sm:$0xf]
      %v274 = vld [vmem:[%s1 + $0x80] sm:$0xf]
      %v275 = vld [vmem:[%s1 + $0x84] sm:$0xf]
      %v276 = vld [vmem:[%s1 + $0x88] sm:$0xf]
      %v277 = vld [vmem:[%s1 + $0x8c] sm:$0xf]
      %v278 = vld [vmem:[%s1 + $0x90] sm:$0xf]
      %v279 = vld [vmem:[%s1 + $0x94] sm:$0xf]
      %v280 = vld [vmem:[%s1 + $0x98] sm:$0xf]
      %v281 = vld [vmem:[%s1 + $0x9c] sm:$0xf]
      %v282 = vld [vmem:[%s1 + $0xa0] sm:$0xf]
      %v283 = vld [vmem:[%s1 + $0xa4] sm:$0xf]
      %v284 = vld [vmem:[%s1 + $0xa8] sm:$0xf]
      %v285 = vld [vmem:[%s1 + $0xac] sm:$0xf]
      %v286 = vld [vmem:[%s1 + $0xb0] sm:$0xf]
      %v287 = vld [vmem:[%s1 + $0xb4] sm:$0xf]
      %v288 = vld [vmem:[%s1 + $0xb8] sm:$0xf]
      %v289 = vld [vmem:[%s1 + $0xbc] sm:$0xf]
      %v290 = vld [vmem:[%s1 + $0xc0] sm:$0xf]
      %v291 = vld [vmem:[%s1 + $0xc4] sm:$0xf]
      %v292 = vld [vmem:[%s1 + $0xc8] sm:$0xf]
      %v293 = vld [vmem:[%s1 + $0xcc] sm:$0xf]
      %v294 = vld [vmem:[%s1 + $0xd0] sm:$0xf]
      %v295 = vld [vmem:[%s1 + $0xd4] sm:$0xf]
      %v296 = vld [vmem:[%s1 + $0xd8] sm:$0xf]
      %v297 = vld [vmem:[%s1 + $0xdc] sm:$0xf]
      %v298 = vld [vmem:[%s1 + $0xe0] sm:$0xf]
      %v299 = vld [vmem:[%s1 + $0xe4] sm:$0xf]
      %v300 = vld [vmem:[%s1 + $0xe8] sm:$0xf]
      %v301 = vld [vmem:[%s1 + $0xec] sm:$0xf]
      %v302 = vld [vmem:[%s1 + $0xf0] sm:$0xf]
      %v303 = vld [vmem:[%s1 + $0xf4] sm:$0xf]
      %v304 = vld [vmem:[%s1 + $0xf8] sm:$0xf]
      %v305 = vld [vmem:[%s1 + $0xfc] sm:$0xf]
      %v306 = vld [vmem:[%s2] sm:$0x1]
      %v308 = vlaneseq
      %v309 = vshrl.u32 %v308, 7
      %v310 = vsub.s32 0, %v309
      %v311 = vrot.slane %v306, %v310
      %v377 = vunpack.c.l.b16 %v178
      %v378 = vunpack.c.h.b16 %v178
      %v379 = vunpack.c.l.b16 %v179
      %v380 = vunpack.c.h.b16 %v179
      %v381 = vunpack.c.l.b16 %v180
      %v382 = vunpack.c.h.b16 %v180
      %v383 = vunpack.c.l.b16 %v181
      %v384 = vunpack.c.h.b16 %v181
      %v385 = vunpack.c.l.b16 %v182
      %v386 = vunpack.c.h.b16 %v182
      %v387 = vunpack.c.l.b16 %v183
      %v388 = vunpack.c.h.b16 %v183
      %v389 = vunpack.c.l.b16 %v184
      %v390 = vunpack.c.h.b16 %v184
      %v391 = vunpack.c.l.b16 %v185
      %v392 = vunpack.c.h.b16 %v185
      %v393 = vunpack.c.l.b16 %v186
      %v394 = vunpack.c.h.b16 %v186
      %v395 = vunpack.c.l.b16 %v187
      %v396 = vunpack.c.h.b16 %v187
      %v397 = vunpack.c.l.b16 %v188
      %v398 = vunpack.c.h.b16 %v188
      %v399 = vunpack.c.l.b16 %v189
      %v400 = vunpack.c.h.b16 %v189
      %v401 = vunpack.c.l.b16 %v190
      %v402 = vunpack.c.h.b16 %v190
      %v403 = vunpack.c.l.b16 %v191
      %v404 = vunpack.c.h.b16 %v191
      %v405 = vunpack.c.l.b16 %v192
      %v406 = vunpack.c.h.b16 %v192
      %v407 = vunpack.c.l.b16 %v193
      %v408 = vunpack.c.h.b16 %v193
      %v409 = vunpack.c.l.b16 %v194
      %v410 = vunpack.c.h.b16 %v194
      %v411 = vunpack.c.l.b16 %v195
      %v412 = vunpack.c.h.b16 %v195
      %v413 = vunpack.c.l.b16 %v196
      %v414 = vunpack.c.h.b16 %v196
      %v415 = vunpack.c.l.b16 %v197
      %v416 = vunpack.c.h.b16 %v197
      %v417 = vunpack.c.l.b16 %v198
      %v418 = vunpack.c.h.b16 %v198
      %v419 = vunpack.c.l.b16 %v199
      %v420 = vunpack.c.h.b16 %v199
      %v421 = vunpack.c.l.b16 %v200
      %v422 = vunpack.c.h.b16 %v200
      %v423 = vunpack.c.l.b16 %v201
      %v424 = vunpack.c.h.b16 %v201
      %v425 = vunpack.c.l.b16 %v202
      %v426 = vunpack.c.h.b16 %v202
      %v427 = vunpack.c.l.b16 %v203
      %v428 = vunpack.c.h.b16 %v203
      %v429 = vunpack.c.l.b16 %v204
      %v430 = vunpack.c.h.b16 %v204
      %v431 = vunpack.c.l.b16 %v205
      %v432 = vunpack.c.h.b16 %v205
      %v433 = vunpack.c.l.b16 %v206
      %v434 = vunpack.c.h.b16 %v206
      %v435 = vunpack.c.l.b16 %v207
      %v436 = vunpack.c.h.b16 %v207
      %v437 = vunpack.c.l.b16 %v208
      %v438 = vunpack.c.h.b16 %v208
      %v439 = vunpack.c.l.b16 %v209
      %v440 = vunpack.c.h.b16 %v209
      %v441 = vunpack.c.l.b16 %v210
      %v442 = vunpack.c.h.b16 %v210
      %v443 = vunpack.c.l.b16 %v211
      %v444 = vunpack.c.h.b16 %v211
      %v445 = vunpack.c.l.b16 %v212
      %v446 = vunpack.c.h.b16 %v212
      %v447 = vunpack.c.l.b16 %v213
      %v448 = vunpack.c.h.b16 %v213
      %v449 = vunpack.c.l.b16 %v214
      %v450 = vunpack.c.h.b16 %v214
      %v451 = vunpack.c.l.b16 %v215
      %v452 = vunpack.c.h.b16 %v215
      %v453 = vunpack.c.l.b16 %v216
      %v454 = vunpack.c.h.b16 %v216
      %v455 = vunpack.c.l.b16 %v217
      %v456 = vunpack.c.h.b16 %v217
      %v457 = vunpack.c.l.b16 %v218
      %v458 = vunpack.c.h.b16 %v218
      %v459 = vunpack.c.l.b16 %v219
      %v460 = vunpack.c.h.b16 %v219
      %v461 = vunpack.c.l.b16 %v220
      %v462 = vunpack.c.h.b16 %v220
      %v463 = vunpack.c.l.b16 %v221
      %v464 = vunpack.c.h.b16 %v221
      %v465 = vunpack.c.l.b16 %v222
      %v466 = vunpack.c.h.b16 %v222
      %v467 = vunpack.c.l.b16 %v223
      %v468 = vunpack.c.h.b16 %v223
      %v469 = vunpack.c.l.b16 %v224
      %v470 = vunpack.c.h.b16 %v224
      %v471 = vunpack.c.l.b16 %v225
      %v472 = vunpack.c.h.b16 %v225
      %v473 = vunpack.c.l.b16 %v226
      %v474 = vunpack.c.h.b16 %v226
      %v475 = vunpack.c.l.b16 %v227
      %v476 = vunpack.c.h.b16 %v227
      %v477 = vunpack.c.l.b16 %v228
      %v478 = vunpack.c.h.b16 %v228
      %v479 = vunpack.c.l.b16 %v229
      %v480 = vunpack.c.h.b16 %v229
      %v481 = vunpack.c.l.b16 %v230
      %v482 = vunpack.c.h.b16 %v230
      %v483 = vunpack.c.l.b16 %v231
      %v484 = vunpack.c.h.b16 %v231
      %v485 = vunpack.c.l.b16 %v232
      %v486 = vunpack.c.h.b16 %v232
      %v487 = vunpack.c.l.b16 %v233
      %v488 = vunpack.c.h.b16 %v233
      %v489 = vunpack.c.l.b16 %v234
      %v490 = vunpack.c.h.b16 %v234
      %v491 = vunpack.c.l.b16 %v235
      %v492 = vunpack.c.h.b16 %v235
      %v493 = vunpack.c.l.b16 %v236
      %v494 = vunpack.c.h.b16 %v236
      %v495 = vunpack.c.l.b16 %v237
      %v496 = vunpack.c.h.b16 %v237
      %v497 = vunpack.c.l.b16 %v238
      %v498 = vunpack.c.h.b16 %v238
      %v499 = vunpack.c.l.b16 %v239
      %v500 = vunpack.c.h.b16 %v239
      %v501 = vunpack.c.l.b16 %v240
      %v502 = vunpack.c.h.b16 %v240
      %v503 = vunpack.c.l.b16 %v241
      %v504 = vunpack.c.h.b16 %v241
      %v505 = vpack.c.b16 %v381, %v377
      %v506 = vpack.c.b16 %v382, %v378
      %v507 = vpack.c.b16 %v383, %v379
      %v508 = vpack.c.b16 %v384, %v380
      %v509 = vpack.c.b16 %v389, %v385
      %v510 = vpack.c.b16 %v390, %v386
      %v511 = vpack.c.b16 %v391, %v387
      %v512 = vpack.c.b16 %v392, %v388
      %v513 = vpack.c.b16 %v397, %v393
      %v514 = vpack.c.b16 %v398, %v394
      %v515 = vpack.c.b16 %v399, %v395
      %v516 = vpack.c.b16 %v400, %v396
      %v517 = vpack.c.b16 %v405, %v401
      %v518 = vpack.c.b16 %v406, %v402
      %v519 = vpack.c.b16 %v407, %v403
      %v520 = vpack.c.b16 %v408, %v404
      %v521 = vpack.c.b16 %v413, %v409
      %v522 = vpack.c.b16 %v414, %v410
      %v523 = vpack.c.b16 %v415, %v411
      %v524 = vpack.c.b16 %v416, %v412
      %v525 = vpack.c.b16 %v421, %v417
      %v526 = vpack.c.b16 %v422, %v418
      %v527 = vpack.c.b16 %v423, %v419
      %v528 = vpack.c.b16 %v424, %v420
      %v529 = vpack.c.b16 %v429, %v425
      %v530 = vpack.c.b16 %v430, %v426
      %v531 = vpack.c.b16 %v431, %v427
      %v532 = vpack.c.b16 %v432, %v428
      %v533 = vpack.c.b16 %v437, %v433
      %v534 = vpack.c.b16 %v438, %v434
      %v535 = vpack.c.b16 %v439, %v435
      %v536 = vpack.c.b16 %v440, %v436
      %v537 = vpack.c.b16 %v445, %v441
      %v538 = vpack.c.b16 %v446, %v442
      %v539 = vpack.c.b16 %v447, %v443
      %v540 = vpack.c.b16 %v448, %v444
      %v541 = vpack.c.b16 %v453, %v449
      %v542 = vpack.c.b16 %v454, %v450
      %v543 = vpack.c.b16 %v455, %v451
      %v544 = vpack.c.b16 %v456, %v452
      %v545 = vpack.c.b16 %v461, %v457
      %v546 = vpack.c.b16 %v462, %v458
      %v547 = vpack.c.b16 %v463, %v459
      %v548 = vpack.c.b16 %v464, %v460
      %v549 = vpack.c.b16 %v469, %v465
      %v550 = vpack.c.b16 %v470, %v466
      %v551 = vpack.c.b16 %v471, %v467
      %v552 = vpack.c.b16 %v472, %v468
      %v553 = vpack.c.b16 %v477, %v473
      %v554 = vpack.c.b16 %v478, %v474
      %v555 = vpack.c.b16 %v479, %v475
      %v556 = vpack.c.b16 %v480, %v476
      %v557 = vpack.c.b16 %v485, %v481
      %v558 = vpack.c.b16 %v486, %v482
      %v559 = vpack.c.b16 %v487, %v483
      %v560 = vpack.c.b16 %v488, %v484
      %v561 = vpack.c.b16 %v493, %v489
      %v562 = vpack.c.b16 %v494, %v490
      %v563 = vpack.c.b16 %v495, %v491
      %v564 = vpack.c.b16 %v496, %v492
      %v565 = vpack.c.b16 %v501, %v497
      %v566 = vpack.c.b16 %v502, %v498
      %v567 = vpack.c.b16 %v503, %v499
      %v568 = vpack.c.b16 %v504, %v500
      %v697 = vunpack.c.l.b16 %v242
      %v698 = vunpack.c.l.b16 %v243
      %v699 = vunpack.c.l.b16 %v244
      %v700 = vunpack.c.l.b16 %v245
      %v701 = vunpack.c.l.b16 %v246
      %v702 = vunpack.c.l.b16 %v247
      %v703 = vunpack.c.l.b16 %v248
      %v704 = vunpack.c.l.b16 %v249
      %v705 = vunpack.c.l.b16 %v250
      %v706 = vunpack.c.l.b16 %v251
      %v707 = vunpack.c.l.b16 %v252
      %v708 = vunpack.c.l.b16 %v253
      %v709 = vunpack.c.l.b16 %v254
      %v710 = vunpack.c.l.b16 %v255
      %v711 = vunpack.c.l.b16 %v256
      %v712 = vunpack.c.l.b16 %v257
      %v713 = vunpack.c.l.b16 %v258
      %v714 = vunpack.c.l.b16 %v259
      %v715 = vunpack.c.l.b16 %v260
      %v716 = vunpack.c.l.b16 %v261
      %v717 = vunpack.c.l.b16 %v262
      %v718 = vunpack.c.l.b16 %v263
      %v719 = vunpack.c.l.b16 %v264
      %v720 = vunpack.c.l.b16 %v265
      %v721 = vunpack.c.l.b16 %v266
      %v722 = vunpack.c.l.b16 %v267
      %v723 = vunpack.c.l.b16 %v268
      %v724 = vunpack.c.l.b16 %v269
      %v725 = vunpack.c.l.b16 %v270
      %v726 = vunpack.c.l.b16 %v271
      %v727 = vunpack.c.l.b16 %v272
      %v728 = vunpack.c.l.b16 %v273
      %v729 = vunpack.c.l.b16 %v274
      %v730 = vunpack.c.l.b16 %v275
      %v731 = vunpack.c.l.b16 %v276
      %v732 = vunpack.c.l.b16 %v277
      %v733 = vunpack.c.l.b16 %v278
      %v734 = vunpack.c.l.b16 %v279
      %v735 = vunpack.c.l.b16 %v280
      %v736 = vunpack.c.l.b16 %v281
      %v737 = vunpack.c.l.b16 %v282
      %v738 = vunpack.c.l.b16 %v283
      %v739 = vunpack.c.l.b16 %v284
      %v740 = vunpack.c.l.b16 %v285
      %v741 = vunpack.c.l.b16 %v286
      %v742 = vunpack.c.l.b16 %v287
      %v743 = vunpack.c.l.b16 %v288
      %v744 = vunpack.c.l.b16 %v289
      %v745 = vunpack.c.l.b16 %v290
      %v746 = vunpack.c.l.b16 %v291
      %v747 = vunpack.c.l.b16 %v292
      %v748 = vunpack.c.l.b16 %v293
      %v749 = vunpack.c.l.b16 %v294
      %v750 = vunpack.c.l.b16 %v295
      %v751 = vunpack.c.l.b16 %v296
      %v752 = vunpack.c.l.b16 %v297
      %v753 = vunpack.c.l.b16 %v298
      %v754 = vunpack.c.l.b16 %v299
      %v755 = vunpack.c.l.b16 %v300
      %v756 = vunpack.c.l.b16 %v301
      %v757 = vunpack.c.l.b16 %v302
      %v758 = vunpack.c.l.b16 %v303
      %v759 = vunpack.c.l.b16 %v304
      %v760 = vunpack.c.l.b16 %v305
      %v761 = vpack.c.b16 %v698, %v697
      %v762 = vpack.c.b16 %v700, %v699
      %v763 = vpack.c.b16 %v702, %v701
      %v764 = vpack.c.b16 %v704, %v703
      %v765 = vpack.c.b16 %v706, %v705
      %v766 = vpack.c.b16 %v708, %v707
      %v767 = vpack.c.b16 %v710, %v709
      %v768 = vpack.c.b16 %v712, %v711
      %v769 = vpack.c.b16 %v714, %v713
      %v770 = vpack.c.b16 %v716, %v715
      %v771 = vpack.c.b16 %v718, %v717
      %v772 = vpack.c.b16 %v720, %v719
      %v773 = vpack.c.b16 %v722, %v721
      %v774 = vpack.c.b16 %v724, %v723
      %v775 = vpack.c.b16 %v726, %v725
      %v776 = vpack.c.b16 %v728, %v727
      %v777 = vpack.c.b16 %v730, %v729
      %v778 = vpack.c.b16 %v732, %v731
      %v779 = vpack.c.b16 %v734, %v733
      %v780 = vpack.c.b16 %v736, %v735
      %v781 = vpack.c.b16 %v738, %v737
      %v782 = vpack.c.b16 %v740, %v739
      %v783 = vpack.c.b16 %v742, %v741
      %v784 = vpack.c.b16 %v744, %v743
      %v785 = vpack.c.b16 %v746, %v745
      %v786 = vpack.c.b16 %v748, %v747
      %v787 = vpack.c.b16 %v750, %v749
      %v788 = vpack.c.b16 %v752, %v751
      %v789 = vpack.c.b16 %v754, %v753
      %v790 = vpack.c.b16 %v756, %v755
      %v791 = vpack.c.b16 %v758, %v757
      %v792 = vpack.c.b16 %v760, %v759
      %825 = vmatprep.subr.bf16.mxu0 0
      %826 = vmatpush1.bf16.msra.mxu0 %v768
      %827 = vmatprep.subr.bf16.mxu0 0
      %828 = vmatpush1.bf16.msra.mxu0 %v767
      %829 = vmatprep.subr.bf16.mxu0 0
      %830 = vmatpush1.bf16.msra.mxu0 %v766
      %831 = vmatprep.subr.bf16.mxu0 0
      %832 = vmatpush1.bf16.msra.mxu0 %v765
      %833 = vmatprep.subr.bf16.mxu0 0
      %834 = vmatpush1.bf16.msra.mxu0 %v764
      %835 = vmatprep.subr.bf16.mxu0 0
      %836 = vmatpush1.bf16.msra.mxu0 %v763
      %837 = vmatprep.subr.bf16.mxu0 0
      %838 = vmatpush1.bf16.msra.mxu0 %v762
      %839 = vmatprep.subr.bf16.mxu0 0
      %840 = vmatpush1.bf16.msra.mxu0 %v761
      %841 = vmatprep.subr.bf16.mxu0 0
      %842 = vmatpush2.bf16.msra.mxu0 %v776
      %843 = vmatprep.subr.bf16.mxu0 0
      %844 = vmatpush2.bf16.msra.mxu0 %v775
      %845 = vmatprep.subr.bf16.mxu0 0
      %846 = vmatpush2.bf16.msra.mxu0 %v774
      %847 = vmatprep.subr.bf16.mxu0 0
      %848 = vmatpush2.bf16.msra.mxu0 %v773
      %849 = vmatprep.subr.bf16.mxu0 0
      %850 = vmatpush2.bf16.msra.mxu0 %v772
      %851 = vmatprep.subr.bf16.mxu0 0
      %852 = vmatpush2.bf16.msra.mxu0 %v771
      %853 = vmatprep.subr.bf16.mxu0 0
      %854 = vmatpush2.bf16.msra.mxu0 %v770
      %855 = vmatprep.subr.bf16.mxu0 0
      %856 = vmatpush2.bf16.msra.mxu0 %v769
      %857 = vmatprep.mubr.bf16.mxu0 %v506
      %858 = vmatmul.mubr.bf16.gmra.mxu0 %v505
      %v859 = vpop.f32.mrf.mxu0
      %v860 = vadd.f32 %v311, %v859
      %v861 = vpop.f32.mrf.mxu0
      %v862 = vpop.f32.mrf.mxu0
      %v863 = vadd.f32 %v311, %v862
      %v864 = vpop.f32.mrf.mxu0
      %865 = vmatprep.mubr.bf16.mxu0 %v510
      %866 = vmatmul.mubr.bf16.gmra.mxu0 %v509
      %v867 = vpop.f32.mrf.mxu0
      %v868 = vadd.f32 %v311, %v867
      %v869 = vpop.f32.mrf.mxu0
      %v870 = vpop.f32.mrf.mxu0
      %v871 = vadd.f32 %v311, %v870
      %v872 = vpop.f32.mrf.mxu0
      %873 = vmatprep.mubr.bf16.mxu0 %v514
      %874 = vmatmul.mubr.bf16.gmra.mxu0 %v513
      %v875 = vpop.f32.mrf.mxu0
      %v876 = vadd.f32 %v311, %v875
      %v877 = vpop.f32.mrf.mxu0
      %v878 = vpop.f32.mrf.mxu0
      %v879 = vadd.f32 %v311, %v878
      %v880 = vpop.f32.mrf.mxu0
      %881 = vmatprep.mubr.bf16.mxu0 %v518
      %882 = vmatmul.mubr.bf16.gmra.mxu0 %v517
      %v883 = vpop.f32.mrf.mxu0
      %v884 = vadd.f32 %v311, %v883
      %v885 = vpop.f32.mrf.mxu0
      %v886 = vpop.f32.mrf.mxu0
      %v887 = vadd.f32 %v311, %v886
      %v888 = vpop.f32.mrf.mxu0
      %889 = vmatprep.mubr.bf16.mxu0 %v522
      %890 = vmatmul.mubr.bf16.gmra.mxu0 %v521
      %v891 = vpop.f32.mrf.mxu0
      %v892 = vadd.f32 %v311, %v891
      %v893 = vpop.f32.mrf.mxu0
      %v894 = vpop.f32.mrf.mxu0
      %v895 = vadd.f32 %v311, %v894
      %v896 = vpop.f32.mrf.mxu0
      %897 = vmatprep.mubr.bf16.mxu0 %v526
      %898 = vmatmul.mubr.bf16.gmra.mxu0 %v525
      %v899 = vpop.f32.mrf.mxu0
      %v900 = vadd.f32 %v311, %v899
      %v901 = vpop.f32.mrf.mxu0
      %v902 = vpop.f32.mrf.mxu0
      %v903 = vadd.f32 %v311, %v902
      %v904 = vpop.f32.mrf.mxu0
      %905 = vmatprep.mubr.bf16.mxu0 %v530
      %906 = vmatmul.mubr.bf16.gmra.mxu0 %v529
      %v907 = vpop.f32.mrf.mxu0
      %v908 = vadd.f32 %v311, %v907
      %v909 = vpop.f32.mrf.mxu0
      %v910 = vpop.f32.mrf.mxu0
      %v911 = vadd.f32 %v311, %v910
      %v912 = vpop.f32.mrf.mxu0
      %913 = vmatprep.mubr.bf16.mxu0 %v534
      %914 = vmatmul.mubr.bf16.gmra.mxu0 %v533
      %v915 = vpop.f32.mrf.mxu0
      %v916 = vadd.f32 %v311, %v915
      %v917 = vpop.f32.mrf.mxu0
      %v918 = vpop.f32.mrf.mxu0
      %v919 = vadd.f32 %v311, %v918
      %v920 = vpop.f32.mrf.mxu0
      %921 = vmatprep.mubr.bf16.mxu0 %v538
      %922 = vmatmul.mubr.bf16.gmra.mxu0 %v537
      %v923 = vpop.f32.mrf.mxu0
      %v924 = vadd.f32 %v311, %v923
      %v925 = vpop.f32.mrf.mxu0
      %v926 = vpop.f32.mrf.mxu0
      %v927 = vadd.f32 %v311, %v926
      %v928 = vpop.f32.mrf.mxu0
      %929 = vmatprep.mubr.bf16.mxu0 %v542
      %930 = vmatmul.mubr.bf16.gmra.mxu0 %v541
      %v931 = vpop.f32.mrf.mxu0
      %v932 = vadd.f32 %v311, %v931
      %v933 = vpop.f32.mrf.mxu0
      %v934 = vpop.f32.mrf.mxu0
      %v935 = vadd.f32 %v311, %v934
      %v936 = vpop.f32.mrf.mxu0
      %937 = vmatprep.mubr.bf16.mxu0 %v546
      %938 = vmatmul.mubr.bf16.gmra.mxu0 %v545
      %v939 = vpop.f32.mrf.mxu0
      %v940 = vadd.f32 %v311, %v939
      %v941 = vpop.f32.mrf.mxu0
      %v942 = vpop.f32.mrf.mxu0
      %v943 = vadd.f32 %v311, %v942
      %v944 = vpop.f32.mrf.mxu0
      %945 = vmatprep.mubr.bf16.mxu0 %v550
      %946 = vmatmul.mubr.bf16.gmra.mxu0 %v549
      %v947 = vpop.f32.mrf.mxu0
      %v948 = vadd.f32 %v311, %v947
      %v949 = vpop.f32.mrf.mxu0
      %v950 = vpop.f32.mrf.mxu0
      %v951 = vadd.f32 %v311, %v950
      %v952 = vpop.f32.mrf.mxu0
      %953 = vmatprep.mubr.bf16.mxu0 %v554
      %954 = vmatmul.mubr.bf16.gmra.mxu0 %v553
      %v955 = vpop.f32.mrf.mxu0
      %v956 = vadd.f32 %v311, %v955
      %v957 = vpop.f32.mrf.mxu0
      %v958 = vpop.f32.mrf.mxu0
      %v959 = vadd.f32 %v311, %v958
      %v960 = vpop.f32.mrf.mxu0
      %961 = vmatprep.mubr.bf16.mxu0 %v558
      %962 = vmatmul.mubr.bf16.gmra.mxu0 %v557
      %v963 = vpop.f32.mrf.mxu0
      %v964 = vadd.f32 %v311, %v963
      %v965 = vpop.f32.mrf.mxu0
      %v966 = vpop.f32.mrf.mxu0
      %v967 = vadd.f32 %v311, %v966
      %v968 = vpop.f32.mrf.mxu0
      %969 = vmatprep.mubr.bf16.mxu0 %v562
      %970 = vmatmul.mubr.bf16.gmra.mxu0 %v561
      %v971 = vpop.f32.mrf.mxu0
      %v972 = vadd.f32 %v311, %v971
      %v973 = vpop.f32.mrf.mxu0
      %v974 = vpop.f32.mrf.mxu0
      %v975 = vadd.f32 %v311, %v974
      %v976 = vpop.f32.mrf.mxu0
      %977 = vmatprep.mubr.bf16.mxu0 %v566
      %978 = vmatmul.mubr.bf16.gmra.mxu0 %v565
      %v979 = vpop.f32.mrf.mxu0
      %v980 = vadd.f32 %v311, %v979
      %v981 = vpop.f32.mrf.mxu0
      %v982 = vpop.f32.mrf.mxu0
      %v983 = vadd.f32 %v311, %v982
      %v984 = vpop.f32.mrf.mxu0
      %985 = vdwg.mxu0
      %986 = vmatprep.subr.bf16.mxu0 0
      %987 = vmatpush1.bf16.msra.mxu0 %v784
      %988 = vmatprep.subr.bf16.mxu0 0
      %989 = vmatpush1.bf16.msra.mxu0 %v783
      %990 = vmatprep.subr.bf16.mxu0 0
      %991 = vmatpush1.bf16.msra.mxu0 %v782
      %992 = vmatprep.subr.bf16.mxu0 0
      %993 = vmatpush1.bf16.msra.mxu0 %v781
      %994 = vmatprep.subr.bf16.mxu0 0
      %995 = vmatpush1.bf16.msra.mxu0 %v780
      %996 = vmatprep.subr.bf16.mxu0 0
      %997 = vmatpush1.bf16.msra.mxu0 %v779
      %998 = vmatprep.subr.bf16.mxu0 0
      %999 = vmatpush1.bf16.msra.mxu0 %v778
      %1000 = vmatprep.subr.bf16.mxu0 0
      %1001 = vmatpush1.bf16.msra.mxu0 %v777
      %1002 = vmatprep.subr.bf16.mxu0 0
      %1003 = vmatpush2.bf16.msra.mxu0 %v792
      %1004 = vmatprep.subr.bf16.mxu0 0
      %1005 = vmatpush2.bf16.msra.mxu0 %v791
      %1006 = vmatprep.subr.bf16.mxu0 0
      %1007 = vmatpush2.bf16.msra.mxu0 %v790
      %1008 = vmatprep.subr.bf16.mxu0 0
      %1009 = vmatpush2.bf16.msra.mxu0 %v789
      %1010 = vmatprep.subr.bf16.mxu0 0
      %1011 = vmatpush2.bf16.msra.mxu0 %v788
      %1012 = vmatprep.subr.bf16.mxu0 0
      %1013 = vmatpush2.bf16.msra.mxu0 %v787
      %1014 = vmatprep.subr.bf16.mxu0 0
      %1015 = vmatpush2.bf16.msra.mxu0 %v786
      %1016 = vmatprep.subr.bf16.mxu0 0
      %1017 = vmatpush2.bf16.msra.mxu0 %v785
      %1018 = vmatprep.mubr.bf16.mxu0 %v508
      %1019 = vmatmul.mubr.bf16.gmra.mxu0 %v507
      %v1020 = vpop.f32.mrf.mxu0
      %v1021 = vadd.f32 %v860, %v1020
      %v1022 = vpop.f32.mrf.mxu0
      %v1023 = vpop.f32.mrf.mxu0
      %v1024 = vadd.f32 %v863, %v1023
      %v1025 = vpop.f32.mrf.mxu0
      %1026 = vmatprep.mubr.bf16.mxu0 %v512
      %1027 = vmatmul.mubr.bf16.gmra.mxu0 %v511
      %v1028 = vpop.f32.mrf.mxu0
      %v1029 = vadd.f32 %v868, %v1028
      %v1030 = vpop.f32.mrf.mxu0
      %v1031 = vpop.f32.mrf.mxu0
      %v1032 = vadd.f32 %v871, %v1031
      %v1033 = vpop.f32.mrf.mxu0
      %1034 = vmatprep.mubr.bf16.mxu0 %v516
      %1035 = vmatmul.mubr.bf16.gmra.mxu0 %v515
      %v1036 = vpop.f32.mrf.mxu0
      %v1037 = vadd.f32 %v876, %v1036
      %v1038 = vpop.f32.mrf.mxu0
      %v1039 = vpop.f32.mrf.mxu0
      %v1040 = vadd.f32 %v879, %v1039
      %v1041 = vpop.f32.mrf.mxu0
      %1042 = vmatprep.mubr.bf16.mxu0 %v520
      %1043 = vmatmul.mubr.bf16.gmra.mxu0 %v519
      %v1044 = vpop.f32.mrf.mxu0
      %v1045 = vadd.f32 %v884, %v1044
      %v1046 = vpop.f32.mrf.mxu0
      %v1047 = vpop.f32.mrf.mxu0
      %v1048 = vadd.f32 %v887, %v1047
      %v1049 = vpop.f32.mrf.mxu0
      %1050 = vmatprep.mubr.bf16.mxu0 %v524
      %1051 = vmatmul.mubr.bf16.gmra.mxu0 %v523
      %v1052 = vpop.f32.mrf.mxu0
      %v1053 = vadd.f32 %v892, %v1052
      %v1054 = vpop.f32.mrf.mxu0
      %v1055 = vpop.f32.mrf.mxu0
      %v1056 = vadd.f32 %v895, %v1055
      %v1057 = vpop.f32.mrf.mxu0
      %1058 = vmatprep.mubr.bf16.mxu0 %v528
      %1059 = vmatmul.mubr.bf16.gmra.mxu0 %v527
      %v1060 = vpop.f32.mrf.mxu0
      %v1061 = vadd.f32 %v900, %v1060
      %v1062 = vpop.f32.mrf.mxu0
      %v1063 = vpop.f32.mrf.mxu0
      %v1064 = vadd.f32 %v903, %v1063
      %v1065 = vpop.f32.mrf.mxu0
      %1066 = vmatprep.mubr.bf16.mxu0 %v532
      %1067 = vmatmul.mubr.bf16.gmra.mxu0 %v531
      %v1068 = vpop.f32.mrf.mxu0
      %v1069 = vadd.f32 %v908, %v1068
      %v1070 = vpop.f32.mrf.mxu0
      %v1071 = vpop.f32.mrf.mxu0
      %v1072 = vadd.f32 %v911, %v1071
      %v1073 = vpop.f32.mrf.mxu0
      %1074 = vmatprep.mubr.bf16.mxu0 %v536
      %1075 = vmatmul.mubr.bf16.gmra.mxu0 %v535
      %v1076 = vpop.f32.mrf.mxu0
      %v1077 = vadd.f32 %v916, %v1076
      %v1078 = vpop.f32.mrf.mxu0
      %v1079 = vpop.f32.mrf.mxu0
      %v1080 = vadd.f32 %v919, %v1079
      %v1081 = vpop.f32.mrf.mxu0
      %1082 = vmatprep.mubr.bf16.mxu0 %v540
      %1083 = vmatmul.mubr.bf16.gmra.mxu0 %v539
      %v1084 = vpop.f32.mrf.mxu0
      %v1085 = vadd.f32 %v924, %v1084
      %v1086 = vpop.f32.mrf.mxu0
      %v1087 = vpop.f32.mrf.mxu0
      %v1088 = vadd.f32 %v927, %v1087
      %v1089 = vpop.f32.mrf.mxu0
      %1090 = vmatprep.mubr.bf16.mxu0 %v544
      %1091 = vmatmul.mubr.bf16.gmra.mxu0 %v543
      %v1092 = vpop.f32.mrf.mxu0
      %v1093 = vadd.f32 %v932, %v1092
      %v1094 = vpop.f32.mrf.mxu0
      %v1095 = vpop.f32.mrf.mxu0
      %v1096 = vadd.f32 %v935, %v1095
      %v1097 = vpop.f32.mrf.mxu0
      %1098 = vmatprep.mubr.bf16.mxu0 %v548
      %1099 = vmatmul.mubr.bf16.gmra.mxu0 %v547
      %v1100 = vpop.f32.mrf.mxu0
      %v1101 = vadd.f32 %v940, %v1100
      %v1102 = vpop.f32.mrf.mxu0
      %v1103 = vpop.f32.mrf.mxu0
      %v1104 = vadd.f32 %v943, %v1103
      %v1105 = vpop.f32.mrf.mxu0
      %1106 = vmatprep.mubr.bf16.mxu0 %v552
      %1107 = vmatmul.mubr.bf16.gmra.mxu0 %v551
      %v1108 = vpop.f32.mrf.mxu0
      %v1109 = vadd.f32 %v948, %v1108
      %v1110 = vpop.f32.mrf.mxu0
      %v1111 = vpop.f32.mrf.mxu0
      %v1112 = vadd.f32 %v951, %v1111
      %v1113 = vpop.f32.mrf.mxu0
      %1114 = vmatprep.mubr.bf16.mxu0 %v556
      %1115 = vmatmul.mubr.bf16.gmra.mxu0 %v555
      %v1116 = vpop.f32.mrf.mxu0
      %v1117 = vadd.f32 %v956, %v1116
      %v1118 = vpop.f32.mrf.mxu0
      %v1119 = vpop.f32.mrf.mxu0
      %v1120 = vadd.f32 %v959, %v1119
      %v1121 = vpop.f32.mrf.mxu0
      %1122 = vmatprep.mubr.bf16.mxu0 %v560
      %1123 = vmatmul.mubr.bf16.gmra.mxu0 %v559
      %v1124 = vpop.f32.mrf.mxu0
      %v1125 = vadd.f32 %v964, %v1124
      %v1126 = vpop.f32.mrf.mxu0
      %v1127 = vpop.f32.mrf.mxu0
      %v1128 = vadd.f32 %v967, %v1127
      %v1129 = vpop.f32.mrf.mxu0
      %1130 = vmatprep.mubr.bf16.mxu0 %v564
      %1131 = vmatmul.mubr.bf16.gmra.mxu0 %v563
      %v1132 = vpop.f32.mrf.mxu0
      %v1133 = vadd.f32 %v972, %v1132
      %v1134 = vpop.f32.mrf.mxu0
      %v1135 = vpop.f32.mrf.mxu0
      %v1136 = vadd.f32 %v975, %v1135
      %v1137 = vpop.f32.mrf.mxu0
      %1138 = vmatprep.mubr.bf16.mxu0 %v568
      %1139 = vmatmul.mubr.bf16.gmra.mxu0 %v567
      %v1140 = vpop.f32.mrf.mxu0
      %v1141 = vadd.f32 %v980, %v1140
      %v1142 = vpop.f32.mrf.mxu0
      %v1143 = vpop.f32.mrf.mxu0
      %v1144 = vadd.f32 %v983, %v1143
      %v1145 = vpop.f32.mrf.mxu0
      %1146 = vdwg.mxu0
      %v1147 = vmax.f32 %v1021, 0.0
      %v1148 = vmax.f32 %v1024, 0.0
      %v1149 = vmax.f32 %v1029, 0.0
      %v1150 = vmax.f32 %v1032, 0.0
      %v1151 = vmax.f32 %v1037, 0.0
      %v1152 = vmax.f32 %v1040, 0.0
      %v1153 = vmax.f32 %v1045, 0.0
      %v1154 = vmax.f32 %v1048, 0.0
      %v1155 = vmax.f32 %v1053, 0.0
      %v1156 = vmax.f32 %v1056, 0.0
      %v1157 = vmax.f32 %v1061, 0.0
      %v1158 = vmax.f32 %v1064, 0.0
      %v1159 = vmax.f32 %v1069, 0.0
      %v1160 = vmax.f32 %v1072, 0.0
      %v1161 = vmax.f32 %v1077, 0.0
      %v1162 = vmax.f32 %v1080, 0.0
      %v1163 = vmax.f32 %v1085, 0.0
      %v1164 = vmax.f32 %v1088, 0.0
      %v1165 = vmax.f32 %v1093, 0.0
      %v1166 = vmax.f32 %v1096, 0.0
      %v1167 = vmax.f32 %v1101, 0.0
      %v1168 = vmax.f32 %v1104, 0.0
      %v1169 = vmax.f32 %v1109, 0.0
      %v1170 = vmax.f32 %v1112, 0.0
      %v1171 = vmax.f32 %v1117, 0.0
      %v1172 = vmax.f32 %v1120, 0.0
      %v1173 = vmax.f32 %v1125, 0.0
      %v1174 = vmax.f32 %v1128, 0.0
      %v1175 = vmax.f32 %v1133, 0.0
      %v1176 = vmax.f32 %v1136, 0.0
      %v1177 = vmax.f32 %v1141, 0.0
      %v1178 = vmax.f32 %v1144, 0.0
      %v1179 = vpack.c.bf16 %v1148, %v1147
      %v1180 = vpack.c.bf16 %v1150, %v1149
      %v1181 = vpack.c.bf16 %v1152, %v1151
      %v1182 = vpack.c.bf16 %v1154, %v1153
      %v1183 = vpack.c.bf16 %v1156, %v1155
      %v1184 = vpack.c.bf16 %v1158, %v1157
      %v1185 = vpack.c.bf16 %v1160, %v1159
      %v1186 = vpack.c.bf16 %v1162, %v1161
      %v1187 = vpack.c.bf16 %v1164, %v1163
      %v1188 = vpack.c.bf16 %v1166, %v1165
      %v1189 = vpack.c.bf16 %v1168, %v1167
      %v1190 = vpack.c.bf16 %v1170, %v1169
      %v1191 = vpack.c.bf16 %v1172, %v1171
      %v1192 = vpack.c.bf16 %v1174, %v1173
      %v1193 = vpack.c.bf16 %v1176, %v1175
      %v1194 = vpack.c.bf16 %v1178, %v1177
      %v1211 = vunpack.c.l.b16 %v1179
      %v1212 = vunpack.c.h.b16 %v1179
      %v1213 = vunpack.c.l.b16 %v1180
      %v1214 = vunpack.c.h.b16 %v1180
      %v1215 = vunpack.c.l.b16 %v1181
      %v1216 = vunpack.c.h.b16 %v1181
      %v1217 = vunpack.c.l.b16 %v1182
      %v1218 = vunpack.c.h.b16 %v1182
      %v1219 = vunpack.c.l.b16 %v1183
      %v1220 = vunpack.c.h.b16 %v1183
      %v1221 = vunpack.c.l.b16 %v1184
      %v1222 = vunpack.c.h.b16 %v1184
      %v1223 = vunpack.c.l.b16 %v1185
      %v1224 = vunpack.c.h.b16 %v1185
      %v1225 = vunpack.c.l.b16 %v1186
      %v1226 = vunpack.c.h.b16 %v1186
      %v1227 = vunpack.c.l.b16 %v1187
      %v1228 = vunpack.c.h.b16 %v1187
      %v1229 = vunpack.c.l.b16 %v1188
      %v1230 = vunpack.c.h.b16 %v1188
      %v1231 = vunpack.c.l.b16 %v1189
      %v1232 = vunpack.c.h.b16 %v1189
      %v1233 = vunpack.c.l.b16 %v1190
      %v1234 = vunpack.c.h.b16 %v1190
      %v1235 = vunpack.c.l.b16 %v1191
      %v1236 = vunpack.c.h.b16 %v1191
      %v1237 = vunpack.c.l.b16 %v1192
      %v1238 = vunpack.c.h.b16 %v1192
      %v1239 = vunpack.c.l.b16 %v1193
      %v1240 = vunpack.c.h.b16 %v1193
      %v1241 = vunpack.c.l.b16 %v1194
      %v1242 = vunpack.c.h.b16 %v1194
      %v1243 = vpack.c.b16 %v1211, %v1211
      %v1244 = vpack.c.b16 %v1212, %v1212
      %v1245 = vpack.c.b16 %v1213, %v1213
      %v1246 = vpack.c.b16 %v1214, %v1214
      %v1247 = vpack.c.b16 %v1215, %v1215
      %v1248 = vpack.c.b16 %v1216, %v1216
      %v1249 = vpack.c.b16 %v1217, %v1217
      %v1250 = vpack.c.b16 %v1218, %v1218
      %v1251 = vpack.c.b16 %v1219, %v1219
      %v1252 = vpack.c.b16 %v1220, %v1220
      %v1253 = vpack.c.b16 %v1221, %v1221
      %v1254 = vpack.c.b16 %v1222, %v1222
      %v1255 = vpack.c.b16 %v1223, %v1223
      %v1256 = vpack.c.b16 %v1224, %v1224
      %v1257 = vpack.c.b16 %v1225, %v1225
      %v1258 = vpack.c.b16 %v1226, %v1226
      %v1259 = vpack.c.b16 %v1227, %v1227
      %v1260 = vpack.c.b16 %v1228, %v1228
      %v1261 = vpack.c.b16 %v1229, %v1229
      %v1262 = vpack.c.b16 %v1230, %v1230
      %v1263 = vpack.c.b16 %v1231, %v1231
      %v1264 = vpack.c.b16 %v1232, %v1232
      %v1265 = vpack.c.b16 %v1233, %v1233
      %v1266 = vpack.c.b16 %v1234, %v1234
      %v1267 = vpack.c.b16 %v1235, %v1235
      %v1268 = vpack.c.b16 %v1236, %v1236
      %v1269 = vpack.c.b16 %v1237, %v1237
      %v1270 = vpack.c.b16 %v1238, %v1238
      %v1271 = vpack.c.b16 %v1239, %v1239
      %v1272 = vpack.c.b16 %v1240, %v1240
      %v1273 = vpack.c.b16 %v1241, %v1241
      %v1274 = vpack.c.b16 %v1242, %v1242
      %vm1307 = vcmask 519168
      %1308 = vst.msk [vmem:[%s175] sm:$0xf] %vm1307, %v1243
      %1309 = vst.msk [vmem:[%s175 + $0x4] sm:$0xf] %vm1307, %v1244
      %1310 = vst.msk [vmem:[%s175 + $0x8] sm:$0xf] %vm1307, %v1245
      %1311 = vst.msk [vmem:[%s175 + $0xc] sm:$0xf] %vm1307, %v1246
      %1312 = vst.msk [vmem:[%s175 + $0x10] sm:$0xf] %vm1307, %v1247
      %1313 = vst.msk [vmem:[%s175 + $0x14] sm:$0xf] %vm1307, %v1248
      %1314 = vst.msk [vmem:[%s175 + $0x18] sm:$0xf] %vm1307, %v1249
      %1315 = vst.msk [vmem:[%s175 + $0x1c] sm:$0xf] %vm1307, %v1250
      %1316 = vst.msk [vmem:[%s175 + $0x20] sm:$0xf] %vm1307, %v1251
      %1317 = vst.msk [vmem:[%s175 + $0x24] sm:$0xf] %vm1307, %v1252
      %1318 = vst.msk [vmem:[%s175 + $0x28] sm:$0xf] %vm1307, %v1253
      %1319 = vst.msk [vmem:[%s175 + $0x2c] sm:$0xf] %vm1307, %v1254
      %1320 = vst.msk [vmem:[%s175 + $0x30] sm:$0xf] %vm1307, %v1255
      %1321 = vst.msk [vmem:[%s175 + $0x34] sm:$0xf] %vm1307, %v1256
      %1322 = vst.msk [vmem:[%s175 + $0x38] sm:$0xf] %vm1307, %v1257
      %1323 = vst.msk [vmem:[%s175 + $0x3c] sm:$0xf] %vm1307, %v1258
      %1324 = vst.msk [vmem:[%s175 + $0x40] sm:$0xf] %vm1307, %v1259
      %1325 = vst.msk [vmem:[%s175 + $0x44] sm:$0xf] %vm1307, %v1260
      %1326 = vst.msk [vmem:[%s175 + $0x48] sm:$0xf] %vm1307, %v1261
      %1327 = vst.msk [vmem:[%s175 + $0x4c] sm:$0xf] %vm1307, %v1262
      %1328 = vst.msk [vmem:[%s175 + $0x50] sm:$0xf] %vm1307, %v1263
      %1329 = vst.msk [vmem:[%s175 + $0x54] sm:$0xf] %vm1307, %v1264
      %1330 = vst.msk [vmem:[%s175 + $0x58] sm:$0xf] %vm1307, %v1265
      %1331 = vst.msk [vmem:[%s175 + $0x5c] sm:$0xf] %vm1307, %v1266
      %1332 = vst.msk [vmem:[%s175 + $0x60] sm:$0xf] %vm1307, %v1267
      %1333 = vst.msk [vmem:[%s175 + $0x64] sm:$0xf] %vm1307, %v1268
      %1334 = vst.msk [vmem:[%s175 + $0x68] sm:$0xf] %vm1307, %v1269
      %1335 = vst.msk [vmem:[%s175 + $0x6c] sm:$0xf] %vm1307, %v1270
      %1336 = vst.msk [vmem:[%s175 + $0x70] sm:$0xf] %vm1307, %v1271
      %1337 = vst.msk [vmem:[%s175 + $0x74] sm:$0xf] %vm1307, %v1272
      %1338 = vst.msk [vmem:[%s175 + $0x78] sm:$0xf] %vm1307, %v1273
      %1339 = vst.msk [vmem:[%s175 + $0x7c] sm:$0xf] %vm1307, %v1274
      %s1340 = smul.u32 32, %s14
      %p1341 = scmp.lt.s32.totalorder %s1340, 63
      %s1342 = scalar_select %p1341, %s1340, 63
      %s1343 = smul.addr %s1342, 4
      %s1344 = scalar_lea.vmem %s3, %s1343
      // Predicated region
      $region33: #{encoder2d_gray_forward.2} parent=31 // pred_check
        %p1345 = pneg %p100
      $region34: #{encoder2d_gray_forward.2} parent=31 // pred_check_branch
        %1347 = sbr.rel (%p1345) target = $region36
      $region35: #{encoder2d_gray_forward.2} parent=31 // pred_region
        %s1348 = smul.u32 32, %s14
      $region36: #{encoder2d_gray_forward.2} parent=31 // pred_fallthru
        _
    $region32: #{encoder2d_gray_forward.2} parent=5 // pred_fallthru
      _
    %p1349 = scmp.le.s32.totalorder 2, %s9
    // Predicated region
    $region37: #{encoder2d_gray_forward.2} parent=5 // pred_check
      %p1350 = pneg %p1349
    $region38: #{encoder2d_gray_forward.2} parent=5 // pred_check_branch
      %1352 = sbr.rel (%p1350) target = $region40
    $region39: #{encoder2d_gray_forward.2} parent=5 // pred_region
      %s1353 = ssub.s32 %s9, 2
      // Predicated region
      $region41: #{encoder2d_gray_forward.2} parent=39 // pred_check
        %p1354 = pneg %p106
      $region42: #{encoder2d_gray_forward.2} parent=39 // pred_check_branch
        %1356 = sbr.rel (%p1354) target = $region44
      $region43: #{encoder2d_gray_forward.2} parent=39 // pred_region
        %s1357 = smul.u32 32, %s15
        %p1358 = scmp.lt.s32.totalorder %s1357, 63
        %s1359 = scalar_select %p1358, %s1357, 63
        %s1360 = smul.addr %s1359, 4
        %s1361 = scalar_lea.vmem %s3, %s1360
      $region44: #{encoder2d_gray_forward.2} parent=39 // pred_fallthru
        _
    $region40: #{encoder2d_gray_forward.2} parent=5 // pred_fallthru
      _
  $region6: #{encoder2d_gray_forward.2} parent=0 // loop_footer
    %s13 = sadd.s32 1, %s9
  $region7: #{encoder2d_gray_forward.2} parent=0 // loop_footer_branch
    %8 = sbr.rel target = $region3
  $region8: #{encoder2d_gray_forward.2} parent=0 // loop_exit
    _

// kernel: encoder2d_gray_forward.3
$region0: #{encoder2d_gray_forward.3}
  #allocation0 [shape = 'u32[]', space=smem, size = 0x4, offset = 0x4, fixed_abs, tag = 'smem constant byte address 0x4 - core index']
  #allocation1 [shape = 'u32[144,128]{1,0:T(1,128)}', space=vmem, size = 0x12000, scoped, tag = 'internal scratch']
  #allocation2 [shape = 'f32[2,256]{1,0:T(2,128)}', space=vmem, size = 0x800, scoped, tag = 'scratch operand']
  %s0 = inlined_call_operand.vmem [shape: bf16[2,16384], index: 0, kind: input, shape index: {}]
  %s1 = inlined_call_operand.vmem [shape: s8[16384,512], index: 1, kind: input, shape index: {}]
  %s2 = inlined_call_operand.vmem [shape: f32[1,512], index: 2, kind: input, shape index: {}]
  %s3 = inlined_call_operand.vmem [shape: f32[1,512], index: 3, kind: input, shape index: {}]
  %s4 = inlined_call_operand.vmem [shape: f32[2,512], index: 4, kind: output, shape index: {}]
  %s5 = sld [smem:[#allocation0]]
  $region80: #{encoder2d_gray_forward.3} parent=0
    _
  %s7 = ssub.s32 1, %s5
  %s8 = scalar_select 0, %s7, %s5
  $region1: #{encoder2d_gray_forward.3} parent=0
    #allocation3 [shape = 'u8[4194304]{0}', space=vmem, size = 0x400000, scoped, tag = 'input window, operand 1']
    loop: start=0, step=1, limit=6
    $region2: #{encoder2d_gray_forward.3} parent=1 // loop_pre_header
      _
    $region3: #{encoder2d_gray_forward.3} parent=1 // loop_header
      %s10 = sphi 0, %s14
      %p11 = scmp.ge.s32.totalorder %s10, 6
      %s17 = sphi 0, %s29
      %s18 = sphi 0, %s25
      %s19 = sphi 0, %s17
      %s20 = sphi 0, %s18
      %s21 = sphi 0, %s19
      %s22 = sphi 0, %s20
      %s32 = sphi 0, %s34
      %s35 = sphi 0, %s32
      %s36 = sphi 0, %s35
      %s52 = sphi 0, %s36
      %s60 = sphi 0, %s62
      %s63 = sphi 0, %s60
      %s64 = sphi 0, %s63
      %s80 = sphi 0, %s64
      %s86 = sphi 0, %s88
      %s89 = sphi 0, %s86
      %s90 = sphi 0, %s89
      %s106 = sphi 0, %s90
      %s112 = sphi 0, %s114
      %s115 = sphi 0, %s112
      %s116 = sphi 0, %s115
      %s132 = sphi 0, %s116
      %s138 = sphi 0, %s140
      %s141 = sphi 0, %s138
      %s142 = sphi 0, %s141
      %s158 = sphi 0, %s142
    $region4: #{encoder2d_gray_forward.3} parent=1 // loop_header_branch
      %13 = sbr.rel (%p11) target = $region8
    $region5: #{encoder2d_gray_forward.3} parent=1 // loop_body
      %s15 = ssub.s32 %s10, 1
      %s16 = ssub.s32 %s10, 2
      %s23 = sadd.s32 1, %s18
      %p24 = scmp.ge.s32.totalorder %s23, 2
      %s25 = scalar_select %p24, 0, %s23
      %s26 = sadd.s32 1, %s17
      %s27 = scalar_select %p24, %s26, %s17
      %p28 = scmp.ge.s32.totalorder %s27, 2
      %s29 = scalar_select %p28, 0, %s27
      %s30 = ssub.s32 %s18, %s25
      %p31 = scmp.eq.s32.totalorder %s30, 0
      %s33 = sadd.s32 %s32, 1
      %s34 = scalar_select %p31, %s32, %s33
      %p37 = pneg %p31
      %p38 = scmp.eq.s32.totalorder %s10, 3
      %p39 = por %p37, %p38
      %p40 = scmp.ne.s32.totalorder %s32, %s35
      %p41 = scmp.eq.s32.totalorder %s10, 0
      %p42 = por %p40, %p41
      %p43 = scmp.ne.s32.totalorder %s32, %s35
      %p44 = scmp.eq.s32.totalorder %s15, 3
      %p45 = por %p43, %p44
      %p46 = scmp.ne.s32.totalorder %s35, %s36
      %p47 = scmp.eq.s32.totalorder %s15, 0
      %p48 = por %p46, %p47
      %p49 = scmp.ne.s32.totalorder %s35, %s36
      %p50 = scmp.eq.s32.totalorder %s16, 3
      %p51 = por %p49, %p50
      %p53 = scmp.ne.s32.totalorder %s36, %s52
      %p54 = scmp.eq.s32.totalorder %s16, 0
      %p55 = por %p53, %p54
      %s56 = ssub.s32 %s18, %s25
      %s57 = ssub.s32 %s17, %s29
      %s58 = sor.u32 %s56, %s57
      %p59 = scmp.eq.s32.totalorder %s58, 0
      %s61 = sadd.s32 %s60, 1
      %s62 = scalar_select %p59, %s60, %s61
      %p65 = pneg %p59
      %p66 = scmp.eq.s32.totalorder %s10, 3
      %p67 = por %p65, %p66
      %p68 = scmp.ne.s32.totalorder %s60, %s63
      %p69 = scmp.eq.s32.totalorder %s10, 0
      %p70 = por %p68, %p69
      %p71 = scmp.ne.s32.totalorder %s60, %s63
      %p72 = scmp.eq.s32.totalorder %s15, 3
      %p73 = por %p71, %p72
      %p74 = scmp.ne.s32.totalorder %s63, %s64
      %p75 = scmp.eq.s32.totalorder %s15, 0
      %p76 = por %p74, %p75
      %p77 = scmp.ne.s32.totalorder %s63, %s64
      %p78 = scmp.eq.s32.totalorder %s16, 3
      %p79 = por %p77, %p78
      %p81 = scmp.ne.s32.totalorder %s64, %s80
      %p82 = scmp.eq.s32.totalorder %s16, 0
      %p83 = por %p81, %p82
      %s84 = ssub.s32 %s17, %s29
      %p85 = scmp.eq.s32.totalorder %s84, 0
      %s87 = sadd.s32 %s86, 1
      %s88 = scalar_select %p85, %s86, %s87
      %p91 = pneg %p85
      %p92 = scmp.eq.s32.totalorder %s10, 3
      %p93 = por %p91, %p92
      %p94 = scmp.ne.s32.totalorder %s86, %s89
      %p95 = scmp.eq.s32.totalorder %s10, 0
      %p96 = por %p94, %p95
      %p97 = scmp.ne.s32.totalorder %s86, %s89
      %p98 = scmp.eq.s32.totalorder %s15, 3
      %p99 = por %p97, %p98
      %p100 = scmp.ne.s32.totalorder %s89, %s90
      %p101 = scmp.eq.s32.totalorder %s15, 0
      %p102 = por %p100, %p101
      %p103 = scmp.ne.s32.totalorder %s89, %s90
      %p104 = scmp.eq.s32.totalorder %s16, 3
      %p105 = por %p103, %p104
      %p107 = scmp.ne.s32.totalorder %s90, %s106
      %p108 = scmp.eq.s32.totalorder %s16, 0
      %p109 = por %p107, %p108
      %s110 = ssub.s32 %s17, %s29
      %p111 = scmp.eq.s32.totalorder %s110, 0
      %s113 = sadd.s32 %s112, 1
      %s114 = scalar_select %p111, %s112, %s113
      %p117 = pneg %p111
      %p118 = scmp.eq.s32.totalorder %s10, 3
      %p119 = por %p117, %p118
      %p120 = scmp.ne.s32.totalorder %s112, %s115
      %p121 = scmp.eq.s32.totalorder %s10, 0
      %p122 = por %p120, %p121
      %p123 = scmp.ne.s32.totalorder %s112, %s115
      %p124 = scmp.eq.s32.totalorder %s15, 3
      %p125 = por %p123, %p124
      %p126 = scmp.ne.s32.totalorder %s115, %s116
      %p127 = scmp.eq.s32.totalorder %s15, 0
      %p128 = por %p126, %p127
      %p129 = scmp.ne.s32.totalorder %s115, %s116
      %p130 = scmp.eq.s32.totalorder %s16, 3
      %p131 = por %p129, %p130
      %p133 = scmp.ne.s32.totalorder %s116, %s132
      %p134 = scmp.eq.s32.totalorder %s16, 0
      %p135 = por %p133, %p134
      %s136 = ssub.s32 %s17, %s29
      %p137 = scmp.eq.s32.totalorder %s136, 0
      %s139 = sadd.s32 %s138, 1
      %s140 = scalar_select %p137, %s138, %s139
      %p143 = pneg %p137
      %p144 = scmp.eq.s32.totalorder %s10, 3
      %p145 = por %p143, %p144
      %p146 = scmp.ne.s32.totalorder %s138, %s141
      %p147 = scmp.eq.s32.totalorder %s10, 0
      %p148 = por %p146, %p147
      %p149 = scmp.ne.s32.totalorder %s138, %s141
      %p150 = scmp.eq.s32.totalorder %s15, 3
      %p151 = por %p149, %p150
      %p152 = scmp.ne.s32.totalorder %s141, %s142
      %p153 = scmp.eq.s32.totalorder %s15, 0
      %p154 = por %p152, %p153
      %p155 = scmp.ne.s32.totalorder %s141, %s142
      %p156 = scmp.eq.s32.totalorder %s16, 3
      %p157 = por %p155, %p156
      %p159 = scmp.ne.s32.totalorder %s142, %s158
      %p160 = scmp.eq.s32.totalorder %s16, 0
      %p161 = por %p159, %p160
      %p162 = scmp.le.s32.totalorder 1, %s10
      %p163 = scmp.lt.s32.totalorder %s10, 5
      %p164 = pnand %p162, %p163
      %p165 = pneg %p164
      // Predicated region
      $region9: #{encoder2d_gray_forward.3} parent=5 // pred_check
        _
      $region10: #{encoder2d_gray_forward.3} parent=5 // pred_check_branch
        %167 = sbr.rel (%p164) target = $region12
      $region11: #{encoder2d_gray_forward.3} parent=5 // pred_region
        %s168 = ssub.s32 %s10, 1
      $region12: #{encoder2d_gray_forward.3} parent=5 // pred_fallthru
        _
      %p169 = scmp.lt.s32.totalorder %s10, 4
      // Predicated region
      $region13: #{encoder2d_gray_forward.3} parent=5 // pred_check
        %p170 = pneg %p169
      $region14: #{encoder2d_gray_forward.3} parent=5 // pred_check_branch
        %172 = sbr.rel (%p170) target = $region16
      $region15: #{encoder2d_gray_forward.3} parent=5 // pred_region
        // Predicated region
        $region17: #{encoder2d_gray_forward.3} parent=15 // pred_check
          %p173 = pneg %p42
        $region18: #{encoder2d_gray_forward.3} parent=15 // pred_check_branch
          %175 = sbr.rel (%p173) target = $region20
        $region19: #{encoder2d_gray_forward.3} parent=15 // pred_region
          %s176 = smul.u32 64, %s18
          %p177 = scmp.lt.s32.totalorder %s176, 127
          %s178 = scalar_select %p177, %s176, 127
          %s179 = scalar_lea.vmem %s0, %s178
          %s180 = smul.u32 64, %s18
        $region20: #{encoder2d_gray_forward.3} parent=15 // pred_fallthru
          _
        // Predicated region
        $region21: #{encoder2d_gray_forward.3} parent=15 // pred_check
          %p181 = pneg %p70
        $region22: #{encoder2d_gray_forward.3} parent=15 // pred_check_branch
          %183 = sbr.rel (%p181) target = $region24
        $region23: #{encoder2d_gray_forward.3} parent=15 // pred_region
          %s184 = sand.u32 %s60, 1
          %s185 = sand.u32 %s60, 1
          %s186 = smul.addr %s185, 4096
          %s187 = scalar_lea.vmem [#allocation3], %s186
          %s188 = smul.u32 256, %s18
          %s189 = smul.u32 2, %s17
          %s190 = smul.addr %s188, 4
          %s191 = sadd.s32 %s189, %s190
          %s192 = smul.addr %s191, 8
          %s193 = scalar_lea.vmem %s1, %s192
          // Predicated region
          $region25: #{encoder2d_gray_forward.3} parent=23 // pred_check
            _
          $region26: #{encoder2d_gray_forward.3} parent=23 // pred_check_branch
            %195 = sbr.rel (0) target = $region28
          $region27: #{encoder2d_gray_forward.3} parent=23 // pred_region
            // Predicated region
            $region29: #{encoder2d_gray_forward.3} parent=27 // pred_check
              _
            $region30: #{encoder2d_gray_forward.3} parent=27 // pred_check_branch
              %197 = sbr.rel (0) target = $region32
            $region31: #{encoder2d_gray_forward.3} parent=27 // pred_region
              loop: start=0, step=1, limit=1
              $region33: #{encoder2d_gray_forward.3} parent=31 // loop_pre_header
                _
              $region34: #{encoder2d_gray_forward.3} parent=31 // loop_header
                %s199 = sphi 0, %s203
                %p200 = scmp.ge.s32.totalorder %s199, 1
                %s204 = sphi %s193, %s193
                %s205 = sphi %s187, %s187
              $region35: #{encoder2d_gray_forward.3} parent=31 // loop_header_branch
                %202 = sbr.rel (%p200) target = $region39
              $region36: #{encoder2d_gray_forward.3} parent=31 // loop_body
                %v206 = vld [vmem:[%s204] sm:$0xff]
                %207 = vst [vmem:[%s205] sm:$0xff] %v206
                %v208 = vld [vmem:[%s204 + $0x8] sm:$0xff]
                %209 = vst [vmem:[%s205 + $0x8] sm:$0xff] %v208
                %v210 = vld [vmem:[%s204 + $0x20] sm:$0xff]
                %211 = vst [vmem:[%s205 + $0x10] sm:$0xff] %v210
                %v212 = vld [vmem:[%s204 + $0x28] sm:$0xff]
                %213 = vst [vmem:[%s205 + $0x18] sm:$0xff] %v212
                %v214 = vld [vmem:[%s204 + $0x40] sm:$0xff]
                %215 = vst [vmem:[%s205 + $0x20] sm:$0xff] %v214
                %v216 = vld [vmem:[%s204 + $0x48] sm:$0xff]
                %217 = vst [vmem:[%s205 + $0x28] sm:$0xff] %v216
                %v218 = vld [vmem:[%s204 + $0x60] sm:$0xff]
                %219 = vst [vmem:[%s205 + $0x30] sm:$0xff] %v218
                %v220 = vld [vmem:[%s204 + $0x68] sm:$0xff]
                %221 = vst [vmem:[%s205 + $0x38] sm:$0xff] %v220
                %v222 = vld [vmem:[%s204 + $0x80] sm:$0xff]
                %223 = vst [vmem:[%s205 + $0x40] sm:$0xff] %v222
                %v224 = vld [vmem:[%s204 + $0x88] sm:$0xff]
                %225 = vst [vmem:[%s205 + $0x48] sm:$0xff] %v224
                %v226 = vld [vmem:[%s204 + $0xa0] sm:$0xff]
                %227 = vst [vmem:[%s205 + $0x50] sm:$0xff] %v226
                %v228 = vld [vmem:[%s204 + $0xa8] sm:$0xff]
                %229 = vst [vmem:[%s205 + $0x58] sm:$0xff] %v228
                %v230 = vld [vmem:[%s204 + $0xc0] sm:$0xff]
                %231 = vst [vmem:[%s205 + $0x60] sm:$0xff] %v230
                %v232 = vld [vmem:[%s204 + $0xc8] sm:$0xff]
                %233 = vst [vmem:[%s205 + $0x68] sm:$0xff] %v232
                %v234 = vld [vmem:[%s204 + $0xe0] sm:$0xff]
                %235 = vst [vmem:[%s205 + $0x70] sm:$0xff] %v234
                %v236 = vld [vmem:[%s204 + $0xe8] sm:$0xff]
                %237 = vst [vmem:[%s205 + $0x78] sm:$0xff] %v236
                %v238 = vld [vmem:[%s204 + $0x100] sm:$0xff]
                %239 = vst [vmem:[%s205 + $0x80] sm:$0xff] %v238
                %v240 = vld [vmem:[%s204 + $0x108] sm:$0xff]
                %241 = vst [vmem:[%s205 + $0x88] sm:$0xff] %v240
                %v242 = vld [vmem:[%s204 + $0x120] sm:$0xff]
                %243 = vst [vmem:[%s205 + $0x90] sm:$0xff] %v242
                %v244 = vld [vmem:[%s204 + $0x128] sm:$0xff]
                %245 = vst [vmem:[%s205 + $0x98] sm:$0xff] %v244
                %v246 = vld [vmem:[%s204 + $0x140] sm:$0xff]
                %247 = vst [vmem:[%s205 + $0xa0] sm:$0xff] %v246
                %v248 = vld [vmem:[%s204 + $0x148] sm:$0xff]
                %249 = vst [vmem:[%s205 + $0xa8] sm:$0xff] %v248
                %v250 = vld [vmem:[%s204 + $0x160] sm:$0xff]
                %251 = vst [vmem:[%s205 + $0xb0] sm:$0xff] %v250
                %v252 = vld [vmem:[%s204 + $0x168] sm:$0xff]
                %253 = vst [vmem:[%s205 + $0xb8] sm:$0xff] %v252
                %v254 = vld [vmem:[%s204 + $0x180] sm:$0xff]
                %255 = vst [vmem:[%s205 + $0xc0] sm:$0xff] %v254
                %v256 = vld [vmem:[%s204 + $0x188] sm:$0xff]
                %257 = vst [vmem:[%s205 + $0xc8] sm:$0xff] %v256
                %v258 = vld [vmem:[%s204 + $0x1a0] sm:$0xff]
                %259 = vst [vmem:[%s205 + $0xd0] sm:$0xff] %v258
                %v260 = vld [vmem:[%s204 + $0x1a8] sm:$0xff]
                %261 = vst [vmem:[%s205 + $0xd8] sm:$0xff] %v260
                %v262 = vld [vmem:[%s204 + $0x1c0] sm:$0xff]
                %263 = vst [vmem:[%s205 + $0xe0] sm:$0xff] %v262
                %v264 = vld [vmem:[%s204 + $0x1c8] sm:$0xff]
                %265 = vst [vmem:[%s205 + $0xe8] sm:$0xff] %v264
                %v266 = vld [vmem:[%s204 + $0x1e0] sm:$0xff]
                %267 = vst [vmem:[%s205 + $0xf0] sm:$0xff] %v266
                %v268 = vld [vmem:[%s204 + $0x1e8] sm:$0xff]
                %269 = vst [vmem:[%s205 + $0xf8] sm:$0xff] %v268
                %v270 = vld [vmem:[%s204 + $0x200] sm:$0xff]
                %271 = vst [vmem:[%s205 + $0x100] sm:$0xff] %v270
                %v272 = vld [vmem:[%s204 + $0x208] sm:$0xff]
                %273 = vst [vmem:[%s205 + $0x108] sm:$0xff] %v272
                %v274 = vld [vmem:[%s204 + $0x220] sm:$0xff]
                %275 = vst [vmem:[%s205 + $0x110] sm:$0xff] %v274
                %v276 = vld [vmem:[%s204 + $0x228] sm:$0xff]
                %277 = vst [vmem:[%s205 + $0x118] sm:$0xff] %v276
                %v278 = vld [vmem:[%s204 + $0x240] sm:$0xff]
                %279 = vst [vmem:[%s205 + $0x120] sm:$0xff] %v278
                %v280 = vld [vmem:[%s204 + $0x248] sm:$0xff]
                %281 = vst [vmem:[%s205 + $0x128] sm:$0xff] %v280
                %v282 = vld [vmem:[%s204 + $0x260] sm:$0xff]
                %283 = vst [vmem:[%s205 + $0x130] sm:$0xff] %v282
                %v284 = vld [vmem:[%s204 + $0x268] sm:$0xff]
                %285 = vst [vmem:[%s205 + $0x138] sm:$0xff] %v284
                %v286 = vld [vmem:[%s204 + $0x280] sm:$0xff]
                %287 = vst [vmem:[%s205 + $0x140] sm:$0xff] %v286
                %v288 = vld [vmem:[%s204 + $0x288] sm:$0xff]
                %289 = vst [vmem:[%s205 + $0x148] sm:$0xff] %v288
                %v290 = vld [vmem:[%s204 + $0x2a0] sm:$0xff]
                %291 = vst [vmem:[%s205 + $0x150] sm:$0xff] %v290
                %v292 = vld [vmem:[%s204 + $0x2a8] sm:$0xff]
                %293 = vst [vmem:[%s205 + $0x158] sm:$0xff] %v292
                %v294 = vld [vmem:[%s204 + $0x2c0] sm:$0xff]
                %295 = vst [vmem:[%s205 + $0x160] sm:$0xff] %v294
                %v296 = vld [vmem:[%s204 + $0x2c8] sm:$0xff]
                %297 = vst [vmem:[%s205 + $0x168] sm:$0xff] %v296
                %v298 = vld [vmem:[%s204 + $0x2e0] sm:$0xff]
                %299 = vst [vmem:[%s205 + $0x170] sm:$0xff] %v298
                %v300 = vld [vmem:[%s204 + $0x2e8] sm:$0xff]
                %301 = vst [vmem:[%s205 + $0x178] sm:$0xff] %v300
                %v302 = vld [vmem:[%s204 + $0x300] sm:$0xff]
                %303 = vst [vmem:[%s205 + $0x180] sm:$0xff] %v302
                %v304 = vld [vmem:[%s204 + $0x308] sm:$0xff]
                %305 = vst [vmem:[%s205 + $0x188] sm:$0xff] %v304
                %v306 = vld [vmem:[%s204 + $0x320] sm:$0xff]
                %307 = vst [vmem:[%s205 + $0x190] sm:$0xff] %v306
                %v308 = vld [vmem:[%s204 + $0x328] sm:$0xff]
                %309 = vst [vmem:[%s205 + $0x198] sm:$0xff] %v308
                %v310 = vld [vmem:[%s204 + $0x340] sm:$0xff]
                %311 = vst [vmem:[%s205 + $0x1a0] sm:$0xff] %v310
                %v312 = vld [vmem:[%s204 + $0x348] sm:$0xff]
                %313 = vst [vmem:[%s205 + $0x1a8] sm:$0xff] %v312
                %v314 = vld [vmem:[%s204 + $0x360] sm:$0xff]
                %315 = vst [vmem:[%s205 + $0x1b0] sm:$0xff] %v314
                %v316 = vld [vmem:[%s204 + $0x368] sm:$0xff]
                %317 = vst [vmem:[%s205 + $0x1b8] sm:$0xff] %v316
                %v318 = vld [vmem:[%s204 + $0x380] sm:$0xff]
                %319 = vst [vmem:[%s205 + $0x1c0] sm:$0xff] %v318
                %v320 = vld [vmem:[%s204 + $0x388] sm:$0xff]
                %321 = vst [vmem:[%s205 + $0x1c8] sm:$0xff] %v320
                %v322 = vld [vmem:[%s204 + $0x3a0] sm:$0xff]
                %323 = vst [vmem:[%s205 + $0x1d0] sm:$0xff] %v322
                %v324 = vld [vmem:[%s204 + $0x3a8] sm:$0xff]
                %325 = vst [vmem:[%s205 + $0x1d8] sm:$0xff] %v324
                %v326 = vld [vmem:[%s204 + $0x3c0] sm:$0xff]
                %327 = vst [vmem:[%s205 + $0x1e0] sm:$0xff] %v326
                %v328 = vld [vmem:[%s204 + $0x3c8] sm:$0xff]
                %329 = vst [vmem:[%s205 + $0x1e8] sm:$0xff] %v328
                %v330 = vld [vmem:[%s204 + $0x3e0] sm:$0xff]
                %331 = vst [vmem:[%s205 + $0x1f0] sm:$0xff] %v330
                %v332 = vld [vmem:[%s204 + $0x3e8] sm:$0xff]
                %333 = vst [vmem:[%s205 + $0x1f8] sm:$0xff] %v332
                %v334 = vld [vmem:[%s204 + $0x400] sm:$0xff]
                %335 = vst [vmem:[%s205 + $0x200] sm:$0xff] %v334
                %v336 = vld [vmem:[%s204 + $0x408] sm:$0xff]
                %337 = vst [vmem:[%s205 + $0x208] sm:$0xff] %v336
                %v338 = vld [vmem:[%s204 + $0x420] sm:$0xff]
                %339 = vst [vmem:[%s205 + $0x210] sm:$0xff] %v338
                %v340 = vld [vmem:[%s204 + $0x428] sm:$0xff]
                %341 = vst [vmem:[%s205 + $0x218] sm:$0xff] %v340
                %v342 = vld [vmem:[%s204 + $0x440] sm:$0xff]
                %343 = vst [vmem:[%s205 + $0x220] sm:$0xff] %v342
                %v344 = vld [vmem:[%s204 + $0x448] sm:$0xff]
                %345 = vst [vmem:[%s205 + $0x228] sm:$0xff] %v344
                %v346 = vld [vmem:[%s204 + $0x460] sm:$0xff]
                %347 = vst [vmem:[%s205 + $0x230] sm:$0xff] %v346
                %v348 = vld [vmem:[%s204 + $0x468] sm:$0xff]
                %349 = vst [vmem:[%s205 + $0x238] sm:$0xff] %v348
                %v350 = vld [vmem:[%s204 + $0x480] sm:$0xff]
                %351 = vst [vmem:[%s205 + $0x240] sm:$0xff] %v350
                %v352 = vld [vmem:[%s204 + $0x488] sm:$0xff]
                %353 = vst [vmem:[%s205 + $0x248] sm:$0xff] %v352
                %v354 = vld [vmem:[%s204 + $0x4a0] sm:$0xff]
                %355 = vst [vmem:[%s205 + $0x250] sm:$0xff] %v354
                %v356 = vld [vmem:[%s204 + $0x4a8] sm:$0xff]
                %357 = vst [vmem:[%s205 + $0x258] sm:$0xff] %v356
                %v358 = vld [vmem:[%s204 + $0x4c0] sm:$0xff]
                %359 = vst [vmem:[%s205 + $0x260] sm:$0xff] %v358
                %v360 = vld [vmem:[%s204 + $0x4c8] sm:$0xff]
                %361 = vst [vmem:[%s205 + $0x268] sm:$0xff] %v360
                %v362 = vld [vmem:[%s204 + $0x4e0] sm:$0xff]
                %363 = vst [vmem:[%s205 + $0x270] sm:$0xff] %v362
                %v364 = vld [vmem:[%s204 + $0x4e8] sm:$0xff]
                %365 = vst [vmem:[%s205 + $0x278] sm:$0xff] %v364
                %v366 = vld [vmem:[%s204 + $0x500] sm:$0xff]
                %367 = vst [vmem:[%s205 + $0x280] sm:$0xff] %v366
                %v368 = vld [vmem:[%s204 + $0x508] sm:$0xff]
                %369 = vst [vmem:[%s205 + $0x288] sm:$0xff] %v368
                %v370 = vld [vmem:[%s204 + $0x520] sm:$0xff]
                %371 = vst [vmem:[%s205 + $0x290] sm:$0xff] %v370
                %v372 = vld [vmem:[%s204 + $0x528] sm:$0xff]
                %373 = vst [vmem:[%s205 + $0x298] sm:$0xff] %v372
                %v374 = vld [vmem:[%s204 + $0x540] sm:$0xff]
                %375 = vst [vmem:[%s205 + $0x2a0] sm:$0xff] %v374
                %v376 = vld [vmem:[%s204 + $0x548] sm:$0xff]
                %377 = vst [vmem:[%s205 + $0x2a8] sm:$0xff] %v376
                %v378 = vld [vmem:[%s204 + $0x560] sm:$0xff]
                %379 = vst [vmem:[%s205 + $0x2b0] sm:$0xff] %v378
                %v380 = vld [vmem:[%s204 + $0x568] sm:$0xff]
                %381 = vst [vmem:[%s205 + $0x2b8] sm:$0xff] %v380
                %v382 = vld [vmem:[%s204 + $0x580] sm:$0xff]
                %383 = vst [vmem:[%s205 + $0x2c0] sm:$0xff] %v382
                %v384 = vld [vmem:[%s204 + $0x588] sm:$0xff]
                %385 = vst [vmem:[%s205 + $0x2c8] sm:$0xff] %v384
                %v386 = vld [vmem:[%s204 + $0x5a0] sm:$0xff]
                %387 = vst [vmem:[%s205 + $0x2d0] sm:$0xff] %v386
                %v388 = vld [vmem:[%s204 + $0x5a8] sm:$0xff]
                %389 = vst [vmem:[%s205 + $0x2d8] sm:$0xff] %v388
                %v390 = vld [vmem:[%s204 + $0x5c0] sm:$0xff]
                %391 = vst [vmem:[%s205 + $0x2e0] sm:$0xff] %v390
                %v392 = vld [vmem:[%s204 + $0x5c8] sm:$0xff]
                %393 = vst [vmem:[%s205 + $0x2e8] sm:$0xff] %v392
                %v394 = vld [vmem:[%s204 + $0x5e0] sm:$0xff]
                %395 = vst [vmem:[%s205 + $0x2f0] sm:$0xff] %v394
                %v396 = vld [vmem:[%s204 + $0x5e8] sm:$0xff]
                %397 = vst [vmem:[%s205 + $0x2f8] sm:$0xff] %v396
                %v398 = vld [vmem:[%s204 + $0x600] sm:$0xff]
                %399 = vst [vmem:[%s205 + $0x300] sm:$0xff] %v398
                %v400 = vld [vmem:[%s204 + $0x608] sm:$0xff]
                %401 = vst [vmem:[%s205 + $0x308] sm:$0xff] %v400
                %v402 = vld [vmem:[%s204 + $0x620] sm:$0xff]
                %403 = vst [vmem:[%s205 + $0x310] sm:$0xff] %v402
                %v404 = vld [vmem:[%s204 + $0x628] sm:$0xff]
                %405 = vst [vmem:[%s205 + $0x318] sm:$0xff] %v404
                %v406 = vld [vmem:[%s204 + $0x640] sm:$0xff]
                %407 = vst [vmem:[%s205 + $0x320] sm:$0xff] %v406
                %v408 = vld [vmem:[%s204 + $0x648] sm:$0xff]
                %409 = vst [vmem:[%s205 + $0x328] sm:$0xff] %v408
                %v410 = vld [vmem:[%s204 + $0x660] sm:$0xff]
                %411 = vst [vmem:[%s205 + $0x330] sm:$0xff] %v410
                %v412 = vld [vmem:[%s204 + $0x668] sm:$0xff]
                %413 = vst [vmem:[%s205 + $0x338] sm:$0xff] %v412
                %v414 = vld [vmem:[%s204 + $0x680] sm:$0xff]
                %415 = vst [vmem:[%s205 + $0x340] sm:$0xff] %v414
                %v416 = vld [vmem:[%s204 + $0x688] sm:$0xff]
                %417 = vst [vmem:[%s205 + $0x348] sm:$0xff] %v416
                %v418 = vld [vmem:[%s204 + $0x6a0] sm:$0xff]
                %419 = vst [vmem:[%s205 + $0x350] sm:$0xff] %v418
                %v420 = vld [vmem:[%s204 + $0x6a8] sm:$0xff]
                %421 = vst [vmem:[%s205 + $0x358] sm:$0xff] %v420
                %v422 = vld [vmem:[%s204 + $0x6c0] sm:$0xff]
                %423 = vst [vmem:[%s205 + $0x360] sm:$0xff] %v422
                %v424 = vld [vmem:[%s204 + $0x6c8] sm:$0xff]
                %425 = vst [vmem:[%s205 + $0x368] sm:$0xff] %v424
                %v426 = vld [vmem:[%s204 + $0x6e0] sm:$0xff]
                %427 = vst [vmem:[%s205 + $0x370] sm:$0xff] %v426
                %v428 = vld [vmem:[%s204 + $0x6e8] sm:$0xff]
                %429 = vst [vmem:[%s205 + $0x378] sm:$0xff] %v428
                %v430 = vld [vmem:[%s204 + $0x700] sm:$0xff]
                %431 = vst [vmem:[%s205 + $0x380] sm:$0xff] %v430
                %v432 = vld [vmem:[%s204 + $0x708] sm:$0xff]
                %433 = vst [vmem:[%s205 + $0x388] sm:$0xff] %v432
                %v434 = vld [vmem:[%s204 + $0x720] sm:$0xff]
                %435 = vst [vmem:[%s205 + $0x390] sm:$0xff] %v434
                %v436 = vld [vmem:[%s204 + $0x728] sm:$0xff]
                %437 = vst [vmem:[%s205 + $0x398] sm:$0xff] %v436
                %v438 = vld [vmem:[%s204 + $0x740] sm:$0xff]
                %439 = vst [vmem:[%s205 + $0x3a0] sm:$0xff] %v438
                %v440 = vld [vmem:[%s204 + $0x748] sm:$0xff]
                %441 = vst [vmem:[%s205 + $0x3a8] sm:$0xff] %v440
                %v442 = vld [vmem:[%s204 + $0x760] sm:$0xff]
                %443 = vst [vmem:[%s205 + $0x3b0] sm:$0xff] %v442
                %v444 = vld [vmem:[%s204 + $0x768] sm:$0xff]
                %445 = vst [vmem:[%s205 + $0x3b8] sm:$0xff] %v444
                %v446 = vld [vmem:[%s204 + $0x780] sm:$0xff]
                %447 = vst [vmem:[%s205 + $0x3c0] sm:$0xff] %v446
                %v448 = vld [vmem:[%s204 + $0x788] sm:$0xff]
                %449 = vst [vmem:[%s205 + $0x3c8] sm:$0xff] %v448
                %v450 = vld [vmem:[%s204 + $0x7a0] sm:$0xff]
                %451 = vst [vmem:[%s205 + $0x3d0] sm:$0xff] %v450
                %v452 = vld [vmem:[%s204 + $0x7a8] sm:$0xff]
                %453 = vst [vmem:[%s205 + $0x3d8] sm:$0xff] %v452
                %v454 = vld [vmem:[%s204 + $0x7c0] sm:$0xff]
                %455 = vst [vmem:[%s205 + $0x3e0] sm:$0xff] %v454
                %v456 = vld [vmem:[%s204 + $0x7c8] sm:$0xff]
                %457 = vst [vmem:[%s205 + $0x3e8] sm:$0xff] %v456
                %v458 = vld [vmem:[%s204 + $0x7e0] sm:$0xff]
                %459 = vst [vmem:[%s205 + $0x3f0] sm:$0xff] %v458
                %v460 = vld [vmem:[%s204 + $0x7e8] sm:$0xff]
                %461 = vst [vmem:[%s205 + $0x3f8] sm:$0xff] %v460
                %v462 = vld [vmem:[%s204 + $0x800] sm:$0xff]
                %463 = vst [vmem:[%s205 + $0x400] sm:$0xff] %v462
                %v464 = vld [vmem:[%s204 + $0x808] sm:$0xff]
                %465 = vst [vmem:[%s205 + $0x408] sm:$0xff] %v464
                %v466 = vld [vmem:[%s204 + $0x820] sm:$0xff]
                %467 = vst [vmem:[%s205 + $0x410] sm:$0xff] %v466
                %v468 = vld [vmem:[%s204 + $0x828] sm:$0xff]
                %469 = vst [vmem:[%s205 + $0x418] sm:$0xff] %v468
                %v470 = vld [vmem:[%s204 + $0x840] sm:$0xff]
                %471 = vst [vmem:[%s205 + $0x420] sm:$0xff] %v470
                %v472 = vld [vmem:[%s204 + $0x848] sm:$0xff]
                %473 = vst [vmem:[%s205 + $0x428] sm:$0xff] %v472
                %v474 = vld [vmem:[%s204 + $0x860] sm:$0xff]
                %475 = vst [vmem:[%s205 + $0x430] sm:$0xff] %v474
                %v476 = vld [vmem:[%s204 + $0x868] sm:$0xff]
                %477 = vst [vmem:[%s205 + $0x438] sm:$0xff] %v476
                %v478 = vld [vmem:[%s204 + $0x880] sm:$0xff]
                %479 = vst [vmem:[%s205 + $0x440] sm:$0xff] %v478
                %v480 = vld [vmem:[%s204 + $0x888] sm:$0xff]
                %481 = vst [vmem:[%s205 + $0x448] sm:$0xff] %v480
                %v482 = vld [vmem:[%s204 + $0x8a0] sm:$0xff]
                %483 = vst [vmem:[%s205 + $0x450] sm:$0xff] %v482
                %v484 = vld [vmem:[%s204 + $0x8a8] sm:$0xff]
                %485 = vst [vmem:[%s205 + $0x458] sm:$0xff] %v484
                %v486 = vld [vmem:[%s204 + $0x8c0] sm:$0xff]
                %487 = vst [vmem:[%s205 + $0x460] sm:$0xff] %v486
                %v488 = vld [vmem:[%s204 + $0x8c8] sm:$0xff]
                %489 = vst [vmem:[%s205 + $0x468] sm:$0xff] %v488
                %v490 = vld [vmem:[%s204 + $0x8e0] sm:$0xff]
                %491 = vst [vmem:[%s205 + $0x470] sm:$0xff] %v490
                %v492 = vld [vmem:[%s204 + $0x8e8] sm:$0xff]
                %493 = vst [vmem:[%s205 + $0x478] sm:$0xff] %v492
                %v494 = vld [vmem:[%s204 + $0x900] sm:$0xff]
                %495 = vst [vmem:[%s205 + $0x480] sm:$0xff] %v494
                %v496 = vld [vmem:[%s204 + $0x908] sm:$0xff]
                %497 = vst [vmem:[%s205 + $0x488] sm:$0xff] %v496
                %v498 = vld [vmem:[%s204 + $0x920] sm:$0xff]
                %499 = vst [vmem:[%s205 + $0x490] sm:$0xff] %v498
                %v500 = vld [vmem:[%s204 + $0x928] sm:$0xff]
                %501 = vst [vmem:[%s205 + $0x498] sm:$0xff] %v500
                %v502 = vld [vmem:[%s204 + $0x940] sm:$0xff]
                %503 = vst [vmem:[%s205 + $0x4a0] sm:$0xff] %v502
                %v504 = vld [vmem:[%s204 + $0x948] sm:$0xff]
                %505 = vst [vmem:[%s205 + $0x4a8] sm:$0xff] %v504
                %v506 = vld [vmem:[%s204 + $0x960] sm:$0xff]
                %507 = vst [vmem:[%s205 + $0x4b0] sm:$0xff] %v506
                %v508 = vld [vmem:[%s204 + $0x968] sm:$0xff]
                %509 = vst [vmem:[%s205 + $0x4b8] sm:$0xff] %v508
                %v510 = vld [vmem:[%s204 + $0x980] sm:$0xff]
                %511 = vst [vmem:[%s205 + $0x4c0] sm:$0xff] %v510
                %v512 = vld [vmem:[%s204 + $0x988] sm:$0xff]
                %513 = vst [vmem:[%s205 + $0x4c8] sm:$0xff] %v512
                %v514 = vld [vmem:[%s204 + $0x9a0] sm:$0xff]
                %515 = vst [vmem:[%s205 + $0x4d0] sm:$0xff] %v514
                %v516 = vld [vmem:[%s204 + $0x9a8] sm:$0xff]
                %517 = vst [vmem:[%s205 + $0x4d8] sm:$0xff] %v516
                %v518 = vld [vmem:[%s204 + $0x9c0] sm:$0xff]
                %519 = vst [vmem:[%s205 + $0x4e0] sm:$0xff] %v518
                %v520 = vld [vmem:[%s204 + $0x9c8] sm:$0xff]
                %521 = vst [vmem:[%s205 + $0x4e8] sm:$0xff] %v520
                %v522 = vld [vmem:[%s204 + $0x9e0] sm:$0xff]
                %523 = vst [vmem:[%s205 + $0x4f0] sm:$0xff] %v522
                %v524 = vld [vmem:[%s204 + $0x9e8] sm:$0xff]
                %525 = vst [vmem:[%s205 + $0x4f8] sm:$0xff] %v524
                %v526 = vld [vmem:[%s204 + $0xa00] sm:$0xff]
                %527 = vst [vmem:[%s205 + $0x500] sm:$0xff] %v526
                %v528 = vld [vmem:[%s204 + $0xa08] sm:$0xff]
                %529 = vst [vmem:[%s205 + $0x508] sm:$0xff] %v528
                %v530 = vld [vmem:[%s204 + $0xa20] sm:$0xff]
                %531 = vst [vmem:[%s205 + $0x510] sm:$0xff] %v530
                %v532 = vld [vmem:[%s204 + $0xa28] sm:$0xff]
                %533 = vst [vmem:[%s205 + $0x518] sm:$0xff] %v532
                %v534 = vld [vmem:[%s204 + $0xa40] sm:$0xff]
                %535 = vst [vmem:[%s205 + $0x520] sm:$0xff] %v534
                %v536 = vld [vmem:[%s204 + $0xa48] sm:$0xff]
                %537 = vst [vmem:[%s205 + $0x528] sm:$0xff] %v536
                %v538 = vld [vmem:[%s204 + $0xa60] sm:$0xff]
                %539 = vst [vmem:[%s205 + $0x530] sm:$0xff] %v538
                %v540 = vld [vmem:[%s204 + $0xa68] sm:$0xff]
                %541 = vst [vmem:[%s205 + $0x538] sm:$0xff] %v540
                %v542 = vld [vmem:[%s204 + $0xa80] sm:$0xff]
                %543 = vst [vmem:[%s205 + $0x540] sm:$0xff] %v542
                %v544 = vld [vmem:[%s204 + $0xa88] sm:$0xff]
                %545 = vst [vmem:[%s205 + $0x548] sm:$0xff] %v544
                %v546 = vld [vmem:[%s204 + $0xaa0] sm:$0xff]
                %547 = vst [vmem:[%s205 + $0x550] sm:$0xff] %v546
                %v548 = vld [vmem:[%s204 + $0xaa8] sm:$0xff]
                %549 = vst [vmem:[%s205 + $0x558] sm:$0xff] %v548
                %v550 = vld [vmem:[%s204 + $0xac0] sm:$0xff]
                %551 = vst [vmem:[%s205 + $0x560] sm:$0xff] %v550
                %v552 = vld [vmem:[%s204 + $0xac8] sm:$0xff]
                %553 = vst [vmem:[%s205 + $0x568] sm:$0xff] %v552
                %v554 = vld [vmem:[%s204 + $0xae0] sm:$0xff]
                %555 = vst [vmem:[%s205 + $0x570] sm:$0xff] %v554
                %v556 = vld [vmem:[%s204 + $0xae8] sm:$0xff]
                %557 = vst [vmem:[%s205 + $0x578] sm:$0xff] %v556
                %v558 = vld [vmem:[%s204 + $0xb00] sm:$0xff]
                %559 = vst [vmem:[%s205 + $0x580] sm:$0xff] %v558
                %v560 = vld [vmem:[%s204 + $0xb08] sm:$0xff]
                %561 = vst [vmem:[%s205 + $0x588] sm:$0xff] %v560
                %v562 = vld [vmem:[%s204 + $0xb20] sm:$0xff]
                %563 = vst [vmem:[%s205 + $0x590] sm:$0xff] %v562
                %v564 = vld [vmem:[%s204 + $0xb28] sm:$0xff]
                %565 = vst [vmem:[%s205 + $0x598] sm:$0xff] %v564
                %v566 = vld [vmem:[%s204 + $0xb40] sm:$0xff]
                %567 = vst [vmem:[%s205 + $0x5a0] sm:$0xff] %v566
                %v568 = vld [vmem:[%s204 + $0xb48] sm:$0xff]
                %569 = vst [vmem:[%s205 + $0x5a8] sm:$0xff] %v568
                %v570 = vld [vmem:[%s204 + $0xb60] sm:$0xff]
                %571 = vst [vmem:[%s205 + $0x5b0] sm:$0xff] %v570
                %v572 = vld [vmem:[%s204 + $0xb68] sm:$0xff]
                %573 = vst [vmem:[%s205 + $0x5b8] sm:$0xff] %v572
                %v574 = vld [vmem:[%s204 + $0xb80] sm:$0xff]
                %575 = vst [vmem:[%s205 + $0x5c0] sm:$0xff] %v574
                %v576 = vld [vmem:[%s204 + $0xb88] sm:$0xff]
                %577 = vst [vmem:[%s205 + $0x5c8] sm:$0xff] %v576
                %v578 = vld [vmem:[%s204 + $0xba0] sm:$0xff]
                %579 = vst [vmem:[%s205 + $0x5d0] sm:$0xff] %v578
                %v580 = vld [vmem:[%s204 + $0xba8] sm:$0xff]
                %581 = vst [vmem:[%s205 + $0x5d8] sm:$0xff] %v580
                %v582 = vld [vmem:[%s204 + $0xbc0] sm:$0xff]
                %583 = vst [vmem:[%s205 + $0x5e0] sm:$0xff] %v582
                %v584 = vld [vmem:[%s204 + $0xbc8] sm:$0xff]
                %585 = vst [vmem:[%s205 + $0x5e8] sm:$0xff] %v584
                %v586 = vld [vmem:[%s204 + $0xbe0] sm:$0xff]
                %587 = vst [vmem:[%s205 + $0x5f0] sm:$0xff] %v586
                %v588 = vld [vmem:[%s204 + $0xbe8] sm:$0xff]
                %589 = vst [vmem:[%s205 + $0x5f8] sm:$0xff] %v588
                %v590 = vld [vmem:[%s204 + $0xc00] sm:$0xff]
                %591 = vst [vmem:[%s205 + $0x600] sm:$0xff] %v590
                %v592 = vld [vmem:[%s204 + $0xc08] sm:$0xff]
                %593 = vst [vmem:[%s205 + $0x608] sm:$0xff] %v592
                %v594 = vld [vmem:[%s204 + $0xc20] sm:$0xff]
                %595 = vst [vmem:[%s205 + $0x610] sm:$0xff] %v594
                %v596 = vld [vmem:[%s204 + $0xc28] sm:$0xff]
                %597 = vst [vmem:[%s205 + $0x618] sm:$0xff] %v596
                %v598 = vld [vmem:[%s204 + $0xc40] sm:$0xff]
                %599 = vst [vmem:[%s205 + $0x620] sm:$0xff] %v598
                %v600 = vld [vmem:[%s204 + $0xc48] sm:$0xff]
                %601 = vst [vmem:[%s205 + $0x628] sm:$0xff] %v600
                %v602 = vld [vmem:[%s204 + $0xc60] sm:$0xff]
                %603 = vst [vmem:[%s205 + $0x630] sm:$0xff] %v602
                %v604 = vld [vmem:[%s204 + $0xc68] sm:$0xff]
                %605 = vst [vmem:[%s205 + $0x638] sm:$0xff] %v604
                %v606 = vld [vmem:[%s204 + $0xc80] sm:$0xff]
                %607 = vst [vmem:[%s205 + $0x640] sm:$0xff] %v606
                %v608 = vld [vmem:[%s204 + $0xc88] sm:$0xff]
                %609 = vst [vmem:[%s205 + $0x648] sm:$0xff] %v608
                %v610 = vld [vmem:[%s204 + $0xca0] sm:$0xff]
                %611 = vst [vmem:[%s205 + $0x650] sm:$0xff] %v610
                %v612 = vld [vmem:[%s204 + $0xca8] sm:$0xff]
                %613 = vst [vmem:[%s205 + $0x658] sm:$0xff] %v612
                %v614 = vld [vmem:[%s204 + $0xcc0] sm:$0xff]
                %615 = vst [vmem:[%s205 + $0x660] sm:$0xff] %v614
                %v616 = vld [vmem:[%s204 + $0xcc8] sm:$0xff]
                %617 = vst [vmem:[%s205 + $0x668] sm:$0xff] %v616
                %v618 = vld [vmem:[%s204 + $0xce0] sm:$0xff]
                %619 = vst [vmem:[%s205 + $0x670] sm:$0xff] %v618
                %v620 = vld [vmem:[%s204 + $0xce8] sm:$0xff]
                %621 = vst [vmem:[%s205 + $0x678] sm:$0xff] %v620
                %v622 = vld [vmem:[%s204 + $0xd00] sm:$0xff]
                %623 = vst [vmem:[%s205 + $0x680] sm:$0xff] %v622
                %v624 = vld [vmem:[%s204 + $0xd08] sm:$0xff]
                %625 = vst [vmem:[%s205 + $0x688] sm:$0xff] %v624
                %v626 = vld [vmem:[%s204 + $0xd20] sm:$0xff]
                %627 = vst [vmem:[%s205 + $0x690] sm:$0xff] %v626
                %v628 = vld [vmem:[%s204 + $0xd28] sm:$0xff]
                %629 = vst [vmem:[%s205 + $0x698] sm:$0xff] %v628
                %v630 = vld [vmem:[%s204 + $0xd40] sm:$0xff]
                %631 = vst [vmem:[%s205 + $0x6a0] sm:$0xff] %v630
                %v632 = vld [vmem:[%s204 + $0xd48] sm:$0xff]
                %633 = vst [vmem:[%s205 + $0x6a8] sm:$0xff] %v632
                %v634 = vld [vmem:[%s204 + $0xd60] sm:$0xff]
                %635 = vst [vmem:[%s205 + $0x6b0] sm:$0xff] %v634
                %v636 = vld [vmem:[%s204 + $0xd68] sm:$0xff]
                %637 = vst [vmem:[%s205 + $0x6b8] sm:$0xff] %v636
                %v638 = vld [vmem:[%s204 + $0xd80] sm:$0xff]
                %639 = vst [vmem:[%s205 + $0x6c0] sm:$0xff] %v638
                %v640 = vld [vmem:[%s204 + $0xd88] sm:$0xff]
                %641 = vst [vmem:[%s205 + $0x6c8] sm:$0xff] %v640
                %v642 = vld [vmem:[%s204 + $0xda0] sm:$0xff]
                %643 = vst [vmem:[%s205 + $0x6d0] sm:$0xff] %v642
                %v644 = vld [vmem:[%s204 + $0xda8] sm:$0xff]
                %645 = vst [vmem:[%s205 + $0x6d8] sm:$0xff] %v644
                %v646 = vld [vmem:[%s204 + $0xdc0] sm:$0xff]
                %647 = vst [vmem:[%s205 + $0x6e0] sm:$0xff] %v646
                %v648 = vld [vmem:[%s204 + $0xdc8] sm:$0xff]
                %649 = vst [vmem:[%s205 + $0x6e8] sm:$0xff] %v648
                %v650 = vld [vmem:[%s204 + $0xde0] sm:$0xff]
                %651 = vst [vmem:[%s205 + $0x6f0] sm:$0xff] %v650
                %v652 = vld [vmem:[%s204 + $0xde8] sm:$0xff]
                %653 = vst [vmem:[%s205 + $0x6f8] sm:$0xff] %v652
                %v654 = vld [vmem:[%s204 + $0xe00] sm:$0xff]
                %655 = vst [vmem:[%s205 + $0x700] sm:$0xff] %v654
                %v656 = vld [vmem:[%s204 + $0xe08] sm:$0xff]
                %657 = vst [vmem:[%s205 + $0x708] sm:$0xff] %v656
                %v658 = vld [vmem:[%s204 + $0xe20] sm:$0xff]
                %659 = vst [vmem:[%s205 + $0x710] sm:$0xff] %v658
                %v660 = vld [vmem:[%s204 + $0xe28] sm:$0xff]
                %661 = vst [vmem:[%s205 + $0x718] sm:$0xff] %v660
                %v662 = vld [vmem:[%s204 + $0xe40] sm:$0xff]
                %663 = vst [vmem:[%s205 + $0x720] sm:$0xff] %v662
                %v664 = vld [vmem:[%s204 + $0xe48] sm:$0xff]
                %665 = vst [vmem:[%s205 + $0x728] sm:$0xff] %v664
                %v666 = vld [vmem:[%s204 + $0xe60] sm:$0xff]
                %667 = vst [vmem:[%s205 + $0x730] sm:$0xff] %v666
                %v668 = vld [vmem:[%s204 + $0xe68] sm:$0xff]
                %669 = vst [vmem:[%s205 + $0x738] sm:$0xff] %v668
                %v670 = vld [vmem:[%s204 + $0xe80] sm:$0xff]
                %671 = vst [vmem:[%s205 + $0x740] sm:$0xff] %v670
                %v672 = vld [vmem:[%s204 + $0xe88] sm:$0xff]
                %673 = vst [vmem:[%s205 + $0x748] sm:$0xff] %v672
                %v674 = vld [vmem:[%s204 + $0xea0] sm:$0xff]
                %675 = vst [vmem:[%s205 + $0x750] sm:$0xff] %v674
                %v676 = vld [vmem:[%s204 + $0xea8] sm:$0xff]
                %677 = vst [vmem:[%s205 + $0x758] sm:$0xff] %v676
                %v678 = vld [vmem:[%s204 + $0xec0] sm:$0xff]
                %679 = vst [vmem:[%s205 + $0x760] sm:$0xff] %v678
                %v680 = vld [vmem:[%s204 + $0xec8] sm:$0xff]
                %681 = vst [vmem:[%s205 + $0x768] sm:$0xff] %v680
                %v682 = vld [vmem:[%s204 + $0xee0] sm:$0xff]
                %683 = vst [vmem:[%s205 + $0x770] sm:$0xff] %v682
                %v684 = vld [vmem:[%s204 + $0xee8] sm:$0xff]
                %685 = vst [vmem:[%s205 + $0x778] sm:$0xff] %v684
                %v686 = vld [vmem:[%s204 + $0xf00] sm:$0xff]
                %687 = vst [vmem:[%s205 + $0x780] sm:$0xff] %v686
                %v688 = vld [vmem:[%s204 + $0xf08] sm:$0xff]
                %689 = vst [vmem:[%s205 + $0x788] sm:$0xff] %v688
                %v690 = vld [vmem:[%s204 + $0xf20] sm:$0xff]
                %691 = vst [vmem:[%s205 + $0x790] sm:$0xff] %v690
                %v692 = vld [vmem:[%s204 + $0xf28] sm:$0xff]
                %693 = vst [vmem:[%s205 + $0x798] sm:$0xff] %v692
                %v694 = vld [vmem:[%s204 + $0xf40] sm:$0xff]
                %695 = vst [vmem:[%s205 + $0x7a0] sm:$0xff] %v694
                %v696 = vld [vmem:[%s204 + $0xf48] sm:$0xff]
                %697 = vst [vmem:[%s205 + $0x7a8] sm:$0xff] %v696
                %v698 = vld [vmem:[%s204 + $0xf60] sm:$0xff]
                %699 = vst [vmem:[%s205 + $0x7b0] sm:$0xff] %v698
                %v700 = vld [vmem:[%s204 + $0xf68] sm:$0xff]
                %701 = vst [vmem:[%s205 + $0x7b8] sm:$0xff] %v700
                %v702 = vld [vmem:[%s204 + $0xf80] sm:$0xff]
                %703 = vst [vmem:[%s205 + $0x7c0] sm:$0xff] %v702
                %v704 = vld [vmem:[%s204 + $0xf88] sm:$0xff]
                %705 = vst [vmem:[%s205 + $0x7c8] sm:$0xff] %v704
                %v706 = vld [vmem:[%s204 + $0xfa0] sm:$0xff]
                %707 = vst [vmem:[%s205 + $0x7d0] sm:$0xff] %v706
                %v708 = vld [vmem:[%s204 + $0xfa8] sm:$0xff]
                %709 = vst [vmem:[%s205 + $0x7d8] sm:$0xff] %v708
                %v710 = vld [vmem:[%s204 + $0xfc0] sm:$0xff]
                %711 = vst [vmem:[%s205 + $0x7e0] sm:$0xff] %v710
                %v712 = vld [vmem:[%s204 + $0xfc8] sm:$0xff]
                %713 = vst [vmem:[%s205 + $0x7e8] sm:$0xff] %v712
                %v714 = vld [vmem:[%s204 + $0xfe0] sm:$0xff]
                %715 = vst [vmem:[%s205 + $0x7f0] sm:$0xff] %v714
                %v716 = vld [vmem:[%s204 + $0xfe8] sm:$0xff]
                %717 = vst [vmem:[%s205 + $0x7f8] sm:$0xff] %v716
                %v718 = vld [vmem:[%s204 + $0x1000] sm:$0xff]
                %719 = vst [vmem:[%s205 + $0x800] sm:$0xff] %v718
                %v720 = vld [vmem:[%s204 + $0x1008] sm:$0xff]
                %721 = vst [vmem:[%s205 + $0x808] sm:$0xff] %v720
                %v722 = vld [vmem:[%s204 + $0x1020] sm:$0xff]
                %723 = vst [vmem:[%s205 + $0x810] sm:$0xff] %v722
                %v724 = vld [vmem:[%s204 + $0x1028] sm:$0xff]
                %725 = vst [vmem:[%s205 + $0x818] sm:$0xff] %v724
                %v726 = vld [vmem:[%s204 + $0x1040] sm:$0xff]
                %727 = vst [vmem:[%s205 + $0x820] sm:$0xff] %v726
                %v728 = vld [vmem:[%s204 + $0x1048] sm:$0xff]
                %729 = vst [vmem:[%s205 + $0x828] sm:$0xff] %v728
                %v730 = vld [vmem:[%s204 + $0x1060] sm:$0xff]
                %731 = vst [vmem:[%s205 + $0x830] sm:$0xff] %v730
                %v732 = vld [vmem:[%s204 + $0x1068] sm:$0xff]
                %733 = vst [vmem:[%s205 + $0x838] sm:$0xff] %v732
                %v734 = vld [vmem:[%s204 + $0x1080] sm:$0xff]
                %735 = vst [vmem:[%s205 + $0x840] sm:$0xff] %v734
                %v736 = vld [vmem:[%s204 + $0x1088] sm:$0xff]
                %737 = vst [vmem:[%s205 + $0x848] sm:$0xff] %v736
                %v738 = vld [vmem:[%s204 + $0x10a0] sm:$0xff]
                %739 = vst [vmem:[%s205 + $0x850] sm:$0xff] %v738
                %v740 = vld [vmem:[%s204 + $0x10a8] sm:$0xff]
                %741 = vst [vmem:[%s205 + $0x858] sm:$0xff] %v740
                %v742 = vld [vmem:[%s204 + $0x10c0] sm:$0xff]
                %743 = vst [vmem:[%s205 + $0x860] sm:$0xff] %v742
                %v744 = vld [vmem:[%s204 + $0x10c8] sm:$0xff]
                %745 = vst [vmem:[%s205 + $0x868] sm:$0xff] %v744
                %v746 = vld [vmem:[%s204 + $0x10e0] sm:$0xff]
                %747 = vst [vmem:[%s205 + $0x870] sm:$0xff] %v746
                %v748 = vld [vmem:[%s204 + $0x10e8] sm:$0xff]
                %749 = vst [vmem:[%s205 + $0x878] sm:$0xff] %v748
                %v750 = vld [vmem:[%s204 + $0x1100] sm:$0xff]
                %751 = vst [vmem:[%s205 + $0x880] sm:$0xff] %v750
                %v752 = vld [vmem:[%s204 + $0x1108] sm:$0xff]
                %753 = vst [vmem:[%s205 + $0x888] sm:$0xff] %v752
                %v754 = vld [vmem:[%s204 + $0x1120] sm:$0xff]
                %755 = vst [vmem:[%s205 + $0x890] sm:$0xff] %v754
                %v756 = vld [vmem:[%s204 + $0x1128] sm:$0xff]
                %757 = vst [vmem:[%s205 + $0x898] sm:$0xff] %v756
                %v758 = vld [vmem:[%s204 + $0x1140] sm:$0xff]
                %759 = vst [vmem:[%s205 + $0x8a0] sm:$0xff] %v758
                %v760 = vld [vmem:[%s204 + $0x1148] sm:$0xff]
                %761 = vst [vmem:[%s205 + $0x8a8] sm:$0xff] %v760
                %v762 = vld [vmem:[%s204 + $0x1160] sm:$0xff]
                %763 = vst [vmem:[%s205 + $0x8b0] sm:$0xff] %v762
                %v764 = vld [vmem:[%s204 + $0x1168] sm:$0xff]
                %765 = vst [vmem:[%s205 + $0x8b8] sm:$0xff] %v764
                %v766 = vld [vmem:[%s204 + $0x1180] sm:$0xff]
                %767 = vst [vmem:[%s205 + $0x8c0] sm:$0xff] %v766
                %v768 = vld [vmem:[%s204 + $0x1188] sm:$0xff]
                %769 = vst [vmem:[%s205 + $0x8c8] sm:$0xff] %v768
                %v770 = vld [vmem:[%s204 + $0x11a0] sm:$0xff]
                %771 = vst [vmem:[%s205 + $0x8d0] sm:$0xff] %v770
                %v772 = vld [vmem:[%s204 + $0x11a8] sm:$0xff]
                %773 = vst [vmem:[%s205 + $0x8d8] sm:$0xff] %v772
                %v774 = vld [vmem:[%s204 + $0x11c0] sm:$0xff]
                %775 = vst [vmem:[%s205 + $0x8e0] sm:$0xff] %v774
                %v776 = vld [vmem:[%s204 + $0x11c8] sm:$0xff]
                %777 = vst [vmem:[%s205 + $0x8e8] sm:$0xff] %v776
                %v778 = vld [vmem:[%s204 + $0x11e0] sm:$0xff]
                %779 = vst [vmem:[%s205 + $0x8f0] sm:$0xff] %v778
                %v780 = vld [vmem:[%s204 + $0x11e8] sm:$0xff]
                %781 = vst [vmem:[%s205 + $0x8f8] sm:$0xff] %v780
                %v782 = vld [vmem:[%s204 + $0x1200] sm:$0xff]
                %783 = vst [vmem:[%s205 + $0x900] sm:$0xff] %v782
                %v784 = vld [vmem:[%s204 + $0x1208] sm:$0xff]
                %785 = vst [vmem:[%s205 + $0x908] sm:$0xff] %v784
                %v786 = vld [vmem:[%s204 + $0x1220] sm:$0xff]
                %787 = vst [vmem:[%s205 + $0x910] sm:$0xff] %v786
                %v788 = vld [vmem:[%s204 + $0x1228] sm:$0xff]
                %789 = vst [vmem:[%s205 + $0x918] sm:$0xff] %v788
                %v790 = vld [vmem:[%s204 + $0x1240] sm:$0xff]
                %791 = vst [vmem:[%s205 + $0x920] sm:$0xff] %v790
                %v792 = vld [vmem:[%s204 + $0x1248] sm:$0xff]
                %793 = vst [vmem:[%s205 + $0x928] sm:$0xff] %v792
                %v794 = vld [vmem:[%s204 + $0x1260] sm:$0xff]
                %795 = vst [vmem:[%s205 + $0x930] sm:$0xff] %v794
                %v796 = vld [vmem:[%s204 + $0x1268] sm:$0xff]
                %797 = vst [vmem:[%s205 + $0x938] sm:$0xff] %v796
                %v798 = vld [vmem:[%s204 + $0x1280] sm:$0xff]
                %799 = vst [vmem:[%s205 + $0x940] sm:$0xff] %v798
                %v800 = vld [vmem:[%s204 + $0x1288] sm:$0xff]
                %801 = vst [vmem:[%s205 + $0x948] sm:$0xff] %v800
                %v802 = vld [vmem:[%s204 + $0x12a0] sm:$0xff]
                %803 = vst [vmem:[%s205 + $0x950] sm:$0xff] %v802
                %v804 = vld [vmem:[%s204 + $0x12a8] sm:$0xff]
                %805 = vst [vmem:[%s205 + $0x958] sm:$0xff] %v804
                %v806 = vld [vmem:[%s204 + $0x12c0] sm:$0xff]
                %807 = vst [vmem:[%s205 + $0x960] sm:$0xff] %v806
                %v808 = vld [vmem:[%s204 + $0x12c8] sm:$0xff]
                %809 = vst [vmem:[%s205 + $0x968] sm:$0xff] %v808
                %v810 = vld [vmem:[%s204 + $0x12e0] sm:$0xff]
                %811 = vst [vmem:[%s205 + $0x970] sm:$0xff] %v810
                %v812 = vld [vmem:[%s204 + $0x12e8] sm:$0xff]
                %813 = vst [vmem:[%s205 + $0x978] sm:$0xff] %v812
                %v814 = vld [vmem:[%s204 + $0x1300] sm:$0xff]
                %815 = vst [vmem:[%s205 + $0x980] sm:$0xff] %v814
                %v816 = vld [vmem:[%s204 + $0x1308] sm:$0xff]
                %817 = vst [vmem:[%s205 + $0x988] sm:$0xff] %v816
                %v818 = vld [vmem:[%s204 + $0x1320] sm:$0xff]
                %819 = vst [vmem:[%s205 + $0x990] sm:$0xff] %v818
                %v820 = vld [vmem:[%s204 + $0x1328] sm:$0xff]
                %821 = vst [vmem:[%s205 + $0x998] sm:$0xff] %v820
                %v822 = vld [vmem:[%s204 + $0x1340] sm:$0xff]
                %823 = vst [vmem:[%s205 + $0x9a0] sm:$0xff] %v822
                %v824 = vld [vmem:[%s204 + $0x1348] sm:$0xff]
                %825 = vst [vmem:[%s205 + $0x9a8] sm:$0xff] %v824
                %v826 = vld [vmem:[%s204 + $0x1360] sm:$0xff]
                %827 = vst [vmem:[%s205 + $0x9b0] sm:$0xff] %v826
                %v828 = vld [vmem:[%s204 + $0x1368] sm:$0xff]
                %829 = vst [vmem:[%s205 + $0x9b8] sm:$0xff] %v828
                %v830 = vld [vmem:[%s204 + $0x1380] sm:$0xff]
                %831 = vst [vmem:[%s205 + $0x9c0] sm:$0xff] %v830
                %v832 = vld [vmem:[%s204 + $0x1388] sm:$0xff]
                %833 = vst [vmem:[%s205 + $0x9c8] sm:$0xff] %v832
                %v834 = vld [vmem:[%s204 + $0x13a0] sm:$0xff]
                %835 = vst [vmem:[%s205 + $0x9d0] sm:$0xff] %v834
                %v836 = vld [vmem:[%s204 + $0x13a8] sm:$0xff]
                %837 = vst [vmem:[%s205 + $0x9d8] sm:$0xff] %v836
                %v838 = vld [vmem:[%s204 + $0x13c0] sm:$0xff]
                %839 = vst [vmem:[%s205 + $0x9e0] sm:$0xff] %v838
                %v840 = vld [vmem:[%s204 + $0x13c8] sm:$0xff]
                %841 = vst [vmem:[%s205 + $0x9e8] sm:$0xff] %v840
                %v842 = vld [vmem:[%s204 + $0x13e0] sm:$0xff]
                %843 = vst [vmem:[%s205 + $0x9f0] sm:$0xff] %v842
                %v844 = vld [vmem:[%s204 + $0x13e8] sm:$0xff]
                %845 = vst [vmem:[%s205 + $0x9f8] sm:$0xff] %v844
                %v846 = vld [vmem:[%s204 + $0x1400] sm:$0xff]
                %847 = vst [vmem:[%s205 + $0xa00] sm:$0xff] %v846
                %v848 = vld [vmem:[%s204 + $0x1408] sm:$0xff]
                %849 = vst [vmem:[%s205 + $0xa08] sm:$0xff] %v848
                %v850 = vld [vmem:[%s204 + $0x1420] sm:$0xff]
                %851 = vst [vmem:[%s205 + $0xa10] sm:$0xff] %v850
                %v852 = vld [vmem:[%s204 + $0x1428] sm:$0xff]
                %853 = vst [vmem:[%s205 + $0xa18] sm:$0xff] %v852
                %v854 = vld [vmem:[%s204 + $0x1440] sm:$0xff]
                %855 = vst [vmem:[%s205 + $0xa20] sm:$0xff] %v854
                %v856 = vld [vmem:[%s204 + $0x1448] sm:$0xff]
                %857 = vst [vmem:[%s205 + $0xa28] sm:$0xff] %v856
                %v858 = vld [vmem:[%s204 + $0x1460] sm:$0xff]
                %859 = vst [vmem:[%s205 + $0xa30] sm:$0xff] %v858
                %v860 = vld [vmem:[%s204 + $0x1468] sm:$0xff]
                %861 = vst [vmem:[%s205 + $0xa38] sm:$0xff] %v860
                %v862 = vld [vmem:[%s204 + $0x1480] sm:$0xff]
                %863 = vst [vmem:[%s205 + $0xa40] sm:$0xff] %v862
                %v864 = vld [vmem:[%s204 + $0x1488] sm:$0xff]
                %865 = vst [vmem:[%s205 + $0xa48] sm:$0xff] %v864
                %v866 = vld [vmem:[%s204 + $0x14a0] sm:$0xff]
                %867 = vst [vmem:[%s205 + $0xa50] sm:$0xff] %v866
                %v868 = vld [vmem:[%s204 + $0x14a8] sm:$0xff]
                %869 = vst [vmem:[%s205 + $0xa58] sm:$0xff] %v868
                %v870 = vld [vmem:[%s204 + $0x14c0] sm:$0xff]
                %871 = vst [vmem:[%s205 + $0xa60] sm:$0xff] %v870
                %v872 = vld [vmem:[%s204 + $0x14c8] sm:$0xff]
                %873 = vst [vmem:[%s205 + $0xa68] sm:$0xff] %v872
                %v874 = vld [vmem:[%s204 + $0x14e0] sm:$0xff]
                %875 = vst [vmem:[%s205 + $0xa70] sm:$0xff] %v874
                %v876 = vld [vmem:[%s204 + $0x14e8] sm:$0xff]
                %877 = vst [vmem:[%s205 + $0xa78] sm:$0xff] %v876
                %v878 = vld [vmem:[%s204 + $0x1500] sm:$0xff]
                %879 = vst [vmem:[%s205 + $0xa80] sm:$0xff] %v878
                %v880 = vld [vmem:[%s204 + $0x1508] sm:$0xff]
                %881 = vst [vmem:[%s205 + $0xa88] sm:$0xff] %v880
                %v882 = vld [vmem:[%s204 + $0x1520] sm:$0xff]
                %883 = vst [vmem:[%s205 + $0xa90] sm:$0xff] %v882
                %v884 = vld [vmem:[%s204 + $0x1528] sm:$0xff]
                %885 = vst [vmem:[%s205 + $0xa98] sm:$0xff] %v884
                %v886 = vld [vmem:[%s204 + $0x1540] sm:$0xff]
                %887 = vst [vmem:[%s205 + $0xaa0] sm:$0xff] %v886
                %v888 = vld [vmem:[%s204 + $0x1548] sm:$0xff]
                %889 = vst [vmem:[%s205 + $0xaa8] sm:$0xff] %v888
                %v890 = vld [vmem:[%s204 + $0x1560] sm:$0xff]
                %891 = vst [vmem:[%s205 + $0xab0] sm:$0xff] %v890
                %v892 = vld [vmem:[%s204 + $0x1568] sm:$0xff]
                %893 = vst [vmem:[%s205 + $0xab8] sm:$0xff] %v892
                %v894 = vld [vmem:[%s204 + $0x1580] sm:$0xff]
                %895 = vst [vmem:[%s205 + $0xac0] sm:$0xff] %v894
                %v896 = vld [vmem:[%s204 + $0x1588] sm:$0xff]
                %897 = vst [vmem:[%s205 + $0xac8] sm:$0xff] %v896
                %v898 = vld [vmem:[%s204 + $0x15a0] sm:$0xff]
                %899 = vst [vmem:[%s205 + $0xad0] sm:$0xff] %v898
                %v900 = vld [vmem:[%s204 + $0x15a8] sm:$0xff]
                %901 = vst [vmem:[%s205 + $0xad8] sm:$0xff] %v900
                %v902 = vld [vmem:[%s204 + $0x15c0] sm:$0xff]
                %903 = vst [vmem:[%s205 + $0xae0] sm:$0xff] %v902
                %v904 = vld [vmem:[%s204 + $0x15c8] sm:$0xff]
                %905 = vst [vmem:[%s205 + $0xae8] sm:$0xff] %v904
                %v906 = vld [vmem:[%s204 + $0x15e0] sm:$0xff]
                %907 = vst [vmem:[%s205 + $0xaf0] sm:$0xff] %v906
                %v908 = vld [vmem:[%s204 + $0x15e8] sm:$0xff]
                %909 = vst [vmem:[%s205 + $0xaf8] sm:$0xff] %v908
                %v910 = vld [vmem:[%s204 + $0x1600] sm:$0xff]
                %911 = vst [vmem:[%s205 + $0xb00] sm:$0xff] %v910
                %v912 = vld [vmem:[%s204 + $0x1608] sm:$0xff]
                %913 = vst [vmem:[%s205 + $0xb08] sm:$0xff] %v912
                %v914 = vld [vmem:[%s204 + $0x1620] sm:$0xff]
                %915 = vst [vmem:[%s205 + $0xb10] sm:$0xff] %v914
                %v916 = vld [vmem:[%s204 + $0x1628] sm:$0xff]
                %917 = vst [vmem:[%s205 + $0xb18] sm:$0xff] %v916
                %v918 = vld [vmem:[%s204 + $0x1640] sm:$0xff]
                %919 = vst [vmem:[%s205 + $0xb20] sm:$0xff] %v918
                %v920 = vld [vmem:[%s204 + $0x1648] sm:$0xff]
                %921 = vst [vmem:[%s205 + $0xb28] sm:$0xff] %v920
                %v922 = vld [vmem:[%s204 + $0x1660] sm:$0xff]
                %923 = vst [vmem:[%s205 + $0xb30] sm:$0xff] %v922
                %v924 = vld [vmem:[%s204 + $0x1668] sm:$0xff]
                %925 = vst [vmem:[%s205 + $0xb38] sm:$0xff] %v924
                %v926 = vld [vmem:[%s204 + $0x1680] sm:$0xff]
                %927 = vst [vmem:[%s205 + $0xb40] sm:$0xff] %v926
                %v928 = vld [vmem:[%s204 + $0x1688] sm:$0xff]
                %929 = vst [vmem:[%s205 + $0xb48] sm:$0xff] %v928
                %v930 = vld [vmem:[%s204 + $0x16a0] sm:$0xff]
                %931 = vst [vmem:[%s205 + $0xb50] sm:$0xff] %v930
                %v932 = vld [vmem:[%s204 + $0x16a8] sm:$0xff]
                %933 = vst [vmem:[%s205 + $0xb58] sm:$0xff] %v932
                %v934 = vld [vmem:[%s204 + $0x16c0] sm:$0xff]
                %935 = vst [vmem:[%s205 + $0xb60] sm:$0xff] %v934
                %v936 = vld [vmem:[%s204 + $0x16c8] sm:$0xff]
                %937 = vst [vmem:[%s205 + $0xb68] sm:$0xff] %v936
                %v938 = vld [vmem:[%s204 + $0x16e0] sm:$0xff]
                %939 = vst [vmem:[%s205 + $0xb70] sm:$0xff] %v938
                %v940 = vld [vmem:[%s204 + $0x16e8] sm:$0xff]
                %941 = vst [vmem:[%s205 + $0xb78] sm:$0xff] %v940
                %v942 = vld [vmem:[%s204 + $0x1700] sm:$0xff]
                %943 = vst [vmem:[%s205 + $0xb80] sm:$0xff] %v942
                %v944 = vld [vmem:[%s204 + $0x1708] sm:$0xff]
                %945 = vst [vmem:[%s205 + $0xb88] sm:$0xff] %v944
                %v946 = vld [vmem:[%s204 + $0x1720] sm:$0xff]
                %947 = vst [vmem:[%s205 + $0xb90] sm:$0xff] %v946
                %v948 = vld [vmem:[%s204 + $0x1728] sm:$0xff]
                %949 = vst [vmem:[%s205 + $0xb98] sm:$0xff] %v948
                %v950 = vld [vmem:[%s204 + $0x1740] sm:$0xff]
                %951 = vst [vmem:[%s205 + $0xba0] sm:$0xff] %v950
                %v952 = vld [vmem:[%s204 + $0x1748] sm:$0xff]
                %953 = vst [vmem:[%s205 + $0xba8] sm:$0xff] %v952
                %v954 = vld [vmem:[%s204 + $0x1760] sm:$0xff]
                %955 = vst [vmem:[%s205 + $0xbb0] sm:$0xff] %v954
                %v956 = vld [vmem:[%s204 + $0x1768] sm:$0xff]
                %957 = vst [vmem:[%s205 + $0xbb8] sm:$0xff] %v956
                %v958 = vld [vmem:[%s204 + $0x1780] sm:$0xff]
                %959 = vst [vmem:[%s205 + $0xbc0] sm:$0xff] %v958
                %v960 = vld [vmem:[%s204 + $0x1788] sm:$0xff]
                %961 = vst [vmem:[%s205 + $0xbc8] sm:$0xff] %v960
                %v962 = vld [vmem:[%s204 + $0x17a0] sm:$0xff]
                %963 = vst [vmem:[%s205 + $0xbd0] sm:$0xff] %v962
                %v964 = vld [vmem:[%s204 + $0x17a8] sm:$0xff]
                %965 = vst [vmem:[%s205 + $0xbd8] sm:$0xff] %v964
                %v966 = vld [vmem:[%s204 + $0x17c0] sm:$0xff]
                %967 = vst [vmem:[%s205 + $0xbe0] sm:$0xff] %v966
                %v968 = vld [vmem:[%s204 + $0x17c8] sm:$0xff]
                %969 = vst [vmem:[%s205 + $0xbe8] sm:$0xff] %v968
                %v970 = vld [vmem:[%s204 + $0x17e0] sm:$0xff]
                %971 = vst [vmem:[%s205 + $0xbf0] sm:$0xff] %v970
                %v972 = vld [vmem:[%s204 + $0x17e8] sm:$0xff]
                %973 = vst [vmem:[%s205 + $0xbf8] sm:$0xff] %v972
                %v974 = vld [vmem:[%s204 + $0x1800] sm:$0xff]
                %975 = vst [vmem:[%s205 + $0xc00] sm:$0xff] %v974
                %v976 = vld [vmem:[%s204 + $0x1808] sm:$0xff]
                %977 = vst [vmem:[%s205 + $0xc08] sm:$0xff] %v976
                %v978 = vld [vmem:[%s204 + $0x1820] sm:$0xff]
                %979 = vst [vmem:[%s205 + $0xc10] sm:$0xff] %v978
                %v980 = vld [vmem:[%s204 + $0x1828] sm:$0xff]
                %981 = vst [vmem:[%s205 + $0xc18] sm:$0xff] %v980
                %v982 = vld [vmem:[%s204 + $0x1840] sm:$0xff]
                %983 = vst [vmem:[%s205 + $0xc20] sm:$0xff] %v982
                %v984 = vld [vmem:[%s204 + $0x1848] sm:$0xff]
                %985 = vst [vmem:[%s205 + $0xc28] sm:$0xff] %v984
                %v986 = vld [vmem:[%s204 + $0x1860] sm:$0xff]
                %987 = vst [vmem:[%s205 + $0xc30] sm:$0xff] %v986
                %v988 = vld [vmem:[%s204 + $0x1868] sm:$0xff]
                %989 = vst [vmem:[%s205 + $0xc38] sm:$0xff] %v988
                %v990 = vld [vmem:[%s204 + $0x1880] sm:$0xff]
                %991 = vst [vmem:[%s205 + $0xc40] sm:$0xff] %v990
                %v992 = vld [vmem:[%s204 + $0x1888] sm:$0xff]
                %993 = vst [vmem:[%s205 + $0xc48] sm:$0xff] %v992
                %v994 = vld [vmem:[%s204 + $0x18a0] sm:$0xff]
                %995 = vst [vmem:[%s205 + $0xc50] sm:$0xff] %v994
                %v996 = vld [vmem:[%s204 + $0x18a8] sm:$0xff]
                %997 = vst [vmem:[%s205 + $0xc58] sm:$0xff] %v996
                %v998 = vld [vmem:[%s204 + $0x18c0] sm:$0xff]
                %999 = vst [vmem:[%s205 + $0xc60] sm:$0xff] %v998
                %v1000 = vld [vmem:[%s204 + $0x18c8] sm:$0xff]
                %1001 = vst [vmem:[%s205 + $0xc68] sm:$0xff] %v1000
                %v1002 = vld [vmem:[%s204 + $0x18e0] sm:$0xff]
                %1003 = vst [vmem:[%s205 + $0xc70] sm:$0xff] %v1002
                %v1004 = vld [vmem:[%s204 + $0x18e8] sm:$0xff]
                %1005 = vst [vmem:[%s205 + $0xc78] sm:$0xff] %v1004
                %v1006 = vld [vmem:[%s204 + $0x1900] sm:$0xff]
                %1007 = vst [vmem:[%s205 + $0xc80] sm:$0xff] %v1006
                %v1008 = vld [vmem:[%s204 + $0x1908] sm:$0xff]
                %1009 = vst [vmem:[%s205 + $0xc88] sm:$0xff] %v1008
                %v1010 = vld [vmem:[%s204 + $0x1920] sm:$0xff]
                %1011 = vst [vmem:[%s205 + $0xc90] sm:$0xff] %v1010
                %v1012 = vld [vmem:[%s204 + $0x1928] sm:$0xff]
                %1013 = vst [vmem:[%s205 + $0xc98] sm:$0xff] %v1012
                %v1014 = vld [vmem:[%s204 + $0x1940] sm:$0xff]
                %1015 = vst [vmem:[%s205 + $0xca0] sm:$0xff] %v1014
                %v1016 = vld [vmem:[%s204 + $0x1948] sm:$0xff]
                %1017 = vst [vmem:[%s205 + $0xca8] sm:$0xff] %v1016
                %v1018 = vld [vmem:[%s204 + $0x1960] sm:$0xff]
                %1019 = vst [vmem:[%s205 + $0xcb0] sm:$0xff] %v1018
                %v1020 = vld [vmem:[%s204 + $0x1968] sm:$0xff]
                %1021 = vst [vmem:[%s205 + $0xcb8] sm:$0xff] %v1020
                %v1022 = vld [vmem:[%s204 + $0x1980] sm:$0xff]
                %1023 = vst [vmem:[%s205 + $0xcc0] sm:$0xff] %v1022
                %v1024 = vld [vmem:[%s204 + $0x1988] sm:$0xff]
                %1025 = vst [vmem:[%s205 + $0xcc8] sm:$0xff] %v1024
                %v1026 = vld [vmem:[%s204 + $0x19a0] sm:$0xff]
                %1027 = vst [vmem:[%s205 + $0xcd0] sm:$0xff] %v1026
                %v1028 = vld [vmem:[%s204 + $0x19a8] sm:$0xff]
                %1029 = vst [vmem:[%s205 + $0xcd8] sm:$0xff] %v1028
                %v1030 = vld [vmem:[%s204 + $0x19c0] sm:$0xff]
                %1031 = vst [vmem:[%s205 + $0xce0] sm:$0xff] %v1030
                %v1032 = vld [vmem:[%s204 + $0x19c8] sm:$0xff]
                %1033 = vst [vmem:[%s205 + $0xce8] sm:$0xff] %v1032
                %v1034 = vld [vmem:[%s204 + $0x19e0] sm:$0xff]
                %1035 = vst [vmem:[%s205 + $0xcf0] sm:$0xff] %v1034
                %v1036 = vld [vmem:[%s204 + $0x19e8] sm:$0xff]
                %1037 = vst [vmem:[%s205 + $0xcf8] sm:$0xff] %v1036
                %v1038 = vld [vmem:[%s204 + $0x1a00] sm:$0xff]
                %1039 = vst [vmem:[%s205 + $0xd00] sm:$0xff] %v1038
                %v1040 = vld [vmem:[%s204 + $0x1a08] sm:$0xff]
                %1041 = vst [vmem:[%s205 + $0xd08] sm:$0xff] %v1040
                %v1042 = vld [vmem:[%s204 + $0x1a20] sm:$0xff]
                %1043 = vst [vmem:[%s205 + $0xd10] sm:$0xff] %v1042
                %v1044 = vld [vmem:[%s204 + $0x1a28] sm:$0xff]
                %1045 = vst [vmem:[%s205 + $0xd18] sm:$0xff] %v1044
                %v1046 = vld [vmem:[%s204 + $0x1a40] sm:$0xff]
                %1047 = vst [vmem:[%s205 + $0xd20] sm:$0xff] %v1046
                %v1048 = vld [vmem:[%s204 + $0x1a48] sm:$0xff]
                %1049 = vst [vmem:[%s205 + $0xd28] sm:$0xff] %v1048
                %v1050 = vld [vmem:[%s204 + $0x1a60] sm:$0xff]
                %1051 = vst [vmem:[%s205 + $0xd30] sm:$0xff] %v1050
                %v1052 = vld [vmem:[%s204 + $0x1a68] sm:$0xff]
                %1053 = vst [vmem:[%s205 + $0xd38] sm:$0xff] %v1052
                %v1054 = vld [vmem:[%s204 + $0x1a80] sm:$0xff]
                %1055 = vst [vmem:[%s205 + $0xd40] sm:$0xff] %v1054
                %v1056 = vld [vmem:[%s204 + $0x1a88] sm:$0xff]
                %1057 = vst [vmem:[%s205 + $0xd48] sm:$0xff] %v1056
                %v1058 = vld [vmem:[%s204 + $0x1aa0] sm:$0xff]
                %1059 = vst [vmem:[%s205 + $0xd50] sm:$0xff] %v1058
                %v1060 = vld [vmem:[%s204 + $0x1aa8] sm:$0xff]
                %1061 = vst [vmem:[%s205 + $0xd58] sm:$0xff] %v1060
                %v1062 = vld [vmem:[%s204 + $0x1ac0] sm:$0xff]
                %1063 = vst [vmem:[%s205 + $0xd60] sm:$0xff] %v1062
                %v1064 = vld [vmem:[%s204 + $0x1ac8] sm:$0xff]
                %1065 = vst [vmem:[%s205 + $0xd68] sm:$0xff] %v1064
                %v1066 = vld [vmem:[%s204 + $0x1ae0] sm:$0xff]
                %1067 = vst [vmem:[%s205 + $0xd70] sm:$0xff] %v1066
                %v1068 = vld [vmem:[%s204 + $0x1ae8] sm:$0xff]
                %1069 = vst [vmem:[%s205 + $0xd78] sm:$0xff] %v1068
                %v1070 = vld [vmem:[%s204 + $0x1b00] sm:$0xff]
                %1071 = vst [vmem:[%s205 + $0xd80] sm:$0xff] %v1070
                %v1072 = vld [vmem:[%s204 + $0x1b08] sm:$0xff]
                %1073 = vst [vmem:[%s205 + $0xd88] sm:$0xff] %v1072
                %v1074 = vld [vmem:[%s204 + $0x1b20] sm:$0xff]
                %1075 = vst [vmem:[%s205 + $0xd90] sm:$0xff] %v1074
                %v1076 = vld [vmem:[%s204 + $0x1b28] sm:$0xff]
                %1077 = vst [vmem:[%s205 + $0xd98] sm:$0xff] %v1076
                %v1078 = vld [vmem:[%s204 + $0x1b40] sm:$0xff]
                %1079 = vst [vmem:[%s205 + $0xda0] sm:$0xff] %v1078
                %v1080 = vld [vmem:[%s204 + $0x1b48] sm:$0xff]
                %1081 = vst [vmem:[%s205 + $0xda8] sm:$0xff] %v1080
                %v1082 = vld [vmem:[%s204 + $0x1b60] sm:$0xff]
                %1083 = vst [vmem:[%s205 + $0xdb0] sm:$0xff] %v1082
                %v1084 = vld [vmem:[%s204 + $0x1b68] sm:$0xff]
                %1085 = vst [vmem:[%s205 + $0xdb8] sm:$0xff] %v1084
                %v1086 = vld [vmem:[%s204 + $0x1b80] sm:$0xff]
                %1087 = vst [vmem:[%s205 + $0xdc0] sm:$0xff] %v1086
                %v1088 = vld [vmem:[%s204 + $0x1b88] sm:$0xff]
                %1089 = vst [vmem:[%s205 + $0xdc8] sm:$0xff] %v1088
                %v1090 = vld [vmem:[%s204 + $0x1ba0] sm:$0xff]
                %1091 = vst [vmem:[%s205 + $0xdd0] sm:$0xff] %v1090
                %v1092 = vld [vmem:[%s204 + $0x1ba8] sm:$0xff]
                %1093 = vst [vmem:[%s205 + $0xdd8] sm:$0xff] %v1092
                %v1094 = vld [vmem:[%s204 + $0x1bc0] sm:$0xff]
                %1095 = vst [vmem:[%s205 + $0xde0] sm:$0xff] %v1094
                %v1096 = vld [vmem:[%s204 + $0x1bc8] sm:$0xff]
                %1097 = vst [vmem:[%s205 + $0xde8] sm:$0xff] %v1096
                %v1098 = vld [vmem:[%s204 + $0x1be0] sm:$0xff]
                %1099 = vst [vmem:[%s205 + $0xdf0] sm:$0xff] %v1098
                %v1100 = vld [vmem:[%s204 + $0x1be8] sm:$0xff]
                %1101 = vst [vmem:[%s205 + $0xdf8] sm:$0xff] %v1100
                %v1102 = vld [vmem:[%s204 + $0x1c00] sm:$0xff]
                %1103 = vst [vmem:[%s205 + $0xe00] sm:$0xff] %v1102
                %v1104 = vld [vmem:[%s204 + $0x1c08] sm:$0xff]
                %1105 = vst [vmem:[%s205 + $0xe08] sm:$0xff] %v1104
                %v1106 = vld [vmem:[%s204 + $0x1c20] sm:$0xff]
                %1107 = vst [vmem:[%s205 + $0xe10] sm:$0xff] %v1106
                %v1108 = vld [vmem:[%s204 + $0x1c28] sm:$0xff]
                %1109 = vst [vmem:[%s205 + $0xe18] sm:$0xff] %v1108
                %v1110 = vld [vmem:[%s204 + $0x1c40] sm:$0xff]
                %1111 = vst [vmem:[%s205 + $0xe20] sm:$0xff] %v1110
                %v1112 = vld [vmem:[%s204 + $0x1c48] sm:$0xff]
                %1113 = vst [vmem:[%s205 + $0xe28] sm:$0xff] %v1112
                %v1114 = vld [vmem:[%s204 + $0x1c60] sm:$0xff]
                %1115 = vst [vmem:[%s205 + $0xe30] sm:$0xff] %v1114
                %v1116 = vld [vmem:[%s204 + $0x1c68] sm:$0xff]
                %1117 = vst [vmem:[%s205 + $0xe38] sm:$0xff] %v1116
                %v1118 = vld [vmem:[%s204 + $0x1c80] sm:$0xff]
                %1119 = vst [vmem:[%s205 + $0xe40] sm:$0xff] %v1118
                %v1120 = vld [vmem:[%s204 + $0x1c88] sm:$0xff]
                %1121 = vst [vmem:[%s205 + $0xe48] sm:$0xff] %v1120
                %v1122 = vld [vmem:[%s204 + $0x1ca0] sm:$0xff]
                %1123 = vst [vmem:[%s205 + $0xe50] sm:$0xff] %v1122
                %v1124 = vld [vmem:[%s204 + $0x1ca8] sm:$0xff]
                %1125 = vst [vmem:[%s205 + $0xe58] sm:$0xff] %v1124
                %v1126 = vld [vmem:[%s204 + $0x1cc0] sm:$0xff]
                %1127 = vst [vmem:[%s205 + $0xe60] sm:$0xff] %v1126
                %v1128 = vld [vmem:[%s204 + $0x1cc8] sm:$0xff]
                %1129 = vst [vmem:[%s205 + $0xe68] sm:$0xff] %v1128
                %v1130 = vld [vmem:[%s204 + $0x1ce0] sm:$0xff]
                %1131 = vst [vmem:[%s205 + $0xe70] sm:$0xff] %v1130
                %v1132 = vld [vmem:[%s204 + $0x1ce8] sm:$0xff]
                %1133 = vst [vmem:[%s205 + $0xe78] sm:$0xff] %v1132
                %v1134 = vld [vmem:[%s204 + $0x1d00] sm:$0xff]
                %1135 = vst [vmem:[%s205 + $0xe80] sm:$0xff] %v1134
                %v1136 = vld [vmem:[%s204 + $0x1d08] sm:$0xff]
                %1137 = vst [vmem:[%s205 + $0xe88] sm:$0xff] %v1136
                %v1138 = vld [vmem:[%s204 + $0x1d20] sm:$0xff]
                %1139 = vst [vmem:[%s205 + $0xe90] sm:$0xff] %v1138
                %v1140 = vld [vmem:[%s204 + $0x1d28] sm:$0xff]
                %1141 = vst [vmem:[%s205 + $0xe98] sm:$0xff] %v1140
                %v1142 = vld [vmem:[%s204 + $0x1d40] sm:$0xff]
                %1143 = vst [vmem:[%s205 + $0xea0] sm:$0xff] %v1142
                %v1144 = vld [vmem:[%s204 + $0x1d48] sm:$0xff]
                %1145 = vst [vmem:[%s205 + $0xea8] sm:$0xff] %v1144
                %v1146 = vld [vmem:[%s204 + $0x1d60] sm:$0xff]
                %1147 = vst [vmem:[%s205 + $0xeb0] sm:$0xff] %v1146
                %v1148 = vld [vmem:[%s204 + $0x1d68] sm:$0xff]
                %1149 = vst [vmem:[%s205 + $0xeb8] sm:$0xff] %v1148
                %v1150 = vld [vmem:[%s204 + $0x1d80] sm:$0xff]
                %1151 = vst [vmem:[%s205 + $0xec0] sm:$0xff] %v1150
                %v1152 = vld [vmem:[%s204 + $0x1d88] sm:$0xff]
                %1153 = vst [vmem:[%s205 + $0xec8] sm:$0xff] %v1152
                %v1154 = vld [vmem:[%s204 + $0x1da0] sm:$0xff]
                %1155 = vst [vmem:[%s205 + $0xed0] sm:$0xff] %v1154
                %v1156 = vld [vmem:[%s204 + $0x1da8] sm:$0xff]
                %1157 = vst [vmem:[%s205 + $0xed8] sm:$0xff] %v1156
                %v1158 = vld [vmem:[%s204 + $0x1dc0] sm:$0xff]
                %1159 = vst [vmem:[%s205 + $0xee0] sm:$0xff] %v1158
                %v1160 = vld [vmem:[%s204 + $0x1dc8] sm:$0xff]
                %1161 = vst [vmem:[%s205 + $0xee8] sm:$0xff] %v1160
                %v1162 = vld [vmem:[%s204 + $0x1de0] sm:$0xff]
                %1163 = vst [vmem:[%s205 + $0xef0] sm:$0xff] %v1162
                %v1164 = vld [vmem:[%s204 + $0x1de8] sm:$0xff]
                %1165 = vst [vmem:[%s205 + $0xef8] sm:$0xff] %v1164
                %v1166 = vld [vmem:[%s204 + $0x1e00] sm:$0xff]
                %1167 = vst [vmem:[%s205 + $0xf00] sm:$0xff] %v1166
                %v1168 = vld [vmem:[%s204 + $0x1e08] sm:$0xff]
                %1169 = vst [vmem:[%s205 + $0xf08] sm:$0xff] %v1168
                %v1170 = vld [vmem:[%s204 + $0x1e20] sm:$0xff]
                %1171 = vst [vmem:[%s205 + $0xf10] sm:$0xff] %v1170
                %v1172 = vld [vmem:[%s204 + $0x1e28] sm:$0xff]
                %1173 = vst [vmem:[%s205 + $0xf18] sm:$0xff] %v1172
                %v1174 = vld [vmem:[%s204 + $0x1e40] sm:$0xff]
                %1175 = vst [vmem:[%s205 + $0xf20] sm:$0xff] %v1174
                %v1176 = vld [vmem:[%s204 + $0x1e48] sm:$0xff]
                %1177 = vst [vmem:[%s205 + $0xf28] sm:$0xff] %v1176
                %v1178 = vld [vmem:[%s204 + $0x1e60] sm:$0xff]
                %1179 = vst [vmem:[%s205 + $0xf30] sm:$0xff] %v1178
                %v1180 = vld [vmem:[%s204 + $0x1e68] sm:$0xff]
                %1181 = vst [vmem:[%s205 + $0xf38] sm:$0xff] %v1180
                %v1182 = vld [vmem:[%s204 + $0x1e80] sm:$0xff]
                %1183 = vst [vmem:[%s205 + $0xf40] sm:$0xff] %v1182
                %v1184 = vld [vmem:[%s204 + $0x1e88] sm:$0xff]
                %1185 = vst [vmem:[%s205 + $0xf48] sm:$0xff] %v1184
                %v1186 = vld [vmem:[%s204 + $0x1ea0] sm:$0xff]
                %1187 = vst [vmem:[%s205 + $0xf50] sm:$0xff] %v1186
                %v1188 = vld [vmem:[%s204 + $0x1ea8] sm:$0xff]
                %1189 = vst [vmem:[%s205 + $0xf58] sm:$0xff] %v1188
                %v1190 = vld [vmem:[%s204 + $0x1ec0] sm:$0xff]
                %1191 = vst [vmem:[%s205 + $0xf60] sm:$0xff] %v1190
                %v1192 = vld [vmem:[%s204 + $0x1ec8] sm:$0xff]
                %1193 = vst [vmem:[%s205 + $0xf68] sm:$0xff] %v1192
                %v1194 = vld [vmem:[%s204 + $0x1ee0] sm:$0xff]
                %1195 = vst [vmem:[%s205 + $0xf70] sm:$0xff] %v1194
                %v1196 = vld [vmem:[%s204 + $0x1ee8] sm:$0xff]
                %1197 = vst [vmem:[%s205 + $0xf78] sm:$0xff] %v1196
                %v1198 = vld [vmem:[%s204 + $0x1f00] sm:$0xff]
                %1199 = vst [vmem:[%s205 + $0xf80] sm:$0xff] %v1198
                %v1200 = vld [vmem:[%s204 + $0x1f08] sm:$0xff]
                %1201 = vst [vmem:[%s205 + $0xf88] sm:$0xff] %v1200
                %v1202 = vld [vmem:[%s204 + $0x1f20] sm:$0xff]
                %1203 = vst [vmem:[%s205 + $0xf90] sm:$0xff] %v1202
                %v1204 = vld [vmem:[%s204 + $0x1f28] sm:$0xff]
                %1205 = vst [vmem:[%s205 + $0xf98] sm:$0xff] %v1204
                %v1206 = vld [vmem:[%s204 + $0x1f40] sm:$0xff]
                %1207 = vst [vmem:[%s205 + $0xfa0] sm:$0xff] %v1206
                %v1208 = vld [vmem:[%s204 + $0x1f48] sm:$0xff]
                %1209 = vst [vmem:[%s205 + $0xfa8] sm:$0xff] %v1208
                %v1210 = vld [vmem:[%s204 + $0x1f60] sm:$0xff]
                %1211 = vst [vmem:[%s205 + $0xfb0] sm:$0xff] %v1210
                %v1212 = vld [vmem:[%s204 + $0x1f68] sm:$0xff]
                %1213 = vst [vmem:[%s205 + $0xfb8] sm:$0xff] %v1212
                %v1214 = vld [vmem:[%s204 + $0x1f80] sm:$0xff]
                %1215 = vst [vmem:[%s205 + $0xfc0] sm:$0xff] %v1214
                %v1216 = vld [vmem:[%s204 + $0x1f88] sm:$0xff]
                %1217 = vst [vmem:[%s205 + $0xfc8] sm:$0xff] %v1216
                %v1218 = vld [vmem:[%s204 + $0x1fa0] sm:$0xff]
                %1219 = vst [vmem:[%s205 + $0xfd0] sm:$0xff] %v1218
                %v1220 = vld [vmem:[%s204 + $0x1fa8] sm:$0xff]
                %1221 = vst [vmem:[%s205 + $0xfd8] sm:$0xff] %v1220
                %v1222 = vld [vmem:[%s204 + $0x1fc0] sm:$0xff]
                %1223 = vst [vmem:[%s205 + $0xfe0] sm:$0xff] %v1222
                %v1224 = vld [vmem:[%s204 + $0x1fc8] sm:$0xff]
                %1225 = vst [vmem:[%s205 + $0xfe8] sm:$0xff] %v1224
                %v1226 = vld [vmem:[%s204 + $0x1fe0] sm:$0xff]
                %1227 = vst [vmem:[%s205 + $0xff0] sm:$0xff] %v1226
                %v1228 = vld [vmem:[%s204 + $0x1fe8] sm:$0xff]
                %1229 = vst [vmem:[%s205 + $0xff8] sm:$0xff] %v1228
              $region37: #{encoder2d_gray_forward.3} parent=31 // loop_footer
                %s203 = sadd.s32 1, %s199
              $region38: #{encoder2d_gray_forward.3} parent=31 // loop_footer_branch
                %198 = sbr.rel target = $region34
              $region39: #{encoder2d_gray_forward.3} parent=31 // loop_exit
                _
            $region32: #{encoder2d_gray_forward.3} parent=27 // pred_fallthru
              _
            // Predicated region
            $region40: #{encoder2d_gray_forward.3} parent=27 // pred_check
              _
            $region41: #{encoder2d_gray_forward.3} parent=27 // pred_check_branch
              %1231 = sbr.rel target = $region43
            $region42: #{encoder2d_gray_forward.3} parent=27 // pred_region
              _
            $region43: #{encoder2d_gray_forward.3} parent=27 // pred_fallthru
              _
          $region28: #{encoder2d_gray_forward.3} parent=23 // pred_fallthru
            _
          %1232 = vnop
        $region24: #{encoder2d_gray_forward.3} parent=15 // pred_fallthru
          _
        // Predicated region
        $region44: #{encoder2d_gray_forward.3} parent=15 // pred_check
          %p1233 = pneg %p96
        $region45: #{encoder2d_gray_forward.3} parent=15 // pred_check_branch
          %1235 = sbr.rel (%p1233) target = $region47
        $region46: #{encoder2d_gray_forward.3} parent=15 // pred_region
          %s1236 = smul.u32 2, %s17
          %p1237 = scmp.lt.s32.totalorder %s1236, 3
          %s1238 = scalar_select %p1237, %s1236, 3
          %s1239 = scalar_lea.vmem %s2, %s1238
          %s1240 = smul.u32 2, %s17
        $region47: #{encoder2d_gray_forward.3} parent=15 // pred_fallthru
          _
        // Predicated region
        $region48: #{encoder2d_gray_forward.3} parent=15 // pred_check
          %p1241 = pneg %p122
        $region49: #{encoder2d_gray_forward.3} parent=15 // pred_check_branch
          %1243 = sbr.rel (%p1241) target = $region51
        $region50: #{encoder2d_gray_forward.3} parent=15 // pred_region
          %s1244 = smul.u32 2, %s17
          %p1245 = scmp.lt.s32.totalorder %s1244, 3
          %s1246 = scalar_select %p1245, %s1244, 3
          %s1247 = scalar_lea.vmem %s3, %s1246
          %s1248 = smul.u32 2, %s17
        $region51: #{encoder2d_gray_forward.3} parent=15 // pred_fallthru
          _
      $region16: #{encoder2d_gray_forward.3} parent=5 // pred_fallthru
        _
      %p1249 = scmp.le.s32.totalorder 1, %s10
      %p1250 = scmp.lt.s32.totalorder %s10, 5
      %p1251 = pnand %p1249, %p1250
      %p1252 = pneg %p1251
      // Predicated region
      $region52: #{encoder2d_gray_forward.3} parent=5 // pred_check
        _
      $region53: #{encoder2d_gray_forward.3} parent=5 // pred_check_branch
        %1254 = sbr.rel (%p1251) target = $region55
      $region54: #{encoder2d_gray_forward.3} parent=5 // pred_region
        %s1255 = ssub.s32 %s10, 1
        %s1256 = sand.u32 %s63, 1
        %s1257 = sand.u32 %s63, 1
        %s1258 = smul.addr %s1257, 4096
        %s1259 = scalar_lea.vmem [#allocation3], %s1258
        // Predicated region
        $region56: #{encoder2d_gray_forward.3} parent=54 // pred_check
          %p1260 = pneg %p76
        $region57: #{encoder2d_gray_forward.3} parent=54 // pred_check_branch
          %1262 = sbr.rel (%p1260) target = $region59
        $region58: #{encoder2d_gray_forward.3} parent=54 // pred_region
          _
        $region59: #{encoder2d_gray_forward.3} parent=54 // pred_fallthru
          _
        %s1263 = smul.u32 64, %s20
        %p1264 = scmp.lt.s32.totalorder %s1263, 127
        %s1265 = scalar_select %p1264, %s1263, 127
        %s1266 = scalar_lea.vmem %s0, %s1265
        %p1267 = pneg %p48
        %p1268 = pneg %p45
        %s1269 = sand.u32 %s63, 1
        %s1270 = sand.u32 %s63, 1
        %s1271 = smul.addr %s1270, 4096
        %s1272 = scalar_lea.vmem [#allocation3], %s1271
        %p1273 = pneg %p76
        %p1274 = pneg %p73
        %s1275 = smul.u32 2, %s19
        %p1276 = scmp.lt.s32.totalorder %s1275, 3
        %s1277 = scalar_select %p1276, %s1275, 3
        %s1278 = scalar_lea.vmem %s2, %s1277
        %p1279 = pneg %p102
        %p1280 = pneg %p99
        %s1281 = smul.u32 2, %s19
        %p1282 = scmp.lt.s32.totalorder %s1281, 3
        %s1283 = scalar_select %p1282, %s1281, 3
        %s1284 = scalar_lea.vmem %s3, %s1283
        %p1285 = pneg %p128
        %p1286 = pneg %p125
        %p1287 = pneg %p154
        %p1288 = pneg %p151
        %s1289 = smul.u32 2, %s19
        %p1290 = scmp.lt.s32.totalorder %s1289, 3
        %s1291 = scalar_select %p1290, %s1289, 3
        %s1292 = smul.addr %s1291, 2
        %s1293 = scalar_lea.vmem %s4, %s1292
        %s1294 = smul.u32 64, %s20
        %p1295 = scmp.lt.s32.totalorder %s1294, 127
        %s1296 = scalar_select %p1295, %s1294, 127
        %s1297 = scalar_lea.vmem %s0, %s1296
        %s1298 = smul.u32 64, %s20
        %s1299 = smul.u32 256, %s20
        %s1300 = smul.u32 2, %s19
        %s1301 = smul.u32 2, %s19
        %p1302 = scmp.lt.s32.totalorder %s1301, 3
        %s1303 = scalar_select %p1302, %s1301, 3
        %s1304 = scalar_lea.vmem %s2, %s1303
        %s1305 = smul.u32 2, %s19
        %s1306 = smul.u32 2, %s19
        %p1307 = scmp.lt.s32.totalorder %s1306, 3
        %s1308 = scalar_select %p1307, %s1306, 3
        %s1309 = scalar_lea.vmem %s3, %s1308
        %s1310 = smul.u32 2, %s19
        %s1311 = smul.u32 2, %s19
        %p1312 = scmp.lt.s32.totalorder %s1311, 3
        %s1313 = scalar_select %p1312, %s1311, 3
        %s1314 = smul.addr %s1313, 2
        %s1315 = scalar_lea.vmem %s4, %s1314
        %s1316 = smul.u32 2, %s19
        %p1317 = scmp.eq.s32.totalorder %s20, 0
        // Predicated region
        $region60: #{encoder2d_gray_forward.3} parent=54 // pred_check
          %p1318 = pneg %p1317
        $region61: #{encoder2d_gray_forward.3} parent=54 // pred_check_branch
          %1320 = sbr.rel (%p1318) target = $region63
        $region62: #{encoder2d_gray_forward.3} parent=54 // pred_region
          %1321 = vst [vmem:[#allocation2] sm:$0xf] 0.0
        $region63: #{encoder2d_gray_forward.3} parent=54 // pred_fallthru
          _
        %v1322 = vld [vmem:[#allocation2] sm:$0xf]
        %v1323 = vld [vmem:[%s1297] sm:$0xff]
        %v1324 = vld [vmem:[%s1297 + $0x8] sm:$0xff]
        %v1325 = vld [vmem:[%s1297 + $0x10] sm:$0xff]
        %v1326 = vld [vmem:[%s1297 + $0x18] sm:$0xff]
        %v1327 = vld [vmem:[%s1297 + $0x20] sm:$0xff]
        %v1328 = vld [vmem:[%s1297 + $0x28] sm:$0xff]
        %v1329 = vld [vmem:[%s1297 + $0x30] sm:$0xff]
        %v1330 = vld [vmem:[%s1297 + $0x38] sm:$0xff]
        %v1331 = vld [vmem:[%s1259] sm:$0xff]
        %v1332 = vld [vmem:[%s1259 + $0x8] sm:$0xff]
        %v1333 = vld [vmem:[%s1259 + $0x10] sm:$0xff]
        %v1334 = vld [vmem:[%s1259 + $0x18] sm:$0xff]
        %v1335 = vld [vmem:[%s1259 + $0x20] sm:$0xff]
        %v1336 = vld [vmem:[%s1259 + $0x28] sm:$0xff]
        %v1337 = vld [vmem:[%s1259 + $0x30] sm:$0xff]
        %v1338 = vld [vmem:[%s1259 + $0x38] sm:$0xff]
        %v1339 = vld [vmem:[%s1259 + $0x40] sm:$0xff]
        %v1340 = vld [vmem:[%s1259 + $0x48] sm:$0xff]
        %v1341 = vld [vmem:[%s1259 + $0x50] sm:$0xff]
        %v1342 = vld [vmem:[%s1259 + $0x58] sm:$0xff]
        %v1343 = vld [vmem:[%s1259 + $0x60] sm:$0xff]
        %v1344 = vld [vmem:[%s1259 + $0x68] sm:$0xff]
        %v1345 = vld [vmem:[%s1259 + $0x70] sm:$0xff]
        %v1346 = vld [vmem:[%s1259 + $0x78] sm:$0xff]
        %v1347 = vld [vmem:[%s1259 + $0x80] sm:$0xff]
        %v1348 = vld [vmem:[%s1259 + $0x88] sm:$0xff]
        %v1349 = vld [vmem:[%s1259 + $0x90] sm:$0xff]
        %v1350 = vld [vmem:[%s1259 + $0x98] sm:$0xff]
        %v1351 = vld [vmem:[%s1259 + $0xa0] sm:$0xff]
        %v1352 = vld [vmem:[%s1259 + $0xa8] sm:$0xff]
        %v1353 = vld [vmem:[%s1259 + $0xb0] sm:$0xff]
        %v1354 = vld [vmem:[%s1259 + $0xb8] sm:$0xff]
        %v1355 = vld [vmem:[%s1259 + $0xc0] sm:$0xff]
        %v1356 = vld [vmem:[%s1259 + $0xc8] sm:$0xff]
        %v1357 = vld [vmem:[%s1259 + $0xd0] sm:$0xff]
        %v1358 = vld [vmem:[%s1259 + $0xd8] sm:$0xff]
        %v1359 = vld [vmem:[%s1259 + $0xe0] sm:$0xff]
        %v1360 = vld [vmem:[%s1259 + $0xe8] sm:$0xff]
        %v1361 = vld [vmem:[%s1259 + $0xf0] sm:$0xff]
        %v1362 = vld [vmem:[%s1259 + $0xf8] sm:$0xff]
        %v1363 = vld [vmem:[%s1259 + $0x100] sm:$0xff]
        %v1364 = vld [vmem:[%s1259 + $0x108] sm:$0xff]
        %v1365 = vld [vmem:[%s1259 + $0x110] sm:$0xff]
        %v1366 = vld [vmem:[%s1259 + $0x118] sm:$0xff]
        %v1367 = vld [vmem:[%s1259 + $0x120] sm:$0xff]
        %v1368 = vld [vmem:[%s1259 + $0x128] sm:$0xff]
        %v1369 = vld [vmem:[%s1259 + $0x130] sm:$0xff]
        %v1370 = vld [vmem:[%s1259 + $0x138] sm:$0xff]
        %v1371 = vld [vmem:[%s1259 + $0x140] sm:$0xff]
        %v1372 = vld [vmem:[%s1259 + $0x148] sm:$0xff]
        %v1373 = vld [vmem:[%s1259 + $0x150] sm:$0xff]
        %v1374 = vld [vmem:[%s1259 + $0x158] sm:$0xff]
        %v1375 = vld [vmem:[%s1259 + $0x160] sm:$0xff]
        %v1376 = vld [vmem:[%s1259 + $0x168] sm:$0xff]
        %v1377 = vld [vmem:[%s1259 + $0x170] sm:$0xff]
        %v1378 = vld [vmem:[%s1259 + $0x178] sm:$0xff]
        %v1379 = vld [vmem:[%s1259 + $0x180] sm:$0xff]
        %v1380 = vld [vmem:[%s1259 + $0x188] sm:$0xff]
        %v1381 = vld [vmem:[%s1259 + $0x190] sm:$0xff]
        %v1382 = vld [vmem:[%s1259 + $0x198] sm:$0xff]
        %v1383 = vld [vmem:[%s1259 + $0x1a0] sm:$0xff]
        %v1384 = vld [vmem:[%s1259 + $0x1a8] sm:$0xff]
        %v1385 = vld [vmem:[%s1259 + $0x1b0] sm:$0xff]
        %v1386 = vld [vmem:[%s1259 + $0x1b8] sm:$0xff]
        %v1387 = vld [vmem:[%s1259 + $0x1c0] sm:$0xff]
        %v1388 = vld [vmem:[%s1259 + $0x1c8] sm:$0xff]
        %v1389 = vld [vmem:[%s1259 + $0x1d0] sm:$0xff]
        %v1390 = vld [vmem:[%s1259 + $0x1d8] sm:$0xff]
        %v1391 = vld [vmem:[%s1259 + $0x1e0] sm:$0xff]
        %v1392 = vld [vmem:[%s1259 + $0x1e8] sm:$0xff]
        %v1393 = vld [vmem:[%s1259 + $0x1f0] sm:$0xff]
        %v1394 = vld [vmem:[%s1259 + $0x1f8] sm:$0xff]
        %v1395 = vld [vmem:[%s1259 + $0x200] sm:$0xff]
        %v1396 = vld [vmem:[%s1259 + $0x208] sm:$0xff]
        %v1397 = vld [vmem:[%s1259 + $0x210] sm:$0xff]
        %v1398 = vld [vmem:[%s1259 + $0x218] sm:$0xff]
        %v1399 = vld [vmem:[%s1259 + $0x220] sm:$0xff]
        %v1400 = vld [vmem:[%s1259 + $0x228] sm:$0xff]
        %v1401 = vld [vmem:[%s1259 + $0x230] sm:$0xff]
        %v1402 = vld [vmem:[%s1259 + $0x238] sm:$0xff]
        %v1403 = vld [vmem:[%s1259 + $0x240] sm:$0xff]
        %v1404 = vld [vmem:[%s1259 + $0x248] sm:$0xff]
        %v1405 = vld [vmem:[%s1259 + $0x250] sm:$0xff]
        %v1406 = vld [vmem:[%s1259 + $0x258] sm:$0xff]
        %v1407 = vld [vmem:[%s1259 + $0x260] sm:$0xff]
        %v1408 = vld [vmem:[%s1259 + $0x268] sm:$0xff]
        %v1409 = vld [vmem:[%s1259 + $0x270] sm:$0xff]
        %v1410 = vld [vmem:[%s1259 + $0x278] sm:$0xff]
        %v1411 = vld [vmem:[%s1259 + $0x280] sm:$0xff]
        %v1412 = vld [vmem:[%s1259 + $0x288] sm:$0xff]
        %v1413 = vld [vmem:[%s1259 + $0x290] sm:$0xff]
        %v1414 = vld [vmem:[%s1259 + $0x298] sm:$0xff]
        %v1415 = vld [vmem:[%s1259 + $0x2a0] sm:$0xff]
        %v1416 = vld [vmem:[%s1259 + $0x2a8] sm:$0xff]
        %v1417 = vld [vmem:[%s1259 + $0x2b0] sm:$0xff]
        %v1418 = vld [vmem:[%s1259 + $0x2b8] sm:$0xff]
        %v1419 = vld [vmem:[%s1259 + $0x2c0] sm:$0xff]
        %v1420 = vld [vmem:[%s1259 + $0x2c8] sm:$0xff]
        %v1421 = vld [vmem:[%s1259 + $0x2d0] sm:$0xff]
        %v1422 = vld [vmem:[%s1259 + $0x2d8] sm:$0xff]
        %v1423 = vld [vmem:[%s1259 + $0x2e0] sm:$0xff]
        %v1424 = vld [vmem:[%s1259 + $0x2e8] sm:$0xff]
        %v1425 = vld [vmem:[%s1259 + $0x2f0] sm:$0xff]
        %v1426 = vld [vmem:[%s1259 + $0x2f8] sm:$0xff]
        %v1427 = vld [vmem:[%s1259 + $0x300] sm:$0xff]
        %v1428 = vld [vmem:[%s1259 + $0x308] sm:$0xff]
        %v1429 = vld [vmem:[%s1259 + $0x310] sm:$0xff]
        %v1430 = vld [vmem:[%s1259 + $0x318] sm:$0xff]
        %v1431 = vld [vmem:[%s1259 + $0x320] sm:$0xff]
        %v1432 = vld [vmem:[%s1259 + $0x328] sm:$0xff]
        %v1433 = vld [vmem:[%s1259 + $0x330] sm:$0xff]
        %v1434 = vld [vmem:[%s1259 + $0x338] sm:$0xff]
        %v1435 = vld [vmem:[%s1259 + $0x340] sm:$0xff]
        %v1436 = vld [vmem:[%s1259 + $0x348] sm:$0xff]
        %v1437 = vld [vmem:[%s1259 + $0x350] sm:$0xff]
        %v1438 = vld [vmem:[%s1259 + $0x358] sm:$0xff]
        %v1439 = vld [vmem:[%s1259 + $0x360] sm:$0xff]
        %v1440 = vld [vmem:[%s1259 + $0x368] sm:$0xff]
        %v1441 = vld [vmem:[%s1259 + $0x370] sm:$0xff]
        %v1442 = vld [vmem:[%s1259 + $0x378] sm:$0xff]
        %v1443 = vld [vmem:[%s1259 + $0x380] sm:$0xff]
        %v1444 = vld [vmem:[%s1259 + $0x388] sm:$0xff]
        %v1445 = vld [vmem:[%s1259 + $0x390] sm:$0xff]
        %v1446 = vld [vmem:[%s1259 + $0x398] sm:$0xff]
        %v1447 = vld [vmem:[%s1259 + $0x3a0] sm:$0xff]
        %v1448 = vld [vmem:[%s1259 + $0x3a8] sm:$0xff]
        %v1449 = vld [vmem:[%s1259 + $0x3b0] sm:$0xff]
        %v1450 = vld [vmem:[%s1259 + $0x3b8] sm:$0xff]
        %v1451 = vld [vmem:[%s1259 + $0x3c0] sm:$0xff]
        %v1452 = vld [vmem:[%s1259 + $0x3c8] sm:$0xff]
        %v1453 = vld [vmem:[%s1259 + $0x3d0] sm:$0xff]
        %v1454 = vld [vmem:[%s1259 + $0x3d8] sm:$0xff]
        %v1455 = vld [vmem:[%s1259 + $0x3e0] sm:$0xff]
        %v1456 = vld [vmem:[%s1259 + $0x3e8] sm:$0xff]
        %v1457 = vld [vmem:[%s1259 + $0x3f0] sm:$0xff]
        %v1458 = vld [vmem:[%s1259 + $0x3f8] sm:$0xff]
        %v1459 = vld [vmem:[%s1259 + $0x400] sm:$0xff]
        %v1460 = vld [vmem:[%s1259 + $0x408] sm:$0xff]
        %v1461 = vld [vmem:[%s1259 + $0x410] sm:$0xff]
        %v1462 = vld [vmem:[%s1259 + $0x418] sm:$0xff]
        %v1463 = vld [vmem:[%s1259 + $0x420] sm:$0xff]
        %v1464 = vld [vmem:[%s1259 + $0x428] sm:$0xff]
        %v1465 = vld [vmem:[%s1259 + $0x430] sm:$0xff]
        %v1466 = vld [vmem:[%s1259 + $0x438] sm:$0xff]
        %v1467 = vld [vmem:[%s1259 + $0x440] sm:$0xff]
        %v1468 = vld [vmem:[%s1259 + $0x448] sm:$0xff]
        %v1469 = vld [vmem:[%s1259 + $0x450] sm:$0xff]
        %v1470 = vld [vmem:[%s1259 + $0x458] sm:$0xff]
        %v1471 = vld [vmem:[%s1259 + $0x460] sm:$0xff]
        %v1472 = vld [vmem:[%s1259 + $0x468] sm:$0xff]
        %v1473 = vld [vmem:[%s1259 + $0x470] sm:$0xff]
        %v1474 = vld [vmem:[%s1259 + $0x478] sm:$0xff]
        %v1475 = vld [vmem:[%s1259 + $0x480] sm:$0xff]
        %v1476 = vld [vmem:[%s1259 + $0x488] sm:$0xff]
        %v1477 = vld [vmem:[%s1259 + $0x490] sm:$0xff]
        %v1478 = vld [vmem:[%s1259 + $0x498] sm:$0xff]
        %v1479 = vld [vmem:[%s1259 + $0x4a0] sm:$0xff]
        %v1480 = vld [vmem:[%s1259 + $0x4a8] sm:$0xff]
        %v1481 = vld [vmem:[%s1259 + $0x4b0] sm:$0xff]
        %v1482 = vld [vmem:[%s1259 + $0x4b8] sm:$0xff]
        %v1483 = vld [vmem:[%s1259 + $0x4c0] sm:$0xff]
        %v1484 = vld [vmem:[%s1259 + $0x4c8] sm:$0xff]
        %v1485 = vld [vmem:[%s1259 + $0x4d0] sm:$0xff]
        %v1486 = vld [vmem:[%s1259 + $0x4d8] sm:$0xff]
        %v1487 = vld [vmem:[%s1259 + $0x4e0] sm:$0xff]
        %v1488 = vld [vmem:[%s1259 + $0x4e8] sm:$0xff]
        %v1489 = vld [vmem:[%s1259 + $0x4f0] sm:$0xff]
        %v1490 = vld [vmem:[%s1259 + $0x4f8] sm:$0xff]
        %v1491 = vld [vmem:[%s1259 + $0x500] sm:$0xff]
        %v1492 = vld [vmem:[%s1259 + $0x508] sm:$0xff]
        %v1493 = vld [vmem:[%s1259 + $0x510] sm:$0xff]
        %v1494 = vld [vmem:[%s1259 + $0x518] sm:$0xff]
        %v1495 = vld [vmem:[%s1259 + $0x520] sm:$0xff]
        %v1496 = vld [vmem:[%s1259 + $0x528] sm:$0xff]
        %v1497 = vld [vmem:[%s1259 + $0x530] sm:$0xff]
        %v1498 = vld [vmem:[%s1259 + $0x538] sm:$0xff]
        %v1499 = vld [vmem:[%s1259 + $0x540] sm:$0xff]
        %v1500 = vld [vmem:[%s1259 + $0x548] sm:$0xff]
        %v1501 = vld [vmem:[%s1259 + $0x550] sm:$0xff]
        %v1502 = vld [vmem:[%s1259 + $0x558] sm:$0xff]
        %v1503 = vld [vmem:[%s1259 + $0x560] sm:$0xff]
        %v1504 = vld [vmem:[%s1259 + $0x568] sm:$0xff]
        %v1505 = vld [vmem:[%s1259 + $0x570] sm:$0xff]
        %v1506 = vld [vmem:[%s1259 + $0x578] sm:$0xff]
        %v1507 = vld [vmem:[%s1259 + $0x580] sm:$0xff]
        %v1508 = vld [vmem:[%s1259 + $0x588] sm:$0xff]
        %v1509 = vld [vmem:[%s1259 + $0x590] sm:$0xff]
        %v1510 = vld [vmem:[%s1259 + $0x598] sm:$0xff]
        %v1511 = vld [vmem:[%s1259 + $0x5a0] sm:$0xff]
        %v1512 = vld [vmem:[%s1259 + $0x5a8] sm:$0xff]
        %v1513 = vld [vmem:[%s1259 + $0x5b0] sm:$0xff]
        %v1514 = vld [vmem:[%s1259 + $0x5b8] sm:$0xff]
        %v1515 = vld [vmem:[%s1259 + $0x5c0] sm:$0xff]
        %v1516 = vld [vmem:[%s1259 + $0x5c8] sm:$0xff]
        %v1517 = vld [vmem:[%s1259 + $0x5d0] sm:$0xff]
        %v1518 = vld [vmem:[%s1259 + $0x5d8] sm:$0xff]
        %v1519 = vld [vmem:[%s1259 + $0x5e0] sm:$0xff]
        %v1520 = vld [vmem:[%s1259 + $0x5e8] sm:$0xff]
        %v1521 = vld [vmem:[%s1259 + $0x5f0] sm:$0xff]
        %v1522 = vld [vmem:[%s1259 + $0x5f8] sm:$0xff]
        %v1523 = vld [vmem:[%s1259 + $0x600] sm:$0xff]
        %v1524 = vld [vmem:[%s1259 + $0x608] sm:$0xff]
        %v1525 = vld [vmem:[%s1259 + $0x610] sm:$0xff]
        %v1526 = vld [vmem:[%s1259 + $0x618] sm:$0xff]
        %v1527 = vld [vmem:[%s1259 + $0x620] sm:$0xff]
        %v1528 = vld [vmem:[%s1259 + $0x628] sm:$0xff]
        %v1529 = vld [vmem:[%s1259 + $0x630] sm:$0xff]
        %v1530 = vld [vmem:[%s1259 + $0x638] sm:$0xff]
        %v1531 = vld [vmem:[%s1259 + $0x640] sm:$0xff]
        %v1532 = vld [vmem:[%s1259 + $0x648] sm:$0xff]
        %v1533 = vld [vmem:[%s1259 + $0x650] sm:$0xff]
        %v1534 = vld [vmem:[%s1259 + $0x658] sm:$0xff]
        %v1535 = vld [vmem:[%s1259 + $0x660] sm:$0xff]
        %v1536 = vld [vmem:[%s1259 + $0x668] sm:$0xff]
        %v1537 = vld [vmem:[%s1259 + $0x670] sm:$0xff]
        %v1538 = vld [vmem:[%s1259 + $0x678] sm:$0xff]
        %v1539 = vld [vmem:[%s1259 + $0x680] sm:$0xff]
        %v1540 = vld [vmem:[%s1259 + $0x688] sm:$0xff]
        %v1541 = vld [vmem:[%s1259 + $0x690] sm:$0xff]
        %v1542 = vld [vmem:[%s1259 + $0x698] sm:$0xff]
        %v1543 = vld [vmem:[%s1259 + $0x6a0] sm:$0xff]
        %v1544 = vld [vmem:[%s1259 + $0x6a8] sm:$0xff]
        %v1545 = vld [vmem:[%s1259 + $0x6b0] sm:$0xff]
        %v1546 = vld [vmem:[%s1259 + $0x6b8] sm:$0xff]
        %v1547 = vld [vmem:[%s1259 + $0x6c0] sm:$0xff]
        %v1548 = vld [vmem:[%s1259 + $0x6c8] sm:$0xff]
        %v1549 = vld [vmem:[%s1259 + $0x6d0] sm:$0xff]
        %v1550 = vld [vmem:[%s1259 + $0x6d8] sm:$0xff]
        %v1551 = vld [vmem:[%s1259 + $0x6e0] sm:$0xff]
        %v1552 = vld [vmem:[%s1259 + $0x6e8] sm:$0xff]
        %v1553 = vld [vmem:[%s1259 + $0x6f0] sm:$0xff]
        %v1554 = vld [vmem:[%s1259 + $0x6f8] sm:$0xff]
        %v1555 = vld [vmem:[%s1259 + $0x700] sm:$0xff]
        %v1556 = vld [vmem:[%s1259 + $0x708] sm:$0xff]
        %v1557 = vld [vmem:[%s1259 + $0x710] sm:$0xff]
        %v1558 = vld [vmem:[%s1259 + $0x718] sm:$0xff]
        %v1559 = vld [vmem:[%s1259 + $0x720] sm:$0xff]
        %v1560 = vld [vmem:[%s1259 + $0x728] sm:$0xff]
        %v1561 = vld [vmem:[%s1259 + $0x730] sm:$0xff]
        %v1562 = vld [vmem:[%s1259 + $0x738] sm:$0xff]
        %v1563 = vld [vmem:[%s1259 + $0x740] sm:$0xff]
        %v1564 = vld [vmem:[%s1259 + $0x748] sm:$0xff]
        %v1565 = vld [vmem:[%s1259 + $0x750] sm:$0xff]
        %v1566 = vld [vmem:[%s1259 + $0x758] sm:$0xff]
        %v1567 = vld [vmem:[%s1259 + $0x760] sm:$0xff]
        %v1568 = vld [vmem:[%s1259 + $0x768] sm:$0xff]
        %v1569 = vld [vmem:[%s1259 + $0x770] sm:$0xff]
        %v1570 = vld [vmem:[%s1259 + $0x778] sm:$0xff]
        %v1571 = vld [vmem:[%s1259 + $0x780] sm:$0xff]
        %v1572 = vld [vmem:[%s1259 + $0x788] sm:$0xff]
        %v1573 = vld [vmem:[%s1259 + $0x790] sm:$0xff]
        %v1574 = vld [vmem:[%s1259 + $0x798] sm:$0xff]
        %v1575 = vld [vmem:[%s1259 + $0x7a0] sm:$0xff]
        %v1576 = vld [vmem:[%s1259 + $0x7a8] sm:$0xff]
        %v1577 = vld [vmem:[%s1259 + $0x7b0] sm:$0xff]
        %v1578 = vld [vmem:[%s1259 + $0x7b8] sm:$0xff]
        %v1579 = vld [vmem:[%s1259 + $0x7c0] sm:$0xff]
        %v1580 = vld [vmem:[%s1259 + $0x7c8] sm:$0xff]
        %v1581 = vld [vmem:[%s1259 + $0x7d0] sm:$0xff]
        %v1582 = vld [vmem:[%s1259 + $0x7d8] sm:$0xff]
        %v1583 = vld [vmem:[%s1259 + $0x7e0] sm:$0xff]
        %v1584 = vld [vmem:[%s1259 + $0x7e8] sm:$0xff]
        %v1585 = vld [vmem:[%s1259 + $0x7f0] sm:$0xff]
        %v1586 = vld [vmem:[%s1259 + $0x7f8] sm:$0xff]
        %v1587 = vld [vmem:[%s1259 + $0x800] sm:$0xff]
        %v1588 = vld [vmem:[%s1259 + $0x808] sm:$0xff]
        %v1589 = vld [vmem:[%s1259 + $0x810] sm:$0xff]
        %v1590 = vld [vmem:[%s1259 + $0x818] sm:$0xff]
        %v1591 = vld [vmem:[%s1259 + $0x820] sm:$0xff]
        %v1592 = vld [vmem:[%s1259 + $0x828] sm:$0xff]
        %v1593 = vld [vmem:[%s1259 + $0x830] sm:$0xff]
        %v1594 = vld [vmem:[%s1259 + $0x838] sm:$0xff]
        %v1595 = vld [vmem:[%s1259 + $0x840] sm:$0xff]
        %v1596 = vld [vmem:[%s1259 + $0x848] sm:$0xff]
        %v1597 = vld [vmem:[%s1259 + $0x850] sm:$0xff]
        %v1598 = vld [vmem:[%s1259 + $0x858] sm:$0xff]
        %v1599 = vld [vmem:[%s1259 + $0x860] sm:$0xff]
        %v1600 = vld [vmem:[%s1259 + $0x868] sm:$0xff]
        %v1601 = vld [vmem:[%s1259 + $0x870] sm:$0xff]
        %v1602 = vld [vmem:[%s1259 + $0x878] sm:$0xff]
        %v1603 = vld [vmem:[%s1259 + $0x880] sm:$0xff]
        %v1604 = vld [vmem:[%s1259 + $0x888] sm:$0xff]
        %v1605 = vld [vmem:[%s1259 + $0x890] sm:$0xff]
        %v1606 = vld [vmem:[%s1259 + $0x898] sm:$0xff]
        %v1607 = vld [vmem:[%s1259 + $0x8a0] sm:$0xff]
        %v1608 = vld [vmem:[%s1259 + $0x8a8] sm:$0xff]
        %v1609 = vld [vmem:[%s1259 + $0x8b0] sm:$0xff]
        %v1610 = vld [vmem:[%s1259 + $0x8b8] sm:$0xff]
        %v1611 = vld [vmem:[%s1259 + $0x8c0] sm:$0xff]
        %v1612 = vld [vmem:[%s1259 + $0x8c8] sm:$0xff]
        %v1613 = vld [vmem:[%s1259 + $0x8d0] sm:$0xff]
        %v1614 = vld [vmem:[%s1259 + $0x8d8] sm:$0xff]
        %v1615 = vld [vmem:[%s1259 + $0x8e0] sm:$0xff]
        %v1616 = vld [vmem:[%s1259 + $0x8e8] sm:$0xff]
        %v1617 = vld [vmem:[%s1259 + $0x8f0] sm:$0xff]
        %v1618 = vld [vmem:[%s1259 + $0x8f8] sm:$0xff]
        %v1619 = vld [vmem:[%s1259 + $0x900] sm:$0xff]
        %v1620 = vld [vmem:[%s1259 + $0x908] sm:$0xff]
        %v1621 = vld [vmem:[%s1259 + $0x910] sm:$0xff]
        %v1622 = vld [vmem:[%s1259 + $0x918] sm:$0xff]
        %v1623 = vld [vmem:[%s1259 + $0x920] sm:$0xff]
        %v1624 = vld [vmem:[%s1259 + $0x928] sm:$0xff]
        %v1625 = vld [vmem:[%s1259 + $0x930] sm:$0xff]
        %v1626 = vld [vmem:[%s1259 + $0x938] sm:$0xff]
        %v1627 = vld [vmem:[%s1259 + $0x940] sm:$0xff]
        %v1628 = vld [vmem:[%s1259 + $0x948] sm:$0xff]
        %v1629 = vld [vmem:[%s1259 + $0x950] sm:$0xff]
        %v1630 = vld [vmem:[%s1259 + $0x958] sm:$0xff]
        %v1631 = vld [vmem:[%s1259 + $0x960] sm:$0xff]
        %v1632 = vld [vmem:[%s1259 + $0x968] sm:$0xff]
        %v1633 = vld [vmem:[%s1259 + $0x970] sm:$0xff]
        %v1634 = vld [vmem:[%s1259 + $0x978] sm:$0xff]
        %v1635 = vld [vmem:[%s1259 + $0x980] sm:$0xff]
        %v1636 = vld [vmem:[%s1259 + $0x988] sm:$0xff]
        %v1637 = vld [vmem:[%s1259 + $0x990] sm:$0xff]
        %v1638 = vld [vmem:[%s1259 + $0x998] sm:$0xff]
        %v1639 = vld [vmem:[%s1259 + $0x9a0] sm:$0xff]
        %v1640 = vld [vmem:[%s1259 + $0x9a8] sm:$0xff]
        %v1641 = vld [vmem:[%s1259 + $0x9b0] sm:$0xff]
        %v1642 = vld [vmem:[%s1259 + $0x9b8] sm:$0xff]
        %v1643 = vld [vmem:[%s1259 + $0x9c0] sm:$0xff]
        %v1644 = vld [vmem:[%s1259 + $0x9c8] sm:$0xff]
        %v1645 = vld [vmem:[%s1259 + $0x9d0] sm:$0xff]
        %v1646 = vld [vmem:[%s1259 + $0x9d8] sm:$0xff]
        %v1647 = vld [vmem:[%s1259 + $0x9e0] sm:$0xff]
        %v1648 = vld [vmem:[%s1259 + $0x9e8] sm:$0xff]
        %v1649 = vld [vmem:[%s1259 + $0x9f0] sm:$0xff]
        %v1650 = vld [vmem:[%s1259 + $0x9f8] sm:$0xff]
        %v1651 = vld [vmem:[%s1259 + $0xa00] sm:$0xff]
        %v1652 = vld [vmem:[%s1259 + $0xa08] sm:$0xff]
        %v1653 = vld [vmem:[%s1259 + $0xa10] sm:$0xff]
        %v1654 = vld [vmem:[%s1259 + $0xa18] sm:$0xff]
        %v1655 = vld [vmem:[%s1259 + $0xa20] sm:$0xff]
        %v1656 = vld [vmem:[%s1259 + $0xa28] sm:$0xff]
        %v1657 = vld [vmem:[%s1259 + $0xa30] sm:$0xff]
        %v1658 = vld [vmem:[%s1259 + $0xa38] sm:$0xff]
        %v1659 = vld [vmem:[%s1259 + $0xa40] sm:$0xff]
        %v1660 = vld [vmem:[%s1259 + $0xa48] sm:$0xff]
        %v1661 = vld [vmem:[%s1259 + $0xa50] sm:$0xff]
        %v1662 = vld [vmem:[%s1259 + $0xa58] sm:$0xff]
        %v1663 = vld [vmem:[%s1259 + $0xa60] sm:$0xff]
        %v1664 = vld [vmem:[%s1259 + $0xa68] sm:$0xff]
        %v1665 = vld [vmem:[%s1259 + $0xa70] sm:$0xff]
        %v1666 = vld [vmem:[%s1259 + $0xa78] sm:$0xff]
        %v1667 = vld [vmem:[%s1259 + $0xa80] sm:$0xff]
        %v1668 = vld [vmem:[%s1259 + $0xa88] sm:$0xff]
        %v1669 = vld [vmem:[%s1259 + $0xa90] sm:$0xff]
        %v1670 = vld [vmem:[%s1259 + $0xa98] sm:$0xff]
        %v1671 = vld [vmem:[%s1259 + $0xaa0] sm:$0xff]
        %v1672 = vld [vmem:[%s1259 + $0xaa8] sm:$0xff]
        %v1673 = vld [vmem:[%s1259 + $0xab0] sm:$0xff]
        %v1674 = vld [vmem:[%s1259 + $0xab8] sm:$0xff]
        %v1675 = vld [vmem:[%s1259 + $0xac0] sm:$0xff]
        %v1676 = vld [vmem:[%s1259 + $0xac8] sm:$0xff]
        %v1677 = vld [vmem:[%s1259 + $0xad0] sm:$0xff]
        %v1678 = vld [vmem:[%s1259 + $0xad8] sm:$0xff]
        %v1679 = vld [vmem:[%s1259 + $0xae0] sm:$0xff]
        %v1680 = vld [vmem:[%s1259 + $0xae8] sm:$0xff]
        %v1681 = vld [vmem:[%s1259 + $0xaf0] sm:$0xff]
        %v1682 = vld [vmem:[%s1259 + $0xaf8] sm:$0xff]
        %v1683 = vld [vmem:[%s1259 + $0xb00] sm:$0xff]
        %v1684 = vld [vmem:[%s1259 + $0xb08] sm:$0xff]
        %v1685 = vld [vmem:[%s1259 + $0xb10] sm:$0xff]
        %v1686 = vld [vmem:[%s1259 + $0xb18] sm:$0xff]
        %v1687 = vld [vmem:[%s1259 + $0xb20] sm:$0xff]
        %v1688 = vld [vmem:[%s1259 + $0xb28] sm:$0xff]
        %v1689 = vld [vmem:[%s1259 + $0xb30] sm:$0xff]
        %v1690 = vld [vmem:[%s1259 + $0xb38] sm:$0xff]
        %v1691 = vld [vmem:[%s1259 + $0xb40] sm:$0xff]
        %v1692 = vld [vmem:[%s1259 + $0xb48] sm:$0xff]
        %v1693 = vld [vmem:[%s1259 + $0xb50] sm:$0xff]
        %v1694 = vld [vmem:[%s1259 + $0xb58] sm:$0xff]
        %v1695 = vld [vmem:[%s1259 + $0xb60] sm:$0xff]
        %v1696 = vld [vmem:[%s1259 + $0xb68] sm:$0xff]
        %v1697 = vld [vmem:[%s1259 + $0xb70] sm:$0xff]
        %v1698 = vld [vmem:[%s1259 + $0xb78] sm:$0xff]
        %v1699 = vld [vmem:[%s1259 + $0xb80] sm:$0xff]
        %v1700 = vld [vmem:[%s1259 + $0xb88] sm:$0xff]
        %v1701 = vld [vmem:[%s1259 + $0xb90] sm:$0xff]
        %v1702 = vld [vmem:[%s1259 + $0xb98] sm:$0xff]
        %v1703 = vld [vmem:[%s1259 + $0xba0] sm:$0xff]
        %v1704 = vld [vmem:[%s1259 + $0xba8] sm:$0xff]
        %v1705 = vld [vmem:[%s1259 + $0xbb0] sm:$0xff]
        %v1706 = vld [vmem:[%s1259 + $0xbb8] sm:$0xff]
        %v1707 = vld [vmem:[%s1259 + $0xbc0] sm:$0xff]
        %v1708 = vld [vmem:[%s1259 + $0xbc8] sm:$0xff]
        %v1709 = vld [vmem:[%s1259 + $0xbd0] sm:$0xff]
        %v1710 = vld [vmem:[%s1259 + $0xbd8] sm:$0xff]
        %v1711 = vld [vmem:[%s1259 + $0xbe0] sm:$0xff]
        %v1712 = vld [vmem:[%s1259 + $0xbe8] sm:$0xff]
        %v1713 = vld [vmem:[%s1259 + $0xbf0] sm:$0xff]
        %v1714 = vld [vmem:[%s1259 + $0xbf8] sm:$0xff]
        %v1715 = vld [vmem:[%s1259 + $0xc00] sm:$0xff]
        %v1716 = vld [vmem:[%s1259 + $0xc08] sm:$0xff]
        %v1717 = vld [vmem:[%s1259 + $0xc10] sm:$0xff]
        %v1718 = vld [vmem:[%s1259 + $0xc18] sm:$0xff]
        %v1719 = vld [vmem:[%s1259 + $0xc20] sm:$0xff]
        %v1720 = vld [vmem:[%s1259 + $0xc28] sm:$0xff]
        %v1721 = vld [vmem:[%s1259 + $0xc30] sm:$0xff]
        %v1722 = vld [vmem:[%s1259 + $0xc38] sm:$0xff]
        %v1723 = vld [vmem:[%s1259 + $0xc40] sm:$0xff]
        %v1724 = vld [vmem:[%s1259 + $0xc48] sm:$0xff]
        %v1725 = vld [vmem:[%s1259 + $0xc50] sm:$0xff]
        %v1726 = vld [vmem:[%s1259 + $0xc58] sm:$0xff]
        %v1727 = vld [vmem:[%s1259 + $0xc60] sm:$0xff]
        %v1728 = vld [vmem:[%s1259 + $0xc68] sm:$0xff]
        %v1729 = vld [vmem:[%s1259 + $0xc70] sm:$0xff]
        %v1730 = vld [vmem:[%s1259 + $0xc78] sm:$0xff]
        %v1731 = vld [vmem:[%s1259 + $0xc80] sm:$0xff]
        %v1732 = vld [vmem:[%s1259 + $0xc88] sm:$0xff]
        %v1733 = vld [vmem:[%s1259 + $0xc90] sm:$0xff]
        %v1734 = vld [vmem:[%s1259 + $0xc98] sm:$0xff]
        %v1735 = vld [vmem:[%s1259 + $0xca0] sm:$0xff]
        %v1736 = vld [vmem:[%s1259 + $0xca8] sm:$0xff]
        %v1737 = vld [vmem:[%s1259 + $0xcb0] sm:$0xff]
        %v1738 = vld [vmem:[%s1259 + $0xcb8] sm:$0xff]
        %v1739 = vld [vmem:[%s1259 + $0xcc0] sm:$0xff]
        %v1740 = vld [vmem:[%s1259 + $0xcc8] sm:$0xff]
        %v1741 = vld [vmem:[%s1259 + $0xcd0] sm:$0xff]
        %v1742 = vld [vmem:[%s1259 + $0xcd8] sm:$0xff]
        %v1743 = vld [vmem:[%s1259 + $0xce0] sm:$0xff]
        %v1744 = vld [vmem:[%s1259 + $0xce8] sm:$0xff]
        %v1745 = vld [vmem:[%s1259 + $0xcf0] sm:$0xff]
        %v1746 = vld [vmem:[%s1259 + $0xcf8] sm:$0xff]
        %v1747 = vld [vmem:[%s1259 + $0xd00] sm:$0xff]
        %v1748 = vld [vmem:[%s1259 + $0xd08] sm:$0xff]
        %v1749 = vld [vmem:[%s1259 + $0xd10] sm:$0xff]
        %v1750 = vld [vmem:[%s1259 + $0xd18] sm:$0xff]
        %v1751 = vld [vmem:[%s1259 + $0xd20] sm:$0xff]
        %v1752 = vld [vmem:[%s1259 + $0xd28] sm:$0xff]
        %v1753 = vld [vmem:[%s1259 + $0xd30] sm:$0xff]
        %v1754 = vld [vmem:[%s1259 + $0xd38] sm:$0xff]
        %v1755 = vld [vmem:[%s1259 + $0xd40] sm:$0xff]
        %v1756 = vld [vmem:[%s1259 + $0xd48] sm:$0xff]
        %v1757 = vld [vmem:[%s1259 + $0xd50] sm:$0xff]
        %v1758 = vld [vmem:[%s1259 + $0xd58] sm:$0xff]
        %v1759 = vld [vmem:[%s1259 + $0xd60] sm:$0xff]
        %v1760 = vld [vmem:[%s1259 + $0xd68] sm:$0xff]
        %v1761 = vld [vmem:[%s1259 + $0xd70] sm:$0xff]
        %v1762 = vld [vmem:[%s1259 + $0xd78] sm:$0xff]
        %v1763 = vld [vmem:[%s1259 + $0xd80] sm:$0xff]
        %v1764 = vld [vmem:[%s1259 + $0xd88] sm:$0xff]
        %v1765 = vld [vmem:[%s1259 + $0xd90] sm:$0xff]
        %v1766 = vld [vmem:[%s1259 + $0xd98] sm:$0xff]
        %v1767 = vld [vmem:[%s1259 + $0xda0] sm:$0xff]
        %v1768 = vld [vmem:[%s1259 + $0xda8] sm:$0xff]
        %v1769 = vld [vmem:[%s1259 + $0xdb0] sm:$0xff]
        %v1770 = vld [vmem:[%s1259 + $0xdb8] sm:$0xff]
        %v1771 = vld [vmem:[%s1259 + $0xdc0] sm:$0xff]
        %v1772 = vld [vmem:[%s1259 + $0xdc8] sm:$0xff]
        %v1773 = vld [vmem:[%s1259 + $0xdd0] sm:$0xff]
        %v1774 = vld [vmem:[%s1259 + $0xdd8] sm:$0xff]
        %v1775 = vld [vmem:[%s1259 + $0xde0] sm:$0xff]
        %v1776 = vld [vmem:[%s1259 + $0xde8] sm:$0xff]
        %v1777 = vld [vmem:[%s1259 + $0xdf0] sm:$0xff]
        %v1778 = vld [vmem:[%s1259 + $0xdf8] sm:$0xff]
        %v1779 = vld [vmem:[%s1259 + $0xe00] sm:$0xff]
        %v1780 = vld [vmem:[%s1259 + $0xe08] sm:$0xff]
        %v1781 = vld [vmem:[%s1259 + $0xe10] sm:$0xff]
        %v1782 = vld [vmem:[%s1259 + $0xe18] sm:$0xff]
        %v1783 = vld [vmem:[%s1259 + $0xe20] sm:$0xff]
        %v1784 = vld [vmem:[%s1259 + $0xe28] sm:$0xff]
        %v1785 = vld [vmem:[%s1259 + $0xe30] sm:$0xff]
        %v1786 = vld [vmem:[%s1259 + $0xe38] sm:$0xff]
        %v1787 = vld [vmem:[%s1259 + $0xe40] sm:$0xff]
        %v1788 = vld [vmem:[%s1259 + $0xe48] sm:$0xff]
        %v1789 = vld [vmem:[%s1259 + $0xe50] sm:$0xff]
        %v1790 = vld [vmem:[%s1259 + $0xe58] sm:$0xff]
        %v1791 = vld [vmem:[%s1259 + $0xe60] sm:$0xff]
        %v1792 = vld [vmem:[%s1259 + $0xe68] sm:$0xff]
        %v1793 = vld [vmem:[%s1259 + $0xe70] sm:$0xff]
        %v1794 = vld [vmem:[%s1259 + $0xe78] sm:$0xff]
        %v1795 = vld [vmem:[%s1259 + $0xe80] sm:$0xff]
        %v1796 = vld [vmem:[%s1259 + $0xe88] sm:$0xff]
        %v1797 = vld [vmem:[%s1259 + $0xe90] sm:$0xff]
        %v1798 = vld [vmem:[%s1259 + $0xe98] sm:$0xff]
        %v1799 = vld [vmem:[%s1259 + $0xea0] sm:$0xff]
        %v1800 = vld [vmem:[%s1259 + $0xea8] sm:$0xff]
        %v1801 = vld [vmem:[%s1259 + $0xeb0] sm:$0xff]
        %v1802 = vld [vmem:[%s1259 + $0xeb8] sm:$0xff]
        %v1803 = vld [vmem:[%s1259 + $0xec0] sm:$0xff]
        %v1804 = vld [vmem:[%s1259 + $0xec8] sm:$0xff]
        %v1805 = vld [vmem:[%s1259 + $0xed0] sm:$0xff]
        %v1806 = vld [vmem:[%s1259 + $0xed8] sm:$0xff]
        %v1807 = vld [vmem:[%s1259 + $0xee0] sm:$0xff]
        %v1808 = vld [vmem:[%s1259 + $0xee8] sm:$0xff]
        %v1809 = vld [vmem:[%s1259 + $0xef0] sm:$0xff]
        %v1810 = vld [vmem:[%s1259 + $0xef8] sm:$0xff]
        %v1811 = vld [vmem:[%s1259 + $0xf00] sm:$0xff]
        %v1812 = vld [vmem:[%s1259 + $0xf08] sm:$0xff]
        %v1813 = vld [vmem:[%s1259 + $0xf10] sm:$0xff]
        %v1814 = vld [vmem:[%s1259 + $0xf18] sm:$0xff]
        %v1815 = vld [vmem:[%s1259 + $0xf20] sm:$0xff]
        %v1816 = vld [vmem:[%s1259 + $0xf28] sm:$0xff]
        %v1817 = vld [vmem:[%s1259 + $0xf30] sm:$0xff]
        %v1818 = vld [vmem:[%s1259 + $0xf38] sm:$0xff]
        %v1819 = vld [vmem:[%s1259 + $0xf40] sm:$0xff]
        %v1820 = vld [vmem:[%s1259 + $0xf48] sm:$0xff]
        %v1821 = vld [vmem:[%s1259 + $0xf50] sm:$0xff]
        %v1822 = vld [vmem:[%s1259 + $0xf58] sm:$0xff]
        %v1823 = vld [vmem:[%s1259 + $0xf60] sm:$0xff]
        %v1824 = vld [vmem:[%s1259 + $0xf68] sm:$0xff]
        %v1825 = vld [vmem:[%s1259 + $0xf70] sm:$0xff]
        %v1826 = vld [vmem:[%s1259 + $0xf78] sm:$0xff]
        %v1827 = vld [vmem:[%s1259 + $0xf80] sm:$0xff]
        %v1828 = vld [vmem:[%s1259 + $0xf88] sm:$0xff]
        %v1829 = vld [vmem:[%s1259 + $0xf90] sm:$0xff]
        %v1830 = vld [vmem:[%s1259 + $0xf98] sm:$0xff]
        %v1831 = vld [vmem:[%s1259 + $0xfa0] sm:$0xff]
        %v1832 = vld [vmem:[%s1259 + $0xfa8] sm:$0xff]
        %v1833 = vld [vmem:[%s1259 + $0xfb0] sm:$0xff]
        %v1834 = vld [vmem:[%s1259 + $0xfb8] sm:$0xff]
        %v1835 = vld [vmem:[%s1259 + $0xfc0] sm:$0xff]
        %v1836 = vld [vmem:[%s1259 + $0xfc8] sm:$0xff]
        %v1837 = vld [vmem:[%s1259 + $0xfd0] sm:$0xff]
        %v1838 = vld [vmem:[%s1259 + $0xfd8] sm:$0xff]
        %v1839 = vld [vmem:[%s1259 + $0xfe0] sm:$0xff]
        %v1840 = vld [vmem:[%s1259 + $0xfe8] sm:$0xff]
        %v1841 = vld [vmem:[%s1259 + $0xff0] sm:$0xff]
        %v1842 = vld [vmem:[%s1259 + $0xff8] sm:$0xff]
        %v1843 = vunpack.c.l.s8.bf16 %v1331
        %v1844 = vunpack.c.l.s8.bf16 %v1332
        %v1845 = vunpack.c.h.s8.bf16 %v1331
        %v1846 = vunpack.c.h.s8.bf16 %v1332
        %v1847 = vunpack.c.l.s8.bf16 %v1333
        %v1848 = vunpack.c.l.s8.bf16 %v1334
        %v1849 = vunpack.c.h.s8.bf16 %v1333
        %v1850 = vunpack.c.h.s8.bf16 %v1334
        %v1851 = vunpack.c.l.s8.bf16 %v1335
        %v1852 = vunpack.c.l.s8.bf16 %v1336
        %v1853 = vunpack.c.h.s8.bf16 %v1335
        %v1854 = vunpack.c.h.s8.bf16 %v1336
        %v1855 = vunpack.c.l.s8.bf16 %v1337
        %v1856 = vunpack.c.l.s8.bf16 %v1338
        %v1857 = vunpack.c.h.s8.bf16 %v1337
        %v1858 = vunpack.c.h.s8.bf16 %v1338
        %v1859 = vunpack.c.l.s8.bf16 %v1339
        %v1860 = vunpack.c.l.s8.bf16 %v1340
        %v1861 = vunpack.c.h.s8.bf16 %v1339
        %v1862 = vunpack.c.h.s8.bf16 %v1340
        %v1863 = vunpack.c.l.s8.bf16 %v1341
        %v1864 = vunpack.c.l.s8.bf16 %v1342
        %v1865 = vunpack.c.h.s8.bf16 %v1341
        %v1866 = vunpack.c.h.s8.bf16 %v1342
        %v1867 = vunpack.c.l.s8.bf16 %v1343
        %v1868 = vunpack.c.l.s8.bf16 %v1344
        %v1869 = vunpack.c.h.s8.bf16 %v1343
        %v1870 = vunpack.c.h.s8.bf16 %v1344
        %v1871 = vunpack.c.l.s8.bf16 %v1345
        %v1872 = vunpack.c.l.s8.bf16 %v1346
        %v1873 = vunpack.c.h.s8.bf16 %v1345
        %v1874 = vunpack.c.h.s8.bf16 %v1346
        %v1875 = vunpack.c.l.s8.bf16 %v1347
        %v1876 = vunpack.c.l.s8.bf16 %v1348
        %v1877 = vunpack.c.h.s8.bf16 %v1347
        %v1878 = vunpack.c.h.s8.bf16 %v1348
        %v1879 = vunpack.c.l.s8.bf16 %v1349
        %v1880 = vunpack.c.l.s8.bf16 %v1350
        %v1881 = vunpack.c.h.s8.bf16 %v1349
        %v1882 = vunpack.c.h.s8.bf16 %v1350
        %v1883 = vunpack.c.l.s8.bf16 %v1351
        %v1884 = vunpack.c.l.s8.bf16 %v1352
        %v1885 = vunpack.c.h.s8.bf16 %v1351
        %v1886 = vunpack.c.h.s8.bf16 %v1352
        %v1887 = vunpack.c.l.s8.bf16 %v1353
        %v1888 = vunpack.c.l.s8.bf16 %v1354
        %v1889 = vunpack.c.h.s8.bf16 %v1353
        %v1890 = vunpack.c.h.s8.bf16 %v1354
        %v1891 = vunpack.c.l.s8.bf16 %v1355
        %v1892 = vunpack.c.l.s8.bf16 %v1356
        %v1893 = vunpack.c.h.s8.bf16 %v1355
        %v1894 = vunpack.c.h.s8.bf16 %v1356
        %v1895 = vunpack.c.l.s8.bf16 %v1357
        %v1896 = vunpack.c.l.s8.bf16 %v1358
        %v1897 = vunpack.c.h.s8.bf16 %v1357
        %v1898 = vunpack.c.h.s8.bf16 %v1358
        %v1899 = vunpack.c.l.s8.bf16 %v1359
        %v1900 = vunpack.c.l.s8.bf16 %v1360
        %v1901 = vunpack.c.h.s8.bf16 %v1359
        %v1902 = vunpack.c.h.s8.bf16 %v1360
        %v1903 = vunpack.c.l.s8.bf16 %v1361
        %v1904 = vunpack.c.l.s8.bf16 %v1362
        %v1905 = vunpack.c.h.s8.bf16 %v1361
        %v1906 = vunpack.c.h.s8.bf16 %v1362
        %v1907 = vunpack.c.l.s8.bf16 %v1363
        %v1908 = vunpack.c.l.s8.bf16 %v1364
        %v1909 = vunpack.c.h.s8.bf16 %v1363
        %v1910 = vunpack.c.h.s8.bf16 %v1364
        %v1911 = vunpack.c.l.s8.bf16 %v1365
        %v1912 = vunpack.c.l.s8.bf16 %v1366
        %v1913 = vunpack.c.h.s8.bf16 %v1365
        %v1914 = vunpack.c.h.s8.bf16 %v1366
        %v1915 = vunpack.c.l.s8.bf16 %v1367
        %v1916 = vunpack.c.l.s8.bf16 %v1368
        %v1917 = vunpack.c.h.s8.bf16 %v1367
        %v1918 = vunpack.c.h.s8.bf16 %v1368
        %v1919 = vunpack.c.l.s8.bf16 %v1369
        %v1920 = vunpack.c.l.s8.bf16 %v1370
        %v1921 = vunpack.c.h.s8.bf16 %v1369
        %v1922 = vunpack.c.h.s8.bf16 %v1370
        %v1923 = vunpack.c.l.s8.bf16 %v1371
        %v1924 = vunpack.c.l.s8.bf16 %v1372
        %v1925 = vunpack.c.h.s8.bf16 %v1371
        %v1926 = vunpack.c.h.s8.bf16 %v1372
        %v1927 = vunpack.c.l.s8.bf16 %v1373
        %v1928 = vunpack.c.l.s8.bf16 %v1374
        %v1929 = vunpack.c.h.s8.bf16 %v1373
        %v1930 = vunpack.c.h.s8.bf16 %v1374
        %v1931 = vunpack.c.l.s8.bf16 %v1375
        %v1932 = vunpack.c.l.s8.bf16 %v1376
        %v1933 = vunpack.c.h.s8.bf16 %v1375
        %v1934 = vunpack.c.h.s8.bf16 %v1376
        %v1935 = vunpack.c.l.s8.bf16 %v1377
        %v1936 = vunpack.c.l.s8.bf16 %v1378
        %v1937 = vunpack.c.h.s8.bf16 %v1377
        %v1938 = vunpack.c.h.s8.bf16 %v1378
        %v1939 = vunpack.c.l.s8.bf16 %v1379
        %v1940 = vunpack.c.l.s8.bf16 %v1380
        %v1941 = vunpack.c.h.s8.bf16 %v1379
        %v1942 = vunpack.c.h.s8.bf16 %v1380
        %v1943 = vunpack.c.l.s8.bf16 %v1381
        %v1944 = vunpack.c.l.s8.bf16 %v1382
        %v1945 = vunpack.c.h.s8.bf16 %v1381
        %v1946 = vunpack.c.h.s8.bf16 %v1382
        %v1947 = vunpack.c.l.s8.bf16 %v1383
        %v1948 = vunpack.c.l.s8.bf16 %v1384
        %v1949 = vunpack.c.h.s8.bf16 %v1383
        %v1950 = vunpack.c.h.s8.bf16 %v1384
        %v1951 = vunpack.c.l.s8.bf16 %v1385
        %v1952 = vunpack.c.l.s8.bf16 %v1386
        %v1953 = vunpack.c.h.s8.bf16 %v1385
        %v1954 = vunpack.c.h.s8.bf16 %v1386
        %v1955 = vunpack.c.l.s8.bf16 %v1387
        %v1956 = vunpack.c.l.s8.bf16 %v1388
        %v1957 = vunpack.c.h.s8.bf16 %v1387
        %v1958 = vunpack.c.h.s8.bf16 %v1388
        %v1959 = vunpack.c.l.s8.bf16 %v1389
        %v1960 = vunpack.c.l.s8.bf16 %v1390
        %v1961 = vunpack.c.h.s8.bf16 %v1389
        %v1962 = vunpack.c.h.s8.bf16 %v1390
        %v1963 = vunpack.c.l.s8.bf16 %v1391
        %v1964 = vunpack.c.l.s8.bf16 %v1392
        %v1965 = vunpack.c.h.s8.bf16 %v1391
        %v1966 = vunpack.c.h.s8.bf16 %v1392
        %v1967 = vunpack.c.l.s8.bf16 %v1393
        %v1968 = vunpack.c.l.s8.bf16 %v1394
        %v1969 = vunpack.c.h.s8.bf16 %v1393
        %v1970 = vunpack.c.h.s8.bf16 %v1394
        %v1971 = vunpack.c.l.s8.bf16 %v1395
        %v1972 = vunpack.c.l.s8.bf16 %v1396
        %v1973 = vunpack.c.h.s8.bf16 %v1395
        %v1974 = vunpack.c.h.s8.bf16 %v1396
        %v1975 = vunpack.c.l.s8.bf16 %v1397
        %v1976 = vunpack.c.l.s8.bf16 %v1398
        %v1977 = vunpack.c.h.s8.bf16 %v1397
        %v1978 = vunpack.c.h.s8.bf16 %v1398
        %v1979 = vunpack.c.l.s8.bf16 %v1399
        %v1980 = vunpack.c.l.s8.bf16 %v1400
        %v1981 = vunpack.c.h.s8.bf16 %v1399
        %v1982 = vunpack.c.h.s8.bf16 %v1400
        %v1983 = vunpack.c.l.s8.bf16 %v1401
        %v1984 = vunpack.c.l.s8.bf16 %v1402
        %v1985 = vunpack.c.h.s8.bf16 %v1401
        %v1986 = vunpack.c.h.s8.bf16 %v1402
        %v1987 = vunpack.c.l.s8.bf16 %v1403
        %v1988 = vunpack.c.l.s8.bf16 %v1404
        %v1989 = vunpack.c.h.s8.bf16 %v1403
        %v1990 = vunpack.c.h.s8.bf16 %v1404
        %v1991 = vunpack.c.l.s8.bf16 %v1405
        %v1992 = vunpack.c.l.s8.bf16 %v1406
        %v1993 = vunpack.c.h.s8.bf16 %v1405
        %v1994 = vunpack.c.h.s8.bf16 %v1406
        %v1995 = vunpack.c.l.s8.bf16 %v1407
        %v1996 = vunpack.c.l.s8.bf16 %v1408
        %v1997 = vunpack.c.h.s8.bf16 %v1407
        %v1998 = vunpack.c.h.s8.bf16 %v1408
        %v1999 = vunpack.c.l.s8.bf16 %v1409
        %v2000 = vunpack.c.l.s8.bf16 %v1410
        %v2001 = vunpack.c.h.s8.bf16 %v1409
        %v2002 = vunpack.c.h.s8.bf16 %v1410
        %v2003 = vunpack.c.l.s8.bf16 %v1411
        %v2004 = vunpack.c.l.s8.bf16 %v1412
        %v2005 = vunpack.c.h.s8.bf16 %v1411
        %v2006 = vunpack.c.h.s8.bf16 %v1412
        %v2007 = vunpack.c.l.s8.bf16 %v1413
        %v2008 = vunpack.c.l.s8.bf16 %v1414
        %v2009 = vunpack.c.h.s8.bf16 %v1413
        %v2010 = vunpack.c.h.s8.bf16 %v1414
        %v2011 = vunpack.c.l.s8.bf16 %v1415
        %v2012 = vunpack.c.l.s8.bf16 %v1416
        %v2013 = vunpack.c.h.s8.bf16 %v1415
        %v2014 = vunpack.c.h.s8.bf16 %v1416
        %v2015 = vunpack.c.l.s8.bf16 %v1417
        %v2016 = vunpack.c.l.s8.bf16 %v1418
        %v2017 = vunpack.c.h.s8.bf16 %v1417
        %v2018 = vunpack.c.h.s8.bf16 %v1418
        %v2019 = vunpack.c.l.s8.bf16 %v1419
        %v2020 = vunpack.c.l.s8.bf16 %v1420
        %v2021 = vunpack.c.h.s8.bf16 %v1419
        %v2022 = vunpack.c.h.s8.bf16 %v1420
        %v2023 = vunpack.c.l.s8.bf16 %v1421
        %v2024 = vunpack.c.l.s8.bf16 %v1422
        %v2025 = vunpack.c.h.s8.bf16 %v1421
        %v2026 = vunpack.c.h.s8.bf16 %v1422
        %v2027 = vunpack.c.l.s8.bf16 %v1423
        %v2028 = vunpack.c.l.s8.bf16 %v1424
        %v2029 = vunpack.c.h.s8.bf16 %v1423
        %v2030 = vunpack.c.h.s8.bf16 %v1424
        %v2031 = vunpack.c.l.s8.bf16 %v1425
        %v2032 = vunpack.c.l.s8.bf16 %v1426
        %v2033 = vunpack.c.h.s8.bf16 %v1425
        %v2034 = vunpack.c.h.s8.bf16 %v1426
        %v2035 = vunpack.c.l.s8.bf16 %v1427
        %v2036 = vunpack.c.l.s8.bf16 %v1428
        %v2037 = vunpack.c.h.s8.bf16 %v1427
        %v2038 = vunpack.c.h.s8.bf16 %v1428
        %v2039 = vunpack.c.l.s8.bf16 %v1429
        %v2040 = vunpack.c.l.s8.bf16 %v1430
        %v2041 = vunpack.c.h.s8.bf16 %v1429
        %v2042 = vunpack.c.h.s8.bf16 %v1430
        %v2043 = vunpack.c.l.s8.bf16 %v1431
        %v2044 = vunpack.c.l.s8.bf16 %v1432
        %v2045 = vunpack.c.h.s8.bf16 %v1431
        %v2046 = vunpack.c.h.s8.bf16 %v1432
        %v2047 = vunpack.c.l.s8.bf16 %v1433
        %v2048 = vunpack.c.l.s8.bf16 %v1434
        %v2049 = vunpack.c.h.s8.bf16 %v1433
        %v2050 = vunpack.c.h.s8.bf16 %v1434
        %v2051 = vunpack.c.l.s8.bf16 %v1435
        %v2052 = vunpack.c.l.s8.bf16 %v1436
        %v2053 = vunpack.c.h.s8.bf16 %v1435
        %v2054 = vunpack.c.h.s8.bf16 %v1436
        %v2055 = vunpack.c.l.s8.bf16 %v1437
        %v2056 = vunpack.c.l.s8.bf16 %v1438
        %v2057 = vunpack.c.h.s8.bf16 %v1437
        %v2058 = vunpack.c.h.s8.bf16 %v1438
        %v2059 = vunpack.c.l.s8.bf16 %v1439
        %v2060 = vunpack.c.l.s8.bf16 %v1440
        %v2061 = vunpack.c.h.s8.bf16 %v1439
        %v2062 = vunpack.c.h.s8.bf16 %v1440
        %v2063 = vunpack.c.l.s8.bf16 %v1441
        %v2064 = vunpack.c.l.s8.bf16 %v1442
        %v2065 = vunpack.c.h.s8.bf16 %v1441
        %v2066 = vunpack.c.h.s8.bf16 %v1442
        %v2067 = vunpack.c.l.s8.bf16 %v1443
        %v2068 = vunpack.c.l.s8.bf16 %v1444
        %v2069 = vunpack.c.h.s8.bf16 %v1443
        %v2070 = vunpack.c.h.s8.bf16 %v1444
        %v2071 = vunpack.c.l.s8.bf16 %v1445
        %v2072 = vunpack.c.l.s8.bf16 %v1446
        %v2073 = vunpack.c.h.s8.bf16 %v1445
        %v2074 = vunpack.c.h.s8.bf16 %v1446
        %v2075 = vunpack.c.l.s8.bf16 %v1447
        %v2076 = vunpack.c.l.s8.bf16 %v1448
        %v2077 = vunpack.c.h.s8.bf16 %v1447
        %v2078 = vunpack.c.h.s8.bf16 %v1448
        %v2079 = vunpack.c.l.s8.bf16 %v1449
        %v2080 = vunpack.c.l.s8.bf16 %v1450
        %v2081 = vunpack.c.h.s8.bf16 %v1449
        %v2082 = vunpack.c.h.s8.bf16 %v1450
        %v2083 = vunpack.c.l.s8.bf16 %v1451
        %v2084 = vunpack.c.l.s8.bf16 %v1452
        %v2085 = vunpack.c.h.s8.bf16 %v1451
        %v2086 = vunpack.c.h.s8.bf16 %v1452
        %v2087 = vunpack.c.l.s8.bf16 %v1453
        %v2088 = vunpack.c.l.s8.bf16 %v1454
        %v2089 = vunpack.c.h.s8.bf16 %v1453
        %v2090 = vunpack.c.h.s8.bf16 %v1454
        %v2091 = vunpack.c.l.s8.bf16 %v1455
        %v2092 = vunpack.c.l.s8.bf16 %v1456
        %v2093 = vunpack.c.h.s8.bf16 %v1455
        %v2094 = vunpack.c.h.s8.bf16 %v1456
        %v2095 = vunpack.c.l.s8.bf16 %v1457
        %v2096 = vunpack.c.l.s8.bf16 %v1458
        %v2097 = vunpack.c.h.s8.bf16 %v1457
        %v2098 = vunpack.c.h.s8.bf16 %v1458
        %v2099 = vunpack.c.l.s8.bf16 %v1459
        %v2100 = vunpack.c.l.s8.bf16 %v1460
        %v2101 = vunpack.c.h.s8.bf16 %v1459
        %v2102 = vunpack.c.h.s8.bf16 %v1460
        %v2103 = vunpack.c.l.s8.bf16 %v1461
        %v2104 = vunpack.c.l.s8.bf16 %v1462
        %v2105 = vunpack.c.h.s8.bf16 %v1461
        %v2106 = vunpack.c.h.s8.bf16 %v1462
        %v2107 = vunpack.c.l.s8.bf16 %v1463
        %v2108 = vunpack.c.l.s8.bf16 %v1464
        %v2109 = vunpack.c.h.s8.bf16 %v1463
        %v2110 = vunpack.c.h.s8.bf16 %v1464
        %v2111 = vunpack.c.l.s8.bf16 %v1465
        %v2112 = vunpack.c.l.s8.bf16 %v1466
        %v2113 = vunpack.c.h.s8.bf16 %v1465
        %v2114 = vunpack.c.h.s8.bf16 %v1466
        %v2115 = vunpack.c.l.s8.bf16 %v1467
        %v2116 = vunpack.c.l.s8.bf16 %v1468
        %v2117 = vunpack.c.h.s8.bf16 %v1467
        %v2118 = vunpack.c.h.s8.bf16 %v1468
        %v2119 = vunpack.c.l.s8.bf16 %v1469
        %v2120 = vunpack.c.l.s8.bf16 %v1470
        %v2121 = vunpack.c.h.s8.bf16 %v1469
        %v2122 = vunpack.c.h.s8.bf16 %v1470
        %v2123 = vunpack.c.l.s8.bf16 %v1471
        %v2124 = vunpack.c.l.s8.bf16 %v1472
        %v2125 = vunpack.c.h.s8.bf16 %v1471
        %v2126 = vunpack.c.h.s8.bf16 %v1472
        %v2127 = vunpack.c.l.s8.bf16 %v1473
        %v2128 = vunpack.c.l.s8.bf16 %v1474
        %v2129 = vunpack.c.h.s8.bf16 %v1473
        %v2130 = vunpack.c.h.s8.bf16 %v1474
        %v2131 = vunpack.c.l.s8.bf16 %v1475
        %v2132 = vunpack.c.l.s8.bf16 %v1476
        %v2133 = vunpack.c.h.s8.bf16 %v1475
        %v2134 = vunpack.c.h.s8.bf16 %v1476
        %v2135 = vunpack.c.l.s8.bf16 %v1477
        %v2136 = vunpack.c.l.s8.bf16 %v1478
        %v2137 = vunpack.c.h.s8.bf16 %v1477
        %v2138 = vunpack.c.h.s8.bf16 %v1478
        %v2139 = vunpack.c.l.s8.bf16 %v1479
        %v2140 = vunpack.c.l.s8.bf16 %v1480
        %v2141 = vunpack.c.h.s8.bf16 %v1479
        %v2142 = vunpack.c.h.s8.bf16 %v1480
        %v2143 = vunpack.c.l.s8.bf16 %v1481
        %v2144 = vunpack.c.l.s8.bf16 %v1482
        %v2145 = vunpack.c.h.s8.bf16 %v1481
        %v2146 = vunpack.c.h.s8.bf16 %v1482
        %v2147 = vunpack.c.l.s8.bf16 %v1483
        %v2148 = vunpack.c.l.s8.bf16 %v1484
        %v2149 = vunpack.c.h.s8.bf16 %v1483
        %v2150 = vunpack.c.h.s8.bf16 %v1484
        %v2151 = vunpack.c.l.s8.bf16 %v1485
        %v2152 = vunpack.c.l.s8.bf16 %v1486
        %v2153 = vunpack.c.h.s8.bf16 %v1485
        %v2154 = vunpack.c.h.s8.bf16 %v1486
        %v2155 = vunpack.c.l.s8.bf16 %v1487
        %v2156 = vunpack.c.l.s8.bf16 %v1488
        %v2157 = vunpack.c.h.s8.bf16 %v1487
        %v2158 = vunpack.c.h.s8.bf16 %v1488
        %v2159 = vunpack.c.l.s8.bf16 %v1489
        %v2160 = vunpack.c.l.s8.bf16 %v1490
        %v2161 = vunpack.c.h.s8.bf16 %v1489
        %v2162 = vunpack.c.h.s8.bf16 %v1490
        %v2163 = vunpack.c.l.s8.bf16 %v1491
        %v2164 = vunpack.c.l.s8.bf16 %v1492
        %v2165 = vunpack.c.h.s8.bf16 %v1491
        %v2166 = vunpack.c.h.s8.bf16 %v1492
        %v2167 = vunpack.c.l.s8.bf16 %v1493
        %v2168 = vunpack.c.l.s8.bf16 %v1494
        %v2169 = vunpack.c.h.s8.bf16 %v1493
        %v2170 = vunpack.c.h.s8.bf16 %v1494
        %v2171 = vunpack.c.l.s8.bf16 %v1495
        %v2172 = vunpack.c.l.s8.bf16 %v1496
        %v2173 = vunpack.c.h.s8.bf16 %v1495
        %v2174 = vunpack.c.h.s8.bf16 %v1496
        %v2175 = vunpack.c.l.s8.bf16 %v1497
        %v2176 = vunpack.c.l.s8.bf16 %v1498
        %v2177 = vunpack.c.h.s8.bf16 %v1497
        %v2178 = vunpack.c.h.s8.bf16 %v1498
        %v2179 = vunpack.c.l.s8.bf16 %v1499
        %v2180 = vunpack.c.l.s8.bf16 %v1500
        %v2181 = vunpack.c.h.s8.bf16 %v1499
        %v2182 = vunpack.c.h.s8.bf16 %v1500
        %v2183 = vunpack.c.l.s8.bf16 %v1501
        %v2184 = vunpack.c.l.s8.bf16 %v1502
        %v2185 = vunpack.c.h.s8.bf16 %v1501
        %v2186 = vunpack.c.h.s8.bf16 %v1502
        %v2187 = vunpack.c.l.s8.bf16 %v1503
        %v2188 = vunpack.c.l.s8.bf16 %v1504
        %v2189 = vunpack.c.h.s8.bf16 %v1503
        %v2190 = vunpack.c.h.s8.bf16 %v1504
        %v2191 = vunpack.c.l.s8.bf16 %v1505
        %v2192 = vunpack.c.l.s8.bf16 %v1506
        %v2193 = vunpack.c.h.s8.bf16 %v1505
        %v2194 = vunpack.c.h.s8.bf16 %v1506
        %v2195 = vunpack.c.l.s8.bf16 %v1507
        %v2196 = vunpack.c.l.s8.bf16 %v1508
        %v2197 = vunpack.c.h.s8.bf16 %v1507
        %v2198 = vunpack.c.h.s8.bf16 %v1508
        %v2199 = vunpack.c.l.s8.bf16 %v1509
        %v2200 = vunpack.c.l.s8.bf16 %v1510
        %v2201 = vunpack.c.h.s8.bf16 %v1509
        %v2202 = vunpack.c.h.s8.bf16 %v1510
        %v2203 = vunpack.c.l.s8.bf16 %v1511
        %v2204 = vunpack.c.l.s8.bf16 %v1512
        %v2205 = vunpack.c.h.s8.bf16 %v1511
        %v2206 = vunpack.c.h.s8.bf16 %v1512
        %v2207 = vunpack.c.l.s8.bf16 %v1513
        %v2208 = vunpack.c.l.s8.bf16 %v1514
        %v2209 = vunpack.c.h.s8.bf16 %v1513
        %v2210 = vunpack.c.h.s8.bf16 %v1514
        %v2211 = vunpack.c.l.s8.bf16 %v1515
        %v2212 = vunpack.c.l.s8.bf16 %v1516
        %v2213 = vunpack.c.h.s8.bf16 %v1515
        %v2214 = vunpack.c.h.s8.bf16 %v1516
        %v2215 = vunpack.c.l.s8.bf16 %v1517
        %v2216 = vunpack.c.l.s8.bf16 %v1518
        %v2217 = vunpack.c.h.s8.bf16 %v1517
        %v2218 = vunpack.c.h.s8.bf16 %v1518
        %v2219 = vunpack.c.l.s8.bf16 %v1519
        %v2220 = vunpack.c.l.s8.bf16 %v1520
        %v2221 = vunpack.c.h.s8.bf16 %v1519
        %v2222 = vunpack.c.h.s8.bf16 %v1520
        %v2223 = vunpack.c.l.s8.bf16 %v1521
        %v2224 = vunpack.c.l.s8.bf16 %v1522
        %v2225 = vunpack.c.h.s8.bf16 %v1521
        %v2226 = vunpack.c.h.s8.bf16 %v1522
        %v2227 = vunpack.c.l.s8.bf16 %v1523
        %v2228 = vunpack.c.l.s8.bf16 %v1524
        %v2229 = vunpack.c.h.s8.bf16 %v1523
        %v2230 = vunpack.c.h.s8.bf16 %v1524
        %v2231 = vunpack.c.l.s8.bf16 %v1525
        %v2232 = vunpack.c.l.s8.bf16 %v1526
        %v2233 = vunpack.c.h.s8.bf16 %v1525
        %v2234 = vunpack.c.h.s8.bf16 %v1526
        %v2235 = vunpack.c.l.s8.bf16 %v1527
        %v2236 = vunpack.c.l.s8.bf16 %v1528
        %v2237 = vunpack.c.h.s8.bf16 %v1527
        %v2238 = vunpack.c.h.s8.bf16 %v1528
        %v2239 = vunpack.c.l.s8.bf16 %v1529
        %v2240 = vunpack.c.l.s8.bf16 %v1530
        %v2241 = vunpack.c.h.s8.bf16 %v1529
        %v2242 = vunpack.c.h.s8.bf16 %v1530
        %v2243 = vunpack.c.l.s8.bf16 %v1531
        %v2244 = vunpack.c.l.s8.bf16 %v1532
        %v2245 = vunpack.c.h.s8.bf16 %v1531
        %v2246 = vunpack.c.h.s8.bf16 %v1532
        %v2247 = vunpack.c.l.s8.bf16 %v1533
        %v2248 = vunpack.c.l.s8.bf16 %v1534
        %v2249 = vunpack.c.h.s8.bf16 %v1533
        %v2250 = vunpack.c.h.s8.bf16 %v1534
        %v2251 = vunpack.c.l.s8.bf16 %v1535
        %v2252 = vunpack.c.l.s8.bf16 %v1536
        %v2253 = vunpack.c.h.s8.bf16 %v1535
        %v2254 = vunpack.c.h.s8.bf16 %v1536
        %v2255 = vunpack.c.l.s8.bf16 %v1537
        %v2256 = vunpack.c.l.s8.bf16 %v1538
        %v2257 = vunpack.c.h.s8.bf16 %v1537
        %v2258 = vunpack.c.h.s8.bf16 %v1538
        %v2259 = vunpack.c.l.s8.bf16 %v1539
        %v2260 = vunpack.c.l.s8.bf16 %v1540
        %v2261 = vunpack.c.h.s8.bf16 %v1539
        %v2262 = vunpack.c.h.s8.bf16 %v1540
        %v2263 = vunpack.c.l.s8.bf16 %v1541
        %v2264 = vunpack.c.l.s8.bf16 %v1542
        %v2265 = vunpack.c.h.s8.bf16 %v1541
        %v2266 = vunpack.c.h.s8.bf16 %v1542
        %v2267 = vunpack.c.l.s8.bf16 %v1543
        %v2268 = vunpack.c.l.s8.bf16 %v1544
        %v2269 = vunpack.c.h.s8.bf16 %v1543
        %v2270 = vunpack.c.h.s8.bf16 %v1544
        %v2271 = vunpack.c.l.s8.bf16 %v1545
        %v2272 = vunpack.c.l.s8.bf16 %v1546
        %v2273 = vunpack.c.h.s8.bf16 %v1545
        %v2274 = vunpack.c.h.s8.bf16 %v1546
        %v2275 = vunpack.c.l.s8.bf16 %v1547
        %v2276 = vunpack.c.l.s8.bf16 %v1548
        %v2277 = vunpack.c.h.s8.bf16 %v1547
        %v2278 = vunpack.c.h.s8.bf16 %v1548
        %v2279 = vunpack.c.l.s8.bf16 %v1549
        %v2280 = vunpack.c.l.s8.bf16 %v1550
        %v2281 = vunpack.c.h.s8.bf16 %v1549
        %v2282 = vunpack.c.h.s8.bf16 %v1550
        %v2283 = vunpack.c.l.s8.bf16 %v1551
        %v2284 = vunpack.c.l.s8.bf16 %v1552
        %v2285 = vunpack.c.h.s8.bf16 %v1551
        %v2286 = vunpack.c.h.s8.bf16 %v1552
        %v2287 = vunpack.c.l.s8.bf16 %v1553
        %v2288 = vunpack.c.l.s8.bf16 %v1554
        %v2289 = vunpack.c.h.s8.bf16 %v1553
        %v2290 = vunpack.c.h.s8.bf16 %v1554
        %v2291 = vunpack.c.l.s8.bf16 %v1555
        %v2292 = vunpack.c.l.s8.bf16 %v1556
        %v2293 = vunpack.c.h.s8.bf16 %v1555
        %v2294 = vunpack.c.h.s8.bf16 %v1556
        %v2295 = vunpack.c.l.s8.bf16 %v1557
        %v2296 = vunpack.c.l.s8.bf16 %v1558
        %v2297 = vunpack.c.h.s8.bf16 %v1557
        %v2298 = vunpack.c.h.s8.bf16 %v1558
        %v2299 = vunpack.c.l.s8.bf16 %v1559
        %v2300 = vunpack.c.l.s8.bf16 %v1560
        %v2301 = vunpack.c.h.s8.bf16 %v1559
        %v2302 = vunpack.c.h.s8.bf16 %v1560
        %v2303 = vunpack.c.l.s8.bf16 %v1561
        %v2304 = vunpack.c.l.s8.bf16 %v1562
        %v2305 = vunpack.c.h.s8.bf16 %v1561
        %v2306 = vunpack.c.h.s8.bf16 %v1562
        %v2307 = vunpack.c.l.s8.bf16 %v1563
        %v2308 = vunpack.c.l.s8.bf16 %v1564
        %v2309 = vunpack.c.h.s8.bf16 %v1563
        %v2310 = vunpack.c.h.s8.bf16 %v1564
        %v2311 = vunpack.c.l.s8.bf16 %v1565
        %v2312 = vunpack.c.l.s8.bf16 %v1566
        %v2313 = vunpack.c.h.s8.bf16 %v1565
        %v2314 = vunpack.c.h.s8.bf16 %v1566
        %v2315 = vunpack.c.l.s8.bf16 %v1567
        %v2316 = vunpack.c.l.s8.bf16 %v1568
        %v2317 = vunpack.c.h.s8.bf16 %v1567
        %v2318 = vunpack.c.h.s8.bf16 %v1568
        %v2319 = vunpack.c.l.s8.bf16 %v1569
        %v2320 = vunpack.c.l.s8.bf16 %v1570
        %v2321 = vunpack.c.h.s8.bf16 %v1569
        %v2322 = vunpack.c.h.s8.bf16 %v1570
        %v2323 = vunpack.c.l.s8.bf16 %v1571
        %v2324 = vunpack.c.l.s8.bf16 %v1572
        %v2325 = vunpack.c.h.s8.bf16 %v1571
        %v2326 = vunpack.c.h.s8.bf16 %v1572
        %v2327 = vunpack.c.l.s8.bf16 %v1573
        %v2328 = vunpack.c.l.s8.bf16 %v1574
        %v2329 = vunpack.c.h.s8.bf16 %v1573
        %v2330 = vunpack.c.h.s8.bf16 %v1574
        %v2331 = vunpack.c.l.s8.bf16 %v1575
        %v2332 = vunpack.c.l.s8.bf16 %v1576
        %v2333 = vunpack.c.h.s8.bf16 %v1575
        %v2334 = vunpack.c.h.s8.bf16 %v1576
        %v2335 = vunpack.c.l.s8.bf16 %v1577
        %v2336 = vunpack.c.l.s8.bf16 %v1578
        %v2337 = vunpack.c.h.s8.bf16 %v1577
        %v2338 = vunpack.c.h.s8.bf16 %v1578
        %v2339 = vunpack.c.l.s8.bf16 %v1579
        %v2340 = vunpack.c.l.s8.bf16 %v1580
        %v2341 = vunpack.c.h.s8.bf16 %v1579
        %v2342 = vunpack.c.h.s8.bf16 %v1580
        %v2343 = vunpack.c.l.s8.bf16 %v1581
        %v2344 = vunpack.c.l.s8.bf16 %v1582
        %v2345 = vunpack.c.h.s8.bf16 %v1581
        %v2346 = vunpack.c.h.s8.bf16 %v1582
        %v2347 = vunpack.c.l.s8.bf16 %v1583
        %v2348 = vunpack.c.l.s8.bf16 %v1584
        %v2349 = vunpack.c.h.s8.bf16 %v1583
        %v2350 = vunpack.c.h.s8.bf16 %v1584
        %v2351 = vunpack.c.l.s8.bf16 %v1585
        %v2352 = vunpack.c.l.s8.bf16 %v1586
        %v2353 = vunpack.c.h.s8.bf16 %v1585
        %v2354 = vunpack.c.h.s8.bf16 %v1586
        %v2355 = vunpack.c.l.s8.bf16 %v1587
        %v2356 = vunpack.c.l.s8.bf16 %v1588
        %v2357 = vunpack.c.h.s8.bf16 %v1587
        %v2358 = vunpack.c.h.s8.bf16 %v1588
        %v2359 = vunpack.c.l.s8.bf16 %v1589
        %v2360 = vunpack.c.l.s8.bf16 %v1590
        %v2361 = vunpack.c.h.s8.bf16 %v1589
        %v2362 = vunpack.c.h.s8.bf16 %v1590
        %v2363 = vunpack.c.l.s8.bf16 %v1591
        %v2364 = vunpack.c.l.s8.bf16 %v1592
        %v2365 = vunpack.c.h.s8.bf16 %v1591
        %v2366 = vunpack.c.h.s8.bf16 %v1592
        %v2367 = vunpack.c.l.s8.bf16 %v1593
        %v2368 = vunpack.c.l.s8.bf16 %v1594
        %v2369 = vunpack.c.h.s8.bf16 %v1593
        %v2370 = vunpack.c.h.s8.bf16 %v1594
        %v2371 = vunpack.c.l.s8.bf16 %v1595
        %v2372 = vunpack.c.l.s8.bf16 %v1596
        %v2373 = vunpack.c.h.s8.bf16 %v1595
        %v2374 = vunpack.c.h.s8.bf16 %v1596
        %v2375 = vunpack.c.l.s8.bf16 %v1597
        %v2376 = vunpack.c.l.s8.bf16 %v1598
        %v2377 = vunpack.c.h.s8.bf16 %v1597
        %v2378 = vunpack.c.h.s8.bf16 %v1598
        %v2379 = vunpack.c.l.s8.bf16 %v1599
        %v2380 = vunpack.c.l.s8.bf16 %v1600
        %v2381 = vunpack.c.h.s8.bf16 %v1599
        %v2382 = vunpack.c.h.s8.bf16 %v1600
        %v2383 = vunpack.c.l.s8.bf16 %v1601
        %v2384 = vunpack.c.l.s8.bf16 %v1602
        %v2385 = vunpack.c.h.s8.bf16 %v1601
        %v2386 = vunpack.c.h.s8.bf16 %v1602
        %v2387 = vunpack.c.l.s8.bf16 %v1603
        %v2388 = vunpack.c.l.s8.bf16 %v1604
        %v2389 = vunpack.c.h.s8.bf16 %v1603
        %v2390 = vunpack.c.h.s8.bf16 %v1604
        %v2391 = vunpack.c.l.s8.bf16 %v1605
        %v2392 = vunpack.c.l.s8.bf16 %v1606
        %v2393 = vunpack.c.h.s8.bf16 %v1605
        %v2394 = vunpack.c.h.s8.bf16 %v1606
        %v2395 = vunpack.c.l.s8.bf16 %v1607
        %v2396 = vunpack.c.l.s8.bf16 %v1608
        %v2397 = vunpack.c.h.s8.bf16 %v1607
        %v2398 = vunpack.c.h.s8.bf16 %v1608
        %v2399 = vunpack.c.l.s8.bf16 %v1609
        %v2400 = vunpack.c.l.s8.bf16 %v1610
        %v2401 = vunpack.c.h.s8.bf16 %v1609
        %v2402 = vunpack.c.h.s8.bf16 %v1610
        %v2403 = vunpack.c.l.s8.bf16 %v1611
        %v2404 = vunpack.c.l.s8.bf16 %v1612
        %v2405 = vunpack.c.h.s8.bf16 %v1611
        %v2406 = vunpack.c.h.s8.bf16 %v1612
        %v2407 = vunpack.c.l.s8.bf16 %v1613
        %v2408 = vunpack.c.l.s8.bf16 %v1614
        %v2409 = vunpack.c.h.s8.bf16 %v1613
        %v2410 = vunpack.c.h.s8.bf16 %v1614
        %v2411 = vunpack.c.l.s8.bf16 %v1615
        %v2412 = vunpack.c.l.s8.bf16 %v1616
        %v2413 = vunpack.c.h.s8.bf16 %v1615
        %v2414 = vunpack.c.h.s8.bf16 %v1616
        %v2415 = vunpack.c.l.s8.bf16 %v1617
        %v2416 = vunpack.c.l.s8.bf16 %v1618
        %v2417 = vunpack.c.h.s8.bf16 %v1617
        %v2418 = vunpack.c.h.s8.bf16 %v1618
        %v2419 = vunpack.c.l.s8.bf16 %v1619
        %v2420 = vunpack.c.l.s8.bf16 %v1620
        %v2421 = vunpack.c.h.s8.bf16 %v1619
        %v2422 = vunpack.c.h.s8.bf16 %v1620
        %v2423 = vunpack.c.l.s8.bf16 %v1621
        %v2424 = vunpack.c.l.s8.bf16 %v1622
        %v2425 = vunpack.c.h.s8.bf16 %v1621
        %v2426 = vunpack.c.h.s8.bf16 %v1622
        %v2427 = vunpack.c.l.s8.bf16 %v1623
        %v2428 = vunpack.c.l.s8.bf16 %v1624
        %v2429 = vunpack.c.h.s8.bf16 %v1623
        %v2430 = vunpack.c.h.s8.bf16 %v1624
        %v2431 = vunpack.c.l.s8.bf16 %v1625
        %v2432 = vunpack.c.l.s8.bf16 %v1626
        %v2433 = vunpack.c.h.s8.bf16 %v1625
        %v2434 = vunpack.c.h.s8.bf16 %v1626
        %v2435 = vunpack.c.l.s8.bf16 %v1627
        %v2436 = vunpack.c.l.s8.bf16 %v1628
        %v2437 = vunpack.c.h.s8.bf16 %v1627
        %v2438 = vunpack.c.h.s8.bf16 %v1628
        %v2439 = vunpack.c.l.s8.bf16 %v1629
        %v2440 = vunpack.c.l.s8.bf16 %v1630
        %v2441 = vunpack.c.h.s8.bf16 %v1629
        %v2442 = vunpack.c.h.s8.bf16 %v1630
        %v2443 = vunpack.c.l.s8.bf16 %v1631
        %v2444 = vunpack.c.l.s8.bf16 %v1632
        %v2445 = vunpack.c.h.s8.bf16 %v1631
        %v2446 = vunpack.c.h.s8.bf16 %v1632
        %v2447 = vunpack.c.l.s8.bf16 %v1633
        %v2448 = vunpack.c.l.s8.bf16 %v1634
        %v2449 = vunpack.c.h.s8.bf16 %v1633
        %v2450 = vunpack.c.h.s8.bf16 %v1634
        %v2451 = vunpack.c.l.s8.bf16 %v1635
        %v2452 = vunpack.c.l.s8.bf16 %v1636
        %v2453 = vunpack.c.h.s8.bf16 %v1635
        %v2454 = vunpack.c.h.s8.bf16 %v1636
        %v2455 = vunpack.c.l.s8.bf16 %v1637
        %v2456 = vunpack.c.l.s8.bf16 %v1638
        %v2457 = vunpack.c.h.s8.bf16 %v1637
        %v2458 = vunpack.c.h.s8.bf16 %v1638
        %v2459 = vunpack.c.l.s8.bf16 %v1639
        %v2460 = vunpack.c.l.s8.bf16 %v1640
        %v2461 = vunpack.c.h.s8.bf16 %v1639
        %v2462 = vunpack.c.h.s8.bf16 %v1640
        %v2463 = vunpack.c.l.s8.bf16 %v1641
        %v2464 = vunpack.c.l.s8.bf16 %v1642
        %v2465 = vunpack.c.h.s8.bf16 %v1641
        %v2466 = vunpack.c.h.s8.bf16 %v1642
        %v2467 = vunpack.c.l.s8.bf16 %v1643
        %v2468 = vunpack.c.l.s8.bf16 %v1644
        %v2469 = vunpack.c.h.s8.bf16 %v1643
        %v2470 = vunpack.c.h.s8.bf16 %v1644
        %v2471 = vunpack.c.l.s8.bf16 %v1645
        %v2472 = vunpack.c.l.s8.bf16 %v1646
        %v2473 = vunpack.c.h.s8.bf16 %v1645
        %v2474 = vunpack.c.h.s8.bf16 %v1646
        %v2475 = vunpack.c.l.s8.bf16 %v1647
        %v2476 = vunpack.c.l.s8.bf16 %v1648
        %v2477 = vunpack.c.h.s8.bf16 %v1647
        %v2478 = vunpack.c.h.s8.bf16 %v1648
        %v2479 = vunpack.c.l.s8.bf16 %v1649
        %v2480 = vunpack.c.l.s8.bf16 %v1650
        %v2481 = vunpack.c.h.s8.bf16 %v1649
        %v2482 = vunpack.c.h.s8.bf16 %v1650
        %v2483 = vunpack.c.l.s8.bf16 %v1651
        %v2484 = vunpack.c.l.s8.bf16 %v1652
        %v2485 = vunpack.c.h.s8.bf16 %v1651
        %v2486 = vunpack.c.h.s8.bf16 %v1652
        %v2487 = vunpack.c.l.s8.bf16 %v1653
        %v2488 = vunpack.c.l.s8.bf16 %v1654
        %v2489 = vunpack.c.h.s8.bf16 %v1653
        %v2490 = vunpack.c.h.s8.bf16 %v1654
        %v2491 = vunpack.c.l.s8.bf16 %v1655
        %v2492 = vunpack.c.l.s8.bf16 %v1656
        %v2493 = vunpack.c.h.s8.bf16 %v1655
        %v2494 = vunpack.c.h.s8.bf16 %v1656
        %v2495 = vunpack.c.l.s8.bf16 %v1657
        %v2496 = vunpack.c.l.s8.bf16 %v1658
        %v2497 = vunpack.c.h.s8.bf16 %v1657
        %v2498 = vunpack.c.h.s8.bf16 %v1658
        %v2499 = vunpack.c.l.s8.bf16 %v1659
        %v2500 = vunpack.c.l.s8.bf16 %v1660
        %v2501 = vunpack.c.h.s8.bf16 %v1659
        %v2502 = vunpack.c.h.s8.bf16 %v1660
        %v2503 = vunpack.c.l.s8.bf16 %v1661
        %v2504 = vunpack.c.l.s8.bf16 %v1662
        %v2505 = vunpack.c.h.s8.bf16 %v1661
        %v2506 = vunpack.c.h.s8.bf16 %v1662
        %v2507 = vunpack.c.l.s8.bf16 %v1663
        %v2508 = vunpack.c.l.s8.bf16 %v1664
        %v2509 = vunpack.c.h.s8.bf16 %v1663
        %v2510 = vunpack.c.h.s8.bf16 %v1664
        %v2511 = vunpack.c.l.s8.bf16 %v1665
        %v2512 = vunpack.c.l.s8.bf16 %v1666
        %v2513 = vunpack.c.h.s8.bf16 %v1665
        %v2514 = vunpack.c.h.s8.bf16 %v1666
        %v2515 = vunpack.c.l.s8.bf16 %v1667
        %v2516 = vunpack.c.l.s8.bf16 %v1668
        %v2517 = vunpack.c.h.s8.bf16 %v1667
        %v2518 = vunpack.c.h.s8.bf16 %v1668
        %v2519 = vunpack.c.l.s8.bf16 %v1669
        %v2520 = vunpack.c.l.s8.bf16 %v1670
        %v2521 = vunpack.c.h.s8.bf16 %v1669
        %v2522 = vunpack.c.h.s8.bf16 %v1670
        %v2523 = vunpack.c.l.s8.bf16 %v1671
        %v2524 = vunpack.c.l.s8.bf16 %v1672
        %v2525 = vunpack.c.h.s8.bf16 %v1671
        %v2526 = vunpack.c.h.s8.bf16 %v1672
        %v2527 = vunpack.c.l.s8.bf16 %v1673
        %v2528 = vunpack.c.l.s8.bf16 %v1674
        %v2529 = vunpack.c.h.s8.bf16 %v1673
        %v2530 = vunpack.c.h.s8.bf16 %v1674
        %v2531 = vunpack.c.l.s8.bf16 %v1675
        %v2532 = vunpack.c.l.s8.bf16 %v1676
        %v2533 = vunpack.c.h.s8.bf16 %v1675
        %v2534 = vunpack.c.h.s8.bf16 %v1676
        %v2535 = vunpack.c.l.s8.bf16 %v1677
        %v2536 = vunpack.c.l.s8.bf16 %v1678
        %v2537 = vunpack.c.h.s8.bf16 %v1677
        %v2538 = vunpack.c.h.s8.bf16 %v1678
        %v2539 = vunpack.c.l.s8.bf16 %v1679
        %v2540 = vunpack.c.l.s8.bf16 %v1680
        %v2541 = vunpack.c.h.s8.bf16 %v1679
        %v2542 = vunpack.c.h.s8.bf16 %v1680
        %v2543 = vunpack.c.l.s8.bf16 %v1681
        %v2544 = vunpack.c.l.s8.bf16 %v1682
        %v2545 = vunpack.c.h.s8.bf16 %v1681
        %v2546 = vunpack.c.h.s8.bf16 %v1682
        %v2547 = vunpack.c.l.s8.bf16 %v1683
        %v2548 = vunpack.c.l.s8.bf16 %v1684
        %v2549 = vunpack.c.h.s8.bf16 %v1683
        %v2550 = vunpack.c.h.s8.bf16 %v1684
        %v2551 = vunpack.c.l.s8.bf16 %v1685
        %v2552 = vunpack.c.l.s8.bf16 %v1686
        %v2553 = vunpack.c.h.s8.bf16 %v1685
        %v2554 = vunpack.c.h.s8.bf16 %v1686
        %v2555 = vunpack.c.l.s8.bf16 %v1687
        %v2556 = vunpack.c.l.s8.bf16 %v1688
        %v2557 = vunpack.c.h.s8.bf16 %v1687
        %v2558 = vunpack.c.h.s8.bf16 %v1688
        %v2559 = vunpack.c.l.s8.bf16 %v1689
        %v2560 = vunpack.c.l.s8.bf16 %v1690
        %v2561 = vunpack.c.h.s8.bf16 %v1689
        %v2562 = vunpack.c.h.s8.bf16 %v1690
        %v2563 = vunpack.c.l.s8.bf16 %v1691
        %v2564 = vunpack.c.l.s8.bf16 %v1692
        %v2565 = vunpack.c.h.s8.bf16 %v1691
        %v2566 = vunpack.c.h.s8.bf16 %v1692
        %v2567 = vunpack.c.l.s8.bf16 %v1693
        %v2568 = vunpack.c.l.s8.bf16 %v1694
        %v2569 = vunpack.c.h.s8.bf16 %v1693
        %v2570 = vunpack.c.h.s8.bf16 %v1694
        %v2571 = vunpack.c.l.s8.bf16 %v1695
        %v2572 = vunpack.c.l.s8.bf16 %v1696
        %v2573 = vunpack.c.h.s8.bf16 %v1695
        %v2574 = vunpack.c.h.s8.bf16 %v1696
        %v2575 = vunpack.c.l.s8.bf16 %v1697
        %v2576 = vunpack.c.l.s8.bf16 %v1698
        %v2577 = vunpack.c.h.s8.bf16 %v1697
        %v2578 = vunpack.c.h.s8.bf16 %v1698
        %v2579 = vunpack.c.l.s8.bf16 %v1699
        %v2580 = vunpack.c.l.s8.bf16 %v1700
        %v2581 = vunpack.c.h.s8.bf16 %v1699
        %v2582 = vunpack.c.h.s8.bf16 %v1700
        %v2583 = vunpack.c.l.s8.bf16 %v1701
        %v2584 = vunpack.c.l.s8.bf16 %v1702
        %v2585 = vunpack.c.h.s8.bf16 %v1701
        %v2586 = vunpack.c.h.s8.bf16 %v1702
        %v2587 = vunpack.c.l.s8.bf16 %v1703
        %v2588 = vunpack.c.l.s8.bf16 %v1704
        %v2589 = vunpack.c.h.s8.bf16 %v1703
        %v2590 = vunpack.c.h.s8.bf16 %v1704
        %v2591 = vunpack.c.l.s8.bf16 %v1705
        %v2592 = vunpack.c.l.s8.bf16 %v1706
        %v2593 = vunpack.c.h.s8.bf16 %v1705
        %v2594 = vunpack.c.h.s8.bf16 %v1706
        %v2595 = vunpack.c.l.s8.bf16 %v1707
        %v2596 = vunpack.c.l.s8.bf16 %v1708
        %v2597 = vunpack.c.h.s8.bf16 %v1707
        %v2598 = vunpack.c.h.s8.bf16 %v1708
        %v2599 = vunpack.c.l.s8.bf16 %v1709
        %v2600 = vunpack.c.l.s8.bf16 %v1710
        %v2601 = vunpack.c.h.s8.bf16 %v1709
        %v2602 = vunpack.c.h.s8.bf16 %v1710
        %v2603 = vunpack.c.l.s8.bf16 %v1711
        %v2604 = vunpack.c.l.s8.bf16 %v1712
        %v2605 = vunpack.c.h.s8.bf16 %v1711
        %v2606 = vunpack.c.h.s8.bf16 %v1712
        %v2607 = vunpack.c.l.s8.bf16 %v1713
        %v2608 = vunpack.c.l.s8.bf16 %v1714
        %v2609 = vunpack.c.h.s8.bf16 %v1713
        %v2610 = vunpack.c.h.s8.bf16 %v1714
        %v2611 = vunpack.c.l.s8.bf16 %v1715
        %v2612 = vunpack.c.l.s8.bf16 %v1716
        %v2613 = vunpack.c.h.s8.bf16 %v1715
        %v2614 = vunpack.c.h.s8.bf16 %v1716
        %v2615 = vunpack.c.l.s8.bf16 %v1717
        %v2616 = vunpack.c.l.s8.bf16 %v1718
        %v2617 = vunpack.c.h.s8.bf16 %v1717
        %v2618 = vunpack.c.h.s8.bf16 %v1718
        %v2619 = vunpack.c.l.s8.bf16 %v1719
        %v2620 = vunpack.c.l.s8.bf16 %v1720
        %v2621 = vunpack.c.h.s8.bf16 %v1719
        %v2622 = vunpack.c.h.s8.bf16 %v1720
        %v2623 = vunpack.c.l.s8.bf16 %v1721
        %v2624 = vunpack.c.l.s8.bf16 %v1722
        %v2625 = vunpack.c.h.s8.bf16 %v1721
        %v2626 = vunpack.c.h.s8.bf16 %v1722
        %v2627 = vunpack.c.l.s8.bf16 %v1723
        %v2628 = vunpack.c.l.s8.bf16 %v1724
        %v2629 = vunpack.c.h.s8.bf16 %v1723
        %v2630 = vunpack.c.h.s8.bf16 %v1724
        %v2631 = vunpack.c.l.s8.bf16 %v1725
        %v2632 = vunpack.c.l.s8.bf16 %v1726
        %v2633 = vunpack.c.h.s8.bf16 %v1725
        %v2634 = vunpack.c.h.s8.bf16 %v1726
        %v2635 = vunpack.c.l.s8.bf16 %v1727
        %v2636 = vunpack.c.l.s8.bf16 %v1728
        %v2637 = vunpack.c.h.s8.bf16 %v1727
        %v2638 = vunpack.c.h.s8.bf16 %v1728
        %v2639 = vunpack.c.l.s8.bf16 %v1729
        %v2640 = vunpack.c.l.s8.bf16 %v1730
        %v2641 = vunpack.c.h.s8.bf16 %v1729
        %v2642 = vunpack.c.h.s8.bf16 %v1730
        %v2643 = vunpack.c.l.s8.bf16 %v1731
        %v2644 = vunpack.c.l.s8.bf16 %v1732
        %v2645 = vunpack.c.h.s8.bf16 %v1731
        %v2646 = vunpack.c.h.s8.bf16 %v1732
        %v2647 = vunpack.c.l.s8.bf16 %v1733
        %v2648 = vunpack.c.l.s8.bf16 %v1734
        %v2649 = vunpack.c.h.s8.bf16 %v1733
        %v2650 = vunpack.c.h.s8.bf16 %v1734
        %v2651 = vunpack.c.l.s8.bf16 %v1735
        %v2652 = vunpack.c.l.s8.bf16 %v1736
        %v2653 = vunpack.c.h.s8.bf16 %v1735
        %v2654 = vunpack.c.h.s8.bf16 %v1736
        %v2655 = vunpack.c.l.s8.bf16 %v1737
        %v2656 = vunpack.c.l.s8.bf16 %v1738
        %v2657 = vunpack.c.h.s8.bf16 %v1737
        %v2658 = vunpack.c.h.s8.bf16 %v1738
        %v2659 = vunpack.c.l.s8.bf16 %v1739
        %v2660 = vunpack.c.l.s8.bf16 %v1740
        %v2661 = vunpack.c.h.s8.bf16 %v1739
        %v2662 = vunpack.c.h.s8.bf16 %v1740
        %v2663 = vunpack.c.l.s8.bf16 %v1741
        %v2664 = vunpack.c.l.s8.bf16 %v1742
        %v2665 = vunpack.c.h.s8.bf16 %v1741
        %v2666 = vunpack.c.h.s8.bf16 %v1742
        %v2667 = vunpack.c.l.s8.bf16 %v1743
        %v2668 = vunpack.c.l.s8.bf16 %v1744
        %v2669 = vunpack.c.h.s8.bf16 %v1743
        %v2670 = vunpack.c.h.s8.bf16 %v1744
        %v2671 = vunpack.c.l.s8.bf16 %v1745
        %v2672 = vunpack.c.l.s8.bf16 %v1746
        %v2673 = vunpack.c.h.s8.bf16 %v1745
        %v2674 = vunpack.c.h.s8.bf16 %v1746
        %v2675 = vunpack.c.l.s8.bf16 %v1747
        %v2676 = vunpack.c.l.s8.bf16 %v1748
        %v2677 = vunpack.c.h.s8.bf16 %v1747
        %v2678 = vunpack.c.h.s8.bf16 %v1748
        %v2679 = vunpack.c.l.s8.bf16 %v1749
        %v2680 = vunpack.c.l.s8.bf16 %v1750
        %v2681 = vunpack.c.h.s8.bf16 %v1749
        %v2682 = vunpack.c.h.s8.bf16 %v1750
        %v2683 = vunpack.c.l.s8.bf16 %v1751
        %v2684 = vunpack.c.l.s8.bf16 %v1752
        %v2685 = vunpack.c.h.s8.bf16 %v1751
        %v2686 = vunpack.c.h.s8.bf16 %v1752
        %v2687 = vunpack.c.l.s8.bf16 %v1753
        %v2688 = vunpack.c.l.s8.bf16 %v1754
        %v2689 = vunpack.c.h.s8.bf16 %v1753
        %v2690 = vunpack.c.h.s8.bf16 %v1754
        %v2691 = vunpack.c.l.s8.bf16 %v1755
        %v2692 = vunpack.c.l.s8.bf16 %v1756
        %v2693 = vunpack.c.h.s8.bf16 %v1755
        %v2694 = vunpack.c.h.s8.bf16 %v1756
        %v2695 = vunpack.c.l.s8.bf16 %v1757
        %v2696 = vunpack.c.l.s8.bf16 %v1758
        %v2697 = vunpack.c.h.s8.bf16 %v1757
        %v2698 = vunpack.c.h.s8.bf16 %v1758
        %v2699 = vunpack.c.l.s8.bf16 %v1759
        %v2700 = vunpack.c.l.s8.bf16 %v1760
        %v2701 = vunpack.c.h.s8.bf16 %v1759
        %v2702 = vunpack.c.h.s8.bf16 %v1760
        %v2703 = vunpack.c.l.s8.bf16 %v1761
        %v2704 = vunpack.c.l.s8.bf16 %v1762
        %v2705 = vunpack.c.h.s8.bf16 %v1761
        %v2706 = vunpack.c.h.s8.bf16 %v1762
        %v2707 = vunpack.c.l.s8.bf16 %v1763
        %v2708 = vunpack.c.l.s8.bf16 %v1764
        %v2709 = vunpack.c.h.s8.bf16 %v1763
        %v2710 = vunpack.c.h.s8.bf16 %v1764
        %v2711 = vunpack.c.l.s8.bf16 %v1765
        %v2712 = vunpack.c.l.s8.bf16 %v1766
        %v2713 = vunpack.c.h.s8.bf16 %v1765
        %v2714 = vunpack.c.h.s8.bf16 %v1766
        %v2715 = vunpack.c.l.s8.bf16 %v1767
        %v2716 = vunpack.c.l.s8.bf16 %v1768
        %v2717 = vunpack.c.h.s8.bf16 %v1767
        %v2718 = vunpack.c.h.s8.bf16 %v1768
        %v2719 = vunpack.c.l.s8.bf16 %v1769
        %v2720 = vunpack.c.l.s8.bf16 %v1770
        %v2721 = vunpack.c.h.s8.bf16 %v1769
        %v2722 = vunpack.c.h.s8.bf16 %v1770
        %v2723 = vunpack.c.l.s8.bf16 %v1771
        %v2724 = vunpack.c.l.s8.bf16 %v1772
        %v2725 = vunpack.c.h.s8.bf16 %v1771
        %v2726 = vunpack.c.h.s8.bf16 %v1772
        %v2727 = vunpack.c.l.s8.bf16 %v1773
        %v2728 = vunpack.c.l.s8.bf16 %v1774
        %v2729 = vunpack.c.h.s8.bf16 %v1773
        %v2730 = vunpack.c.h.s8.bf16 %v1774
        %v2731 = vunpack.c.l.s8.bf16 %v1775
        %v2732 = vunpack.c.l.s8.bf16 %v1776
        %v2733 = vunpack.c.h.s8.bf16 %v1775
        %v2734 = vunpack.c.h.s8.bf16 %v1776
        %v2735 = vunpack.c.l.s8.bf16 %v1777
        %v2736 = vunpack.c.l.s8.bf16 %v1778
        %v2737 = vunpack.c.h.s8.bf16 %v1777
        %v2738 = vunpack.c.h.s8.bf16 %v1778
        %v2739 = vunpack.c.l.s8.bf16 %v1779
        %v2740 = vunpack.c.l.s8.bf16 %v1780
        %v2741 = vunpack.c.h.s8.bf16 %v1779
        %v2742 = vunpack.c.h.s8.bf16 %v1780
        %v2743 = vunpack.c.l.s8.bf16 %v1781
        %v2744 = vunpack.c.l.s8.bf16 %v1782
        %v2745 = vunpack.c.h.s8.bf16 %v1781
        %v2746 = vunpack.c.h.s8.bf16 %v1782
        %v2747 = vunpack.c.l.s8.bf16 %v1783
        %v2748 = vunpack.c.l.s8.bf16 %v1784
        %v2749 = vunpack.c.h.s8.bf16 %v1783
        %v2750 = vunpack.c.h.s8.bf16 %v1784
        %v2751 = vunpack.c.l.s8.bf16 %v1785
        %v2752 = vunpack.c.l.s8.bf16 %v1786
        %v2753 = vunpack.c.h.s8.bf16 %v1785
        %v2754 = vunpack.c.h.s8.bf16 %v1786
        %v2755 = vunpack.c.l.s8.bf16 %v1787
        %v2756 = vunpack.c.l.s8.bf16 %v1788
        %v2757 = vunpack.c.h.s8.bf16 %v1787
        %v2758 = vunpack.c.h.s8.bf16 %v1788
        %v2759 = vunpack.c.l.s8.bf16 %v1789
        %v2760 = vunpack.c.l.s8.bf16 %v1790
        %v2761 = vunpack.c.h.s8.bf16 %v1789
        %v2762 = vunpack.c.h.s8.bf16 %v1790
        %v2763 = vunpack.c.l.s8.bf16 %v1791
        %v2764 = vunpack.c.l.s8.bf16 %v1792
        %v2765 = vunpack.c.h.s8.bf16 %v1791
        %v2766 = vunpack.c.h.s8.bf16 %v1792
        %v2767 = vunpack.c.l.s8.bf16 %v1793
        %v2768 = vunpack.c.l.s8.bf16 %v1794
        %v2769 = vunpack.c.h.s8.bf16 %v1793
        %v2770 = vunpack.c.h.s8.bf16 %v1794
        %v2771 = vunpack.c.l.s8.bf16 %v1795
        %v2772 = vunpack.c.l.s8.bf16 %v1796
        %v2773 = vunpack.c.h.s8.bf16 %v1795
        %v2774 = vunpack.c.h.s8.bf16 %v1796
        %v2775 = vunpack.c.l.s8.bf16 %v1797
        %v2776 = vunpack.c.l.s8.bf16 %v1798
        %v2777 = vunpack.c.h.s8.bf16 %v1797
        %v2778 = vunpack.c.h.s8.bf16 %v1798
        %v2779 = vunpack.c.l.s8.bf16 %v1799
        %v2780 = vunpack.c.l.s8.bf16 %v1800
        %v2781 = vunpack.c.h.s8.bf16 %v1799
        %v2782 = vunpack.c.h.s8.bf16 %v1800
        %v2783 = vunpack.c.l.s8.bf16 %v1801
        %v2784 = vunpack.c.l.s8.bf16 %v1802
        %v2785 = vunpack.c.h.s8.bf16 %v1801
        %v2786 = vunpack.c.h.s8.bf16 %v1802
        %v2787 = vunpack.c.l.s8.bf16 %v1803
        %v2788 = vunpack.c.l.s8.bf16 %v1804
        %v2789 = vunpack.c.h.s8.bf16 %v1803
        %v2790 = vunpack.c.h.s8.bf16 %v1804
        %v2791 = vunpack.c.l.s8.bf16 %v1805
        %v2792 = vunpack.c.l.s8.bf16 %v1806
        %v2793 = vunpack.c.h.s8.bf16 %v1805
        %v2794 = vunpack.c.h.s8.bf16 %v1806
        %v2795 = vunpack.c.l.s8.bf16 %v1807
        %v2796 = vunpack.c.l.s8.bf16 %v1808
        %v2797 = vunpack.c.h.s8.bf16 %v1807
        %v2798 = vunpack.c.h.s8.bf16 %v1808
        %v2799 = vunpack.c.l.s8.bf16 %v1809
        %v2800 = vunpack.c.l.s8.bf16 %v1810
        %v2801 = vunpack.c.h.s8.bf16 %v1809
        %v2802 = vunpack.c.h.s8.bf16 %v1810
        %v2803 = vunpack.c.l.s8.bf16 %v1811
        %v2804 = vunpack.c.l.s8.bf16 %v1812
        %v2805 = vunpack.c.h.s8.bf16 %v1811
        %v2806 = vunpack.c.h.s8.bf16 %v1812
        %v2807 = vunpack.c.l.s8.bf16 %v1813
        %v2808 = vunpack.c.l.s8.bf16 %v1814
        %v2809 = vunpack.c.h.s8.bf16 %v1813
        %v2810 = vunpack.c.h.s8.bf16 %v1814
        %v2811 = vunpack.c.l.s8.bf16 %v1815
        %v2812 = vunpack.c.l.s8.bf16 %v1816
        %v2813 = vunpack.c.h.s8.bf16 %v1815
        %v2814 = vunpack.c.h.s8.bf16 %v1816
        %v2815 = vunpack.c.l.s8.bf16 %v1817
        %v2816 = vunpack.c.l.s8.bf16 %v1818
        %v2817 = vunpack.c.h.s8.bf16 %v1817
        %v2818 = vunpack.c.h.s8.bf16 %v1818
        %v2819 = vunpack.c.l.s8.bf16 %v1819
        %v2820 = vunpack.c.l.s8.bf16 %v1820
        %v2821 = vunpack.c.h.s8.bf16 %v1819
        %v2822 = vunpack.c.h.s8.bf16 %v1820
        %v2823 = vunpack.c.l.s8.bf16 %v1821
        %v2824 = vunpack.c.l.s8.bf16 %v1822
        %v2825 = vunpack.c.h.s8.bf16 %v1821
        %v2826 = vunpack.c.h.s8.bf16 %v1822
        %v2827 = vunpack.c.l.s8.bf16 %v1823
        %v2828 = vunpack.c.l.s8.bf16 %v1824
        %v2829 = vunpack.c.h.s8.bf16 %v1823
        %v2830 = vunpack.c.h.s8.bf16 %v1824
        %v2831 = vunpack.c.l.s8.bf16 %v1825
        %v2832 = vunpack.c.l.s8.bf16 %v1826
        %v2833 = vunpack.c.h.s8.bf16 %v1825
        %v2834 = vunpack.c.h.s8.bf16 %v1826
        %v2835 = vunpack.c.l.s8.bf16 %v1827
        %v2836 = vunpack.c.l.s8.bf16 %v1828
        %v2837 = vunpack.c.h.s8.bf16 %v1827
        %v2838 = vunpack.c.h.s8.bf16 %v1828
        %v2839 = vunpack.c.l.s8.bf16 %v1829
        %v2840 = vunpack.c.l.s8.bf16 %v1830
        %v2841 = vunpack.c.h.s8.bf16 %v1829
        %v2842 = vunpack.c.h.s8.bf16 %v1830
        %v2843 = vunpack.c.l.s8.bf16 %v1831
        %v2844 = vunpack.c.l.s8.bf16 %v1832
        %v2845 = vunpack.c.h.s8.bf16 %v1831
        %v2846 = vunpack.c.h.s8.bf16 %v1832
        %v2847 = vunpack.c.l.s8.bf16 %v1833
        %v2848 = vunpack.c.l.s8.bf16 %v1834
        %v2849 = vunpack.c.h.s8.bf16 %v1833
        %v2850 = vunpack.c.h.s8.bf16 %v1834
        %v2851 = vunpack.c.l.s8.bf16 %v1835
        %v2852 = vunpack.c.l.s8.bf16 %v1836
        %v2853 = vunpack.c.h.s8.bf16 %v1835
        %v2854 = vunpack.c.h.s8.bf16 %v1836
        %v2855 = vunpack.c.l.s8.bf16 %v1837
        %v2856 = vunpack.c.l.s8.bf16 %v1838
        %v2857 = vunpack.c.h.s8.bf16 %v1837
        %v2858 = vunpack.c.h.s8.bf16 %v1838
        %v2859 = vunpack.c.l.s8.bf16 %v1839
        %v2860 = vunpack.c.l.s8.bf16 %v1840
        %v2861 = vunpack.c.h.s8.bf16 %v1839
        %v2862 = vunpack.c.h.s8.bf16 %v1840
        %v2863 = vunpack.c.l.s8.bf16 %v1841
        %v2864 = vunpack.c.l.s8.bf16 %v1842
        %v2865 = vunpack.c.h.s8.bf16 %v1841
        %v2866 = vunpack.c.h.s8.bf16 %v1842
        %v2875 = vcombine.high %v1323, %v1323
        %v2877 = vunpack.c.l.s4 1966171168
        %v2878 = vunpack.c.0.s8 %v2877
        %v2879 = vlaneseq
        %v2880 = vshrl.u32 %v2879, 7
        %v2881 = vsub.s32 %v2878, %v2880
        %v2882 = vrot.slane %v1323, %v2881
        %v2884 = vunpack.c.l.s4 1966171168
        %v2885 = vunpack.c.0.s8 %v2884
        %v2886 = vlaneseq
        %v2887 = vshrl.u32 %v2886, 7
        %v2888 = vsub.s32 %v2885, %v2887
        %v2889 = vrot.slane %v2875, %v2888
        %v2890 = vcombine.high %v2882, %v2882
        %v2891 = vcombine.high %v2889, %v2889
        %v2893 = vunpack.c.l.s4 1966171168
        %v2894 = vunpack.c.0.s8 %v2893
        %v2895 = vlaneseq
        %v2896 = vshrl.u32 %v2895, 7
        %v2897 = vsub.s32 %v2894, %v2896
        %v2898 = vrot.slane %v2882, %v2897
        %v2900 = vunpack.c.l.s4 1966171168
        %v2901 = vunpack.c.0.s8 %v2900
        %v2902 = vlaneseq
        %v2903 = vshrl.u32 %v2902, 7
        %v2904 = vsub.s32 %v2901, %v2903
        %v2905 = vrot.slane %v2889, %v2904
        %v2907 = vunpack.c.l.s4 1966171168
        %v2908 = vunpack.c.0.s8 %v2907
        %v2909 = vlaneseq
        %v2910 = vshrl.u32 %v2909, 7
        %v2911 = vsub.s32 %v2908, %v2910
        %v2912 = vrot.slane %v2890, %v2911
        %v2914 = vunpack.c.l.s4 1966171168
        %v2915 = vunpack.c.0.s8 %v2914
        %v2916 = vlaneseq
        %v2917 = vshrl.u32 %v2916, 7
        %v2918 = vsub.s32 %v2915, %v2917
        %v2919 = vrot.slane %v2891, %v2918
        %v2920 = vcombine.high %v2898, %v2898
        %v2921 = vcombine.high %v2905, %v2905
        %v2922 = vcombine.high %v2912, %v2912
        %v2923 = vcombine.high %v2919, %v2919
        %v2924 = vcombine.high %v1324, %v1324
        %v2926 = vunpack.c.l.s4 1966171168
        %v2927 = vunpack.c.0.s8 %v2926
        %v2928 = vlaneseq
        %v2929 = vshrl.u32 %v2928, 7
        %v2930 = vsub.s32 %v2927, %v2929
        %v2931 = vrot.slane %v1324, %v2930
        %v2933 = vunpack.c.l.s4 1966171168
        %v2934 = vunpack.c.0.s8 %v2933
        %v2935 = vlaneseq
        %v2936 = vshrl.u32 %v2935, 7
        %v2937 = vsub.s32 %v2934, %v2936
        %v2938 = vrot.slane %v2924, %v2937
        %v2939 = vcombine.high %v2931, %v2931
        %v2940 = vcombine.high %v2938, %v2938
        %v2942 = vunpack.c.l.s4 1966171168
        %v2943 = vunpack.c.0.s8 %v2942
        %v2944 = vlaneseq
        %v2945 = vshrl.u32 %v2944, 7
        %v2946 = vsub.s32 %v2943, %v2945
        %v2947 = vrot.slane %v2931, %v2946
        %v2949 = vunpack.c.l.s4 1966171168
        %v2950 = vunpack.c.0.s8 %v2949
        %v2951 = vlaneseq
        %v2952 = vshrl.u32 %v2951, 7
        %v2953 = vsub.s32 %v2950, %v2952
        %v2954 = vrot.slane %v2938, %v2953
        %v2956 = vunpack.c.l.s4 1966171168
        %v2957 = vunpack.c.0.s8 %v2956
        %v2958 = vlaneseq
        %v2959 = vshrl.u32 %v2958, 7
        %v2960 = vsub.s32 %v2957, %v2959
        %v2961 = vrot.slane %v2939, %v2960
        %v2963 = vunpack.c.l.s4 1966171168
        %v2964 = vunpack.c.0.s8 %v2963
        %v2965 = vlaneseq
        %v2966 = vshrl.u32 %v2965, 7
        %v2967 = vsub.s32 %v2964, %v2966
        %v2968 = vrot.slane %v2940, %v2967
        %v2969 = vcombine.high %v2947, %v2947
        %v2970 = vcombine.high %v2954, %v2954
        %v2971 = vcombine.high %v2961, %v2961
        %v2972 = vcombine.high %v2968, %v2968
        %v2973 = vcombine.high %v1325, %v1325
        %v2975 = vunpack.c.l.s4 1966171168
        %v2976 = vunpack.c.0.s8 %v2975
        %v2977 = vlaneseq
        %v2978 = vshrl.u32 %v2977, 7
        %v2979 = vsub.s32 %v2976, %v2978
        %v2980 = vrot.slane %v1325, %v2979
        %v2982 = vunpack.c.l.s4 1966171168
        %v2983 = vunpack.c.0.s8 %v2982
        %v2984 = vlaneseq
        %v2985 = vshrl.u32 %v2984, 7
        %v2986 = vsub.s32 %v2983, %v2985
        %v2987 = vrot.slane %v2973, %v2986
        %v2988 = vcombine.high %v2980, %v2980
        %v2989 = vcombine.high %v2987, %v2987
        %v2991 = vunpack.c.l.s4 1966171168
        %v2992 = vunpack.c.0.s8 %v2991
        %v2993 = vlaneseq
        %v2994 = vshrl.u32 %v2993, 7
        %v2995 = vsub.s32 %v2992, %v2994
        %v2996 = vrot.slane %v2980, %v2995
        %v2998 = vunpack.c.l.s4 1966171168
        %v2999 = vunpack.c.0.s8 %v2998
        %v3000 = vlaneseq
        %v3001 = vshrl.u32 %v3000, 7
        %v3002 = vsub.s32 %v2999, %v3001
        %v3003 = vrot.slane %v2987, %v3002
        %v3005 = vunpack.c.l.s4 1966171168
        %v3006 = vunpack.c.0.s8 %v3005
        %v3007 = vlaneseq
        %v3008 = vshrl.u32 %v3007, 7
        %v3009 = vsub.s32 %v3006, %v3008
        %v3010 = vrot.slane %v2988, %v3009
        %v3012 = vunpack.c.l.s4 1966171168
        %v3013 = vunpack.c.0.s8 %v3012
        %v3014 = vlaneseq
        %v3015 = vshrl.u32 %v3014, 7
        %v3016 = vsub.s32 %v3013, %v3015
        %v3017 = vrot.slane %v2989, %v3016
        %v3018 = vcombine.high %v2996, %v2996
        %v3019 = vcombine.high %v3003, %v3003
        %v3020 = vcombine.high %v3010, %v3010
        %v3021 = vcombine.high %v3017, %v3017
        %v3022 = vcombine.high %v1326, %v1326
        %v3024 = vunpack.c.l.s4 1966171168
        %v3025 = vunpack.c.0.s8 %v3024
        %v3026 = vlaneseq
        %v3027 = vshrl.u32 %v3026, 7
        %v3028 = vsub.s32 %v3025, %v3027
        %v3029 = vrot.slane %v1326, %v3028
        %v3031 = vunpack.c.l.s4 1966171168
        %v3032 = vunpack.c.0.s8 %v3031
        %v3033 = vlaneseq
        %v3034 = vshrl.u32 %v3033, 7
        %v3035 = vsub.s32 %v3032, %v3034
        %v3036 = vrot.slane %v3022, %v3035
        %v3037 = vcombine.high %v3029, %v3029
        %v3038 = vcombine.high %v3036, %v3036
        %v3040 = vunpack.c.l.s4 1966171168
        %v3041 = vunpack.c.0.s8 %v3040
        %v3042 = vlaneseq
        %v3043 = vshrl.u32 %v3042, 7
        %v3044 = vsub.s32 %v3041, %v3043
        %v3045 = vrot.slane %v3029, %v3044
        %v3047 = vunpack.c.l.s4 1966171168
        %v3048 = vunpack.c.0.s8 %v3047
        %v3049 = vlaneseq
        %v3050 = vshrl.u32 %v3049, 7
        %v3051 = vsub.s32 %v3048, %v3050
        %v3052 = vrot.slane %v3036, %v3051
        %v3054 = vunpack.c.l.s4 1966171168
        %v3055 = vunpack.c.0.s8 %v3054
        %v3056 = vlaneseq
        %v3057 = vshrl.u32 %v3056, 7
        %v3058 = vsub.s32 %v3055, %v3057
        %v3059 = vrot.slane %v3037, %v3058
        %v3061 = vunpack.c.l.s4 1966171168
        %v3062 = vunpack.c.0.s8 %v3061
        %v3063 = vlaneseq
        %v3064 = vshrl.u32 %v3063, 7
        %v3065 = vsub.s32 %v3062, %v3064
        %v3066 = vrot.slane %v3038, %v3065
        %v3067 = vcombine.high %v3045, %v3045
        %v3068 = vcombine.high %v3052, %v3052
        %v3069 = vcombine.high %v3059, %v3059
        %v3070 = vcombine.high %v3066, %v3066
        %v3071 = vcombine.high %v1327, %v1327
        %v3073 = vunpack.c.l.s4 1966171168
        %v3074 = vunpack.c.0.s8 %v3073
        %v3075 = vlaneseq
        %v3076 = vshrl.u32 %v3075, 7
        %v3077 = vsub.s32 %v3074, %v3076
        %v3078 = vrot.slane %v1327, %v3077
        %v3080 = vunpack.c.l.s4 1966171168
        %v3081 = vunpack.c.0.s8 %v3080
        %v3082 = vlaneseq
        %v3083 = vshrl.u32 %v3082, 7
        %v3084 = vsub.s32 %v3081, %v3083
        %v3085 = vrot.slane %v3071, %v3084
        %v3086 = vcombine.high %v3078, %v3078
        %v3087 = vcombine.high %v3085, %v3085
        %v3089 = vunpack.c.l.s4 1966171168
        %v3090 = vunpack.c.0.s8 %v3089
        %v3091 = vlaneseq
        %v3092 = vshrl.u32 %v3091, 7
        %v3093 = vsub.s32 %v3090, %v3092
        %v3094 = vrot.slane %v3078, %v3093
        %v3096 = vunpack.c.l.s4 1966171168
        %v3097 = vunpack.c.0.s8 %v3096
        %v3098 = vlaneseq
        %v3099 = vshrl.u32 %v3098, 7
        %v3100 = vsub.s32 %v3097, %v3099
        %v3101 = vrot.slane %v3085, %v3100
        %v3103 = vunpack.c.l.s4 1966171168
        %v3104 = vunpack.c.0.s8 %v3103
        %v3105 = vlaneseq
        %v3106 = vshrl.u32 %v3105, 7
        %v3107 = vsub.s32 %v3104, %v3106
        %v3108 = vrot.slane %v3086, %v3107
        %v3110 = vunpack.c.l.s4 1966171168
        %v3111 = vunpack.c.0.s8 %v3110
        %v3112 = vlaneseq
        %v3113 = vshrl.u32 %v3112, 7
        %v3114 = vsub.s32 %v3111, %v3113
        %v3115 = vrot.slane %v3087, %v3114
        %v3116 = vcombine.high %v3094, %v3094
        %v3117 = vcombine.high %v3101, %v3101
        %v3118 = vcombine.high %v3108, %v3108
        %v3119 = vcombine.high %v3115, %v3115
        %v3120 = vcombine.high %v1328, %v1328
        %v3122 = vunpack.c.l.s4 1966171168
        %v3123 = vunpack.c.0.s8 %v3122
        %v3124 = vlaneseq
        %v3125 = vshrl.u32 %v3124, 7
        %v3126 = vsub.s32 %v3123, %v3125
        %v3127 = vrot.slane %v1328, %v3126
        %v3129 = vunpack.c.l.s4 1966171168
        %v3130 = vunpack.c.0.s8 %v3129
        %v3131 = vlaneseq
        %v3132 = vshrl.u32 %v3131, 7
        %v3133 = vsub.s32 %v3130, %v3132
        %v3134 = vrot.slane %v3120, %v3133
        %v3135 = vcombine.high %v3127, %v3127
        %v3136 = vcombine.high %v3134, %v3134
        %v3138 = vunpack.c.l.s4 1966171168
        %v3139 = vunpack.c.0.s8 %v3138
        %v3140 = vlaneseq
        %v3141 = vshrl.u32 %v3140, 7
        %v3142 = vsub.s32 %v3139, %v3141
        %v3143 = vrot.slane %v3127, %v3142
        %v3145 = vunpack.c.l.s4 1966171168
        %v3146 = vunpack.c.0.s8 %v3145
        %v3147 = vlaneseq
        %v3148 = vshrl.u32 %v3147, 7
        %v3149 = vsub.s32 %v3146, %v3148
        %v3150 = vrot.slane %v3134, %v3149
        %v3152 = vunpack.c.l.s4 1966171168
        %v3153 = vunpack.c.0.s8 %v3152
        %v3154 = vlaneseq
        %v3155 = vshrl.u32 %v3154, 7
        %v3156 = vsub.s32 %v3153, %v3155
        %v3157 = vrot.slane %v3135, %v3156
        %v3159 = vunpack.c.l.s4 1966171168
        %v3160 = vunpack.c.0.s8 %v3159
        %v3161 = vlaneseq
        %v3162 = vshrl.u32 %v3161, 7
        %v3163 = vsub.s32 %v3160, %v3162
        %v3164 = vrot.slane %v3136, %v3163
        %v3165 = vcombine.high %v3143, %v3143
        %v3166 = vcombine.high %v3150, %v3150
        %v3167 = vcombine.high %v3157, %v3157
        %v3168 = vcombine.high %v3164, %v3164
        %v3169 = vcombine.high %v1329, %v1329
        %v3171 = vunpack.c.l.s4 1966171168
        %v3172 = vunpack.c.0.s8 %v3171
        %v3173 = vlaneseq
        %v3174 = vshrl.u32 %v3173, 7
        %v3175 = vsub.s32 %v3172, %v3174
        %v3176 = vrot.slane %v1329, %v3175
        %v3178 = vunpack.c.l.s4 1966171168
        %v3179 = vunpack.c.0.s8 %v3178
        %v3180 = vlaneseq
        %v3181 = vshrl.u32 %v3180, 7
        %v3182 = vsub.s32 %v3179, %v3181
        %v3183 = vrot.slane %v3169, %v3182
        %v3184 = vcombine.high %v3176, %v3176
        %v3185 = vcombine.high %v3183, %v3183
        %v3187 = vunpack.c.l.s4 1966171168
        %v3188 = vunpack.c.0.s8 %v3187
        %v3189 = vlaneseq
        %v3190 = vshrl.u32 %v3189, 7
        %v3191 = vsub.s32 %v3188, %v3190
        %v3192 = vrot.slane %v3176, %v3191
        %v3194 = vunpack.c.l.s4 1966171168
        %v3195 = vunpack.c.0.s8 %v3194
        %v3196 = vlaneseq
        %v3197 = vshrl.u32 %v3196, 7
        %v3198 = vsub.s32 %v3195, %v3197
        %v3199 = vrot.slane %v3183, %v3198
        %v3201 = vunpack.c.l.s4 1966171168
        %v3202 = vunpack.c.0.s8 %v3201
        %v3203 = vlaneseq
        %v3204 = vshrl.u32 %v3203, 7
        %v3205 = vsub.s32 %v3202, %v3204
        %v3206 = vrot.slane %v3184, %v3205
        %v3208 = vunpack.c.l.s4 1966171168
        %v3209 = vunpack.c.0.s8 %v3208
        %v3210 = vlaneseq
        %v3211 = vshrl.u32 %v3210, 7
        %v3212 = vsub.s32 %v3209, %v3211
        %v3213 = vrot.slane %v3185, %v3212
        %v3214 = vcombine.high %v3192, %v3192
        %v3215 = vcombine.high %v3199, %v3199
        %v3216 = vcombine.high %v3206, %v3206
        %v3217 = vcombine.high %v3213, %v3213
        %v3218 = vcombine.high %v1330, %v1330
        %v3220 = vunpack.c.l.s4 1966171168
        %v3221 = vunpack.c.0.s8 %v3220
        %v3222 = vlaneseq
        %v3223 = vshrl.u32 %v3222, 7
        %v3224 = vsub.s32 %v3221, %v3223
        %v3225 = vrot.slane %v1330, %v3224
        %v3227 = vunpack.c.l.s4 1966171168
        %v3228 = vunpack.c.0.s8 %v3227
        %v3229 = vlaneseq
        %v3230 = vshrl.u32 %v3229, 7
        %v3231 = vsub.s32 %v3228, %v3230
        %v3232 = vrot.slane %v3218, %v3231
        %v3233 = vcombine.high %v3225, %v3225
        %v3234 = vcombine.high %v3232, %v3232
        %v3236 = vunpack.c.l.s4 1966171168
        %v3237 = vunpack.c.0.s8 %v3236
        %v3238 = vlaneseq
        %v3239 = vshrl.u32 %v3238, 7
        %v3240 = vsub.s32 %v3237, %v3239
        %v3241 = vrot.slane %v3225, %v3240
        %v3243 = vunpack.c.l.s4 1966171168
        %v3244 = vunpack.c.0.s8 %v3243
        %v3245 = vlaneseq
        %v3246 = vshrl.u32 %v3245, 7
        %v3247 = vsub.s32 %v3244, %v3246
        %v3248 = vrot.slane %v3232, %v3247
        %v3250 = vunpack.c.l.s4 1966171168
        %v3251 = vunpack.c.0.s8 %v3250
        %v3252 = vlaneseq
        %v3253 = vshrl.u32 %v3252, 7
        %v3254 = vsub.s32 %v3251, %v3253
        %v3255 = vrot.slane %v3233, %v3254
        %v3257 = vunpack.c.l.s4 1966171168
        %v3258 = vunpack.c.0.s8 %v3257
        %v3259 = vlaneseq
        %v3260 = vshrl.u32 %v3259, 7
        %v3261 = vsub.s32 %v3258, %v3260
        %v3262 = vrot.slane %v3234, %v3261
        %v3263 = vcombine.high %v3241, %v3241
        %v3264 = vcombine.high %v3248, %v3248
        %v3265 = vcombine.high %v3255, %v3255
        %v3266 = vcombine.high %v3262, %v3262
        %3331 = vmatprep.subr.bf16.mxu0 %v1858
        %3332 = vmatpush1.bf16.msra.mxu0 %v1857
        %3333 = vmatprep.subr.bf16.mxu0 %v1856
        %3334 = vmatpush1.bf16.msra.mxu0 %v1855
        %3335 = vmatprep.subr.bf16.mxu0 %v1854
        %3336 = vmatpush1.bf16.msra.mxu0 %v1853
        %3337 = vmatprep.subr.bf16.mxu0 %v1852
        %3338 = vmatpush1.bf16.msra.mxu0 %v1851
        %3339 = vmatprep.subr.bf16.mxu0 %v1850
        %3340 = vmatpush1.bf16.msra.mxu0 %v1849
        %3341 = vmatprep.subr.bf16.mxu0 %v1848
        %3342 = vmatpush1.bf16.msra.mxu0 %v1847
        %3343 = vmatprep.subr.bf16.mxu0 %v1846
        %3344 = vmatpush1.bf16.msra.mxu0 %v1845
        %3345 = vmatprep.subr.bf16.mxu0 %v1844
        %3346 = vmatpush1.bf16.msra.mxu0 %v1843
        %3347 = vmatprep.subr.bf16.mxu0 %v1874
        %3348 = vmatpush2.bf16.msra.mxu0 %v1873
        %3349 = vmatprep.subr.bf16.mxu0 %v1872
        %3350 = vmatpush2.bf16.msra.mxu0 %v1871
        %3351 = vmatprep.subr.bf16.mxu0 %v1870
        %3352 = vmatpush2.bf16.msra.mxu0 %v1869
        %3353 = vmatprep.subr.bf16.mxu0 %v1868
        %3354 = vmatpush2.bf16.msra.mxu0 %v1867
        %3355 = vmatprep.subr.bf16.mxu0 %v1866
        %3356 = vmatpush2.bf16.msra.mxu0 %v1865
        %3357 = vmatprep.subr.bf16.mxu0 %v1864
        %3358 = vmatpush2.bf16.msra.mxu0 %v1863
        %3359 = vmatprep.subr.bf16.mxu0 %v1862
        %3360 = vmatpush2.bf16.msra.mxu0 %v1861
        %3361 = vmatprep.subr.bf16.mxu0 %v1860
        %3362 = vmatpush2.bf16.msra.mxu0 %v1859
        %3363 = vmatprep.mubr.bf16.mxu0 %v2912
        %3364 = vmatmul.mubr.bf16.gmra.mxu0 %v2898
        %v3365 = vpop.f32.mrf.mxu0
        %v3366 = vadd.f32 0.0, %v3365
        %v3367 = vpop.f32.mrf.mxu0
        %v3368 = vadd.f32 0.0, %v3367
        %v3369 = vpop.f32.mrf.mxu0
        %v3370 = vpop.f32.mrf.mxu0
        %3371 = vdwg.mxu0
        %3372 = vmatprep.subr.bf16.mxu0 %v1890
        %3373 = vmatpush1.bf16.msra.mxu0 %v1889
        %3374 = vmatprep.subr.bf16.mxu0 %v1888
        %3375 = vmatpush1.bf16.msra.mxu0 %v1887
        %3376 = vmatprep.subr.bf16.mxu0 %v1886
        %3377 = vmatpush1.bf16.msra.mxu0 %v1885
        %3378 = vmatprep.subr.bf16.mxu0 %v1884
        %3379 = vmatpush1.bf16.msra.mxu0 %v1883
        %3380 = vmatprep.subr.bf16.mxu0 %v1882
        %3381 = vmatpush1.bf16.msra.mxu0 %v1881
        %3382 = vmatprep.subr.bf16.mxu0 %v1880
        %3383 = vmatpush1.bf16.msra.mxu0 %v1879
        %3384 = vmatprep.subr.bf16.mxu0 %v1878
        %3385 = vmatpush1.bf16.msra.mxu0 %v1877
        %3386 = vmatprep.subr.bf16.mxu0 %v1876
        %3387 = vmatpush1.bf16.msra.mxu0 %v1875
        %3388 = vmatprep.subr.bf16.mxu0 %v1906
        %3389 = vmatpush2.bf16.msra.mxu0 %v1905
        %3390 = vmatprep.subr.bf16.mxu0 %v1904
        %3391 = vmatpush2.bf16.msra.mxu0 %v1903
        %3392 = vmatprep.subr.bf16.mxu0 %v1902
        %3393 = vmatpush2.bf16.msra.mxu0 %v1901
        %3394 = vmatprep.subr.bf16.mxu0 %v1900
        %3395 = vmatpush2.bf16.msra.mxu0 %v1899
        %3396 = vmatprep.subr.bf16.mxu0 %v1898
        %3397 = vmatpush2.bf16.msra.mxu0 %v1897
        %3398 = vmatprep.subr.bf16.mxu0 %v1896
        %3399 = vmatpush2.bf16.msra.mxu0 %v1895
        %3400 = vmatprep.subr.bf16.mxu0 %v1894
        %3401 = vmatpush2.bf16.msra.mxu0 %v1893
        %3402 = vmatprep.subr.bf16.mxu0 %v1892
        %3403 = vmatpush2.bf16.msra.mxu0 %v1891
        %3404 = vmatprep.mubr.bf16.mxu0 %v2922
        %3405 = vmatmul.mubr.bf16.gmra.mxu0 %v2920
        %v3406 = vpop.f32.mrf.mxu0
        %v3407 = vadd.f32 %v3366, %v3406
        %v3408 = vpop.f32.mrf.mxu0
        %v3409 = vadd.f32 %v3368, %v3408
        %v3410 = vpop.f32.mrf.mxu0
        %v3411 = vpop.f32.mrf.mxu0
        %3412 = vdwg.mxu0
        %3413 = vmatprep.subr.bf16.mxu0 %v1922
        %3414 = vmatpush1.bf16.msra.mxu0 %v1921
        %3415 = vmatprep.subr.bf16.mxu0 %v1920
        %3416 = vmatpush1.bf16.msra.mxu0 %v1919
        %3417 = vmatprep.subr.bf16.mxu0 %v1918
        %3418 = vmatpush1.bf16.msra.mxu0 %v1917
        %3419 = vmatprep.subr.bf16.mxu0 %v1916
        %3420 = vmatpush1.bf16.msra.mxu0 %v1915
        %3421 = vmatprep.subr.bf16.mxu0 %v1914
        %3422 = vmatpush1.bf16.msra.mxu0 %v1913
        %3423 = vmatprep.subr.bf16.mxu0 %v1912
        %3424 = vmatpush1.bf16.msra.mxu0 %v1911
        %3425 = vmatprep.subr.bf16.mxu0 %v1910
        %3426 = vmatpush1.bf16.msra.mxu0 %v1909
        %3427 = vmatprep.subr.bf16.mxu0 %v1908
        %3428 = vmatpush1.bf16.msra.mxu0 %v1907
        %3429 = vmatprep.subr.bf16.mxu0 %v1938
        %3430 = vmatpush2.bf16.msra.mxu0 %v1937
        %3431 = vmatprep.subr.bf16.mxu0 %v1936
        %3432 = vmatpush2.bf16.msra.mxu0 %v1935
        %3433 = vmatprep.subr.bf16.mxu0 %v1934
        %3434 = vmatpush2.bf16.msra.mxu0 %v1933
        %3435 = vmatprep.subr.bf16.mxu0 %v1932
        %3436 = vmatpush2.bf16.msra.mxu0 %v1931
        %3437 = vmatprep.subr.bf16.mxu0 %v1930
        %3438 = vmatpush2.bf16.msra.mxu0 %v1929
        %3439 = vmatprep.subr.bf16.mxu0 %v1928
        %3440 = vmatpush2.bf16.msra.mxu0 %v1927
        %3441 = vmatprep.subr.bf16.mxu0 %v1926
        %3442 = vmatpush2.bf16.msra.mxu0 %v1925
        %3443 = vmatprep.subr.bf16.mxu0 %v1924
        %3444 = vmatpush2.bf16.msra.mxu0 %v1923
        %3445 = vmatprep.mubr.bf16.mxu0 %v2919
        %3446 = vmatmul.mubr.bf16.gmra.mxu0 %v2905
        %v3447 = vpop.f32.mrf.mxu0
        %v3448 = vadd.f32 %v3407, %v3447
        %v3449 = vpop.f32.mrf.mxu0
        %v3450 = vadd.f32 %v3409, %v3449
        %v3451 = vpop.f32.mrf.mxu0
        %v3452 = vpop.f32.mrf.mxu0
        %3453 = vdwg.mxu0
        %3454 = vmatprep.subr.bf16.mxu0 %v1954
        %3455 = vmatpush1.bf16.msra.mxu0 %v1953
        %3456 = vmatprep.subr.bf16.mxu0 %v1952
        %3457 = vmatpush1.bf16.msra.mxu0 %v1951
        %3458 = vmatprep.subr.bf16.mxu0 %v1950
        %3459 = vmatpush1.bf16.msra.mxu0 %v1949
        %3460 = vmatprep.subr.bf16.mxu0 %v1948
        %3461 = vmatpush1.bf16.msra.mxu0 %v1947
        %3462 = vmatprep.subr.bf16.mxu0 %v1946
        %3463 = vmatpush1.bf16.msra.mxu0 %v1945
        %3464 = vmatprep.subr.bf16.mxu0 %v1944
        %3465 = vmatpush1.bf16.msra.mxu0 %v1943
        %3466 = vmatprep.subr.bf16.mxu0 %v1942
        %3467 = vmatpush1.bf16.msra.mxu0 %v1941
        %3468 = vmatprep.subr.bf16.mxu0 %v1940
        %3469 = vmatpush1.bf16.msra.mxu0 %v1939
        %3470 = vmatprep.subr.bf16.mxu0 %v1970
        %3471 = vmatpush2.bf16.msra.mxu0 %v1969
        %3472 = vmatprep.subr.bf16.mxu0 %v1968
        %3473 = vmatpush2.bf16.msra.mxu0 %v1967
        %3474 = vmatprep.subr.bf16.mxu0 %v1966
        %3475 = vmatpush2.bf16.msra.mxu0 %v1965
        %3476 = vmatprep.subr.bf16.mxu0 %v1964
        %3477 = vmatpush2.bf16.msra.mxu0 %v1963
        %3478 = vmatprep.subr.bf16.mxu0 %v1962
        %3479 = vmatpush2.bf16.msra.mxu0 %v1961
        %3480 = vmatprep.subr.bf16.mxu0 %v1960
        %3481 = vmatpush2.bf16.msra.mxu0 %v1959
        %3482 = vmatprep.subr.bf16.mxu0 %v1958
        %3483 = vmatpush2.bf16.msra.mxu0 %v1957
        %3484 = vmatprep.subr.bf16.mxu0 %v1956
        %3485 = vmatpush2.bf16.msra.mxu0 %v1955
        %3486 = vmatprep.mubr.bf16.mxu0 %v2923
        %3487 = vmatmul.mubr.bf16.gmra.mxu0 %v2921
        %v3488 = vpop.f32.mrf.mxu0
        %v3489 = vadd.f32 %v3448, %v3488
        %v3490 = vpop.f32.mrf.mxu0
        %v3491 = vadd.f32 %v3450, %v3490
        %v3492 = vpop.f32.mrf.mxu0
        %v3493 = vpop.f32.mrf.mxu0
        %3494 = vdwg.mxu0
        %3495 = vmatprep.subr.bf16.mxu0 %v1986
        %3496 = vmatpush1.bf16.msra.mxu0 %v1985
        %3497 = vmatprep.subr.bf16.mxu0 %v1984
        %3498 = vmatpush1.bf16.msra.mxu0 %v1983
        %3499 = vmatprep.subr.bf16.mxu0 %v1982
        %3500 = vmatpush1.bf16.msra.mxu0 %v1981
        %3501 = vmatprep.subr.bf16.mxu0 %v1980
        %3502 = vmatpush1.bf16.msra.mxu0 %v1979
        %3503 = vmatprep.subr.bf16.mxu0 %v1978
        %3504 = vmatpush1.bf16.msra.mxu0 %v1977
        %3505 = vmatprep.subr.bf16.mxu0 %v1976
        %3506 = vmatpush1.bf16.msra.mxu0 %v1975
        %3507 = vmatprep.subr.bf16.mxu0 %v1974
        %3508 = vmatpush1.bf16.msra.mxu0 %v1973
        %3509 = vmatprep.subr.bf16.mxu0 %v1972
        %3510 = vmatpush1.bf16.msra.mxu0 %v1971
        %3511 = vmatprep.subr.bf16.mxu0 %v2002
        %3512 = vmatpush2.bf16.msra.mxu0 %v2001
        %3513 = vmatprep.subr.bf16.mxu0 %v2000
        %3514 = vmatpush2.bf16.msra.mxu0 %v1999
        %3515 = vmatprep.subr.bf16.mxu0 %v1998
        %3516 = vmatpush2.bf16.msra.mxu0 %v1997
        %3517 = vmatprep.subr.bf16.mxu0 %v1996
        %3518 = vmatpush2.bf16.msra.mxu0 %v1995
        %3519 = vmatprep.subr.bf16.mxu0 %v1994
        %3520 = vmatpush2.bf16.msra.mxu0 %v1993
        %3521 = vmatprep.subr.bf16.mxu0 %v1992
        %3522 = vmatpush2.bf16.msra.mxu0 %v1991
        %3523 = vmatprep.subr.bf16.mxu0 %v1990
        %3524 = vmatpush2.bf16.msra.mxu0 %v1989
        %3525 = vmatprep.subr.bf16.mxu0 %v1988
        %3526 = vmatpush2.bf16.msra.mxu0 %v1987
        %3527 = vmatprep.mubr.bf16.mxu0 %v2961
        %3528 = vmatmul.mubr.bf16.gmra.mxu0 %v2947
        %v3529 = vpop.f32.mrf.mxu0
        %v3530 = vadd.f32 %v3489, %v3529
        %v3531 = vpop.f32.mrf.mxu0
        %v3532 = vadd.f32 %v3491, %v3531
        %v3533 = vpop.f32.mrf.mxu0
        %v3534 = vpop.f32.mrf.mxu0
        %3535 = vdwg.mxu0
        %3536 = vmatprep.subr.bf16.mxu0 %v2018
        %3537 = vmatpush1.bf16.msra.mxu0 %v2017
        %3538 = vmatprep.subr.bf16.mxu0 %v2016
        %3539 = vmatpush1.bf16.msra.mxu0 %v2015
        %3540 = vmatprep.subr.bf16.mxu0 %v2014
        %3541 = vmatpush1.bf16.msra.mxu0 %v2013
        %3542 = vmatprep.subr.bf16.mxu0 %v2012
        %3543 = vmatpush1.bf16.msra.mxu0 %v2011
        %3544 = vmatprep.subr.bf16.mxu0 %v2010
        %3545 = vmatpush1.bf16.msra.mxu0 %v2009
        %3546 = vmatprep.subr.bf16.mxu0 %v2008
        %3547 = vmatpush1.bf16.msra.mxu0 %v2007
        %3548 = vmatprep.subr.bf16.mxu0 %v2006
        %3549 = vmatpush1.bf16.msra.mxu0 %v2005
        %3550 = vmatprep.subr.bf16.mxu0 %v2004
        %3551 = vmatpush1.bf16.msra.mxu0 %v2003
        %3552 = vmatprep.subr.bf16.mxu0 %v2034
        %3553 = vmatpush2.bf16.msra.mxu0 %v2033
        %3554 = vmatprep.subr.bf16.mxu0 %v2032
        %3555 = vmatpush2.bf16.msra.mxu0 %v2031
        %3556 = vmatprep.subr.bf16.mxu0 %v2030
        %3557 = vmatpush2.bf16.msra.mxu0 %v2029
        %3558 = vmatprep.subr.bf16.mxu0 %v2028
        %3559 = vmatpush2.bf16.msra.mxu0 %v2027
        %3560 = vmatprep.subr.bf16.mxu0 %v2026
        %3561 = vmatpush2.bf16.msra.mxu0 %v2025
        %3562 = vmatprep.subr.bf16.mxu0 %v2024
        %3563 = vmatpush2.bf16.msra.mxu0 %v2023
        %3564 = vmatprep.subr.bf16.mxu0 %v2022
        %3565 = vmatpush2.bf16.msra.mxu0 %v2021
        %3566 = vmatprep.subr.bf16.mxu0 %v2020
        %3567 = vmatpush2.bf16.msra.mxu0 %v2019
        %3568 = vmatprep.mubr.bf16.mxu0 %v2971
        %3569 = vmatmul.mubr.bf16.gmra.mxu0 %v2969
        %v3570 = vpop.f32.mrf.mxu0
        %v3571 = vadd.f32 %v3530, %v3570
        %v3572 = vpop.f32.mrf.mxu0
        %v3573 = vadd.f32 %v3532, %v3572
        %v3574 = vpop.f32.mrf.mxu0
        %v3575 = vpop.f32.mrf.mxu0
        %3576 = vdwg.mxu0
        %3577 = vmatprep.subr.bf16.mxu0 %v2050
        %3578 = vmatpush1.bf16.msra.mxu0 %v2049
        %3579 = vmatprep.subr.bf16.mxu0 %v2048
        %3580 = vmatpush1.bf16.msra.mxu0 %v2047
        %3581 = vmatprep.subr.bf16.mxu0 %v2046
        %3582 = vmatpush1.bf16.msra.mxu0 %v2045
        %3583 = vmatprep.subr.bf16.mxu0 %v2044
        %3584 = vmatpush1.bf16.msra.mxu0 %v2043
        %3585 = vmatprep.subr.bf16.mxu0 %v2042
        %3586 = vmatpush1.bf16.msra.mxu0 %v2041
        %3587 = vmatprep.subr.bf16.mxu0 %v2040
        %3588 = vmatpush1.bf16.msra.mxu0 %v2039
        %3589 = vmatprep.subr.bf16.mxu0 %v2038
        %3590 = vmatpush1.bf16.msra.mxu0 %v2037
        %3591 = vmatprep.subr.bf16.mxu0 %v2036
        %3592 = vmatpush1.bf16.msra.mxu0 %v2035
        %3593 = vmatprep.subr.bf16.mxu0 %v2066
        %3594 = vmatpush2.bf16.msra.mxu0 %v2065
        %3595 = vmatprep.subr.bf16.mxu0 %v2064
        %3596 = vmatpush2.bf16.msra.mxu0 %v2063
        %3597 = vmatprep.subr.bf16.mxu0 %v2062
        %3598 = vmatpush2.bf16.msra.mxu0 %v2061
        %3599 = vmatprep.subr.bf16.mxu0 %v2060
        %3600 = vmatpush2.bf16.msra.mxu0 %v2059
        %3601 = vmatprep.subr.bf16.mxu0 %v2058
        %3602 = vmatpush2.bf16.msra.mxu0 %v2057
        %3603 = vmatprep.subr.bf16.mxu0 %v2056
        %3604 = vmatpush2.bf16.msra.mxu0 %v2055
        %3605 = vmatprep.subr.bf16.mxu0 %v2054
        %3606 = vmatpush2.bf16.msra.mxu0 %v2053
        %3607 = vmatprep.subr.bf16.mxu0 %v2052
        %3608 = vmatpush2.bf16.msra.mxu0 %v2051
        %3609 = vmatprep.mubr.bf16.mxu0 %v2968
        %3610 = vmatmul.mubr.bf16.gmra.mxu0 %v2954
        %v3611 = vpop.f32.mrf.mxu0
        %v3612 = vadd.f32 %v3571, %v3611
        %v3613 = vpop.f32.mrf.mxu0
        %v3614 = vadd.f32 %v3573, %v3613
        %v3615 = vpop.f32.mrf.mxu0
        %v3616 = vpop.f32.mrf.mxu0
        %3617 = vdwg.mxu0
        %3618 = vmatprep.subr.bf16.mxu0 %v2082
        %3619 = vmatpush1.bf16.msra.mxu0 %v2081
        %3620 = vmatprep.subr.bf16.mxu0 %v2080
        %3621 = vmatpush1.bf16.msra.mxu0 %v2079
        %3622 = vmatprep.subr.bf16.mxu0 %v2078
        %3623 = vmatpush1.bf16.msra.mxu0 %v2077
        %3624 = vmatprep.subr.bf16.mxu0 %v2076
        %3625 = vmatpush1.bf16.msra.mxu0 %v2075
        %3626 = vmatprep.subr.bf16.mxu0 %v2074
        %3627 = vmatpush1.bf16.msra.mxu0 %v2073
        %3628 = vmatprep.subr.bf16.mxu0 %v2072
        %3629 = vmatpush1.bf16.msra.mxu0 %v2071
        %3630 = vmatprep.subr.bf16.mxu0 %v2070
        %3631 = vmatpush1.bf16.msra.mxu0 %v2069
        %3632 = vmatprep.subr.bf16.mxu0 %v2068
        %3633 = vmatpush1.bf16.msra.mxu0 %v2067
        %3634 = vmatprep.subr.bf16.mxu0 %v2098
        %3635 = vmatpush2.bf16.msra.mxu0 %v2097
        %3636 = vmatprep.subr.bf16.mxu0 %v2096
        %3637 = vmatpush2.bf16.msra.mxu0 %v2095
        %3638 = vmatprep.subr.bf16.mxu0 %v2094
        %3639 = vmatpush2.bf16.msra.mxu0 %v2093
        %3640 = vmatprep.subr.bf16.mxu0 %v2092
        %3641 = vmatpush2.bf16.msra.mxu0 %v2091
        %3642 = vmatprep.subr.bf16.mxu0 %v2090
        %3643 = vmatpush2.bf16.msra.mxu0 %v2089
        %3644 = vmatprep.subr.bf16.mxu0 %v2088
        %3645 = vmatpush2.bf16.msra.mxu0 %v2087
        %3646 = vmatprep.subr.bf16.mxu0 %v2086
        %3647 = vmatpush2.bf16.msra.mxu0 %v2085
        %3648 = vmatprep.subr.bf16.mxu0 %v2084
        %3649 = vmatpush2.bf16.msra.mxu0 %v2083
        %3650 = vmatprep.mubr.bf16.mxu0 %v2972
        %3651 = vmatmul.mubr.bf16.gmra.mxu0 %v2970
        %v3652 = vpop.f32.mrf.mxu0
        %v3653 = vadd.f32 %v3612, %v3652
        %v3654 = vpop.f32.mrf.mxu0
        %v3655 = vadd.f32 %v3614, %v3654
        %v3656 = vpop.f32.mrf.mxu0
        %v3657 = vpop.f32.mrf.mxu0
        %3658 = vdwg.mxu0
        %3659 = vmatprep.subr.bf16.mxu0 %v2114
        %3660 = vmatpush1.bf16.msra.mxu0 %v2113
        %3661 = vmatprep.subr.bf16.mxu0 %v2112
        %3662 = vmatpush1.bf16.msra.mxu0 %v2111
        %3663 = vmatprep.subr.bf16.mxu0 %v2110
        %3664 = vmatpush1.bf16.msra.mxu0 %v2109
        %3665 = vmatprep.subr.bf16.mxu0 %v2108
        %3666 = vmatpush1.bf16.msra.mxu0 %v2107
        %3667 = vmatprep.subr.bf16.mxu0 %v2106
        %3668 = vmatpush1.bf16.msra.mxu0 %v2105
        %3669 = vmatprep.subr.bf16.mxu0 %v2104
        %3670 = vmatpush1.bf16.msra.mxu0 %v2103
        %3671 = vmatprep.subr.bf16.mxu0 %v2102
        %3672 = vmatpush1.bf16.msra.mxu0 %v2101
        %3673 = vmatprep.subr.bf16.mxu0 %v2100
        %3674 = vmatpush1.bf16.msra.mxu0 %v2099
        %3675 = vmatprep.subr.bf16.mxu0 %v2130
        %3676 = vmatpush2.bf16.msra.mxu0 %v2129
        %3677 = vmatprep.subr.bf16.mxu0 %v2128
        %3678 = vmatpush2.bf16.msra.mxu0 %v2127
        %3679 = vmatprep.subr.bf16.mxu0 %v2126
        %3680 = vmatpush2.bf16.msra.mxu0 %v2125
        %3681 = vmatprep.subr.bf16.mxu0 %v2124
        %3682 = vmatpush2.bf16.msra.mxu0 %v2123
        %3683 = vmatprep.subr.bf16.mxu0 %v2122
        %3684 = vmatpush2.bf16.msra.mxu0 %v2121
        %3685 = vmatprep.subr.bf16.mxu0 %v2120
        %3686 = vmatpush2.bf16.msra.mxu0 %v2119
        %3687 = vmatprep.subr.bf16.mxu0 %v2118
        %3688 = vmatpush2.bf16.msra.mxu0 %v2117
        %3689 = vmatprep.subr.bf16.mxu0 %v2116
        %3690 = vmatpush2.bf16.msra.mxu0 %v2115
        %3691 = vmatprep.mubr.bf16.mxu0 %v3010
        %3692 = vmatmul.mubr.bf16.gmra.mxu0 %v2996
        %v3693 = vpop.f32.mrf.mxu0
        %v3694 = vadd.f32 %v3653, %v3693
        %v3695 = vpop.f32.mrf.mxu0
        %v3696 = vadd.f32 %v3655, %v3695
        %v3697 = vpop.f32.mrf.mxu0
        %v3698 = vpop.f32.mrf.mxu0
        %3699 = vdwg.mxu0
        %3700 = vmatprep.subr.bf16.mxu0 %v2146
        %3701 = vmatpush1.bf16.msra.mxu0 %v2145
        %3702 = vmatprep.subr.bf16.mxu0 %v2144
        %3703 = vmatpush1.bf16.msra.mxu0 %v2143
        %3704 = vmatprep.subr.bf16.mxu0 %v2142
        %3705 = vmatpush1.bf16.msra.mxu0 %v2141
        %3706 = vmatprep.subr.bf16.mxu0 %v2140
        %3707 = vmatpush1.bf16.msra.mxu0 %v2139
        %3708 = vmatprep.subr.bf16.mxu0 %v2138
        %3709 = vmatpush1.bf16.msra.mxu0 %v2137
        %3710 = vmatprep.subr.bf16.mxu0 %v2136
        %3711 = vmatpush1.bf16.msra.mxu0 %v2135
        %3712 = vmatprep.subr.bf16.mxu0 %v2134
        %3713 = vmatpush1.bf16.msra.mxu0 %v2133
        %3714 = vmatprep.subr.bf16.mxu0 %v2132
        %3715 = vmatpush1.bf16.msra.mxu0 %v2131
        %3716 = vmatprep.subr.bf16.mxu0 %v2162
        %3717 = vmatpush2.bf16.msra.mxu0 %v2161
        %3718 = vmatprep.subr.bf16.mxu0 %v2160
        %3719 = vmatpush2.bf16.msra.mxu0 %v2159
        %3720 = vmatprep.subr.bf16.mxu0 %v2158
        %3721 = vmatpush2.bf16.msra.mxu0 %v2157
        %3722 = vmatprep.subr.bf16.mxu0 %v2156
        %3723 = vmatpush2.bf16.msra.mxu0 %v2155
        %3724 = vmatprep.subr.bf16.mxu0 %v2154
        %3725 = vmatpush2.bf16.msra.mxu0 %v2153
        %3726 = vmatprep.subr.bf16.mxu0 %v2152
        %3727 = vmatpush2.bf16.msra.mxu0 %v2151
        %3728 = vmatprep.subr.bf16.mxu0 %v2150
        %3729 = vmatpush2.bf16.msra.mxu0 %v2149
        %3730 = vmatprep.subr.bf16.mxu0 %v2148
        %3731 = vmatpush2.bf16.msra.mxu0 %v2147
        %3732 = vmatprep.mubr.bf16.mxu0 %v3020
        %3733 = vmatmul.mubr.bf16.gmra.mxu0 %v3018
        %v3734 = vpop.f32.mrf.mxu0
        %v3735 = vadd.f32 %v3694, %v3734
        %v3736 = vpop.f32.mrf.mxu0
        %v3737 = vadd.f32 %v3696, %v3736
        %v3738 = vpop.f32.mrf.mxu0
        %v3739 = vpop.f32.mrf.mxu0
        %3740 = vdwg.mxu0
        %3741 = vmatprep.subr.bf16.mxu0 %v2178
        %3742 = vmatpush1.bf16.msra.mxu0 %v2177
        %3743 = vmatprep.subr.bf16.mxu0 %v2176
        %3744 = vmatpush1.bf16.msra.mxu0 %v2175
        %3745 = vmatprep.subr.bf16.mxu0 %v2174
        %3746 = vmatpush1.bf16.msra.mxu0 %v2173
        %3747 = vmatprep.subr.bf16.mxu0 %v2172
        %3748 = vmatpush1.bf16.msra.mxu0 %v2171
        %3749 = vmatprep.subr.bf16.mxu0 %v2170
        %3750 = vmatpush1.bf16.msra.mxu0 %v2169
        %3751 = vmatprep.subr.bf16.mxu0 %v2168
        %3752 = vmatpush1.bf16.msra.mxu0 %v2167
        %3753 = vmatprep.subr.bf16.mxu0 %v2166
        %3754 = vmatpush1.bf16.msra.mxu0 %v2165
        %3755 = vmatprep.subr.bf16.mxu0 %v2164
        %3756 = vmatpush1.bf16.msra.mxu0 %v2163
        %3757 = vmatprep.subr.bf16.mxu0 %v2194
        %3758 = vmatpush2.bf16.msra.mxu0 %v2193
        %3759 = vmatprep.subr.bf16.mxu0 %v2192
        %3760 = vmatpush2.bf16.msra.mxu0 %v2191
        %3761 = vmatprep.subr.bf16.mxu0 %v2190
        %3762 = vmatpush2.bf16.msra.mxu0 %v2189
        %3763 = vmatprep.subr.bf16.mxu0 %v2188
        %3764 = vmatpush2.bf16.msra.mxu0 %v2187
        %3765 = vmatprep.subr.bf16.mxu0 %v2186
        %3766 = vmatpush2.bf16.msra.mxu0 %v2185
        %3767 = vmatprep.subr.bf16.mxu0 %v2184
        %3768 = vmatpush2.bf16.msra.mxu0 %v2183
        %3769 = vmatprep.subr.bf16.mxu0 %v2182
        %3770 = vmatpush2.bf16.msra.mxu0 %v2181
        %3771 = vmatprep.subr.bf16.mxu0 %v2180
        %3772 = vmatpush2.bf16.msra.mxu0 %v2179
        %3773 = vmatprep.mubr.bf16.mxu0 %v3017
        %3774 = vmatmul.mubr.bf16.gmra.mxu0 %v3003
        %v3775 = vpop.f32.mrf.mxu0
        %v3776 = vadd.f32 %v3735, %v3775
        %v3777 = vpop.f32.mrf.mxu0
        %v3778 = vadd.f32 %v3737, %v3777
        %v3779 = vpop.f32.mrf.mxu0
        %v3780 = vpop.f32.mrf.mxu0
        %3781 = vdwg.mxu0
        %3782 = vmatprep.subr.bf16.mxu0 %v2210
        %3783 = vmatpush1.bf16.msra.mxu0 %v2209
        %3784 = vmatprep.subr.bf16.mxu0 %v2208
        %3785 = vmatpush1.bf16.msra.mxu0 %v2207
        %3786 = vmatprep.subr.bf16.mxu0 %v2206
        %3787 = vmatpush1.bf16.msra.mxu0 %v2205
        %3788 = vmatprep.subr.bf16.mxu0 %v2204
        %3789 = vmatpush1.bf16.msra.mxu0 %v2203
        %3790 = vmatprep.subr.bf16.mxu0 %v2202
        %3791 = vmatpush1.bf16.msra.mxu0 %v2201
        %3792 = vmatprep.subr.bf16.mxu0 %v2200
        %3793 = vmatpush1.bf16.msra.mxu0 %v2199
        %3794 = vmatprep.subr.bf16.mxu0 %v2198
        %3795 = vmatpush1.bf16.msra.mxu0 %v2197
        %3796 = vmatprep.subr.bf16.mxu0 %v2196
        %3797 = vmatpush1.bf16.msra.mxu0 %v2195
        %3798 = vmatprep.subr.bf16.mxu0 %v2226
        %3799 = vmatpush2.bf16.msra.mxu0 %v2225
        %3800 = vmatprep.subr.bf16.mxu0 %v2224
        %3801 = vmatpush2.bf16.msra.mxu0 %v2223
        %3802 = vmatprep.subr.bf16.mxu0 %v2222
        %3803 = vmatpush2.bf16.msra.mxu0 %v2221
        %3804 = vmatprep.subr.bf16.mxu0 %v2220
        %3805 = vmatpush2.bf16.msra.mxu0 %v2219
        %3806 = vmatprep.subr.bf16.mxu0 %v2218
        %3807 = vmatpush2.bf16.msra.mxu0 %v2217
        %3808 = vmatprep.subr.bf16.mxu0 %v2216
        %3809 = vmatpush2.bf16.msra.mxu0 %v2215
        %3810 = vmatprep.subr.bf16.mxu0 %v2214
        %3811 = vmatpush2.bf16.msra.mxu0 %v2213
        %3812 = vmatprep.subr.bf16.mxu0 %v2212
        %3813 = vmatpush2.bf16.msra.mxu0 %v2211
        %3814 = vmatprep.mubr.bf16.mxu0 %v3021
        %3815 = vmatmul.mubr.bf16.gmra.mxu0 %v3019
        %v3816 = vpop.f32.mrf.mxu0
        %v3817 = vadd.f32 %v3776, %v3816
        %v3818 = vpop.f32.mrf.mxu0
        %v3819 = vadd.f32 %v3778, %v3818
        %v3820 = vpop.f32.mrf.mxu0
        %v3821 = vpop.f32.mrf.mxu0
        %3822 = vdwg.mxu0
        %3823 = vmatprep.subr.bf16.mxu0 %v2242
        %3824 = vmatpush1.bf16.msra.mxu0 %v2241
        %3825 = vmatprep.subr.bf16.mxu0 %v2240
        %3826 = vmatpush1.bf16.msra.mxu0 %v2239
        %3827 = vmatprep.subr.bf16.mxu0 %v2238
        %3828 = vmatpush1.bf16.msra.mxu0 %v2237
        %3829 = vmatprep.subr.bf16.mxu0 %v2236
        %3830 = vmatpush1.bf16.msra.mxu0 %v2235
        %3831 = vmatprep.subr.bf16.mxu0 %v2234
        %3832 = vmatpush1.bf16.msra.mxu0 %v2233
        %3833 = vmatprep.subr.bf16.mxu0 %v2232
        %3834 = vmatpush1.bf16.msra.mxu0 %v2231
        %3835 = vmatprep.subr.bf16.mxu0 %v2230
        %3836 = vmatpush1.bf16.msra.mxu0 %v2229
        %3837 = vmatprep.subr.bf16.mxu0 %v2228
        %3838 = vmatpush1.bf16.msra.mxu0 %v2227
        %3839 = vmatprep.subr.bf16.mxu0 %v2258
        %3840 = vmatpush2.bf16.msra.mxu0 %v2257
        %3841 = vmatprep.subr.bf16.mxu0 %v2256
        %3842 = vmatpush2.bf16.msra.mxu0 %v2255
        %3843 = vmatprep.subr.bf16.mxu0 %v2254
        %3844 = vmatpush2.bf16.msra.mxu0 %v2253
        %3845 = vmatprep.subr.bf16.mxu0 %v2252
        %3846 = vmatpush2.bf16.msra.mxu0 %v2251
        %3847 = vmatprep.subr.bf16.mxu0 %v2250
        %3848 = vmatpush2.bf16.msra.mxu0 %v2249
        %3849 = vmatprep.subr.bf16.mxu0 %v2248
        %3850 = vmatpush2.bf16.msra.mxu0 %v2247
        %3851 = vmatprep.subr.bf16.mxu0 %v2246
        %3852 = vmatpush2.bf16.msra.mxu0 %v2245
        %3853 = vmatprep.subr.bf16.mxu0 %v2244
        %3854 = vmatpush2.bf16.msra.mxu0 %v2243
        %3855 = vmatprep.mubr.bf16.mxu0 %v3059
        %3856 = vmatmul.mubr.bf16.gmra.mxu0 %v3045
        %v3857 = vpop.f32.mrf.mxu0
        %v3858 = vadd.f32 %v3817, %v3857
        %v3859 = vpop.f32.mrf.mxu0
        %v3860 = vadd.f32 %v3819, %v3859
        %v3861 = vpop.f32.mrf.mxu0
        %v3862 = vpop.f32.mrf.mxu0
        %3863 = vdwg.mxu0
        %3864 = vmatprep.subr.bf16.mxu0 %v2274
        %3865 = vmatpush1.bf16.msra.mxu0 %v2273
        %3866 = vmatprep.subr.bf16.mxu0 %v2272
        %3867 = vmatpush1.bf16.msra.mxu0 %v2271
        %3868 = vmatprep.subr.bf16.mxu0 %v2270
        %3869 = vmatpush1.bf16.msra.mxu0 %v2269
        %3870 = vmatprep.subr.bf16.mxu0 %v2268
        %3871 = vmatpush1.bf16.msra.mxu0 %v2267
        %3872 = vmatprep.subr.bf16.mxu0 %v2266
        %3873 = vmatpush1.bf16.msra.mxu0 %v2265
        %3874 = vmatprep.subr.bf16.mxu0 %v2264
        %3875 = vmatpush1.bf16.msra.mxu0 %v2263
        %3876 = vmatprep.subr.bf16.mxu0 %v2262
        %3877 = vmatpush1.bf16.msra.mxu0 %v2261
        %3878 = vmatprep.subr.bf16.mxu0 %v2260
        %3879 = vmatpush1.bf16.msra.mxu0 %v2259
        %3880 = vmatprep.subr.bf16.mxu0 %v2290
        %3881 = vmatpush2.bf16.msra.mxu0 %v2289
        %3882 = vmatprep.subr.bf16.mxu0 %v2288
        %3883 = vmatpush2.bf16.msra.mxu0 %v2287
        %3884 = vmatprep.subr.bf16.mxu0 %v2286
        %3885 = vmatpush2.bf16.msra.mxu0 %v2285
        %3886 = vmatprep.subr.bf16.mxu0 %v2284
        %3887 = vmatpush2.bf16.msra.mxu0 %v2283
        %3888 = vmatprep.subr.bf16.mxu0 %v2282
        %3889 = vmatpush2.bf16.msra.mxu0 %v2281
        %3890 = vmatprep.subr.bf16.mxu0 %v2280
        %3891 = vmatpush2.bf16.msra.mxu0 %v2279
        %3892 = vmatprep.subr.bf16.mxu0 %v2278
        %3893 = vmatpush2.bf16.msra.mxu0 %v2277
        %3894 = vmatprep.subr.bf16.mxu0 %v2276
        %3895 = vmatpush2.bf16.msra.mxu0 %v2275
        %3896 = vmatprep.mubr.bf16.mxu0 %v3069
        %3897 = vmatmul.mubr.bf16.gmra.mxu0 %v3067
        %v3898 = vpop.f32.mrf.mxu0
        %v3899 = vadd.f32 %v3858, %v3898
        %v3900 = vpop.f32.mrf.mxu0
        %v3901 = vadd.f32 %v3860, %v3900
        %v3902 = vpop.f32.mrf.mxu0
        %v3903 = vpop.f32.mrf.mxu0
        %3904 = vdwg.mxu0
        %3905 = vmatprep.subr.bf16.mxu0 %v2306
        %3906 = vmatpush1.bf16.msra.mxu0 %v2305
        %3907 = vmatprep.subr.bf16.mxu0 %v2304
        %3908 = vmatpush1.bf16.msra.mxu0 %v2303
        %3909 = vmatprep.subr.bf16.mxu0 %v2302
        %3910 = vmatpush1.bf16.msra.mxu0 %v2301
        %3911 = vmatprep.subr.bf16.mxu0 %v2300
        %3912 = vmatpush1.bf16.msra.mxu0 %v2299
        %3913 = vmatprep.subr.bf16.mxu0 %v2298
        %3914 = vmatpush1.bf16.msra.mxu0 %v2297
        %3915 = vmatprep.subr.bf16.mxu0 %v2296
        %3916 = vmatpush1.bf16.msra.mxu0 %v2295
        %3917 = vmatprep.subr.bf16.mxu0 %v2294
        %3918 = vmatpush1.bf16.msra.mxu0 %v2293
        %3919 = vmatprep.subr.bf16.mxu0 %v2292
        %3920 = vmatpush1.bf16.msra.mxu0 %v2291
        %3921 = vmatprep.subr.bf16.mxu0 %v2322
        %3922 = vmatpush2.bf16.msra.mxu0 %v2321
        %3923 = vmatprep.subr.bf16.mxu0 %v2320
        %3924 = vmatpush2.bf16.msra.mxu0 %v2319
        %3925 = vmatprep.subr.bf16.mxu0 %v2318
        %3926 = vmatpush2.bf16.msra.mxu0 %v2317
        %3927 = vmatprep.subr.bf16.mxu0 %v2316
        %3928 = vmatpush2.bf16.msra.mxu0 %v2315
        %3929 = vmatprep.subr.bf16.mxu0 %v2314
        %3930 = vmatpush2.bf16.msra.mxu0 %v2313
        %3931 = vmatprep.subr.bf16.mxu0 %v2312
        %3932 = vmatpush2.bf16.msra.mxu0 %v2311
        %3933 = vmatprep.subr.bf16.mxu0 %v2310
        %3934 = vmatpush2.bf16.msra.mxu0 %v2309
        %3935 = vmatprep.subr.bf16.mxu0 %v2308
        %3936 = vmatpush2.bf16.msra.mxu0 %v2307
        %3937 = vmatprep.mubr.bf16.mxu0 %v3066
        %3938 = vmatmul.mubr.bf16.gmra.mxu0 %v3052
        %v3939 = vpop.f32.mrf.mxu0
        %v3940 = vadd.f32 %v3899, %v3939
        %v3941 = vpop.f32.mrf.mxu0
        %v3942 = vadd.f32 %v3901, %v3941
        %v3943 = vpop.f32.mrf.mxu0
        %v3944 = vpop.f32.mrf.mxu0
        %3945 = vdwg.mxu0
        %3946 = vmatprep.subr.bf16.mxu0 %v2338
        %3947 = vmatpush1.bf16.msra.mxu0 %v2337
        %3948 = vmatprep.subr.bf16.mxu0 %v2336
        %3949 = vmatpush1.bf16.msra.mxu0 %v2335
        %3950 = vmatprep.subr.bf16.mxu0 %v2334
        %3951 = vmatpush1.bf16.msra.mxu0 %v2333
        %3952 = vmatprep.subr.bf16.mxu0 %v2332
        %3953 = vmatpush1.bf16.msra.mxu0 %v2331
        %3954 = vmatprep.subr.bf16.mxu0 %v2330
        %3955 = vmatpush1.bf16.msra.mxu0 %v2329
        %3956 = vmatprep.subr.bf16.mxu0 %v2328
        %3957 = vmatpush1.bf16.msra.mxu0 %v2327
        %3958 = vmatprep.subr.bf16.mxu0 %v2326
        %3959 = vmatpush1.bf16.msra.mxu0 %v2325
        %3960 = vmatprep.subr.bf16.mxu0 %v2324
        %3961 = vmatpush1.bf16.msra.mxu0 %v2323
        %3962 = vmatprep.subr.bf16.mxu0 %v2354
        %3963 = vmatpush2.bf16.msra.mxu0 %v2353
        %3964 = vmatprep.subr.bf16.mxu0 %v2352
        %3965 = vmatpush2.bf16.msra.mxu0 %v2351
        %3966 = vmatprep.subr.bf16.mxu0 %v2350
        %3967 = vmatpush2.bf16.msra.mxu0 %v2349
        %3968 = vmatprep.subr.bf16.mxu0 %v2348
        %3969 = vmatpush2.bf16.msra.mxu0 %v2347
        %3970 = vmatprep.subr.bf16.mxu0 %v2346
        %3971 = vmatpush2.bf16.msra.mxu0 %v2345
        %3972 = vmatprep.subr.bf16.mxu0 %v2344
        %3973 = vmatpush2.bf16.msra.mxu0 %v2343
        %3974 = vmatprep.subr.bf16.mxu0 %v2342
        %3975 = vmatpush2.bf16.msra.mxu0 %v2341
        %3976 = vmatprep.subr.bf16.mxu0 %v2340
        %3977 = vmatpush2.bf16.msra.mxu0 %v2339
        %3978 = vmatprep.mubr.bf16.mxu0 %v3070
        %3979 = vmatmul.mubr.bf16.gmra.mxu0 %v3068
        %v3980 = vpop.f32.mrf.mxu0
        %v3981 = vadd.f32 %v3940, %v3980
        %v3982 = vpop.f32.mrf.mxu0
        %v3983 = vadd.f32 %v3942, %v3982
        %v3984 = vpop.f32.mrf.mxu0
        %v3985 = vpop.f32.mrf.mxu0
        %3986 = vdwg.mxu0
        %3987 = vmatprep.subr.bf16.mxu0 %v2370
        %3988 = vmatpush1.bf16.msra.mxu0 %v2369
        %3989 = vmatprep.subr.bf16.mxu0 %v2368
        %3990 = vmatpush1.bf16.msra.mxu0 %v2367
        %3991 = vmatprep.subr.bf16.mxu0 %v2366
        %3992 = vmatpush1.bf16.msra.mxu0 %v2365
        %3993 = vmatprep.subr.bf16.mxu0 %v2364
        %3994 = vmatpush1.bf16.msra.mxu0 %v2363
        %3995 = vmatprep.subr.bf16.mxu0 %v2362
        %3996 = vmatpush1.bf16.msra.mxu0 %v2361
        %3997 = vmatprep.subr.bf16.mxu0 %v2360
        %3998 = vmatpush1.bf16.msra.mxu0 %v2359
        %3999 = vmatprep.subr.bf16.mxu0 %v2358
        %4000 = vmatpush1.bf16.msra.mxu0 %v2357
        %4001 = vmatprep.subr.bf16.mxu0 %v2356
        %4002 = vmatpush1.bf16.msra.mxu0 %v2355
        %4003 = vmatprep.subr.bf16.mxu0 %v2386
        %4004 = vmatpush2.bf16.msra.mxu0 %v2385
        %4005 = vmatprep.subr.bf16.mxu0 %v2384
        %4006 = vmatpush2.bf16.msra.mxu0 %v2383
        %4007 = vmatprep.subr.bf16.mxu0 %v2382
        %4008 = vmatpush2.bf16.msra.mxu0 %v2381
        %4009 = vmatprep.subr.bf16.mxu0 %v2380
        %4010 = vmatpush2.bf16.msra.mxu0 %v2379
        %4011 = vmatprep.subr.bf16.mxu0 %v2378
        %4012 = vmatpush2.bf16.msra.mxu0 %v2377
        %4013 = vmatprep.subr.bf16.mxu0 %v2376
        %4014 = vmatpush2.bf16.msra.mxu0 %v2375
        %4015 = vmatprep.subr.bf16.mxu0 %v2374
        %4016 = vmatpush2.bf16.msra.mxu0 %v2373
        %4017 = vmatprep.subr.bf16.mxu0 %v2372
        %4018 = vmatpush2.bf16.msra.mxu0 %v2371
        %4019 = vmatprep.mubr.bf16.mxu0 %v3108
        %4020 = vmatmul.mubr.bf16.gmra.mxu0 %v3094
        %v4021 = vpop.f32.mrf.mxu0
        %v4022 = vadd.f32 %v3981, %v4021
        %v4023 = vpop.f32.mrf.mxu0
        %v4024 = vadd.f32 %v3983, %v4023
        %v4025 = vpop.f32.mrf.mxu0
        %v4026 = vpop.f32.mrf.mxu0
        %4027 = vdwg.mxu0
        %4028 = vmatprep.subr.bf16.mxu0 %v2402
        %4029 = vmatpush1.bf16.msra.mxu0 %v2401
        %4030 = vmatprep.subr.bf16.mxu0 %v2400
        %4031 = vmatpush1.bf16.msra.mxu0 %v2399
        %4032 = vmatprep.subr.bf16.mxu0 %v2398
        %4033 = vmatpush1.bf16.msra.mxu0 %v2397
        %4034 = vmatprep.subr.bf16.mxu0 %v2396
        %4035 = vmatpush1.bf16.msra.mxu0 %v2395
        %4036 = vmatprep.subr.bf16.mxu0 %v2394
        %4037 = vmatpush1.bf16.msra.mxu0 %v2393
        %4038 = vmatprep.subr.bf16.mxu0 %v2392
        %4039 = vmatpush1.bf16.msra.mxu0 %v2391
        %4040 = vmatprep.subr.bf16.mxu0 %v2390
        %4041 = vmatpush1.bf16.msra.mxu0 %v2389
        %4042 = vmatprep.subr.bf16.mxu0 %v2388
        %4043 = vmatpush1.bf16.msra.mxu0 %v2387
        %4044 = vmatprep.subr.bf16.mxu0 %v2418
        %4045 = vmatpush2.bf16.msra.mxu0 %v2417
        %4046 = vmatprep.subr.bf16.mxu0 %v2416
        %4047 = vmatpush2.bf16.msra.mxu0 %v2415
        %4048 = vmatprep.subr.bf16.mxu0 %v2414
        %4049 = vmatpush2.bf16.msra.mxu0 %v2413
        %4050 = vmatprep.subr.bf16.mxu0 %v2412
        %4051 = vmatpush2.bf16.msra.mxu0 %v2411
        %4052 = vmatprep.subr.bf16.mxu0 %v2410
        %4053 = vmatpush2.bf16.msra.mxu0 %v2409
        %4054 = vmatprep.subr.bf16.mxu0 %v2408
        %4055 = vmatpush2.bf16.msra.mxu0 %v2407
        %4056 = vmatprep.subr.bf16.mxu0 %v2406
        %4057 = vmatpush2.bf16.msra.mxu0 %v2405
        %4058 = vmatprep.subr.bf16.mxu0 %v2404
        %4059 = vmatpush2.bf16.msra.mxu0 %v2403
        %4060 = vmatprep.mubr.bf16.mxu0 %v3118
        %4061 = vmatmul.mubr.bf16.gmra.mxu0 %v3116
        %v4062 = vpop.f32.mrf.mxu0
        %v4063 = vadd.f32 %v4022, %v4062
        %v4064 = vpop.f32.mrf.mxu0
        %v4065 = vadd.f32 %v4024, %v4064
        %v4066 = vpop.f32.mrf.mxu0
        %v4067 = vpop.f32.mrf.mxu0
        %4068 = vdwg.mxu0
        %4069 = vmatprep.subr.bf16.mxu0 %v2434
        %4070 = vmatpush1.bf16.msra.mxu0 %v2433
        %4071 = vmatprep.subr.bf16.mxu0 %v2432
        %4072 = vmatpush1.bf16.msra.mxu0 %v2431
        %4073 = vmatprep.subr.bf16.mxu0 %v2430
        %4074 = vmatpush1.bf16.msra.mxu0 %v2429
        %4075 = vmatprep.subr.bf16.mxu0 %v2428
        %4076 = vmatpush1.bf16.msra.mxu0 %v2427
        %4077 = vmatprep.subr.bf16.mxu0 %v2426
        %4078 = vmatpush1.bf16.msra.mxu0 %v2425
        %4079 = vmatprep.subr.bf16.mxu0 %v2424
        %4080 = vmatpush1.bf16.msra.mxu0 %v2423
        %4081 = vmatprep.subr.bf16.mxu0 %v2422
        %4082 = vmatpush1.bf16.msra.mxu0 %v2421
        %4083 = vmatprep.subr.bf16.mxu0 %v2420
        %4084 = vmatpush1.bf16.msra.mxu0 %v2419
        %4085 = vmatprep.subr.bf16.mxu0 %v2450
        %4086 = vmatpush2.bf16.msra.mxu0 %v2449
        %4087 = vmatprep.subr.bf16.mxu0 %v2448
        %4088 = vmatpush2.bf16.msra.mxu0 %v2447
        %4089 = vmatprep.subr.bf16.mxu0 %v2446
        %4090 = vmatpush2.bf16.msra.mxu0 %v2445
        %4091 = vmatprep.subr.bf16.mxu0 %v2444
        %4092 = vmatpush2.bf16.msra.mxu0 %v2443
        %4093 = vmatprep.subr.bf16.mxu0 %v2442
        %4094 = vmatpush2.bf16.msra.mxu0 %v2441
        %4095 = vmatprep.subr.bf16.mxu0 %v2440
        %4096 = vmatpush2.bf16.msra.mxu0 %v2439
        %4097 = vmatprep.subr.bf16.mxu0 %v2438
        %4098 = vmatpush2.bf16.msra.mxu0 %v2437
        %4099 = vmatprep.subr.bf16.mxu0 %v2436
        %4100 = vmatpush2.bf16.msra.mxu0 %v2435
        %4101 = vmatprep.mubr.bf16.mxu0 %v3115
        %4102 = vmatmul.mubr.bf16.gmra.mxu0 %v3101
        %v4103 = vpop.f32.mrf.mxu0
        %v4104 = vadd.f32 %v4063, %v4103
        %v4105 = vpop.f32.mrf.mxu0
        %v4106 = vadd.f32 %v4065, %v4105
        %v4107 = vpop.f32.mrf.mxu0
        %v4108 = vpop.f32.mrf.mxu0
        %4109 = vdwg.mxu0
        %4110 = vmatprep.subr.bf16.mxu0 %v2466
        %4111 = vmatpush1.bf16.msra.mxu0 %v2465
        %4112 = vmatprep.subr.bf16.mxu0 %v2464
        %4113 = vmatpush1.bf16.msra.mxu0 %v2463
        %4114 = vmatprep.subr.bf16.mxu0 %v2462
        %4115 = vmatpush1.bf16.msra.mxu0 %v2461
        %4116 = vmatprep.subr.bf16.mxu0 %v2460
        %4117 = vmatpush1.bf16.msra.mxu0 %v2459
        %4118 = vmatprep.subr.bf16.mxu0 %v2458
        %4119 = vmatpush1.bf16.msra.mxu0 %v2457
        %4120 = vmatprep.subr.bf16.mxu0 %v2456
        %4121 = vmatpush1.bf16.msra.mxu0 %v2455
        %4122 = vmatprep.subr.bf16.mxu0 %v2454
        %4123 = vmatpush1.bf16.msra.mxu0 %v2453
        %4124 = vmatprep.subr.bf16.mxu0 %v2452
        %4125 = vmatpush1.bf16.msra.mxu0 %v2451
        %4126 = vmatprep.subr.bf16.mxu0 %v2482
        %4127 = vmatpush2.bf16.msra.mxu0 %v2481
        %4128 = vmatprep.subr.bf16.mxu0 %v2480
        %4129 = vmatpush2.bf16.msra.mxu0 %v2479
        %4130 = vmatprep.subr.bf16.mxu0 %v2478
        %4131 = vmatpush2.bf16.msra.mxu0 %v2477
        %4132 = vmatprep.subr.bf16.mxu0 %v2476
        %4133 = vmatpush2.bf16.msra.mxu0 %v2475
        %4134 = vmatprep.subr.bf16.mxu0 %v2474
        %4135 = vmatpush2.bf16.msra.mxu0 %v2473
        %4136 = vmatprep.subr.bf16.mxu0 %v2472
        %4137 = vmatpush2.bf16.msra.mxu0 %v2471
        %4138 = vmatprep.subr.bf16.mxu0 %v2470
        %4139 = vmatpush2.bf16.msra.mxu0 %v2469
        %4140 = vmatprep.subr.bf16.mxu0 %v2468
        %4141 = vmatpush2.bf16.msra.mxu0 %v2467
        %4142 = vmatprep.mubr.bf16.mxu0 %v3119
        %4143 = vmatmul.mubr.bf16.gmra.mxu0 %v3117
        %v4144 = vpop.f32.mrf.mxu0
        %v4145 = vadd.f32 %v4104, %v4144
        %v4146 = vpop.f32.mrf.mxu0
        %v4147 = vadd.f32 %v4106, %v4146
        %v4148 = vpop.f32.mrf.mxu0
        %v4149 = vpop.f32.mrf.mxu0
        %4150 = vdwg.mxu0
        %4151 = vmatprep.subr.bf16.mxu0 %v2498
        %4152 = vmatpush1.bf16.msra.mxu0 %v2497
        %4153 = vmatprep.subr.bf16.mxu0 %v2496
        %4154 = vmatpush1.bf16.msra.mxu0 %v2495
        %4155 = vmatprep.subr.bf16.mxu0 %v2494
        %4156 = vmatpush1.bf16.msra.mxu0 %v2493
        %4157 = vmatprep.subr.bf16.mxu0 %v2492
        %4158 = vmatpush1.bf16.msra.mxu0 %v2491
        %4159 = vmatprep.subr.bf16.mxu0 %v2490
        %4160 = vmatpush1.bf16.msra.mxu0 %v2489
        %4161 = vmatprep.subr.bf16.mxu0 %v2488
        %4162 = vmatpush1.bf16.msra.mxu0 %v2487
        %4163 = vmatprep.subr.bf16.mxu0 %v2486
        %4164 = vmatpush1.bf16.msra.mxu0 %v2485
        %4165 = vmatprep.subr.bf16.mxu0 %v2484
        %4166 = vmatpush1.bf16.msra.mxu0 %v2483
        %4167 = vmatprep.subr.bf16.mxu0 %v2514
        %4168 = vmatpush2.bf16.msra.mxu0 %v2513
        %4169 = vmatprep.subr.bf16.mxu0 %v2512
        %4170 = vmatpush2.bf16.msra.mxu0 %v2511
        %4171 = vmatprep.subr.bf16.mxu0 %v2510
        %4172 = vmatpush2.bf16.msra.mxu0 %v2509
        %4173 = vmatprep.subr.bf16.mxu0 %v2508
        %4174 = vmatpush2.bf16.msra.mxu0 %v2507
        %4175 = vmatprep.subr.bf16.mxu0 %v2506
        %4176 = vmatpush2.bf16.msra.mxu0 %v2505
        %4177 = vmatprep.subr.bf16.mxu0 %v2504
        %4178 = vmatpush2.bf16.msra.mxu0 %v2503
        %4179 = vmatprep.subr.bf16.mxu0 %v2502
        %4180 = vmatpush2.bf16.msra.mxu0 %v2501
        %4181 = vmatprep.subr.bf16.mxu0 %v2500
        %4182 = vmatpush2.bf16.msra.mxu0 %v2499
        %4183 = vmatprep.mubr.bf16.mxu0 %v3157
        %4184 = vmatmul.mubr.bf16.gmra.mxu0 %v3143
        %v4185 = vpop.f32.mrf.mxu0
        %v4186 = vadd.f32 %v4145, %v4185
        %v4187 = vpop.f32.mrf.mxu0
        %v4188 = vadd.f32 %v4147, %v4187
        %v4189 = vpop.f32.mrf.mxu0
        %v4190 = vpop.f32.mrf.mxu0
        %4191 = vdwg.mxu0
        %4192 = vmatprep.subr.bf16.mxu0 %v2530
        %4193 = vmatpush1.bf16.msra.mxu0 %v2529
        %4194 = vmatprep.subr.bf16.mxu0 %v2528
        %4195 = vmatpush1.bf16.msra.mxu0 %v2527
        %4196 = vmatprep.subr.bf16.mxu0 %v2526
        %4197 = vmatpush1.bf16.msra.mxu0 %v2525
        %4198 = vmatprep.subr.bf16.mxu0 %v2524
        %4199 = vmatpush1.bf16.msra.mxu0 %v2523
        %4200 = vmatprep.subr.bf16.mxu0 %v2522
        %4201 = vmatpush1.bf16.msra.mxu0 %v2521
        %4202 = vmatprep.subr.bf16.mxu0 %v2520
        %4203 = vmatpush1.bf16.msra.mxu0 %v2519
        %4204 = vmatprep.subr.bf16.mxu0 %v2518
        %4205 = vmatpush1.bf16.msra.mxu0 %v2517
        %4206 = vmatprep.subr.bf16.mxu0 %v2516
        %4207 = vmatpush1.bf16.msra.mxu0 %v2515
        %4208 = vmatprep.subr.bf16.mxu0 %v2546
        %4209 = vmatpush2.bf16.msra.mxu0 %v2545
        %4210 = vmatprep.subr.bf16.mxu0 %v2544
        %4211 = vmatpush2.bf16.msra.mxu0 %v2543
        %4212 = vmatprep.subr.bf16.mxu0 %v2542
        %4213 = vmatpush2.bf16.msra.mxu0 %v2541
        %4214 = vmatprep.subr.bf16.mxu0 %v2540
        %4215 = vmatpush2.bf16.msra.mxu0 %v2539
        %4216 = vmatprep.subr.bf16.mxu0 %v2538
        %4217 = vmatpush2.bf16.msra.mxu0 %v2537
        %4218 = vmatprep.subr.bf16.mxu0 %v2536
        %4219 = vmatpush2.bf16.msra.mxu0 %v2535
        %4220 = vmatprep.subr.bf16.mxu0 %v2534
        %4221 = vmatpush2.bf16.msra.mxu0 %v2533
        %4222 = vmatprep.subr.bf16.mxu0 %v2532
        %4223 = vmatpush2.bf16.msra.mxu0 %v2531
        %4224 = vmatprep.mubr.bf16.mxu0 %v3167
        %4225 = vmatmul.mubr.bf16.gmra.mxu0 %v3165
        %v4226 = vpop.f32.mrf.mxu0
        %v4227 = vadd.f32 %v4186, %v4226
        %v4228 = vpop.f32.mrf.mxu0
        %v4229 = vadd.f32 %v4188, %v4228
        %v4230 = vpop.f32.mrf.mxu0
        %v4231 = vpop.f32.mrf.mxu0
        %4232 = vdwg.mxu0
        %4233 = vmatprep.subr.bf16.mxu0 %v2562
        %4234 = vmatpush1.bf16.msra.mxu0 %v2561
        %4235 = vmatprep.subr.bf16.mxu0 %v2560
        %4236 = vmatpush1.bf16.msra.mxu0 %v2559
        %4237 = vmatprep.subr.bf16.mxu0 %v2558
        %4238 = vmatpush1.bf16.msra.mxu0 %v2557
        %4239 = vmatprep.subr.bf16.mxu0 %v2556
        %4240 = vmatpush1.bf16.msra.mxu0 %v2555
        %4241 = vmatprep.subr.bf16.mxu0 %v2554
        %4242 = vmatpush1.bf16.msra.mxu0 %v2553
        %4243 = vmatprep.subr.bf16.mxu0 %v2552
        %4244 = vmatpush1.bf16.msra.mxu0 %v2551
        %4245 = vmatprep.subr.bf16.mxu0 %v2550
        %4246 = vmatpush1.bf16.msra.mxu0 %v2549
        %4247 = vmatprep.subr.bf16.mxu0 %v2548
        %4248 = vmatpush1.bf16.msra.mxu0 %v2547
        %4249 = vmatprep.subr.bf16.mxu0 %v2578
        %4250 = vmatpush2.bf16.msra.mxu0 %v2577
        %4251 = vmatprep.subr.bf16.mxu0 %v2576
        %4252 = vmatpush2.bf16.msra.mxu0 %v2575
        %4253 = vmatprep.subr.bf16.mxu0 %v2574
        %4254 = vmatpush2.bf16.msra.mxu0 %v2573
        %4255 = vmatprep.subr.bf16.mxu0 %v2572
        %4256 = vmatpush2.bf16.msra.mxu0 %v2571
        %4257 = vmatprep.subr.bf16.mxu0 %v2570
        %4258 = vmatpush2.bf16.msra.mxu0 %v2569
        %4259 = vmatprep.subr.bf16.mxu0 %v2568
        %4260 = vmatpush2.bf16.msra.mxu0 %v2567
        %4261 = vmatprep.subr.bf16.mxu0 %v2566
        %4262 = vmatpush2.bf16.msra.mxu0 %v2565
        %4263 = vmatprep.subr.bf16.mxu0 %v2564
        %4264 = vmatpush2.bf16.msra.mxu0 %v2563
        %4265 = vmatprep.mubr.bf16.mxu0 %v3164
        %4266 = vmatmul.mubr.bf16.gmra.mxu0 %v3150
        %v4267 = vpop.f32.mrf.mxu0
        %v4268 = vadd.f32 %v4227, %v4267
        %v4269 = vpop.f32.mrf.mxu0
        %v4270 = vadd.f32 %v4229, %v4269
        %v4271 = vpop.f32.mrf.mxu0
        %v4272 = vpop.f32.mrf.mxu0
        %4273 = vdwg.mxu0
        %4274 = vmatprep.subr.bf16.mxu0 %v2594
        %4275 = vmatpush1.bf16.msra.mxu0 %v2593
        %4276 = vmatprep.subr.bf16.mxu0 %v2592
        %4277 = vmatpush1.bf16.msra.mxu0 %v2591
        %4278 = vmatprep.subr.bf16.mxu0 %v2590
        %4279 = vmatpush1.bf16.msra.mxu0 %v2589
        %4280 = vmatprep.subr.bf16.mxu0 %v2588
        %4281 = vmatpush1.bf16.msra.mxu0 %v2587
        %4282 = vmatprep.subr.bf16.mxu0 %v2586
        %4283 = vmatpush1.bf16.msra.mxu0 %v2585
        %4284 = vmatprep.subr.bf16.mxu0 %v2584
        %4285 = vmatpush1.bf16.msra.mxu0 %v2583
        %4286 = vmatprep.subr.bf16.mxu0 %v2582
        %4287 = vmatpush1.bf16.msra.mxu0 %v2581
        %4288 = vmatprep.subr.bf16.mxu0 %v2580
        %4289 = vmatpush1.bf16.msra.mxu0 %v2579
        %4290 = vmatprep.subr.bf16.mxu0 %v2610
        %4291 = vmatpush2.bf16.msra.mxu0 %v2609
        %4292 = vmatprep.subr.bf16.mxu0 %v2608
        %4293 = vmatpush2.bf16.msra.mxu0 %v2607
        %4294 = vmatprep.subr.bf16.mxu0 %v2606
        %4295 = vmatpush2.bf16.msra.mxu0 %v2605
        %4296 = vmatprep.subr.bf16.mxu0 %v2604
        %4297 = vmatpush2.bf16.msra.mxu0 %v2603
        %4298 = vmatprep.subr.bf16.mxu0 %v2602
        %4299 = vmatpush2.bf16.msra.mxu0 %v2601
        %4300 = vmatprep.subr.bf16.mxu0 %v2600
        %4301 = vmatpush2.bf16.msra.mxu0 %v2599
        %4302 = vmatprep.subr.bf16.mxu0 %v2598
        %4303 = vmatpush2.bf16.msra.mxu0 %v2597
        %4304 = vmatprep.subr.bf16.mxu0 %v2596
        %4305 = vmatpush2.bf16.msra.mxu0 %v2595
        %4306 = vmatprep.mubr.bf16.mxu0 %v3168
        %4307 = vmatmul.mubr.bf16.gmra.mxu0 %v3166
        %v4308 = vpop.f32.mrf.mxu0
        %v4309 = vadd.f32 %v4268, %v4308
        %v4310 = vpop.f32.mrf.mxu0
        %v4311 = vadd.f32 %v4270, %v4310
        %v4312 = vpop.f32.mrf.mxu0
        %v4313 = vpop.f32.mrf.mxu0
        %4314 = vdwg.mxu0
        %4315 = vmatprep.subr.bf16.mxu0 %v2626
        %4316 = vmatpush1.bf16.msra.mxu0 %v2625
        %4317 = vmatprep.subr.bf16.mxu0 %v2624
        %4318 = vmatpush1.bf16.msra.mxu0 %v2623
        %4319 = vmatprep.subr.bf16.mxu0 %v2622
        %4320 = vmatpush1.bf16.msra.mxu0 %v2621
        %4321 = vmatprep.subr.bf16.mxu0 %v2620
        %4322 = vmatpush1.bf16.msra.mxu0 %v2619
        %4323 = vmatprep.subr.bf16.mxu0 %v2618
        %4324 = vmatpush1.bf16.msra.mxu0 %v2617
        %4325 = vmatprep.subr.bf16.mxu0 %v2616
        %4326 = vmatpush1.bf16.msra.mxu0 %v2615
        %4327 = vmatprep.subr.bf16.mxu0 %v2614
        %4328 = vmatpush1.bf16.msra.mxu0 %v2613
        %4329 = vmatprep.subr.bf16.mxu0 %v2612
        %4330 = vmatpush1.bf16.msra.mxu0 %v2611
        %4331 = vmatprep.subr.bf16.mxu0 %v2642
        %4332 = vmatpush2.bf16.msra.mxu0 %v2641
        %4333 = vmatprep.subr.bf16.mxu0 %v2640
        %4334 = vmatpush2.bf16.msra.mxu0 %v2639
        %4335 = vmatprep.subr.bf16.mxu0 %v2638
        %4336 = vmatpush2.bf16.msra.mxu0 %v2637
        %4337 = vmatprep.subr.bf16.mxu0 %v2636
        %4338 = vmatpush2.bf16.msra.mxu0 %v2635
        %4339 = vmatprep.subr.bf16.mxu0 %v2634
        %4340 = vmatpush2.bf16.msra.mxu0 %v2633
        %4341 = vmatprep.subr.bf16.mxu0 %v2632
        %4342 = vmatpush2.bf16.msra.mxu0 %v2631
        %4343 = vmatprep.subr.bf16.mxu0 %v2630
        %4344 = vmatpush2.bf16.msra.mxu0 %v2629
        %4345 = vmatprep.subr.bf16.mxu0 %v2628
        %4346 = vmatpush2.bf16.msra.mxu0 %v2627
        %4347 = vmatprep.mubr.bf16.mxu0 %v3206
        %4348 = vmatmul.mubr.bf16.gmra.mxu0 %v3192
        %v4349 = vpop.f32.mrf.mxu0
        %v4350 = vadd.f32 %v4309, %v4349
        %v4351 = vpop.f32.mrf.mxu0
        %v4352 = vadd.f32 %v4311, %v4351
        %v4353 = vpop.f32.mrf.mxu0
        %v4354 = vpop.f32.mrf.mxu0
        %4355 = vdwg.mxu0
        %4356 = vmatprep.subr.bf16.mxu0 %v2658
        %4357 = vmatpush1.bf16.msra.mxu0 %v2657
        %4358 = vmatprep.subr.bf16.mxu0 %v2656
        %4359 = vmatpush1.bf16.msra.mxu0 %v2655
        %4360 = vmatprep.subr.bf16.mxu0 %v2654
        %4361 = vmatpush1.bf16.msra.mxu0 %v2653
        %4362 = vmatprep.subr.bf16.mxu0 %v2652
        %4363 = vmatpush1.bf16.msra.mxu0 %v2651
        %4364 = vmatprep.subr.bf16.mxu0 %v2650
        %4365 = vmatpush1.bf16.msra.mxu0 %v2649
        %4366 = vmatprep.subr.bf16.mxu0 %v2648
        %4367 = vmatpush1.bf16.msra.mxu0 %v2647
        %4368 = vmatprep.subr.bf16.mxu0 %v2646
        %4369 = vmatpush1.bf16.msra.mxu0 %v2645
        %4370 = vmatprep.subr.bf16.mxu0 %v2644
        %4371 = vmatpush1.bf16.msra.mxu0 %v2643
        %4372 = vmatprep.subr.bf16.mxu0 %v2674
        %4373 = vmatpush2.bf16.msra.mxu0 %v2673
        %4374 = vmatprep.subr.bf16.mxu0 %v2672
        %4375 = vmatpush2.bf16.msra.mxu0 %v2671
        %4376 = vmatprep.subr.bf16.mxu0 %v2670
        %4377 = vmatpush2.bf16.msra.mxu0 %v2669
        %4378 = vmatprep.subr.bf16.mxu0 %v2668
        %4379 = vmatpush2.bf16.msra.mxu0 %v2667
        %4380 = vmatprep.subr.bf16.mxu0 %v2666
        %4381 = vmatpush2.bf16.msra.mxu0 %v2665
        %4382 = vmatprep.subr.bf16.mxu0 %v2664
        %4383 = vmatpush2.bf16.msra.mxu0 %v2663
        %4384 = vmatprep.subr.bf16.mxu0 %v2662
        %4385 = vmatpush2.bf16.msra.mxu0 %v2661
        %4386 = vmatprep.subr.bf16.mxu0 %v2660
        %4387 = vmatpush2.bf16.msra.mxu0 %v2659
        %4388 = vmatprep.mubr.bf16.mxu0 %v3216
        %4389 = vmatmul.mubr.bf16.gmra.mxu0 %v3214
        %v4390 = vpop.f32.mrf.mxu0
        %v4391 = vadd.f32 %v4350, %v4390
        %v4392 = vpop.f32.mrf.mxu0
        %v4393 = vadd.f32 %v4352, %v4392
        %v4394 = vpop.f32.mrf.mxu0
        %v4395 = vpop.f32.mrf.mxu0
        %4396 = vdwg.mxu0
        %4397 = vmatprep.subr.bf16.mxu0 %v2690
        %4398 = vmatpush1.bf16.msra.mxu0 %v2689
        %4399 = vmatprep.subr.bf16.mxu0 %v2688
        %4400 = vmatpush1.bf16.msra.mxu0 %v2687
        %4401 = vmatprep.subr.bf16.mxu0 %v2686
        %4402 = vmatpush1.bf16.msra.mxu0 %v2685
        %4403 = vmatprep.subr.bf16.mxu0 %v2684
        %4404 = vmatpush1.bf16.msra.mxu0 %v2683
        %4405 = vmatprep.subr.bf16.mxu0 %v2682
        %4406 = vmatpush1.bf16.msra.mxu0 %v2681
        %4407 = vmatprep.subr.bf16.mxu0 %v2680
        %4408 = vmatpush1.bf16.msra.mxu0 %v2679
        %4409 = vmatprep.subr.bf16.mxu0 %v2678
        %4410 = vmatpush1.bf16.msra.mxu0 %v2677
        %4411 = vmatprep.subr.bf16.mxu0 %v2676
        %4412 = vmatpush1.bf16.msra.mxu0 %v2675
        %4413 = vmatprep.subr.bf16.mxu0 %v2706
        %4414 = vmatpush2.bf16.msra.mxu0 %v2705
        %4415 = vmatprep.subr.bf16.mxu0 %v2704
        %4416 = vmatpush2.bf16.msra.mxu0 %v2703
        %4417 = vmatprep.subr.bf16.mxu0 %v2702
        %4418 = vmatpush2.bf16.msra.mxu0 %v2701
        %4419 = vmatprep.subr.bf16.mxu0 %v2700
        %4420 = vmatpush2.bf16.msra.mxu0 %v2699
        %4421 = vmatprep.subr.bf16.mxu0 %v2698
        %4422 = vmatpush2.bf16.msra.mxu0 %v2697
        %4423 = vmatprep.subr.bf16.mxu0 %v2696
        %4424 = vmatpush2.bf16.msra.mxu0 %v2695
        %4425 = vmatprep.subr.bf16.mxu0 %v2694
        %4426 = vmatpush2.bf16.msra.mxu0 %v2693
        %4427 = vmatprep.subr.bf16.mxu0 %v2692
        %4428 = vmatpush2.bf16.msra.mxu0 %v2691
        %4429 = vmatprep.mubr.bf16.mxu0 %v3213
        %4430 = vmatmul.mubr.bf16.gmra.mxu0 %v3199
        %v4431 = vpop.f32.mrf.mxu0
        %v4432 = vadd.f32 %v4391, %v4431
        %v4433 = vpop.f32.mrf.mxu0
        %v4434 = vadd.f32 %v4393, %v4433
        %v4435 = vpop.f32.mrf.mxu0
        %v4436 = vpop.f32.mrf.mxu0
        %4437 = vdwg.mxu0
        %4438 = vmatprep.subr.bf16.mxu0 %v2722
        %4439 = vmatpush1.bf16.msra.mxu0 %v2721
        %4440 = vmatprep.subr.bf16.mxu0 %v2720
        %4441 = vmatpush1.bf16.msra.mxu0 %v2719
        %4442 = vmatprep.subr.bf16.mxu0 %v2718
        %4443 = vmatpush1.bf16.msra.mxu0 %v2717
        %4444 = vmatprep.subr.bf16.mxu0 %v2716
        %4445 = vmatpush1.bf16.msra.mxu0 %v2715
        %4446 = vmatprep.subr.bf16.mxu0 %v2714
        %4447 = vmatpush1.bf16.msra.mxu0 %v2713
        %4448 = vmatprep.subr.bf16.mxu0 %v2712
        %4449 = vmatpush1.bf16.msra.mxu0 %v2711
        %4450 = vmatprep.subr.bf16.mxu0 %v2710
        %4451 = vmatpush1.bf16.msra.mxu0 %v2709
        %4452 = vmatprep.subr.bf16.mxu0 %v2708
        %4453 = vmatpush1.bf16.msra.mxu0 %v2707
        %4454 = vmatprep.subr.bf16.mxu0 %v2738
        %4455 = vmatpush2.bf16.msra.mxu0 %v2737
        %4456 = vmatprep.subr.bf16.mxu0 %v2736
        %4457 = vmatpush2.bf16.msra.mxu0 %v2735
        %4458 = vmatprep.subr.bf16.mxu0 %v2734
        %4459 = vmatpush2.bf16.msra.mxu0 %v2733
        %4460 = vmatprep.subr.bf16.mxu0 %v2732
        %4461 = vmatpush2.bf16.msra.mxu0 %v2731
        %4462 = vmatprep.subr.bf16.mxu0 %v2730
        %4463 = vmatpush2.bf16.msra.mxu0 %v2729
        %4464 = vmatprep.subr.bf16.mxu0 %v2728
        %4465 = vmatpush2.bf16.msra.mxu0 %v2727
        %4466 = vmatprep.subr.bf16.mxu0 %v2726
        %4467 = vmatpush2.bf16.msra.mxu0 %v2725
        %4468 = vmatprep.subr.bf16.mxu0 %v2724
        %4469 = vmatpush2.bf16.msra.mxu0 %v2723
        %4470 = vmatprep.mubr.bf16.mxu0 %v3217
        %4471 = vmatmul.mubr.bf16.gmra.mxu0 %v3215
        %v4472 = vpop.f32.mrf.mxu0
        %v4473 = vadd.f32 %v4432, %v4472
        %v4474 = vpop.f32.mrf.mxu0
        %v4475 = vadd.f32 %v4434, %v4474
        %v4476 = vpop.f32.mrf.mxu0
        %v4477 = vpop.f32.mrf.mxu0
        %4478 = vdwg.mxu0
        %4479 = vmatprep.subr.bf16.mxu0 %v2754
        %4480 = vmatpush1.bf16.msra.mxu0 %v2753
        %4481 = vmatprep.subr.bf16.mxu0 %v2752
        %4482 = vmatpush1.bf16.msra.mxu0 %v2751
        %4483 = vmatprep.subr.bf16.mxu0 %v2750
        %4484 = vmatpush1.bf16.msra.mxu0 %v2749
        %4485 = vmatprep.subr.bf16.mxu0 %v2748
        %4486 = vmatpush1.bf16.msra.mxu0 %v2747
        %4487 = vmatprep.subr.bf16.mxu0 %v2746
        %4488 = vmatpush1.bf16.msra.mxu0 %v2745
        %4489 = vmatprep.subr.bf16.mxu0 %v2744
        %4490 = vmatpush1.bf16.msra.mxu0 %v2743
        %4491 = vmatprep.subr.bf16.mxu0 %v2742
        %4492 = vmatpush1.bf16.msra.mxu0 %v2741
        %4493 = vmatprep.subr.bf16.mxu0 %v2740
        %4494 = vmatpush1.bf16.msra.mxu0 %v2739
        %4495 = vmatprep.subr.bf16.mxu0 %v2770
        %4496 = vmatpush2.bf16.msra.mxu0 %v2769
        %4497 = vmatprep.subr.bf16.mxu0 %v2768
        %4498 = vmatpush2.bf16.msra.mxu0 %v2767
        %4499 = vmatprep.subr.bf16.mxu0 %v2766
        %4500 = vmatpush2.bf16.msra.mxu0 %v2765
        %4501 = vmatprep.subr.bf16.mxu0 %v2764
        %4502 = vmatpush2.bf16.msra.mxu0 %v2763
        %4503 = vmatprep.subr.bf16.mxu0 %v2762
        %4504 = vmatpush2.bf16.msra.mxu0 %v2761
        %4505 = vmatprep.subr.bf16.mxu0 %v2760
        %4506 = vmatpush2.bf16.msra.mxu0 %v2759
        %4507 = vmatprep.subr.bf16.mxu0 %v2758
        %4508 = vmatpush2.bf16.msra.mxu0 %v2757
        %4509 = vmatprep.subr.bf16.mxu0 %v2756
        %4510 = vmatpush2.bf16.msra.mxu0 %v2755
        %4511 = vmatprep.mubr.bf16.mxu0 %v3255
        %4512 = vmatmul.mubr.bf16.gmra.mxu0 %v3241
        %v4513 = vpop.f32.mrf.mxu0
        %v4514 = vadd.f32 %v4473, %v4513
        %v4515 = vpop.f32.mrf.mxu0
        %v4516 = vadd.f32 %v4475, %v4515
        %v4517 = vpop.f32.mrf.mxu0
        %v4518 = vpop.f32.mrf.mxu0
        %4519 = vdwg.mxu0
        %4520 = vmatprep.subr.bf16.mxu0 %v2786
        %4521 = vmatpush1.bf16.msra.mxu0 %v2785
        %4522 = vmatprep.subr.bf16.mxu0 %v2784
        %4523 = vmatpush1.bf16.msra.mxu0 %v2783
        %4524 = vmatprep.subr.bf16.mxu0 %v2782
        %4525 = vmatpush1.bf16.msra.mxu0 %v2781
        %4526 = vmatprep.subr.bf16.mxu0 %v2780
        %4527 = vmatpush1.bf16.msra.mxu0 %v2779
        %4528 = vmatprep.subr.bf16.mxu0 %v2778
        %4529 = vmatpush1.bf16.msra.mxu0 %v2777
        %4530 = vmatprep.subr.bf16.mxu0 %v2776
        %4531 = vmatpush1.bf16.msra.mxu0 %v2775
        %4532 = vmatprep.subr.bf16.mxu0 %v2774
        %4533 = vmatpush1.bf16.msra.mxu0 %v2773
        %4534 = vmatprep.subr.bf16.mxu0 %v2772
        %4535 = vmatpush1.bf16.msra.mxu0 %v2771
        %4536 = vmatprep.subr.bf16.mxu0 %v2802
        %4537 = vmatpush2.bf16.msra.mxu0 %v2801
        %4538 = vmatprep.subr.bf16.mxu0 %v2800
        %4539 = vmatpush2.bf16.msra.mxu0 %v2799
        %4540 = vmatprep.subr.bf16.mxu0 %v2798
        %4541 = vmatpush2.bf16.msra.mxu0 %v2797
        %4542 = vmatprep.subr.bf16.mxu0 %v2796
        %4543 = vmatpush2.bf16.msra.mxu0 %v2795
        %4544 = vmatprep.subr.bf16.mxu0 %v2794
        %4545 = vmatpush2.bf16.msra.mxu0 %v2793
        %4546 = vmatprep.subr.bf16.mxu0 %v2792
        %4547 = vmatpush2.bf16.msra.mxu0 %v2791
        %4548 = vmatprep.subr.bf16.mxu0 %v2790
        %4549 = vmatpush2.bf16.msra.mxu0 %v2789
        %4550 = vmatprep.subr.bf16.mxu0 %v2788
        %4551 = vmatpush2.bf16.msra.mxu0 %v2787
        %4552 = vmatprep.mubr.bf16.mxu0 %v3265
        %4553 = vmatmul.mubr.bf16.gmra.mxu0 %v3263
        %v4554 = vpop.f32.mrf.mxu0
        %v4555 = vadd.f32 %v4514, %v4554
        %v4556 = vpop.f32.mrf.mxu0
        %v4557 = vadd.f32 %v4516, %v4556
        %v4558 = vpop.f32.mrf.mxu0
        %v4559 = vpop.f32.mrf.mxu0
        %4560 = vdwg.mxu0
        %4561 = vmatprep.subr.bf16.mxu0 %v2818
        %4562 = vmatpush1.bf16.msra.mxu0 %v2817
        %4563 = vmatprep.subr.bf16.mxu0 %v2816
        %4564 = vmatpush1.bf16.msra.mxu0 %v2815
        %4565 = vmatprep.subr.bf16.mxu0 %v2814
        %4566 = vmatpush1.bf16.msra.mxu0 %v2813
        %4567 = vmatprep.subr.bf16.mxu0 %v2812
        %4568 = vmatpush1.bf16.msra.mxu0 %v2811
        %4569 = vmatprep.subr.bf16.mxu0 %v2810
        %4570 = vmatpush1.bf16.msra.mxu0 %v2809
        %4571 = vmatprep.subr.bf16.mxu0 %v2808
        %4572 = vmatpush1.bf16.msra.mxu0 %v2807
        %4573 = vmatprep.subr.bf16.mxu0 %v2806
        %4574 = vmatpush1.bf16.msra.mxu0 %v2805
        %4575 = vmatprep.subr.bf16.mxu0 %v2804
        %4576 = vmatpush1.bf16.msra.mxu0 %v2803
        %4577 = vmatprep.subr.bf16.mxu0 %v2834
        %4578 = vmatpush2.bf16.msra.mxu0 %v2833
        %4579 = vmatprep.subr.bf16.mxu0 %v2832
        %4580 = vmatpush2.bf16.msra.mxu0 %v2831
        %4581 = vmatprep.subr.bf16.mxu0 %v2830
        %4582 = vmatpush2.bf16.msra.mxu0 %v2829
        %4583 = vmatprep.subr.bf16.mxu0 %v2828
        %4584 = vmatpush2.bf16.msra.mxu0 %v2827
        %4585 = vmatprep.subr.bf16.mxu0 %v2826
        %4586 = vmatpush2.bf16.msra.mxu0 %v2825
        %4587 = vmatprep.subr.bf16.mxu0 %v2824
        %4588 = vmatpush2.bf16.msra.mxu0 %v2823
        %4589 = vmatprep.subr.bf16.mxu0 %v2822
        %4590 = vmatpush2.bf16.msra.mxu0 %v2821
        %4591 = vmatprep.subr.bf16.mxu0 %v2820
        %4592 = vmatpush2.bf16.msra.mxu0 %v2819
        %4593 = vmatprep.mubr.bf16.mxu0 %v3262
        %4594 = vmatmul.mubr.bf16.gmra.mxu0 %v3248
        %v4595 = vpop.f32.mrf.mxu0
        %v4596 = vadd.f32 %v4555, %v4595
        %v4597 = vpop.f32.mrf.mxu0
        %v4598 = vadd.f32 %v4557, %v4597
        %v4599 = vpop.f32.mrf.mxu0
        %v4600 = vpop.f32.mrf.mxu0
        %4601 = vdwg.mxu0
        %4602 = vmatprep.subr.bf16.mxu0 %v2850
        %4603 = vmatpush1.bf16.msra.mxu0 %v2849
        %4604 = vmatprep.subr.bf16.mxu0 %v2848
        %4605 = vmatpush1.bf16.msra.mxu0 %v2847
        %4606 = vmatprep.subr.bf16.mxu0 %v2846
        %4607 = vmatpush1.bf16.msra.mxu0 %v2845
        %4608 = vmatprep.subr.bf16.mxu0 %v2844
        %4609 = vmatpush1.bf16.msra.mxu0 %v2843
        %4610 = vmatprep.subr.bf16.mxu0 %v2842
        %4611 = vmatpush1.bf16.msra.mxu0 %v2841
        %4612 = vmatprep.subr.bf16.mxu0 %v2840
        %4613 = vmatpush1.bf16.msra.mxu0 %v2839
        %4614 = vmatprep.subr.bf16.mxu0 %v2838
        %4615 = vmatpush1.bf16.msra.mxu0 %v2837
        %4616 = vmatprep.subr.bf16.mxu0 %v2836
        %4617 = vmatpush1.bf16.msra.mxu0 %v2835
        %4618 = vmatprep.subr.bf16.mxu0 %v2866
        %4619 = vmatpush2.bf16.msra.mxu0 %v2865
        %4620 = vmatprep.subr.bf16.mxu0 %v2864
        %4621 = vmatpush2.bf16.msra.mxu0 %v2863
        %4622 = vmatprep.subr.bf16.mxu0 %v2862
        %4623 = vmatpush2.bf16.msra.mxu0 %v2861
        %4624 = vmatprep.subr.bf16.mxu0 %v2860
        %4625 = vmatpush2.bf16.msra.mxu0 %v2859
        %4626 = vmatprep.subr.bf16.mxu0 %v2858
        %4627 = vmatpush2.bf16.msra.mxu0 %v2857
        %4628 = vmatprep.subr.bf16.mxu0 %v2856
        %4629 = vmatpush2.bf16.msra.mxu0 %v2855
        %4630 = vmatprep.subr.bf16.mxu0 %v2854
        %4631 = vmatpush2.bf16.msra.mxu0 %v2853
        %4632 = vmatprep.subr.bf16.mxu0 %v2852
        %4633 = vmatpush2.bf16.msra.mxu0 %v2851
        %4634 = vmatprep.mubr.bf16.mxu0 %v3266
        %4635 = vmatmul.mubr.bf16.gmra.mxu0 %v3264
        %v4636 = vpop.f32.mrf.mxu0
        %v4637 = vadd.f32 %v4596, %v4636
        %v4638 = vpop.f32.mrf.mxu0
        %v4639 = vadd.f32 %v4598, %v4638
        %v4640 = vpop.f32.mrf.mxu0
        %v4641 = vpop.f32.mrf.mxu0
        %4642 = vdwg.mxu0
        %v4645 = vcombine.low %v4637, %v4639
        %v4647 = vunpack.c.l.s4 1983009808
        %v4648 = vunpack.c.0.s8 %v4647
        %v4649 = vlaneseq
        %v4650 = vshrl.u32 %v4649, 7
        %v4651 = vsub.s32 %v4648, %v4650
        %v4652 = vrot.slane %v4645, %v4651
        %v4654 = vadd.f32 %v1322, %v4652
        %4655 = vst [vmem:[#allocation2] sm:$0xf] %v4654
        %p4656 = scmp.eq.s32.totalorder %s20, 1
        // Predicated region
        $region64: #{encoder2d_gray_forward.3} parent=54 // pred_check
          %p4657 = pneg %p4656
        $region65: #{encoder2d_gray_forward.3} parent=54 // pred_check_branch
          %4659 = sbr.rel (%p4657) target = $region67
        $region66: #{encoder2d_gray_forward.3} parent=54 // pred_region
          %v4660 = vld [vmem:[#allocation2] sm:$0xf]
          %v4661 = vld [vmem:[%s1304] sm:$0x3]
          %v4663 = vlaneseq
          %v4664 = vshrl.u32 %v4663, 7
          %v4665 = vsub.s32 0, %v4664
          %v4666 = vrot.slane %v4661, %v4665
          %v4667 = vlaneseq
          %v4668 = vshrl.u32 %v4667, 7
          %v4669 = vsub.s32 1, %v4668
          %v4670 = vrot.slane %v4661, %v4669
          %v4671 = vcombine.low %v4666, %v4670
          %v4673 = vunpack.c.l.s4 1983009808
          %v4674 = vunpack.c.0.s8 %v4673
          %v4675 = vlaneseq
          %v4676 = vshrl.u32 %v4675, 7
          %v4677 = vsub.s32 %v4674, %v4676
          %v4678 = vrot.slane %v4671, %v4677
          %v4680 = vmul.f32 %v4660, %v4678
          %v4681 = vld [vmem:[%s1309] sm:$0x3]
          %v4683 = vlaneseq
          %v4684 = vshrl.u32 %v4683, 7
          %v4685 = vsub.s32 0, %v4684
          %v4686 = vrot.slane %v4681, %v4685
          %v4687 = vlaneseq
          %v4688 = vshrl.u32 %v4687, 7
          %v4689 = vsub.s32 1, %v4688
          %v4690 = vrot.slane %v4681, %v4689
          %v4691 = vcombine.low %v4686, %v4690
          %v4693 = vunpack.c.l.s4 1983009808
          %v4694 = vunpack.c.0.s8 %v4693
          %v4695 = vlaneseq
          %v4696 = vshrl.u32 %v4695, 7
          %v4697 = vsub.s32 %v4694, %v4696
          %v4698 = vrot.slane %v4691, %v4697
          %v4700 = vadd.f32 %v4680, %v4698
          %v4701 = vmax.f32 %v4700, 0.0
          %4702 = vst [vmem:[%s1315] sm:$0xf] %v4701
        $region67: #{encoder2d_gray_forward.3} parent=54 // pred_fallthru
          _
        %s4703 = smul.u32 2, %s19
        %p4704 = scmp.lt.s32.totalorder %s4703, 3
        %s4705 = scalar_select %p4704, %s4703, 3
        %s4706 = smul.addr %s4705, 2
        %s4707 = scalar_lea.vmem %s4, %s4706
        // Predicated region
        $region68: #{encoder2d_gray_forward.3} parent=54 // pred_check
          %p4708 = pneg %p151
        $region69: #{encoder2d_gray_forward.3} parent=54 // pred_check_branch
          %4710 = sbr.rel (%p4708) target = $region71
        $region70: #{encoder2d_gray_forward.3} parent=54 // pred_region
          %s4711 = smul.u32 2, %s19
        $region71: #{encoder2d_gray_forward.3} parent=54 // pred_fallthru
          _
      $region55: #{encoder2d_gray_forward.3} parent=5 // pred_fallthru
        _
      %p4712 = scmp.le.s32.totalorder 2, %s10
      // Predicated region
      $region72: #{encoder2d_gray_forward.3} parent=5 // pred_check
        %p4713 = pneg %p4712
      $region73: #{encoder2d_gray_forward.3} parent=5 // pred_check_branch
        %4715 = sbr.rel (%p4713) target = $region75
      $region74: #{encoder2d_gray_forward.3} parent=5 // pred_region
        %s4716 = ssub.s32 %s10, 2
        // Predicated region
        $region76: #{encoder2d_gray_forward.3} parent=74 // pred_check
          %p4717 = pneg %p157
        $region77: #{encoder2d_gray_forward.3} parent=74 // pred_check_branch
          %4719 = sbr.rel (%p4717) target = $region79
        $region78: #{encoder2d_gray_forward.3} parent=74 // pred_region
          %s4720 = smul.u32 2, %s21
          %p4721 = scmp.lt.s32.totalorder %s4720, 3
          %s4722 = scalar_select %p4721, %s4720, 3
          %s4723 = smul.addr %s4722, 2
          %s4724 = scalar_lea.vmem %s4, %s4723
        $region79: #{encoder2d_gray_forward.3} parent=74 // pred_fallthru
          _
      $region75: #{encoder2d_gray_forward.3} parent=5 // pred_fallthru
        _
    $region6: #{encoder2d_gray_forward.3} parent=1 // loop_footer
      %s14 = sadd.s32 1, %s10
    $region7: #{encoder2d_gray_forward.3} parent=1 // loop_footer_branch
      %9 = sbr.rel target = $region3
    $region8: #{encoder2d_gray_forward.3} parent=1 // loop_exit
      _

</llo_original>
